<compile_context>
chip_gen: v7x
topology: tpu7x:2x2x1
jax: 0.10.0
libtpu: 0.0.40
codegen_flags: <defaults>
</compile_context>

<pallas_src>
from functools import partial

import jax
import jax.numpy as jnp
from jax.experimental import pallas as pl
from jax.experimental.pallas import tpu as pltpu

_BN_EPS = 1e-5


def _round_up(x, m):
    return ((x + m - 1) // m) * m


# ============================================================================
# Kernel A: fused conv1+pool+conv2+pool+conv3 (BN/bias folded, ReLU), grid=(B,)
# ============================================================================
def _cnn_kernel(xim_ref, w1_ref, s1_ref, w2_ref, s2_ref, w3_ref, s3_ref, o_ref,
                pad2_ref, pad3_ref, buf1_ref, buf2_ref, *, H, W, PW1, PW2, PW3):
    H2, W2 = H // 2, W // 2
    H3, W3 = H // 4, W // 4
    f32 = jnp.float32

    # ---- conv1 (+folded BN, +ReLU).  Input is a wrapper-built im2col in
    #      "wide-row" layout: rows = y*PW1 + x (x >= W columns are junk and are
    #      discarded by the pooling gather), channels = 9*Cin, tap-major.
    y1 = jnp.dot(xim_ref[0], w1_ref[...], preferred_element_type=f32)
    y1 = jnp.maximum(y1 + s1_ref[...], 0.0)                 # (H*PW1, 64)
    buf1_ref[...] = y1

    # ---- maxpool 2x2 + re-pad into conv2's zero-padded flattened scratch.
    half1 = PW1 // 2
    hm = jnp.maximum(buf1_ref[pl.ds(0, H * half1, stride=2), :],
                     buf1_ref[pl.ds(1, H * half1, stride=2), :])   # rows y*half1+m
    pad2_ref[...] = jnp.zeros(pad2_ref.shape, f32)
    for k in range(H2):                                     # vertical pairs (tile-aligned slices)
        vk = jnp.maximum(hm[(2 * k) * half1:(2 * k) * half1 + half1, :],
                         hm[(2 * k + 1) * half1:(2 * k + 1) * half1 + half1, :])
        base = (k + 1) * PW2 + 1
        pad2_ref[base:base + W2, :] = vk[:W2, :]

    # ---- conv2: in-VMEM im2col (9 contiguous shifted windows concatenated
    #      along channels -> single K=9*Cin matmul).
    im2 = jnp.concatenate(
        [pad2_ref[dy * PW2 + dx: dy * PW2 + dx + H2 * PW2, :].astype(jnp.bfloat16)
         for dy in range(3) for dx in range(3)], axis=-1)    # (H2*PW2, 576)
    y2 = jnp.dot(im2, w2_ref[...], preferred_element_type=f32)
    y2 = jnp.maximum(y2 + s2_ref[...], 0.0)                  # (H2*PW2, 128)
    buf2_ref[...] = y2

    half2 = PW2 // 2
    hm = jnp.maximum(buf2_ref[pl.ds(0, H2 * half2, stride=2), :],
                     buf2_ref[pl.ds(1, H2 * half2, stride=2), :])
    pad3_ref[...] = jnp.zeros(pad3_ref.shape, f32)
    for k in range(H3):
        vk = jnp.maximum(hm[(2 * k) * half2:(2 * k) * half2 + half2, :],
                         hm[(2 * k + 1) * half2:(2 * k + 1) * half2 + half2, :])
        base = (k + 1) * PW3 + 1
        pad3_ref[base:base + W3, :] = vk[:W3, :]

    # ---- conv3 (no pooling after).
    im3 = jnp.concatenate(
        [pad3_ref[dy * PW3 + dx: dy * PW3 + dx + H3 * PW3, :].astype(jnp.bfloat16)
         for dy in range(3) for dx in range(3)], axis=-1)    # (H3*PW3, 1152)
    y3 = jnp.dot(im3, w3_ref[...], preferred_element_type=f32)
    y3 = jnp.maximum(y3 + s3_ref[...], 0.0)                  # (H3*PW3, 256)

    # ---- compact to the clean NHWC-flattened feature map, emit bf16.
    for k in range(H3):
        o_ref[0, k * W3:(k + 1) * W3, :] = \
            y3[k * PW3:k * PW3 + W3, :].astype(o_ref.dtype)


def cnn_conv_features(x_nhwc, p):
    B, H, W, C = x_nhwc.shape
    assert H % 4 == 0 and W % 4 == 0
    PW1 = _round_up(W + 2, 16)
    PW2 = _round_up(W // 2 + 2, 16)
    PW3 = _round_up(W // 4 + 2, 8)
    H2, H3, W3 = H // 2, H // 4, W // 4

    # Layer-1 im2col is built by XLA on the tiny network input: zero-pad to
    # (H+3, PW1) rows, flatten, and concatenate the 9 shifted tap windows.
    xp = jnp.pad(x_nhwc, ((0, 0), (1, 2), (1, PW1 - W - 1), (0, 0)))
    xp = xp.reshape(B, (H + 3) * PW1, C)
    xim = jnp.concatenate(
        [xp[:, dy * PW1 + dx: dy * PW1 + dx + H * PW1, :]
         for dy in range(3) for dx in range(3)], axis=-1).astype(jnp.bfloat16)

    c1, c2, c3 = p["conv1"], p["conv2"], p["conv3"]
    co1, co2, co3 = c1["w"].shape[-1], c2["w"].shape[-1], c3["w"].shape[-1]
    const2 = lambda b: (0, 0)
    out = pl.pallas_call(
        partial(_cnn_kernel, H=H, W=W, PW1=PW1, PW2=PW2, PW3=PW3),
        out_shape=jax.ShapeDtypeStruct((B, H3 * W3, co3), jnp.bfloat16),
        grid_spec=pltpu.PrefetchScalarGridSpec(
            num_scalar_prefetch=0,
            grid=(B,),
            in_specs=[
                pl.BlockSpec((1, H * PW1, 9 * C), lambda b: (b, 0, 0)),
                pl.BlockSpec(c1["w"].shape, const2),
                pl.BlockSpec(c1["shift"].shape, const2),
                pl.BlockSpec(c2["w"].shape, const2),
                pl.BlockSpec(c2["shift"].shape, const2),
                pl.BlockSpec(c3["w"].shape, const2),
                pl.BlockSpec(c3["shift"].shape, const2),
            ],
            out_specs=pl.BlockSpec((1, H3 * W3, co3), lambda b: (b, 0, 0)),
            scratch_shapes=[
                pltpu.VMEM(((H2 + 2) * PW2 + 8, co1), jnp.float32),   # padded conv2 input
                pltpu.VMEM(((H3 + 2) * PW3 + 8, co2), jnp.float32),   # padded conv3 input
                pltpu.VMEM((H * PW1, co1), jnp.float32),              # conv1 out (pool staging)
                pltpu.VMEM((H2 * PW2, co2), jnp.float32),             # conv2 out (pool staging)
            ],
        ),
        compiler_params=pltpu.CompilerParams(dimension_semantics=("parallel",)),
    )(xim, c1["w"], c1["shift"], c2["w"], c2["shift"], c3["w"], c3["shift"])
    return out


# ============================================================================
# Kernel B: fc1 + ReLU + fc2 (Dropout = identity), one grid step, M = B.
# ============================================================================
def _fc_head_kernel(f_ref, w1_ref, b1_ref, w2_ref, b2_ref, o_ref):
    h = jnp.dot(f_ref[...], w1_ref[...], preferred_element_type=jnp.float32)
    h = jnp.maximum(h + b1_ref[...], 0.0)
    o_ref[...] = jnp.dot(h.astype(jnp.bfloat16), w2_ref[...],
                         preferred_element_type=jnp.float32) + b2_ref[...]


def fc_head(feat_flat, hp):
    B, K = feat_flat.shape
    N = hp["fc2_w"].shape[-1]
    const2 = lambda i: (0, 0)
    return pl.pallas_call(
        _fc_head_kernel,
        out_shape=jax.ShapeDtypeStruct((B, N), jnp.float32),
        grid_spec=pltpu.PrefetchScalarGridSpec(
            num_scalar_prefetch=0,
            grid=(1,),
            in_specs=[
                pl.BlockSpec((B, K), const2),
                pl.BlockSpec(hp["fc1_w"].shape, const2),
                pl.BlockSpec(hp["fc1_b"].shape, const2),
                pl.BlockSpec(hp["fc2_w"].shape, const2),
                pl.BlockSpec(hp["fc2_b"].shape, const2),
            ],
            out_specs=pl.BlockSpec((B, N), const2),
        ),
        compiler_params=pltpu.CompilerParams(dimension_semantics=("arbitrary",)),
    )(feat_flat, hp["fc1_w"], hp["fc1_b"], hp["fc2_w"], hp["fc2_b"])


# ============================================================================
# Kernel C_train: T independent denoisers, grid=(T,) "parallel".
# ============================================================================
def _denoise_train_kernel(xf_ref, w1x_ref, w1z_ref, sh1_ref, w2_ref, b2_ref,
                          z_ref, o_ref):
    xf = xf_ref[...].astype(jnp.bfloat16)
    h = jnp.dot(xf, w1x_ref[0], preferred_element_type=jnp.float32)
    h = h + jnp.dot(z_ref[0].astype(jnp.bfloat16), w1z_ref[0],
                    preferred_element_type=jnp.float32)
    h = jnp.maximum(h + sh1_ref[0], 0.0)                    # Linear+BN+ReLU (folded)
    o_ref[0] = jnp.dot(h.astype(jnp.bfloat16), w2_ref[0],
                       preferred_element_type=jnp.float32) + b2_ref[0]


def head_denoisers_train(xf, z_stack, hp):
    T, B, embed = z_stack.shape
    hidden = hp["w1x"].shape[-1]
    const2 = lambda t: (0, 0)
    per_t = lambda t: (t, 0, 0)
    return pl.pallas_call(
        _denoise_train_kernel,
        out_shape=jax.ShapeDtypeStruct((T, B, embed), jnp.float32),
        grid_spec=pltpu.PrefetchScalarGridSpec(
            num_scalar_prefetch=0, grid=(T,),
            in_specs=[
                pl.BlockSpec((B, 128), const2),
                pl.BlockSpec((1, 128, hidden), per_t),
                pl.BlockSpec((1, embed, hidden), per_t),
                pl.BlockSpec((1, 1, hidden), per_t),
                pl.BlockSpec((1, hidden, embed), per_t),
                pl.BlockSpec((1, 1, embed), per_t),
                pl.BlockSpec((1, B, embed), per_t),
            ],
            out_specs=pl.BlockSpec((1, B, embed), per_t),
        ),
        compiler_params=pltpu.CompilerParams(dimension_semantics=("parallel",)),
    )(xf, hp["w1x"], hp["w1z"], hp["sh1"], hp["w2"], hp["b2"], z_stack)


# ============================================================================
# Kernel C_eval: sequential reverse-diffusion chain, ONE grid step, all T
# denoiser weights resident in VMEM, sqrt(alpha)/sqrt(1-alpha) in SMEM.
# ============================================================================
def _denoise_eval_kernel(sa_ref, sb_ref, xf_ref, w1x_ref, w1z_ref, sh1_ref,
                         w2_ref, b2_ref, z0_ref, noise_ref, o_ref, *, T):
    xf = xf_ref[...].astype(jnp.bfloat16)
    z = z0_ref[...]
    for i in range(T):                      # static unroll; t = T-1 .. 0
        t = T - 1 - i
        h = jnp.dot(xf, w1x_ref[t], preferred_element_type=jnp.float32)
        h = h + jnp.dot(z.astype(jnp.bfloat16), w1z_ref[t],
                        preferred_element_type=jnp.float32)
        h = jnp.maximum(h + sh1_ref[t], 0.0)
        u_hat = jnp.dot(h.astype(jnp.bfloat16), w2_ref[t],
                        preferred_element_type=jnp.float32) + b2_ref[t]
        z = sa_ref[t] * u_hat + sb_ref[t] * noise_ref[i]
    o_ref[...] = z


def head_denoisers_eval(xf, z0, noise_stack, alpha, hp):
    B = xf.shape[0]
    T, _, embed = noise_stack.shape
    hidden = hp["w1x"].shape[-1]
    sa = jnp.sqrt(alpha).astype(jnp.float32)          # (T,)
    sb = jnp.sqrt(1.0 - alpha).astype(jnp.float32)    # (T,)
    smem = pl.BlockSpec(memory_space=pltpu.MemorySpace.SMEM)
    c2 = lambda i: (0, 0)
    c3 = lambda i: (0, 0, 0)
    return pl.pallas_call(
        partial(_denoise_eval_kernel, T=T),
        out_shape=jax.ShapeDtypeStruct((B, embed), jnp.float32),
        grid_spec=pltpu.PrefetchScalarGridSpec(
            num_scalar_prefetch=0, grid=(1,),
            in_specs=[
                smem,                                   # sqrt(alpha)
                smem,                                   # sqrt(1-alpha)
                pl.BlockSpec((B, 128), c2),
                pl.BlockSpec((T, 128, hidden), c3),
                pl.BlockSpec((T, embed, hidden), c3),
                pl.BlockSpec((T, 1, hidden), c3),
                pl.BlockSpec((T, hidden, embed), c3),
                pl.BlockSpec((T, 1, embed), c3),
                pl.BlockSpec((B, embed), c2),
                pl.BlockSpec((T, B, embed), c3),
            ],
            out_specs=pl.BlockSpec((B, embed), c2),
        ),
        compiler_params=pltpu.CompilerParams(dimension_semantics=("arbitrary",)),
    )(sa, sb, xf, hp["w1x"], hp["w1z"], hp["sh1"], hp["w2"], hp["b2"],
      z0, noise_stack)


# ============================================================================
# Parameter initialization (deterministic, synthetic) with BN folding, conv
# weights reshaped to (9*Cin, Cout), W1 split (removes concat), and fc1 K-axis
# permuted to NHWC flatten order (removes runtime transpose).
# ============================================================================
def init_params(key, in_channels, feature_dim, hidden_dim, embed_dim, T):
    keys = iter(jax.random.split(key, 64))
    bn_scale = lambda gamma: gamma / jnp.sqrt(1.0 + _BN_EPS)  # running stats (0,1)

    def conv_bn(cin, cout):
        w = jax.random.normal(next(keys), (3, 3, cin, cout), jnp.float32)
        w = w / jnp.sqrt(9.0 * cin)
        b = 0.01 * jax.random.normal(next(keys), (cout,), jnp.float32)
        gamma = 1.0 + 0.1 * jax.random.normal(next(keys), (cout,), jnp.float32)
        beta = 0.1 * jax.random.normal(next(keys), (cout,), jnp.float32)
        s = bn_scale(gamma)
        return {"w": (w * s).reshape(9 * cin, cout).astype(jnp.bfloat16),
                "shift": (b * s + beta).reshape(1, cout).astype(jnp.float32)}

    def linear(cin, cout):
        w = jax.random.normal(next(keys), (cin, cout), jnp.float32) / jnp.sqrt(cin)
        b = 0.01 * jax.random.normal(next(keys), (cout,), jnp.float32)
        return w, b

    cnn = {"conv1": conv_bn(in_channels, 64),
           "conv2": conv_bn(64, 128),
           "conv3": conv_bn(128, 256)}

    # fc1: permute K axis from PyTorch NCHW-flatten order (c*S + p) to our
    # NHWC-flatten order (p*256 + c) once at init.
    S = feature_dim // 256
    fc1_w_pt, fc1_b = linear(feature_dim, 256)
    perm = (jnp.arange(256)[None, :] * S + jnp.arange(S)[:, None]).reshape(-1)
    fc1_w = fc1_w_pt[perm, :]
    fc2_w, fc2_b = linear(256, 128)

    w1x, w1z, sh1, w2, b2 = [], [], [], [], []
    for _ in range(T):
        l1w, l1b = linear(128 + embed_dim, hidden_dim)
        gamma = 1.0 + 0.1 * jax.random.normal(next(keys), (hidden_dim,), jnp.float32)
        beta = 0.1 * jax.random.normal(next(keys), (hidden_dim,), jnp.float32)
        s1 = bn_scale(gamma)
        w1x.append((l1w[:128] * s1).astype(jnp.bfloat16))
        w1z.append((l1w[128:] * s1).astype(jnp.bfloat16))
        sh1.append((l1b * s1 + beta).reshape(1, hidden_dim).astype(jnp.float32))
        l2w, l2b = linear(hidden_dim, embed_dim)
        w2.append(l2w.astype(jnp.bfloat16))
        b2.append(l2b.reshape(1, embed_dim).astype(jnp.float32))

    head = {"fc1_w": fc1_w.astype(jnp.bfloat16),
            "fc1_b": fc1_b.reshape(1, 256).astype(jnp.float32),
            "fc2_w": fc2_w.astype(jnp.bfloat16),
            "fc2_b": fc2_b.reshape(1, 128).astype(jnp.float32),
            "w1x": jnp.stack(w1x), "w1z": jnp.stack(w1z), "sh1": jnp.stack(sh1),
            "w2": jnp.stack(w2), "b2": jnp.stack(b2)}
    return {"cnn": cnn, "head": head}


# ============================================================================
# Forward passes.
# ============================================================================
def cnn_features(x_nhwc, params):
    B = x_nhwc.shape[0]
    feats = cnn_conv_features(x_nhwc, params["cnn"])   # (B, H/4*W/4, 256) bf16
    return fc_head(feats.reshape(B, -1), params["head"])


def traditional_model_forward(x_nhwc, u_y, params, alpha, key, train=True):
    xf = cnn_features(x_nhwc, params)                  # (B, 128) f32
    hp = params["head"]
    T = hp["w2"].shape[0]
    B, embed = u_y.shape

    if not train:
        key, sub = jax.random.split(key)
        z0 = jax.random.normal(sub, (B, embed), jnp.float32)
        noises = []
        for _ in range(T):
            key, sub = jax.random.split(key)
            noises.append(jax.random.normal(sub, (B, embed), jnp.float32))
        noise_stack = jnp.stack(noises, axis=0)        # step order t = T-1 .. 0
        return head_denoisers_eval(xf, z0, noise_stack, alpha, hp)

    # train branch: build the (tiny) noise chain in plain JAX, then one fused call.
    z = [u_y]
    for t in range(1, T + 1):
        key, sub = jax.random.split(key)
        eps = jax.random.normal(sub, u_y.shape, jnp.float32)
        z.append(jnp.sqrt(alpha[t - 1]) * z[-1] + jnp.sqrt(1.0 - alpha[t - 1]) * eps)
    preds = head_denoisers_train(xf, jnp.stack(z[1:], axis=0), hp)
    return [preds[t] for t in range(T)], z[1:]


# ----------------------------------------------------------------------------
# Pure-JAX f32 reference (same folded params, same RNG stream) for validation.
# ----------------------------------------------------------------------------
def _reference_forward(x_nhwc, u_y, params, alpha, key, train=True):
    cnn, hp = params["cnn"], params["head"]
    h = x_nhwc
    for name in ("conv1", "conv2", "conv3"):
        w = cnn[name]["w"].astype(jnp.float32)
        cin = w.shape[0] // 9
        w = w.reshape(3, 3, cin, w.shape[-1])
        h = jax.lax.conv_general_dilated(h, w, (1, 1), "SAME",
                                         dimension_numbers=("NHWC", "HWIO", "NHWC"))
        h = jnp.maximum(h + cnn[name]["shift"][0], 0.0)
        if name != "conv3":
            Bh, Hh, Wh, Ch = h.shape
            h = h.reshape(Bh, Hh // 2, 2, Wh // 2, 2, Ch).max(axis=(2, 4))
    B = x_nhwc.shape[0]
    flat = h.reshape(B, -1)
    hfc = jnp.maximum(flat @ hp["fc1_w"].astype(jnp.float32) + hp["fc1_b"][0], 0.0)
    xf = hfc @ hp["fc2_w"].astype(jnp.float32) + hp["fc2_b"][0]

    T = hp["w2"].shape[0]
    embed = u_y.shape[1]

    def denoise(t, zt):
        hd = xf @ hp["w1x"][t].astype(jnp.float32) + zt @ hp["w1z"][t].astype(jnp.float32)
        hd = jnp.maximum(hd + hp["sh1"][t][0], 0.0)
        return hd @ hp["w2"][t].astype(jnp.float32) + hp["b2"][t][0]

    if not train:
        key, sub = jax.random.split(key)
        z_t = jax.random.normal(sub, (B, embed), jnp.float32)
        for i in range(T):
            key, sub = jax.random.split(key)
            noise = jax.random.normal(sub, (B, embed), jnp.float32)
            t = T - 1 - i
            z_t = jnp.sqrt(alpha[t]) * denoise(t, z_t) + jnp.sqrt(1.0 - alpha[t]) * noise
        return z_t

    z = [u_y]
    for t in range(1, T + 1):
        key, sub = jax.random.split(key)
        eps = jax.random.normal(sub, u_y.shape, jnp.float32)
        z.append(jnp.sqrt(alpha[t - 1]) * z[-1] + jnp.sqrt(1.0 - alpha[t - 1]) * eps)
    return [denoise(t, z[t + 1]) for t in range(T)], z[1:]


# ----------------------------------------------------------------------------
if __name__ == "__main__":
    B, C, H, W = 2, 4, 16, 16
    embed_dim, hidden_dim, T = 16, 32, 3
    feature_dim = 256 * (H // 4) * (W // 4)            # 4096
    alpha = jnp.linspace(0.9, 0.6, T).astype(jnp.float32)

    root = jax.random.PRNGKey(0)
    k_param, k_x, k_u, k_noise = jax.random.split(root, 4)
    params = init_params(k_param, C, feature_dim, hidden_dim, embed_dim, T)

    x_nchw = jax.random.normal(k_x, (B, C, H, W), jnp.float32)   # PyTorch layout
    x_nhwc = jnp.transpose(x_nchw, (0, 2, 3, 1))                 # kernel layout
    u_y = jax.random.normal(k_u, (B, embed_dim), jnp.float32)

    fwd_train = jax.jit(partial(traditional_model_forward, train=True))
    fwd_eval = jax.jit(partial(traditional_model_forward, train=False))

    preds, zs = fwd_train(x_nhwc, u_y, params, alpha, k_noise)
    jax.block_until_ready(preds)
    jax.block_until_ready(zs)
    assert len(preds) == T and preds[0].shape == (B, embed_dim)
    assert len(zs) == T and zs[0].shape == (B, embed_dim)
    assert all(bool(jnp.isfinite(p).all()) for p in preds)

    z_final = fwd_eval(x_nhwc, u_y, params, alpha, k_noise)
    jax.block_until_ready(z_final)
    assert z_final.shape == (B, embed_dim)
    assert bool(jnp.isfinite(z_final).all())

    # Numerical cross-check vs. the pure-JAX f32 reference (loose tolerance:
    # the Pallas path runs its matmuls in bf16).
    ref_preds, _ = _reference_forward(x_nhwc, u_y, params, alpha, k_noise, train=True)
    ref_z = _reference_forward(x_nhwc, u_y, params, alpha, k_noise, train=False)
    for t in range(T):
        assert bool(jnp.allclose(preds[t], ref_preds[t], rtol=0.2, atol=0.2)), t
    assert bool(jnp.allclose(z_final, ref_z, rtol=0.2, atol=0.2))

    print("KERNEL_OK")
</pallas_src>

<mosaic_0001>
module attributes {stable_mosaic.version = 11 : i64} {
  func.func @_fc_head_kernel(%arg0: i32, %arg1: memref<2x4096xbf16, #tpu.memory_space<vmem>>, %arg2: memref<4096x256xbf16, #tpu.memory_space<vmem>>, %arg3: memref<1x256xf32, #tpu.memory_space<vmem>>, %arg4: memref<256x128xbf16, #tpu.memory_space<vmem>>, %arg5: memref<1x128xf32, #tpu.memory_space<vmem>>, %arg6: memref<2x128xf32, #tpu.memory_space<vmem>>) attributes {dimension_semantics = [#tpu.dimension_semantics<arbitrary>], iteration_bounds = array<i64: 1>, scalar_prefetch = 0 : i64, scratch_operands = 0 : i64, tpu.core_type = #tpu.core_type<tc>, window_params = [{pipeline_mode = #tpu.pipeline_mode<synchronous>, transform_indices = @transform_0, window_bounds = array<i64: 2, 4096>}, {pipeline_mode = #tpu.pipeline_mode<synchronous>, transform_indices = @transform_1, window_bounds = array<i64: 4096, 256>}, {pipeline_mode = #tpu.pipeline_mode<synchronous>, transform_indices = @transform_2, window_bounds = array<i64: 1, 256>}, {pipeline_mode = #tpu.pipeline_mode<synchronous>, transform_indices = @transform_3, window_bounds = array<i64: 256, 128>}, {pipeline_mode = #tpu.pipeline_mode<synchronous>, transform_indices = @transform_4, window_bounds = array<i64: 1, 128>}, {pipeline_mode = #tpu.pipeline_mode<synchronous>, transform_indices = @transform_5, window_bounds = array<i64: 2, 128>}]} {
    %c0 = arith.constant 0 : index
    %c0_0 = arith.constant 0 : index
    %0 = vector.load %arg1[%c0, %c0_0] : memref<2x4096xbf16, #tpu.memory_space<vmem>>, vector<2x4096xbf16>
    %c0_1 = arith.constant 0 : index
    %c0_2 = arith.constant 0 : index
    %1 = vector.load %arg2[%c0_1, %c0_2] : memref<4096x256xbf16, #tpu.memory_space<vmem>>, vector<4096x256xbf16>
    %cst = arith.constant dense<0.000000e+00> : vector<2x256xf32>
    %2 = tpu.matmul %0, %1, %cst {dimension_numbers = #tpu.dot_dimension_numbers<[1], [0], [0], [1], [0, 0, 1, 1], [], []>} : vector<2x4096xbf16>, vector<4096x256xbf16>, vector<2x256xf32> -> vector<2x256xf32>
    %c0_3 = arith.constant 0 : index
    %c0_4 = arith.constant 0 : index
    %3 = vector.load %arg3[%c0_3, %c0_4] : memref<1x256xf32, #tpu.memory_space<vmem>>, vector<1x256xf32>
    %4 = vector.broadcast %3 : vector<1x256xf32> to vector<2x256xf32>
    %5 = arith.addf %2, %4 : vector<2x256xf32>
    %cst_5 = arith.constant 0.000000e+00 : f32
    %6 = vector.broadcast %cst_5 : f32 to vector<2x256xf32>
    %7 = arith.maximumf %5, %6 : vector<2x256xf32>
    %8 = arith.truncf %7 : vector<2x256xf32> to vector<2x256xbf16>
    %c0_6 = arith.constant 0 : index
    %c0_7 = arith.constant 0 : index
    %9 = vector.load %arg4[%c0_6, %c0_7] : memref<256x128xbf16, #tpu.memory_space<vmem>>, vector<256x128xbf16>
    %cst_8 = arith.constant dense<0.000000e+00> : vector<2x128xf32>
    %10 = tpu.matmul %8, %9, %cst_8 {dimension_numbers = #tpu.dot_dimension_numbers<[1], [0], [0], [1], [0, 0, 1, 1], [], []>} : vector<2x256xbf16>, vector<256x128xbf16>, vector<2x128xf32> -> vector<2x128xf32>
    %c0_9 = arith.constant 0 : index
    %c0_10 = arith.constant 0 : index
    %11 = vector.load %arg5[%c0_9, %c0_10] : memref<1x128xf32, #tpu.memory_space<vmem>>, vector<1x128xf32>
    %12 = vector.broadcast %11 : vector<1x128xf32> to vector<2x128xf32>
    %13 = arith.addf %10, %12 : vector<2x128xf32>
    %c0_11 = arith.constant 0 : index
    %c0_12 = arith.constant 0 : index
    %14 = vector.load %arg6[%c0_11, %c0_12] : memref<2x128xf32, #tpu.memory_space<vmem>>, vector<2x128xf32>
    tpu.vector_store %arg6[%c0_11, %c0_12], %13 {strides = array<i32>} : memref<2x128xf32, #tpu.memory_space<vmem>>, vector<2x128xf32>,
    return
  }
  func.func @transform_0(%arg0: i32) -> (i32, i32) {
    %c0_i32 = arith.constant 0 : i32
    %c0_i32_0 = arith.constant 0 : i32
    %c0_i32_1 = arith.constant 0 : i32
    return %c0_i32, %c0_i32_0 : i32, i32
  }
  func.func @transform_1(%arg0: i32) -> (i32, i32) {
    %c0_i32 = arith.constant 0 : i32
    %c0_i32_0 = arith.constant 0 : i32
    %c0_i32_1 = arith.constant 0 : i32
    return %c0_i32, %c0_i32_0 : i32, i32
  }
  func.func @transform_2(%arg0: i32) -> (i32, i32) {
    %c0_i32 = arith.constant 0 : i32
    %c0_i32_0 = arith.constant 0 : i32
    %c0_i32_1 = arith.constant 0 : i32
    return %c0_i32, %c0_i32_0 : i32, i32
  }
  func.func @transform_3(%arg0: i32) -> (i32, i32) {
    %c0_i32 = arith.constant 0 : i32
    %c0_i32_0 = arith.constant 0 : i32
    %c0_i32_1 = arith.constant 0 : i32
    return %c0_i32, %c0_i32_0 : i32, i32
  }
  func.func @transform_4(%arg0: i32) -> (i32, i32) {
    %c0_i32 = arith.constant 0 : i32
    %c0_i32_0 = arith.constant 0 : i32
    %c0_i32_1 = arith.constant 0 : i32
    return %c0_i32, %c0_i32_0 : i32, i32
  }
  func.func @transform_5(%arg0: i32) -> (i32, i32) {
    %c0_i32 = arith.constant 0 : i32
    %c0_i32_0 = arith.constant 0 : i32
    %c0_i32_1 = arith.constant 0 : i32
    return %c0_i32, %c0_i32_0 : i32, i32
  }
}

module attributes {stable_mosaic.version = 11 : i64} {
  func.func @_cnn_kernel(%arg0: i32, %arg1: memref<1x512x36xbf16, #tpu.memory_space<vmem>>, %arg2: memref<36x64xbf16, #tpu.memory_space<vmem>>, %arg3: memref<1x64xf32, #tpu.memory_space<vmem>>, %arg4: memref<576x128xbf16, #tpu.memory_space<vmem>>, %arg5: memref<1x128xf32, #tpu.memory_space<vmem>>, %arg6: memref<1152x256xbf16, #tpu.memory_space<vmem>>, %arg7: memref<1x256xf32, #tpu.memory_space<vmem>>, %arg8: memref<1x16x256xbf16, #tpu.memory_space<vmem>>, %arg9: memref<168x64xf32, #tpu.memory_space<vmem>>, %arg10: memref<56x128xf32, #tpu.memory_space<vmem>>, %arg11: memref<512x64xf32, #tpu.memory_space<vmem>>, %arg12: memref<128x128xf32, #tpu.memory_space<vmem>>) attributes {dimension_semantics = [#tpu.dimension_semantics<parallel>], iteration_bounds = array<i64: 2>, scalar_prefetch = 0 : i64, scratch_operands = 4 : i64, tpu.core_type = #tpu.core_type<tc>, window_params = [{transform_indices = @transform_0, window_bounds = array<i64: 1, 512, 36>}, {pipeline_mode = #tpu.pipeline_mode<synchronous>, transform_indices = @transform_1, window_bounds = array<i64: 36, 64>}, {pipeline_mode = #tpu.pipeline_mode<synchronous>, transform_indices = @transform_2, window_bounds = array<i64: 1, 64>}, {pipeline_mode = #tpu.pipeline_mode<synchronous>, transform_indices = @transform_3, window_bounds = array<i64: 576, 128>}, {pipeline_mode = #tpu.pipeline_mode<synchronous>, transform_indices = @transform_4, window_bounds = array<i64: 1, 128>}, {pipeline_mode = #tpu.pipeline_mode<synchronous>, transform_indices = @transform_5, window_bounds = array<i64: 1152, 256>}, {pipeline_mode = #tpu.pipeline_mode<synchronous>, transform_indices = @transform_6, window_bounds = array<i64: 1, 256>}, {transform_indices = @transform_7, window_bounds = array<i64: 1, 16, 256>}]} {
    %c0 = arith.constant 0 : index
    %c0_0 = arith.constant 0 : index
    %c0_1 = arith.constant 0 : index
    %0 = vector.load %arg1[%c0, %c0_0, %c0_1] : memref<1x512x36xbf16, #tpu.memory_space<vmem>>, vector<1x512x36xbf16>
    %1 = vector.shape_cast %0 : vector<1x512x36xbf16> to vector<512x36xbf16>
    %c0_2 = arith.constant 0 : index
    %c0_3 = arith.constant 0 : index
    %2 = vector.load %arg2[%c0_2, %c0_3] : memref<36x64xbf16, #tpu.memory_space<vmem>>, vector<36x64xbf16>
    %cst = arith.constant dense<0.000000e+00> : vector<512x64xf32>
    %3 = tpu.matmul %1, %2, %cst {dimension_numbers = #tpu.dot_dimension_numbers<[1], [0], [0], [1], [0, 0, 1, 1], [], []>} : vector<512x36xbf16>, vector<36x64xbf16>, vector<512x64xf32> -> vector<512x64xf32>
    %c0_4 = arith.constant 0 : index
    %c0_5 = arith.constant 0 : index
    %4 = vector.load %arg3[%c0_4, %c0_5] : memref<1x64xf32, #tpu.memory_space<vmem>>, vector<1x64xf32>
    %5 = vector.broadcast %4 : vector<1x64xf32> to vector<512x64xf32>
    %6 = arith.addf %3, %5 : vector<512x64xf32>
    %cst_6 = arith.constant 0.000000e+00 : f32
    %7 = vector.broadcast %cst_6 : f32 to vector<512x64xf32>
    %8 = arith.maximumf %6, %7 : vector<512x64xf32>
    %c0_7 = arith.constant 0 : index
    %c0_8 = arith.constant 0 : index
    %9 = vector.load %arg11[%c0_7, %c0_8] : memref<512x64xf32, #tpu.memory_space<vmem>>, vector<512x64xf32>
    tpu.vector_store %arg11[%c0_7, %c0_8], %8 {strides = array<i32>} : memref<512x64xf32, #tpu.memory_space<vmem>>, vector<512x64xf32>,
    %c0_9 = arith.constant 0 : index
    %c0_10 = arith.constant 0 : index
    %10 = tpu.strided_load %arg11[%c0_9, %c0_10] {strides = array<i32: 2, 1>} : memref<512x64xf32, #tpu.memory_space<vmem>>, vector<256x64xf32>
    %c1 = arith.constant 1 : index
    %c0_11 = arith.constant 0 : index
    %11 = tpu.strided_load %arg11[%c1, %c0_11] {strides = array<i32: 2, 1>} : memref<512x64xf32, #tpu.memory_space<vmem>>, vector<256x64xf32>
    %12 = arith.maximumf %10, %11 : vector<256x64xf32>
    %cst_12 = arith.constant 0.000000e+00 : f32
    %13 = vector.broadcast %cst_12 : f32 to vector<168x64xf32>
    %c0_13 = arith.constant 0 : index
    %c0_14 = arith.constant 0 : index
    %14 = vector.load %arg9[%c0_13, %c0_14] : memref<168x64xf32, #tpu.memory_space<vmem>>, vector<168x64xf32>
    tpu.vector_store %arg9[%c0_13, %c0_14], %13 {strides = array<i32>} : memref<168x64xf32, #tpu.memory_space<vmem>>, vector<168x64xf32>,
    %15 = vector.extract_strided_slice %12 {offsets = [0, 0], sizes = [16, 64], strides = [1, 1]} : vector<256x64xf32> to vector<16x64xf32>
    %16 = vector.extract_strided_slice %12 {offsets = [16, 0], sizes = [16, 64], strides = [1, 1]} : vector<256x64xf32> to vector<16x64xf32>
    %17 = arith.maximumf %15, %16 : vector<16x64xf32>
    %18 = vector.extract_strided_slice %17 {offsets = [0, 0], sizes = [8, 64], strides = [1, 1]} : vector<16x64xf32> to vector<8x64xf32>
    %c17 = arith.constant 17 : index
    %c0_15 = arith.constant 0 : index
    %19 = vector.load %arg9[%c17, %c0_15] : memref<168x64xf32, #tpu.memory_space<vmem>>, vector<8x64xf32>
    tpu.vector_store %arg9[%c17, %c0_15], %18 {strides = array<i32>} : memref<168x64xf32, #tpu.memory_space<vmem>>, vector<8x64xf32>,
    %20 = vector.extract_strided_slice %12 {offsets = [32, 0], sizes = [16, 64], strides = [1, 1]} : vector<256x64xf32> to vector<16x64xf32>
    %21 = vector.extract_strided_slice %12 {offsets = [48, 0], sizes = [16, 64], strides = [1, 1]} : vector<256x64xf32> to vector<16x64xf32>
    %22 = arith.maximumf %20, %21 : vector<16x64xf32>
    %23 = vector.extract_strided_slice %22 {offsets = [0, 0], sizes = [8, 64], strides = [1, 1]} : vector<16x64xf32> to vector<8x64xf32>
    %c33 = arith.constant 33 : index
    %c0_16 = arith.constant 0 : index
    %24 = vector.load %arg9[%c33, %c0_16] : memref<168x64xf32, #tpu.memory_space<vmem>>, vector<8x64xf32>
    tpu.vector_store %arg9[%c33, %c0_16], %23 {strides = array<i32>} : memref<168x64xf32, #tpu.memory_space<vmem>>, vector<8x64xf32>,
    %25 = vector.extract_strided_slice %12 {offsets = [64, 0], sizes = [16, 64], strides = [1, 1]} : vector<256x64xf32> to vector<16x64xf32>
    %26 = vector.extract_strided_slice %12 {offsets = [80, 0], sizes = [16, 64], strides = [1, 1]} : vector<256x64xf32> to vector<16x64xf32>
    %27 = arith.maximumf %25, %26 : vector<16x64xf32>
    %28 = vector.extract_strided_slice %27 {offsets = [0, 0], sizes = [8, 64], strides = [1, 1]} : vector<16x64xf32> to vector<8x64xf32>
    %c49 = arith.constant 49 : index
    %c0_17 = arith.constant 0 : index
    %29 = vector.load %arg9[%c49, %c0_17] : memref<168x64xf32, #tpu.memory_space<vmem>>, vector<8x64xf32>
    tpu.vector_store %arg9[%c49, %c0_17], %28 {strides = array<i32>} : memref<168x64xf32, #tpu.memory_space<vmem>>, vector<8x64xf32>,
    %30 = vector.extract_strided_slice %12 {offsets = [96, 0], sizes = [16, 64], strides = [1, 1]} : vector<256x64xf32> to vector<16x64xf32>
    %31 = vector.extract_strided_slice %12 {offsets = [112, 0], sizes = [16, 64], strides = [1, 1]} : vector<256x64xf32> to vector<16x64xf32>
    %32 = arith.maximumf %30, %31 : vector<16x64xf32>
    %33 = vector.extract_strided_slice %32 {offsets = [0, 0], sizes = [8, 64], strides = [1, 1]} : vector<16x64xf32> to vector<8x64xf32>
    %c65 = arith.constant 65 : index
    %c0_18 = arith.constant 0 : index
    %34 = vector.load %arg9[%c65, %c0_18] : memref<168x64xf32, #tpu.memory_space<vmem>>, vector<8x64xf32>
    tpu.vector_store %arg9[%c65, %c0_18], %33 {strides = array<i32>} : memref<168x64xf32, #tpu.memory_space<vmem>>, vector<8x64xf32>,
    %35 = vector.extract_strided_slice %12 {offsets = [128, 0], sizes = [16, 64], strides = [1, 1]} : vector<256x64xf32> to vector<16x64xf32>
    %36 = vector.extract_strided_slice %12 {offsets = [144, 0], sizes = [16, 64], strides = [1, 1]} : vector<256x64xf32> to vector<16x64xf32>
    %37 = arith.maximumf %35, %36 : vector<16x64xf32>
    %38 = vector.extract_strided_slice %37 {offsets = [0, 0], sizes = [8, 64], strides = [1, 1]} : vector<16x64xf32> to vector<8x64xf32>
    %c81 = arith.constant 81 : index
    %c0_19 = arith.constant 0 : index
    %39 = vector.load %arg9[%c81, %c0_19] : memref<168x64xf32, #tpu.memory_space<vmem>>, vector<8x64xf32>
    tpu.vector_store %arg9[%c81, %c0_19], %38 {strides = array<i32>} : memref<168x64xf32, #tpu.memory_space<vmem>>, vector<8x64xf32>,
    %40 = vector.extract_strided_slice %12 {offsets = [160, 0], sizes = [16, 64], strides = [1, 1]} : vector<256x64xf32> to vector<16x64xf32>
    %41 = vector.extract_strided_slice %12 {offsets = [176, 0], sizes = [16, 64], strides = [1, 1]} : vector<256x64xf32> to vector<16x64xf32>
    %42 = arith.maximumf %40, %41 : vector<16x64xf32>
    %43 = vector.extract_strided_slice %42 {offsets = [0, 0], sizes = [8, 64], strides = [1, 1]} : vector<16x64xf32> to vector<8x64xf32>
    %c97 = arith.constant 97 : index
    %c0_20 = arith.constant 0 : index
    %44 = vector.load %arg9[%c97, %c0_20] : memref<168x64xf32, #tpu.memory_space<vmem>>, vector<8x64xf32>
    tpu.vector_store %arg9[%c97, %c0_20], %43 {strides = array<i32>} : memref<168x64xf32, #tpu.memory_space<vmem>>, vector<8x64xf32>,
    %45 = vector.extract_strided_slice %12 {offsets = [192, 0], sizes = [16, 64], strides = [1, 1]} : vector<256x64xf32> to vector<16x64xf32>
    %46 = vector.extract_strided_slice %12 {offsets = [208, 0], sizes = [16, 64], strides = [1, 1]} : vector<256x64xf32> to vector<16x64xf32>
    %47 = arith.maximumf %45, %46 : vector<16x64xf32>
    %48 = vector.extract_strided_slice %47 {offsets = [0, 0], sizes = [8, 64], strides = [1, 1]} : vector<16x64xf32> to vector<8x64xf32>
    %c113 = arith.constant 113 : index
    %c0_21 = arith.constant 0 : index
    %49 = vector.load %arg9[%c113, %c0_21] : memref<168x64xf32, #tpu.memory_space<vmem>>, vector<8x64xf32>
    tpu.vector_store %arg9[%c113, %c0_21], %48 {strides = array<i32>} : memref<168x64xf32, #tpu.memory_space<vmem>>, vector<8x64xf32>,
    %50 = vector.extract_strided_slice %12 {offsets = [224, 0], sizes = [16, 64], strides = [1, 1]} : vector<256x64xf32> to vector<16x64xf32>
    %51 = vector.extract_strided_slice %12 {offsets = [240, 0], sizes = [16, 64], strides = [1, 1]} : vector<256x64xf32> to vector<16x64xf32>
    %52 = arith.maximumf %50, %51 : vector<16x64xf32>
    %53 = vector.extract_strided_slice %52 {offsets = [0, 0], sizes = [8, 64], strides = [1, 1]} : vector<16x64xf32> to vector<8x64xf32>
    %c129 = arith.constant 129 : index
    %c0_22 = arith.constant 0 : index
    %54 = vector.load %arg9[%c129, %c0_22] : memref<168x64xf32, #tpu.memory_space<vmem>>, vector<8x64xf32>
    tpu.vector_store %arg9[%c129, %c0_22], %53 {strides = array<i32>} : memref<168x64xf32, #tpu.memory_space<vmem>>, vector<8x64xf32>,
    %c0_23 = arith.constant 0 : index
    %c0_24 = arith.constant 0 : index
    %55 = vector.load %arg9[%c0_23, %c0_24] : memref<168x64xf32, #tpu.memory_space<vmem>>, vector<128x64xf32>
    %56 = arith.truncf %55 : vector<128x64xf32> to vector<128x64xbf16>
    %c1_25 = arith.constant 1 : index
    %c0_26 = arith.constant 0 : index
    %57 = vector.load %arg9[%c1_25, %c0_26] : memref<168x64xf32, #tpu.memory_space<vmem>>, vector<128x64xf32>
    %58 = arith.truncf %57 : vector<128x64xf32> to vector<128x64xbf16>
    %c2 = arith.constant 2 : index
    %c0_27 = arith.constant 0 : index
    %59 = vector.load %arg9[%c2, %c0_27] : memref<168x64xf32, #tpu.memory_space<vmem>>, vector<128x64xf32>
    %60 = arith.truncf %59 : vector<128x64xf32> to vector<128x64xbf16>
    %c16 = arith.constant 16 : index
    %c0_28 = arith.constant 0 : index
    %61 = vector.load %arg9[%c16, %c0_28] : memref<168x64xf32, #tpu.memory_space<vmem>>, vector<128x64xf32>
    %62 = arith.truncf %61 : vector<128x64xf32> to vector<128x64xbf16>
    %c17_29 = arith.constant 17 : index
    %c0_30 = arith.constant 0 : index
    %63 = vector.load %arg9[%c17_29, %c0_30] : memref<168x64xf32, #tpu.memory_space<vmem>>, vector<128x64xf32>
    %64 = arith.truncf %63 : vector<128x64xf32> to vector<128x64xbf16>
    %c18 = arith.constant 18 : index
    %c0_31 = arith.constant 0 : index
    %65 = vector.load %arg9[%c18, %c0_31] : memref<168x64xf32, #tpu.memory_space<vmem>>, vector<128x64xf32>
    %66 = arith.truncf %65 : vector<128x64xf32> to vector<128x64xbf16>
    %c32 = arith.constant 32 : index
    %c0_32 = arith.constant 0 : index
    %67 = vector.load %arg9[%c32, %c0_32] : memref<168x64xf32, #tpu.memory_space<vmem>>, vector<128x64xf32>
    %68 = arith.truncf %67 : vector<128x64xf32> to vector<128x64xbf16>
    %c33_33 = arith.constant 33 : index
    %c0_34 = arith.constant 0 : index
    %69 = vector.load %arg9[%c33_33, %c0_34] : memref<168x64xf32, #tpu.memory_space<vmem>>, vector<128x64xf32>
    %70 = arith.truncf %69 : vector<128x64xf32> to vector<128x64xbf16>
    %c34 = arith.constant 34 : index
    %c0_35 = arith.constant 0 : index
    %71 = vector.load %arg9[%c34, %c0_35] : memref<168x64xf32, #tpu.memory_space<vmem>>, vector<128x64xf32>
    %72 = arith.truncf %71 : vector<128x64xf32> to vector<128x64xbf16>
    %73 = tpu.concatenate %56, %58, %60, %62, %64, %66, %68, %70, %72 in 1 : vector<128x64xbf16>, vector<128x64xbf16>, vector<128x64xbf16>, vector<128x64xbf16>, vector<128x64xbf16>, vector<128x64xbf16>, vector<128x64xbf16>, vector<128x64xbf16>, vector<128x64xbf16> -> vector<128x576xbf16>
    %c0_36 = arith.constant 0 : index
    %c0_37 = arith.constant 0 : index
    %74 = vector.load %arg4[%c0_36, %c0_37] : memref<576x128xbf16, #tpu.memory_space<vmem>>, vector<576x128xbf16>
    %cst_38 = arith.constant dense<0.000000e+00> : vector<128x128xf32>
    %75 = tpu.matmul %73, %74, %cst_38 {dimension_numbers = #tpu.dot_dimension_numbers<[1], [0], [0], [1], [0, 0, 1, 1], [], []>} : vector<128x576xbf16>, vector<576x128xbf16>, vector<128x128xf32> -> vector<128x128xf32>
    %c0_39 = arith.constant 0 : index
    %c0_40 = arith.constant 0 : index
    %76 = vector.load %arg5[%c0_39, %c0_40] : memref<1x128xf32, #tpu.memory_space<vmem>>, vector<1x128xf32>
    %77 = vector.broadcast %76 : vector<1x128xf32> to vector<128x128xf32>
    %78 = arith.addf %75, %77 : vector<128x128xf32>
    %cst_41 = arith.constant 0.000000e+00 : f32
    %79 = vector.broadcast %cst_41 : f32 to vector<128x128xf32>
    %80 = arith.maximumf %78, %79 : vector<128x128xf32>
    %c0_42 = arith.constant 0 : index
    %c0_43 = arith.constant 0 : index
    %81 = vector.load %arg12[%c0_42, %c0_43] : memref<128x128xf32, #tpu.memory_space<vmem>>, vector<128x128xf32>
    tpu.vector_store %arg12[%c0_42, %c0_43], %80 {strides = array<i32>} : memref<128x128xf32, #tpu.memory_space<vmem>>, vector<128x128xf32>,
    %c0_44 = arith.constant 0 : index
    %c0_45 = arith.constant 0 : index
    %82 = tpu.strided_load %arg12[%c0_44, %c0_45] {strides = array<i32: 2, 1>} : memref<128x128xf32, #tpu.memory_space<vmem>>, vector<64x128xf32>
    %c1_46 = arith.constant 1 : index
    %c0_47 = arith.constant 0 : index
    %83 = tpu.strided_load %arg12[%c1_46, %c0_47] {strides = array<i32: 2, 1>} : memref<128x128xf32, #tpu.memory_space<vmem>>, vector<64x128xf32>
    %84 = arith.maximumf %82, %83 : vector<64x128xf32>
    %cst_48 = arith.constant 0.000000e+00 : f32
    %85 = vector.broadcast %cst_48 : f32 to vector<56x128xf32>
    %c0_49 = arith.constant 0 : index
    %c0_50 = arith.constant 0 : index
    %86 = vector.load %arg10[%c0_49, %c0_50] : memref<56x128xf32, #tpu.memory_space<vmem>>, vector<56x128xf32>
    tpu.vector_store %arg10[%c0_49, %c0_50], %85 {strides = array<i32>} : memref<56x128xf32, #tpu.memory_space<vmem>>, vector<56x128xf32>,
    %87 = vector.extract_strided_slice %84 {offsets = [0, 0], sizes = [8, 128], strides = [1, 1]} : vector<64x128xf32> to vector<8x128xf32>
    %88 = vector.extract_strided_slice %84 {offsets = [8, 0], sizes = [8, 128], strides = [1, 1]} : vector<64x128xf32> to vector<8x128xf32>
    %89 = arith.maximumf %87, %88 : vector<8x128xf32>
    %90 = vector.extract_strided_slice %89 {offsets = [0, 0], sizes = [4, 128], strides = [1, 1]} : vector<8x128xf32> to vector<4x128xf32>
    %c9 = arith.constant 9 : index
    %c0_51 = arith.constant 0 : index
    %91 = vector.load %arg10[%c9, %c0_51] : memref<56x128xf32, #tpu.memory_space<vmem>>, vector<4x128xf32>
    tpu.vector_store %arg10[%c9, %c0_51], %90 {strides = array<i32>} : memref<56x128xf32, #tpu.memory_space<vmem>>, vector<4x128xf32>,
    %92 = vector.extract_strided_slice %84 {offsets = [16, 0], sizes = [8, 128], strides = [1, 1]} : vector<64x128xf32> to vector<8x128xf32>
    %93 = vector.extract_strided_slice %84 {offsets = [24, 0], sizes = [8, 128], strides = [1, 1]} : vector<64x128xf32> to vector<8x128xf32>
    %94 = arith.maximumf %92, %93 : vector<8x128xf32>
    %95 = vector.extract_strided_slice %94 {offsets = [0, 0], sizes = [4, 128], strides = [1, 1]} : vector<8x128xf32> to vector<4x128xf32>
    %c17_52 = arith.constant 17 : index
    %c0_53 = arith.constant 0 : index
    %96 = vector.load %arg10[%c17_52, %c0_53] : memref<56x128xf32, #tpu.memory_space<vmem>>, vector<4x128xf32>
    tpu.vector_store %arg10[%c17_52, %c0_53], %95 {strides = array<i32>} : memref<56x128xf32, #tpu.memory_space<vmem>>, vector<4x128xf32>,
    %97 = vector.extract_strided_slice %84 {offsets = [32, 0], sizes = [8, 128], strides = [1, 1]} : vector<64x128xf32> to vector<8x128xf32>
    %98 = vector.extract_strided_slice %84 {offsets = [40, 0], sizes = [8, 128], strides = [1, 1]} : vector<64x128xf32> to vector<8x128xf32>
    %99 = arith.maximumf %97, %98 : vector<8x128xf32>
    %100 = vector.extract_strided_slice %99 {offsets = [0, 0], sizes = [4, 128], strides = [1, 1]} : vector<8x128xf32> to vector<4x128xf32>
    %c25 = arith.constant 25 : index
    %c0_54 = arith.constant 0 : index
    %101 = vector.load %arg10[%c25, %c0_54] : memref<56x128xf32, #tpu.memory_space<vmem>>, vector<4x128xf32>
    tpu.vector_store %arg10[%c25, %c0_54], %100 {strides = array<i32>} : memref<56x128xf32, #tpu.memory_space<vmem>>, vector<4x128xf32>,
    %102 = vector.extract_strided_slice %84 {offsets = [48, 0], sizes = [8, 128], strides = [1, 1]} : vector<64x128xf32> to vector<8x128xf32>
    %103 = vector.extract_strided_slice %84 {offsets = [56, 0], sizes = [8, 128], strides = [1, 1]} : vector<64x128xf32> to vector<8x128xf32>
    %104 = arith.maximumf %102, %103 : vector<8x128xf32>
    %105 = vector.extract_strided_slice %104 {offsets = [0, 0], sizes = [4, 128], strides = [1, 1]} : vector<8x128xf32> to vector<4x128xf32>
    %c33_55 = arith.constant 33 : index
    %c0_56 = arith.constant 0 : index
    %106 = vector.load %arg10[%c33_55, %c0_56] : memref<56x128xf32, #tpu.memory_space<vmem>>, vector<4x128xf32>
    tpu.vector_store %arg10[%c33_55, %c0_56], %105 {strides = array<i32>} : memref<56x128xf32, #tpu.memory_space<vmem>>, vector<4x128xf32>,
    %c0_57 = arith.constant 0 : index
    %c0_58 = arith.constant 0 : index
    %107 = vector.load %arg10[%c0_57, %c0_58] : memref<56x128xf32, #tpu.memory_space<vmem>>, vector<32x128xf32>
    %108 = arith.truncf %107 : vector<32x128xf32> to vector<32x128xbf16>
    %c1_59 = arith.constant 1 : index
    %c0_60 = arith.constant 0 : index
    %109 = vector.load %arg10[%c1_59, %c0_60] : memref<56x128xf32, #tpu.memory_space<vmem>>, vector<32x128xf32>
    %110 = arith.truncf %109 : vector<32x128xf32> to vector<32x128xbf16>
    %c2_61 = arith.constant 2 : index
    %c0_62 = arith.constant 0 : index
    %111 = vector.load %arg10[%c2_61, %c0_62] : memref<56x128xf32, #tpu.memory_space<vmem>>, vector<32x128xf32>
    %112 = arith.truncf %111 : vector<32x128xf32> to vector<32x128xbf16>
    %c8 = arith.constant 8 : index
    %c0_63 = arith.constant 0 : index
    %113 = vector.load %arg10[%c8, %c0_63] : memref<56x128xf32, #tpu.memory_space<vmem>>, vector<32x128xf32>
    %114 = arith.truncf %113 : vector<32x128xf32> to vector<32x128xbf16>
    %c9_64 = arith.constant 9 : index
    %c0_65 = arith.constant 0 : index
    %115 = vector.load %arg10[%c9_64, %c0_65] : memref<56x128xf32, #tpu.memory_space<vmem>>, vector<32x128xf32>
    %116 = arith.truncf %115 : vector<32x128xf32> to vector<32x128xbf16>
    %c10 = arith.constant 10 : index
    %c0_66 = arith.constant 0 : index
    %117 = vector.load %arg10[%c10, %c0_66] : memref<56x128xf32, #tpu.memory_space<vmem>>, vector<32x128xf32>
    %118 = arith.truncf %117 : vector<32x128xf32> to vector<32x128xbf16>
    %c16_67 = arith.constant 16 : index
    %c0_68 = arith.constant 0 : index
    %119 = vector.load %arg10[%c16_67, %c0_68] : memref<56x128xf32, #tpu.memory_space<vmem>>, vector<32x128xf32>
    %120 = arith.truncf %119 : vector<32x128xf32> to vector<32x128xbf16>
    %c17_69 = arith.constant 17 : index
    %c0_70 = arith.constant 0 : index
    %121 = vector.load %arg10[%c17_69, %c0_70] : memref<56x128xf32, #tpu.memory_space<vmem>>, vector<32x128xf32>
    %122 = arith.truncf %121 : vector<32x128xf32> to vector<32x128xbf16>
    %c18_71 = arith.constant 18 : index
    %c0_72 = arith.constant 0 : index
    %123 = vector.load %arg10[%c18_71, %c0_72] : memref<56x128xf32, #tpu.memory_space<vmem>>, vector<32x128xf32>
    %124 = arith.truncf %123 : vector<32x128xf32> to vector<32x128xbf16>
    %125 = tpu.concatenate %108, %110, %112, %114, %116, %118, %120, %122, %124 in 1 : vector<32x128xbf16>, vector<32x128xbf16>, vector<32x128xbf16>, vector<32x128xbf16>, vector<32x128xbf16>, vector<32x128xbf16>, vector<32x128xbf16>, vector<32x128xbf16>, vector<32x128xbf16> -> vector<32x1152xbf16>
    %c0_73 = arith.constant 0 : index
    %c0_74 = arith.constant 0 : index
    %126 = vector.load %arg6[%c0_73, %c0_74] : memref<1152x256xbf16, #tpu.memory_space<vmem>>, vector<1152x256xbf16>
    %cst_75 = arith.constant dense<0.000000e+00> : vector<32x256xf32>
    %127 = tpu.matmul %125, %126, %cst_75 {dimension_numbers = #tpu.dot_dimension_numbers<[1], [0], [0], [1], [0, 0, 1, 1], [], []>} : vector<32x1152xbf16>, vector<1152x256xbf16>, vector<32x256xf32> -> vector<32x256xf32>
    %c0_76 = arith.constant 0 : index
    %c0_77 = arith.constant 0 : index
    %128 = vector.load %arg7[%c0_76, %c0_77] : memref<1x256xf32, #tpu.memory_space<vmem>>, vector<1x256xf32>
    %129 = vector.broadcast %128 : vector<1x256xf32> to vector<32x256xf32>
    %130 = arith.addf %127, %129 : vector<32x256xf32>
    %cst_78 = arith.constant 0.000000e+00 : f32
    %131 = vector.broadcast %cst_78 : f32 to vector<32x256xf32>
    %132 = arith.maximumf %130, %131 : vector<32x256xf32>
    %133 = vector.extract_strided_slice %132 {offsets = [0, 0], sizes = [4, 256], strides = [1, 1]} : vector<32x256xf32> to vector<4x256xf32>
    %134 = arith.truncf %133 : vector<4x256xf32> to vector<4x256xbf16>
    %c0_79 = arith.constant 0 : index
    %c0_80 = arith.constant 0 : index
    %c0_81 = arith.constant 0 : index
    %135 = vector.load %arg8[%c0_79, %c0_80, %c0_81] : memref<1x16x256xbf16, #tpu.memory_space<vmem>>, vector<1x4x256xbf16>
    %136 = vector.shape_cast %135 : vector<1x4x256xbf16> to vector<4x256xbf16>
    %137 = vector.shape_cast %134 : vector<4x256xbf16> to vector<1x4x256xbf16>
    tpu.vector_store %arg8[%c0_79, %c0_80, %c0_81], %137 {strides = array<i32>} : memref<1x16x256xbf16, #tpu.memory_space<vmem>>, vector<1x4x256xbf16>,
    %138 = vector.extract_strided_slice %132 {offsets = [8, 0], sizes = [4, 256], strides = [1, 1]} : vector<32x256xf32> to vector<4x256xf32>
    %139 = arith.truncf %138 : vector<4x256xf32> to vector<4x256xbf16>
    %c0_82 = arith.constant 0 : index
    %c4 = arith.constant 4 : index
    %c0_83 = arith.constant 0 : index
    %140 = vector.load %arg8[%c0_82, %c4, %c0_83] : memref<1x16x256xbf16, #tpu.memory_space<vmem>>, vector<1x4x256xbf16>
    %141 = vector.shape_cast %140 : vector<1x4x256xbf16> to vector<4x256xbf16>
    %142 = vector.shape_cast %139 : vector<4x256xbf16> to vector<1x4x256xbf16>
    tpu.vector_store %arg8[%c0_82, %c4, %c0_83], %142 {strides = array<i32>} : memref<1x16x256xbf16, #tpu.memory_space<vmem>>, vector<1x4x256xbf16>,
    %143 = vector.extract_strided_slice %132 {offsets = [16, 0], sizes = [4, 256], strides = [1, 1]} : vector<32x256xf32> to vector<4x256xf32>
    %144 = arith.truncf %143 : vector<4x256xf32> to vector<4x256xbf16>
    %c0_84 = arith.constant 0 : index
    %c8_85 = arith.constant 8 : index
    %c0_86 = arith.constant 0 : index
    %145 = vector.load %arg8[%c0_84, %c8_85, %c0_86] : memref<1x16x256xbf16, #tpu.memory_space<vmem>>, vector<1x4x256xbf16>
    %146 = vector.shape_cast %145 : vector<1x4x256xbf16> to vector<4x256xbf16>
    %147 = vector.shape_cast %144 : vector<4x256xbf16> to vector<1x4x256xbf16>
    tpu.vector_store %arg8[%c0_84, %c8_85, %c0_86], %147 {strides = array<i32>} : memref<1x16x256xbf16, #tpu.memory_space<vmem>>, vector<1x4x256xbf16>,
    %148 = vector.extract_strided_slice %132 {offsets = [24, 0], sizes = [4, 256], strides = [1, 1]} : vector<32x256xf32> to vector<4x256xf32>
    %149 = arith.truncf %148 : vector<4x256xf32> to vector<4x256xbf16>
    %c0_87 = arith.constant 0 : index
    %c12 = arith.constant 12 : index
    %c0_88 = arith.constant 0 : index
    %150 = vector.load %arg8[%c0_87, %c12, %c0_88] : memref<1x16x256xbf16, #tpu.memory_space<vmem>>, vector<1x4x256xbf16>
    %151 = vector.shape_cast %150 : vector<1x4x256xbf16> to vector<4x256xbf16>
    %152 = vector.shape_cast %149 : vector<4x256xbf16> to vector<1x4x256xbf16>
    tpu.vector_store %arg8[%c0_87, %c12, %c0_88], %152 {strides = array<i32>} : memref<1x16x256xbf16, #tpu.memory_space<vmem>>, vector<1x4x256xbf16>,
    return
  }
  func.func @transform_0(%arg0: i32) -> (i32, i32, i32) {
    %c0_i32 = arith.constant 0 : i32
    %c0_i32_0 = arith.constant 0 : i32
    %c0_i32_1 = arith.constant 0 : i32
    return %arg0, %c0_i32, %c0_i32_0 : i32, i32, i32
  }
  func.func @transform_1(%arg0: i32) -> (i32, i32) {
    %c0_i32 = arith.constant 0 : i32
    %c0_i32_0 = arith.constant 0 : i32
    %c0_i32_1 = arith.constant 0 : i32
    return %c0_i32, %c0_i32_0 : i32, i32
  }
  func.func @transform_2(%arg0: i32) -> (i32, i32) {
    %c0_i32 = arith.constant 0 : i32
    %c0_i32_0 = arith.constant 0 : i32
    %c0_i32_1 = arith.constant 0 : i32
    return %c0_i32, %c0_i32_0 : i32, i32
  }
  func.func @transform_3(%arg0: i32) -> (i32, i32) {
    %c0_i32 = arith.constant 0 : i32
    %c0_i32_0 = arith.constant 0 : i32
    %c0_i32_1 = arith.constant 0 : i32
    return %c0_i32, %c0_i32_0 : i32, i32
  }
  func.func @transform_4(%arg0: i32) -> (i32, i32) {
    %c0_i32 = arith.constant 0 : i32
    %c0_i32_0 = arith.constant 0 : i32
    %c0_i32_1 = arith.constant 0 : i32
    return %c0_i32, %c0_i32_0 : i32, i32
  }
  func.func @transform_5(%arg0: i32) -> (i32, i32) {
    %c0_i32 = arith.constant 0 : i32
    %c0_i32_0 = arith.constant 0 : i32
    %c0_i32_1 = arith.constant 0 : i32
    return %c0_i32, %c0_i32_0 : i32, i32
  }
  func.func @transform_6(%arg0: i32) -> (i32, i32) {
    %c0_i32 = arith.constant 0 : i32
    %c0_i32_0 = arith.constant 0 : i32
    %c0_i32_1 = arith.constant 0 : i32
    return %c0_i32, %c0_i32_0 : i32, i32
  }
  func.func @transform_7(%arg0: i32) -> (i32, i32, i32) {
    %c0_i32 = arith.constant 0 : i32
    %c0_i32_0 = arith.constant 0 : i32
    %c0_i32_1 = arith.constant 0 : i32
    return %arg0, %c0_i32, %c0_i32_0 : i32, i32, i32
  }
}

module attributes {stable_mosaic.version = 11 : i64} {
  func.func @_denoise_train_kernel(%arg0: i32, %arg1: memref<2x128xf32, #tpu.memory_space<vmem>>, %arg2: memref<1x128x32xbf16, #tpu.memory_space<vmem>>, %arg3: memref<1x16x32xbf16, #tpu.memory_space<vmem>>, %arg4: memref<1x1x32xf32, #tpu.memory_space<vmem>>, %arg5: memref<1x32x16xbf16, #tpu.memory_space<vmem>>, %arg6: memref<1x1x16xf32, #tpu.memory_space<vmem>>, %arg7: memref<1x2x16xf32, #tpu.memory_space<vmem>>, %arg8: memref<1x2x16xf32, #tpu.memory_space<vmem>>) attributes {dimension_semantics = [#tpu.dimension_semantics<parallel>], iteration_bounds = array<i64: 3>, scalar_prefetch = 0 : i64, scratch_operands = 0 : i64, tpu.core_type = #tpu.core_type<tc>, window_params = [{pipeline_mode = #tpu.pipeline_mode<synchronous>, transform_indices = @transform_0, window_bounds = array<i64: 2, 128>}, {transform_indices = @transform_1, window_bounds = array<i64: 1, 128, 32>}, {transform_indices = @transform_2, window_bounds = array<i64: 1, 16, 32>}, {transform_indices = @transform_3, window_bounds = array<i64: 1, 1, 32>}, {transform_indices = @transform_4, window_bounds = array<i64: 1, 32, 16>}, {transform_indices = @transform_5, window_bounds = array<i64: 1, 1, 16>}, {transform_indices = @transform_6, window_bounds = array<i64: 1, 2, 16>}, {transform_indices = @transform_7, window_bounds = array<i64: 1, 2, 16>}]} {
    %c0 = arith.constant 0 : index
    %c0_0 = arith.constant 0 : index
    %0 = vector.load %arg1[%c0, %c0_0] : memref<2x128xf32, #tpu.memory_space<vmem>>, vector<2x128xf32>
    %1 = arith.truncf %0 : vector<2x128xf32> to vector<2x128xbf16>
    %c0_1 = arith.constant 0 : index
    %c0_2 = arith.constant 0 : index
    %c0_3 = arith.constant 0 : index
    %2 = vector.load %arg2[%c0_1, %c0_2, %c0_3] : memref<1x128x32xbf16, #tpu.memory_space<vmem>>, vector<1x128x32xbf16>
    %3 = vector.shape_cast %2 : vector<1x128x32xbf16> to vector<128x32xbf16>
    %cst = arith.constant dense<0.000000e+00> : vector<2x32xf32>
    %4 = tpu.matmul %1, %3, %cst {dimension_numbers = #tpu.dot_dimension_numbers<[1], [0], [0], [1], [0, 0, 1, 1], [], []>} : vector<2x128xbf16>, vector<128x32xbf16>, vector<2x32xf32> -> vector<2x32xf32>
    %c0_4 = arith.constant 0 : index
    %c0_5 = arith.constant 0 : index
    %c0_6 = arith.constant 0 : index
    %5 = vector.load %arg7[%c0_4, %c0_5, %c0_6] : memref<1x2x16xf32, #tpu.memory_space<vmem>>, vector<1x2x16xf32>
    %6 = vector.shape_cast %5 : vector<1x2x16xf32> to vector<2x16xf32>
    %7 = arith.truncf %6 : vector<2x16xf32> to vector<2x16xbf16>
    %c0_7 = arith.constant 0 : index
    %c0_8 = arith.constant 0 : index
    %c0_9 = arith.constant 0 : index
    %8 = vector.load %arg3[%c0_7, %c0_8, %c0_9] : memref<1x16x32xbf16, #tpu.memory_space<vmem>>, vector<1x16x32xbf16>
    %9 = vector.shape_cast %8 : vector<1x16x32xbf16> to vector<16x32xbf16>
    %cst_10 = arith.constant dense<0.000000e+00> : vector<2x32xf32>
    %10 = tpu.matmul %7, %9, %cst_10 {dimension_numbers = #tpu.dot_dimension_numbers<[1], [0], [0], [1], [0, 0, 1, 1], [], []>} : vector<2x16xbf16>, vector<16x32xbf16>, vector<2x32xf32> -> vector<2x32xf32>
    %11 = arith.addf %4, %10 : vector<2x32xf32>
    %c0_11 = arith.constant 0 : index
    %c0_12 = arith.constant 0 : index
    %c0_13 = arith.constant 0 : index
    %12 = vector.load %arg4[%c0_11, %c0_12, %c0_13] : memref<1x1x32xf32, #tpu.memory_space<vmem>>, vector<1x1x32xf32>
    %13 = vector.shape_cast %12 : vector<1x1x32xf32> to vector<1x32xf32>
    %14 = vector.broadcast %13 : vector<1x32xf32> to vector<2x32xf32>
    %15 = arith.addf %11, %14 : vector<2x32xf32>
    %cst_14 = arith.constant 0.000000e+00 : f32
    %16 = vector.broadcast %cst_14 : f32 to vector<2x32xf32>
    %17 = arith.maximumf %15, %16 : vector<2x32xf32>
    %18 = arith.truncf %17 : vector<2x32xf32> to vector<2x32xbf16>
    %c0_15 = arith.constant 0 : index
    %c0_16 = arith.constant 0 : index
    %c0_17 = arith.constant 0 : index
    %19 = vector.load %arg5[%c0_15, %c0_16, %c0_17] : memref<1x32x16xbf16, #tpu.memory_space<vmem>>, vector<1x32x16xbf16>
    %20 = vector.shape_cast %19 : vector<1x32x16xbf16> to vector<32x16xbf16>
    %cst_18 = arith.constant dense<0.000000e+00> : vector<2x16xf32>
    %21 = tpu.matmul %18, %20, %cst_18 {dimension_numbers = #tpu.dot_dimension_numbers<[1], [0], [0], [1], [0, 0, 1, 1], [], []>} : vector<2x32xbf16>, vector<32x16xbf16>, vector<2x16xf32> -> vector<2x16xf32>
    %c0_19 = arith.constant 0 : index
    %c0_20 = arith.constant 0 : index
    %c0_21 = arith.constant 0 : index
    %22 = vector.load %arg6[%c0_19, %c0_20, %c0_21] : memref<1x1x16xf32, #tpu.memory_space<vmem>>, vector<1x1x16xf32>
    %23 = vector.shape_cast %22 : vector<1x1x16xf32> to vector<1x16xf32>
    %24 = vector.broadcast %23 : vector<1x16xf32> to vector<2x16xf32>
    %25 = arith.addf %21, %24 : vector<2x16xf32>
    %c0_22 = arith.constant 0 : index
    %c0_23 = arith.constant 0 : index
    %c0_24 = arith.constant 0 : index
    %26 = vector.load %arg8[%c0_22, %c0_23, %c0_24] : memref<1x2x16xf32, #tpu.memory_space<vmem>>, vector<1x2x16xf32>
    %27 = vector.shape_cast %26 : vector<1x2x16xf32> to vector<2x16xf32>
    %28 = vector.shape_cast %25 : vector<2x16xf32> to vector<1x2x16xf32>
    tpu.vector_store %arg8[%c0_22, %c0_23, %c0_24], %28 {strides = array<i32>} : memref<1x2x16xf32, #tpu.memory_space<vmem>>, vector<1x2x16xf32>,
    return
  }
  func.func @transform_0(%arg0: i32) -> (i32, i32) {
    %c0_i32 = arith.constant 0 : i32
    %c0_i32_0 = arith.constant 0 : i32
    %c0_i32_1 = arith.constant 0 : i32
    return %c0_i32, %c0_i32_0 : i32, i32
  }
  func.func @transform_1(%arg0: i32) -> (i32, i32, i32) {
    %c0_i32 = arith.constant 0 : i32
    %c0_i32_0 = arith.constant 0 : i32
    %c0_i32_1 = arith.constant 0 : i32
    return %arg0, %c0_i32, %c0_i32_0 : i32, i32, i32
  }
  func.func @transform_2(%arg0: i32) -> (i32, i32, i32) {
    %c0_i32 = arith.constant 0 : i32
    %c0_i32_0 = arith.constant 0 : i32
    %c0_i32_1 = arith.constant 0 : i32
    return %arg0, %c0_i32, %c0_i32_0 : i32, i32, i32
  }
  func.func @transform_3(%arg0: i32) -> (i32, i32, i32) {
    %c0_i32 = arith.constant 0 : i32
    %c0_i32_0 = arith.constant 0 : i32
    %c0_i32_1 = arith.constant 0 : i32
    return %arg0, %c0_i32, %c0_i32_0 : i32, i32, i32
  }
  func.func @transform_4(%arg0: i32) -> (i32, i32, i32) {
    %c0_i32 = arith.constant 0 : i32
    %c0_i32_0 = arith.constant 0 : i32
    %c0_i32_1 = arith.constant 0 : i32
    return %arg0, %c0_i32, %c0_i32_0 : i32, i32, i32
  }
  func.func @transform_5(%arg0: i32) -> (i32, i32, i32) {
    %c0_i32 = arith.constant 0 : i32
    %c0_i32_0 = arith.constant 0 : i32
    %c0_i32_1 = arith.constant 0 : i32
    return %arg0, %c0_i32, %c0_i32_0 : i32, i32, i32
  }
  func.func @transform_6(%arg0: i32) -> (i32, i32, i32) {
    %c0_i32 = arith.constant 0 : i32
    %c0_i32_0 = arith.constant 0 : i32
    %c0_i32_1 = arith.constant 0 : i32
    return %arg0, %c0_i32, %c0_i32_0 : i32, i32, i32
  }
  func.func @transform_7(%arg0: i32) -> (i32, i32, i32) {
    %c0_i32 = arith.constant 0 : i32
    %c0_i32_0 = arith.constant 0 : i32
    %c0_i32_1 = arith.constant 0 : i32
    return %arg0, %c0_i32, %c0_i32_0 : i32, i32, i32
  }
}

</mosaic_0001>

<llo_original>
// kernel: traditional_model_forward.5
$region0: #{traditional_model_forward.5}
  #allocation0 [shape = 'u32[]', space=smem, size = 0x4, offset = 0x4, fixed_abs, tag = 'smem constant byte address 0x4 - core index']
  #allocation1 [shape = 'u32[144,128]{1,0:T(1,128)}', space=vmem, size = 0x12000, scoped, tag = 'internal scratch']
  %s0 = inlined_call_operand.vmem [shape: f32[2,128], index: 0, kind: input, shape index: {}]
  %s1 = inlined_call_operand.vmem [shape: bf16[3,128,32], index: 1, kind: input, shape index: {}]
  %s2 = inlined_call_operand.vmem [shape: bf16[3,16,32], index: 2, kind: input, shape index: {}]
  %s3 = inlined_call_operand.vmem [shape: f32[3,1,32], index: 3, kind: input, shape index: {}]
  %s4 = inlined_call_operand.vmem [shape: bf16[3,32,16], index: 4, kind: input, shape index: {}]
  %s5 = inlined_call_operand.vmem [shape: f32[3,1,16], index: 5, kind: input, shape index: {}]
  %s6 = inlined_call_operand.vmem [shape: f32[3,2,16], index: 6, kind: input, shape index: {}]
  %s7 = inlined_call_operand.vmem [shape: f32[3,2,16], index: 7, kind: output, shape index: {}]
  %s8 = sld [smem:[#allocation0]]
  $region61: #{traditional_model_forward.5} parent=0
    _
  %s10 = ssub.s32 1, %s8
  %s11 = scalar_select 0, %s10, %s8
  loop: start=0, step=1, limit=5
  $region2: #{traditional_model_forward.5} parent=0 // loop_pre_header
    _
  $region3: #{traditional_model_forward.5} parent=0 // loop_header
    %s13 = sphi 0, %s17
    %p14 = scmp.ge.s32.totalorder %s13, 5
    %s21 = sphi 0, %s21
    %s23 = sphi 0, %s21
    %s24 = sphi 0, %s23
    %s38 = sphi 0, %s24
    %s44 = sphi 0, %s46
    %s47 = sphi 0, %s44
    %s48 = sphi 0, %s47
    %s64 = sphi 0, %s48
    %s70 = sphi 0, %s72
    %s73 = sphi 0, %s70
    %s74 = sphi 0, %s73
    %s90 = sphi 0, %s74
    %s96 = sphi 0, %s98
    %s99 = sphi 0, %s96
    %s100 = sphi 0, %s99
    %s116 = sphi 0, %s100
    %s122 = sphi 0, %s124
    %s125 = sphi 0, %s122
    %s126 = sphi 0, %s125
    %s142 = sphi 0, %s126
    %s148 = sphi 0, %s150
    %s151 = sphi 0, %s148
    %s152 = sphi 0, %s151
    %s168 = sphi 0, %s152
    %s174 = sphi 0, %s176
    %s177 = sphi 0, %s174
    %s178 = sphi 0, %s177
    %s194 = sphi 0, %s178
    %s200 = sphi 0, %s202
    %s203 = sphi 0, %s200
    %s204 = sphi 0, %s203
    %s220 = sphi 0, %s204
  $region4: #{traditional_model_forward.5} parent=0 // loop_header_branch
    %16 = sbr.rel (%p14) target = $region8
  $region5: #{traditional_model_forward.5} parent=0 // loop_body
    %s18 = ssub.s32 %s13, 1
    %s19 = ssub.s32 %s13, 2
    %s20 = sadd.s32 %s13, 1
    %s22 = sadd.s32 %s21, 1
    %p25 = scmp.eq.s32.totalorder %s13, 2
    %p26 = scmp.ne.s32.totalorder %s21, %s23
    %p27 = scmp.eq.s32.totalorder %s13, 0
    %p28 = por %p26, %p27
    %p29 = scmp.ne.s32.totalorder %s21, %s23
    %p30 = scmp.eq.s32.totalorder %s18, 2
    %p31 = por %p29, %p30
    %p32 = scmp.ne.s32.totalorder %s23, %s24
    %p33 = scmp.eq.s32.totalorder %s18, 0
    %p34 = por %p32, %p33
    %p35 = scmp.ne.s32.totalorder %s23, %s24
    %p36 = scmp.eq.s32.totalorder %s19, 2
    %p37 = por %p35, %p36
    %p39 = scmp.ne.s32.totalorder %s24, %s38
    %p40 = scmp.eq.s32.totalorder %s19, 0
    %p41 = por %p39, %p40
    %s42 = ssub.s32 %s13, %s20
    %p43 = scmp.eq.s32.totalorder %s42, 0
    %s45 = sadd.s32 %s44, 1
    %s46 = scalar_select %p43, %s44, %s45
    %p49 = pneg %p43
    %p50 = scmp.eq.s32.totalorder %s13, 2
    %p51 = por %p49, %p50
    %p52 = scmp.ne.s32.totalorder %s44, %s47
    %p53 = scmp.eq.s32.totalorder %s13, 0
    %p54 = por %p52, %p53
    %p55 = scmp.ne.s32.totalorder %s44, %s47
    %p56 = scmp.eq.s32.totalorder %s18, 2
    %p57 = por %p55, %p56
    %p58 = scmp.ne.s32.totalorder %s47, %s48
    %p59 = scmp.eq.s32.totalorder %s18, 0
    %p60 = por %p58, %p59
    %p61 = scmp.ne.s32.totalorder %s47, %s48
    %p62 = scmp.eq.s32.totalorder %s19, 2
    %p63 = por %p61, %p62
    %p65 = scmp.ne.s32.totalorder %s48, %s64
    %p66 = scmp.eq.s32.totalorder %s19, 0
    %p67 = por %p65, %p66
    %s68 = ssub.s32 %s13, %s20
    %p69 = scmp.eq.s32.totalorder %s68, 0
    %s71 = sadd.s32 %s70, 1
    %s72 = scalar_select %p69, %s70, %s71
    %p75 = pneg %p69
    %p76 = scmp.eq.s32.totalorder %s13, 2
    %p77 = por %p75, %p76
    %p78 = scmp.ne.s32.totalorder %s70, %s73
    %p79 = scmp.eq.s32.totalorder %s13, 0
    %p80 = por %p78, %p79
    %p81 = scmp.ne.s32.totalorder %s70, %s73
    %p82 = scmp.eq.s32.totalorder %s18, 2
    %p83 = por %p81, %p82
    %p84 = scmp.ne.s32.totalorder %s73, %s74
    %p85 = scmp.eq.s32.totalorder %s18, 0
    %p86 = por %p84, %p85
    %p87 = scmp.ne.s32.totalorder %s73, %s74
    %p88 = scmp.eq.s32.totalorder %s19, 2
    %p89 = por %p87, %p88
    %p91 = scmp.ne.s32.totalorder %s74, %s90
    %p92 = scmp.eq.s32.totalorder %s19, 0
    %p93 = por %p91, %p92
    %s94 = ssub.s32 %s13, %s20
    %p95 = scmp.eq.s32.totalorder %s94, 0
    %s97 = sadd.s32 %s96, 1
    %s98 = scalar_select %p95, %s96, %s97
    %p101 = pneg %p95
    %p102 = scmp.eq.s32.totalorder %s13, 2
    %p103 = por %p101, %p102
    %p104 = scmp.ne.s32.totalorder %s96, %s99
    %p105 = scmp.eq.s32.totalorder %s13, 0
    %p106 = por %p104, %p105
    %p107 = scmp.ne.s32.totalorder %s96, %s99
    %p108 = scmp.eq.s32.totalorder %s18, 2
    %p109 = por %p107, %p108
    %p110 = scmp.ne.s32.totalorder %s99, %s100
    %p111 = scmp.eq.s32.totalorder %s18, 0
    %p112 = por %p110, %p111
    %p113 = scmp.ne.s32.totalorder %s99, %s100
    %p114 = scmp.eq.s32.totalorder %s19, 2
    %p115 = por %p113, %p114
    %p117 = scmp.ne.s32.totalorder %s100, %s116
    %p118 = scmp.eq.s32.totalorder %s19, 0
    %p119 = por %p117, %p118
    %s120 = ssub.s32 %s13, %s20
    %p121 = scmp.eq.s32.totalorder %s120, 0
    %s123 = sadd.s32 %s122, 1
    %s124 = scalar_select %p121, %s122, %s123
    %p127 = pneg %p121
    %p128 = scmp.eq.s32.totalorder %s13, 2
    %p129 = por %p127, %p128
    %p130 = scmp.ne.s32.totalorder %s122, %s125
    %p131 = scmp.eq.s32.totalorder %s13, 0
    %p132 = por %p130, %p131
    %p133 = scmp.ne.s32.totalorder %s122, %s125
    %p134 = scmp.eq.s32.totalorder %s18, 2
    %p135 = por %p133, %p134
    %p136 = scmp.ne.s32.totalorder %s125, %s126
    %p137 = scmp.eq.s32.totalorder %s18, 0
    %p138 = por %p136, %p137
    %p139 = scmp.ne.s32.totalorder %s125, %s126
    %p140 = scmp.eq.s32.totalorder %s19, 2
    %p141 = por %p139, %p140
    %p143 = scmp.ne.s32.totalorder %s126, %s142
    %p144 = scmp.eq.s32.totalorder %s19, 0
    %p145 = por %p143, %p144
    %s146 = ssub.s32 %s13, %s20
    %p147 = scmp.eq.s32.totalorder %s146, 0
    %s149 = sadd.s32 %s148, 1
    %s150 = scalar_select %p147, %s148, %s149
    %p153 = pneg %p147
    %p154 = scmp.eq.s32.totalorder %s13, 2
    %p155 = por %p153, %p154
    %p156 = scmp.ne.s32.totalorder %s148, %s151
    %p157 = scmp.eq.s32.totalorder %s13, 0
    %p158 = por %p156, %p157
    %p159 = scmp.ne.s32.totalorder %s148, %s151
    %p160 = scmp.eq.s32.totalorder %s18, 2
    %p161 = por %p159, %p160
    %p162 = scmp.ne.s32.totalorder %s151, %s152
    %p163 = scmp.eq.s32.totalorder %s18, 0
    %p164 = por %p162, %p163
    %p165 = scmp.ne.s32.totalorder %s151, %s152
    %p166 = scmp.eq.s32.totalorder %s19, 2
    %p167 = por %p165, %p166
    %p169 = scmp.ne.s32.totalorder %s152, %s168
    %p170 = scmp.eq.s32.totalorder %s19, 0
    %p171 = por %p169, %p170
    %s172 = ssub.s32 %s13, %s20
    %p173 = scmp.eq.s32.totalorder %s172, 0
    %s175 = sadd.s32 %s174, 1
    %s176 = scalar_select %p173, %s174, %s175
    %p179 = pneg %p173
    %p180 = scmp.eq.s32.totalorder %s13, 2
    %p181 = por %p179, %p180
    %p182 = scmp.ne.s32.totalorder %s174, %s177
    %p183 = scmp.eq.s32.totalorder %s13, 0
    %p184 = por %p182, %p183
    %p185 = scmp.ne.s32.totalorder %s174, %s177
    %p186 = scmp.eq.s32.totalorder %s18, 2
    %p187 = por %p185, %p186
    %p188 = scmp.ne.s32.totalorder %s177, %s178
    %p189 = scmp.eq.s32.totalorder %s18, 0
    %p190 = por %p188, %p189
    %p191 = scmp.ne.s32.totalorder %s177, %s178
    %p192 = scmp.eq.s32.totalorder %s19, 2
    %p193 = por %p191, %p192
    %p195 = scmp.ne.s32.totalorder %s178, %s194
    %p196 = scmp.eq.s32.totalorder %s19, 0
    %p197 = por %p195, %p196
    %s198 = ssub.s32 %s13, %s20
    %p199 = scmp.eq.s32.totalorder %s198, 0
    %s201 = sadd.s32 %s200, 1
    %s202 = scalar_select %p199, %s200, %s201
    %p205 = pneg %p199
    %p206 = scmp.eq.s32.totalorder %s13, 2
    %p207 = por %p205, %p206
    %p208 = scmp.ne.s32.totalorder %s200, %s203
    %p209 = scmp.eq.s32.totalorder %s13, 0
    %p210 = por %p208, %p209
    %p211 = scmp.ne.s32.totalorder %s200, %s203
    %p212 = scmp.eq.s32.totalorder %s18, 2
    %p213 = por %p211, %p212
    %p214 = scmp.ne.s32.totalorder %s203, %s204
    %p215 = scmp.eq.s32.totalorder %s18, 0
    %p216 = por %p214, %p215
    %p217 = scmp.ne.s32.totalorder %s203, %s204
    %p218 = scmp.eq.s32.totalorder %s19, 2
    %p219 = por %p217, %p218
    %p221 = scmp.ne.s32.totalorder %s204, %s220
    %p222 = scmp.eq.s32.totalorder %s19, 0
    %p223 = por %p221, %p222
    %p224 = scmp.le.s32.totalorder 1, %s13
    %p225 = scmp.lt.s32.totalorder %s13, 4
    %p226 = pnand %p224, %p225
    %p227 = pneg %p226
    // Predicated region
    $region9: #{traditional_model_forward.5} parent=5 // pred_check
      _
    $region10: #{traditional_model_forward.5} parent=5 // pred_check_branch
      %229 = sbr.rel (%p226) target = $region12
    $region11: #{traditional_model_forward.5} parent=5 // pred_region
      %s230 = ssub.s32 %s13, 1
      // Predicated region
      $region13: #{traditional_model_forward.5} parent=11 // pred_check
        %p231 = pneg %p34
      $region14: #{traditional_model_forward.5} parent=11 // pred_check_branch
        %233 = sbr.rel (%p231) target = $region16
      $region15: #{traditional_model_forward.5} parent=11 // pred_region
        _
      $region16: #{traditional_model_forward.5} parent=11 // pred_fallthru
        _
    $region12: #{traditional_model_forward.5} parent=5 // pred_fallthru
      _
    %p234 = scmp.lt.s32.totalorder %s13, 3
    // Predicated region
    $region17: #{traditional_model_forward.5} parent=5 // pred_check
      %p235 = pneg %p234
    $region18: #{traditional_model_forward.5} parent=5 // pred_check_branch
      %237 = sbr.rel (%p235) target = $region20
    $region19: #{traditional_model_forward.5} parent=5 // pred_region
      // Predicated region
      $region21: #{traditional_model_forward.5} parent=19 // pred_check
        %p238 = pneg %p54
      $region22: #{traditional_model_forward.5} parent=19 // pred_check_branch
        %240 = sbr.rel (%p238) target = $region24
      $region23: #{traditional_model_forward.5} parent=19 // pred_region
        %p241 = scmp.lt.s32.totalorder %s13, 2
        %s242 = scalar_select %p241, %s13, 2
        %s243 = smul.addr %s242, 16
        %s244 = smul.addr %s243, 4
        %s245 = scalar_lea.vmem %s1, %s244
      $region24: #{traditional_model_forward.5} parent=19 // pred_fallthru
        _
      // Predicated region
      $region25: #{traditional_model_forward.5} parent=19 // pred_check
        %p246 = pneg %p80
      $region26: #{traditional_model_forward.5} parent=19 // pred_check_branch
        %248 = sbr.rel (%p246) target = $region28
      $region27: #{traditional_model_forward.5} parent=19 // pred_region
        %p249 = scmp.lt.s32.totalorder %s13, 2
        %s250 = scalar_select %p249, %s13, 2
        %s251 = smul.addr %s250, 2
        %s252 = smul.addr %s251, 4
        %s253 = scalar_lea.vmem %s2, %s252
      $region28: #{traditional_model_forward.5} parent=19 // pred_fallthru
        _
      // Predicated region
      $region29: #{traditional_model_forward.5} parent=19 // pred_check
        %p254 = pneg %p106
      $region30: #{traditional_model_forward.5} parent=19 // pred_check_branch
        %256 = sbr.rel (%p254) target = $region32
      $region31: #{traditional_model_forward.5} parent=19 // pred_region
        %p257 = scmp.lt.s32.totalorder %s13, 2
        %s258 = scalar_select %p257, %s13, 2
        %s259 = scalar_lea.vmem %s3, %s258
      $region32: #{traditional_model_forward.5} parent=19 // pred_fallthru
        _
      // Predicated region
      $region33: #{traditional_model_forward.5} parent=19 // pred_check
        %p260 = pneg %p132
      $region34: #{traditional_model_forward.5} parent=19 // pred_check_branch
        %262 = sbr.rel (%p260) target = $region36
      $region35: #{traditional_model_forward.5} parent=19 // pred_region
        %p263 = scmp.lt.s32.totalorder %s13, 2
        %s264 = scalar_select %p263, %s13, 2
        %s265 = smul.addr %s264, 4
        %s266 = smul.addr %s265, 4
        %s267 = scalar_lea.vmem %s4, %s266
      $region36: #{traditional_model_forward.5} parent=19 // pred_fallthru
        _
      // Predicated region
      $region37: #{traditional_model_forward.5} parent=19 // pred_check
        %p268 = pneg %p158
      $region38: #{traditional_model_forward.5} parent=19 // pred_check_branch
        %270 = sbr.rel (%p268) target = $region40
      $region39: #{traditional_model_forward.5} parent=19 // pred_region
        %p271 = scmp.lt.s32.totalorder %s13, 2
        %s272 = scalar_select %p271, %s13, 2
        %s273 = scalar_lea.vmem %s5, %s272
      $region40: #{traditional_model_forward.5} parent=19 // pred_fallthru
        _
      // Predicated region
      $region41: #{traditional_model_forward.5} parent=19 // pred_check
        %p274 = pneg %p184
      $region42: #{traditional_model_forward.5} parent=19 // pred_check_branch
        %276 = sbr.rel (%p274) target = $region44
      $region43: #{traditional_model_forward.5} parent=19 // pred_region
        %p277 = scmp.lt.s32.totalorder %s13, 2
        %s278 = scalar_select %p277, %s13, 2
        %s279 = smul.addr %s278, 2
        %s280 = scalar_lea.vmem %s6, %s279
      $region44: #{traditional_model_forward.5} parent=19 // pred_fallthru
        _
    $region20: #{traditional_model_forward.5} parent=5 // pred_fallthru
      _
    %p281 = scmp.le.s32.totalorder 1, %s13
    %p282 = scmp.lt.s32.totalorder %s13, 4
    %p283 = pnand %p281, %p282
    %p284 = pneg %p283
    // Predicated region
    $region45: #{traditional_model_forward.5} parent=5 // pred_check
      _
    $region46: #{traditional_model_forward.5} parent=5 // pred_check_branch
      %286 = sbr.rel (%p283) target = $region48
    $region47: #{traditional_model_forward.5} parent=5 // pred_region
      %s287 = ssub.s32 %s13, 1
      %p288 = pneg %p34
      %p289 = pneg %p31
      %p290 = scmp.lt.s32.totalorder %s18, 2
      %s291 = scalar_select %p290, %s18, 2
      %s292 = smul.addr %s291, 16
      %s293 = smul.addr %s292, 4
      %s294 = scalar_lea.vmem %s1, %s293
      %p295 = pneg %p60
      %p296 = pneg %p57
      %p297 = scmp.lt.s32.totalorder %s18, 2
      %s298 = scalar_select %p297, %s18, 2
      %s299 = smul.addr %s298, 2
      %s300 = smul.addr %s299, 4
      %s301 = scalar_lea.vmem %s2, %s300
      %p302 = pneg %p86
      %p303 = pneg %p83
      %p304 = scmp.lt.s32.totalorder %s18, 2
      %s305 = scalar_select %p304, %s18, 2
      %s306 = scalar_lea.vmem %s3, %s305
      %p307 = pneg %p112
      %p308 = pneg %p109
      %p309 = scmp.lt.s32.totalorder %s18, 2
      %s310 = scalar_select %p309, %s18, 2
      %s311 = smul.addr %s310, 4
      %s312 = smul.addr %s311, 4
      %s313 = scalar_lea.vmem %s4, %s312
      %p314 = pneg %p138
      %p315 = pneg %p135
      %p316 = scmp.lt.s32.totalorder %s18, 2
      %s317 = scalar_select %p316, %s18, 2
      %s318 = scalar_lea.vmem %s5, %s317
      %p319 = pneg %p164
      %p320 = pneg %p161
      %p321 = scmp.lt.s32.totalorder %s18, 2
      %s322 = scalar_select %p321, %s18, 2
      %s323 = smul.addr %s322, 2
      %s324 = scalar_lea.vmem %s6, %s323
      %p325 = pneg %p190
      %p326 = pneg %p187
      %p327 = pneg %p216
      %p328 = pneg %p213
      %p329 = scmp.lt.s32.totalorder %s18, 2
      %s330 = scalar_select %p329, %s18, 2
      %s331 = smul.addr %s330, 2
      %s332 = scalar_lea.vmem %s7, %s331
      %p333 = scmp.lt.s32.totalorder %s18, 2
      %s334 = scalar_select %p333, %s18, 2
      %s335 = smul.addr %s334, 16
      %s336 = smul.addr %s335, 4
      %s337 = scalar_lea.vmem %s1, %s336
      %p338 = scmp.lt.s32.totalorder %s18, 2
      %s339 = scalar_select %p338, %s18, 2
      %s340 = smul.addr %s339, 2
      %s341 = smul.addr %s340, 4
      %s342 = scalar_lea.vmem %s2, %s341
      %p343 = scmp.lt.s32.totalorder %s18, 2
      %s344 = scalar_select %p343, %s18, 2
      %s345 = scalar_lea.vmem %s3, %s344
      %p346 = scmp.lt.s32.totalorder %s18, 2
      %s347 = scalar_select %p346, %s18, 2
      %s348 = smul.addr %s347, 4
      %s349 = smul.addr %s348, 4
      %s350 = scalar_lea.vmem %s4, %s349
      %p351 = scmp.lt.s32.totalorder %s18, 2
      %s352 = scalar_select %p351, %s18, 2
      %s353 = scalar_lea.vmem %s5, %s352
      %p354 = scmp.lt.s32.totalorder %s18, 2
      %s355 = scalar_select %p354, %s18, 2
      %s356 = smul.addr %s355, 2
      %s357 = scalar_lea.vmem %s6, %s356
      %p358 = scmp.lt.s32.totalorder %s18, 2
      %s359 = scalar_select %p358, %s18, 2
      %s360 = smul.addr %s359, 2
      %s361 = scalar_lea.vmem %s7, %s360
      %v363 = vld [vmem:[%s0] sm:$0x3]
      %v364 = vpack.c.bf16 %v363, %v363
      %v365 = vld [vmem:[%s337] sm:$0xf]
      %v366 = vld [vmem:[%s337 + $0x4] sm:$0xf]
      %v367 = vld [vmem:[%s337 + $0x8] sm:$0xf]
      %v368 = vld [vmem:[%s337 + $0xc] sm:$0xf]
      %v369 = vld [vmem:[%s337 + $0x10] sm:$0xf]
      %v370 = vld [vmem:[%s337 + $0x14] sm:$0xf]
      %v371 = vld [vmem:[%s337 + $0x18] sm:$0xf]
      %v372 = vld [vmem:[%s337 + $0x1c] sm:$0xf]
      %v373 = vld [vmem:[%s337 + $0x20] sm:$0xf]
      %v374 = vld [vmem:[%s337 + $0x24] sm:$0xf]
      %v375 = vld [vmem:[%s337 + $0x28] sm:$0xf]
      %v376 = vld [vmem:[%s337 + $0x2c] sm:$0xf]
      %v377 = vld [vmem:[%s337 + $0x30] sm:$0xf]
      %v378 = vld [vmem:[%s337 + $0x34] sm:$0xf]
      %v379 = vld [vmem:[%s337 + $0x38] sm:$0xf]
      %v380 = vld [vmem:[%s337 + $0x3c] sm:$0xf]
      %v381 = vld [vmem:[%s357] sm:$0x3]
      %v382 = vpack.c.bf16 %v381, %v381
      %v383 = vld [vmem:[%s342] sm:$0xf]
      %v384 = vld [vmem:[%s342 + $0x4] sm:$0xf]
      %v387 = vunpack.c.l.b16 %v383
      %v388 = vunpack.c.l.b16 %v384
      %v389 = vpack.c.b16 %v388, %v387
      %vm391 = vcmask 130048
      %v393 = vsel %vm391, %v382, 0
      %395 = vmatprep.subr.bf16.mxu0 0
      %396 = vmatpush1.bf16.msra.mxu0 %v389
      %397 = vmatprep.subr.bf16.mxu0 0
      %398 = vmatpush1.bf16.msra.mxu0 0
      %399 = vmatprep.subr.bf16.mxu0 0
      %400 = vmatpush1.bf16.msra.mxu0 0
      %401 = vmatprep.subr.bf16.mxu0 0
      %402 = vmatpush1.bf16.msra.mxu0 0
      %403 = vmatprep.subr.bf16.mxu0 0
      %404 = vmatpush1.bf16.msra.mxu0 0
      %405 = vmatprep.subr.bf16.mxu0 0
      %406 = vmatpush1.bf16.msra.mxu0 0
      %407 = vmatprep.subr.bf16.mxu0 0
      %408 = vmatpush1.bf16.msra.mxu0 0
      %409 = vmatprep.subr.bf16.mxu0 0
      %410 = vmatpush1.bf16.msra.mxu0 0
      %411 = vmatprep.subr.bf16.mxu0 0
      %412 = vmatpush1.bf16.msra.mxu0 0
      %413 = vmatprep.subr.bf16.mxu0 0
      %414 = vmatpush1.bf16.msra.mxu0 0
      %415 = vmatprep.subr.bf16.mxu0 0
      %416 = vmatpush1.bf16.msra.mxu0 0
      %417 = vmatprep.subr.bf16.mxu0 0
      %418 = vmatpush1.bf16.msra.mxu0 0
      %419 = vmatprep.subr.bf16.mxu0 0
      %420 = vmatpush1.bf16.msra.mxu0 0
      %421 = vmatprep.subr.bf16.mxu0 0
      %422 = vmatpush1.bf16.msra.mxu0 0
      %423 = vmatprep.subr.bf16.mxu0 0
      %424 = vmatpush1.bf16.msra.mxu0 0
      %425 = vmatprep.subr.bf16.mxu0 0
      %426 = vmatpush1.bf16.msra.mxu0 0
      %427 = vmatprep.mubr.bf16.mxu0 0
      %428 = vmatmul.mubr.bf16.gmra.mrb[0].mxu0 %v393
      %v429 = vpop.f32.mrb[0].mxu0
      %v430 = vadd.f32 0.0, %v429
      %v431 = vpop.f32.mrb[0].mxu0
      %v432 = vpop.f32.mrb[0].mxu0
      %v433 = vpop.f32.mrb[0].mxu0
      %434 = vdwg.mxu0
      %v451 = vunpack.c.l.b16 %v365
      %v452 = vunpack.c.l.b16 %v366
      %v453 = vunpack.c.l.b16 %v367
      %v454 = vunpack.c.l.b16 %v368
      %v455 = vunpack.c.l.b16 %v369
      %v456 = vunpack.c.l.b16 %v370
      %v457 = vunpack.c.l.b16 %v371
      %v458 = vunpack.c.l.b16 %v372
      %v459 = vunpack.c.l.b16 %v373
      %v460 = vunpack.c.l.b16 %v374
      %v461 = vunpack.c.l.b16 %v375
      %v462 = vunpack.c.l.b16 %v376
      %v463 = vunpack.c.l.b16 %v377
      %v464 = vunpack.c.l.b16 %v378
      %v465 = vunpack.c.l.b16 %v379
      %v466 = vunpack.c.l.b16 %v380
      %v467 = vpack.c.b16 %v452, %v451
      %v468 = vpack.c.b16 %v454, %v453
      %v469 = vpack.c.b16 %v456, %v455
      %v470 = vpack.c.b16 %v458, %v457
      %v471 = vpack.c.b16 %v460, %v459
      %v472 = vpack.c.b16 %v462, %v461
      %v473 = vpack.c.b16 %v464, %v463
      %v474 = vpack.c.b16 %v466, %v465
      %483 = vmatprep.subr.bf16.mxu0 0
      %484 = vmatpush1.bf16.msra.mxu0 %v467
      %485 = vmatprep.subr.bf16.mxu0 0
      %486 = vmatpush1.bf16.msra.mxu0 %v468
      %487 = vmatprep.subr.bf16.mxu0 0
      %488 = vmatpush1.bf16.msra.mxu0 %v469
      %489 = vmatprep.subr.bf16.mxu0 0
      %490 = vmatpush1.bf16.msra.mxu0 %v470
      %491 = vmatprep.subr.bf16.mxu0 0
      %492 = vmatpush1.bf16.msra.mxu0 %v471
      %493 = vmatprep.subr.bf16.mxu0 0
      %494 = vmatpush1.bf16.msra.mxu0 %v472
      %495 = vmatprep.subr.bf16.mxu0 0
      %496 = vmatpush1.bf16.msra.mxu0 %v473
      %497 = vmatprep.subr.bf16.mxu0 0
      %498 = vmatpush1.bf16.msra.mxu0 %v474
      %499 = vmatprep.subr.bf16.mxu0 0
      %500 = vmatpush1.bf16.msra.mxu0 0
      %501 = vmatprep.subr.bf16.mxu0 0
      %502 = vmatpush1.bf16.msra.mxu0 0
      %503 = vmatprep.subr.bf16.mxu0 0
      %504 = vmatpush1.bf16.msra.mxu0 0
      %505 = vmatprep.subr.bf16.mxu0 0
      %506 = vmatpush1.bf16.msra.mxu0 0
      %507 = vmatprep.subr.bf16.mxu0 0
      %508 = vmatpush1.bf16.msra.mxu0 0
      %509 = vmatprep.subr.bf16.mxu0 0
      %510 = vmatpush1.bf16.msra.mxu0 0
      %511 = vmatprep.subr.bf16.mxu0 0
      %512 = vmatpush1.bf16.msra.mxu0 0
      %513 = vmatprep.subr.bf16.mxu0 0
      %514 = vmatpush1.bf16.msra.mxu0 0
      %515 = vmatprep.mubr.bf16.mxu0 0
      %516 = vmatmul.mubr.bf16.gmra.mrb[0].mxu0 %v364
      %v517 = vpop.f32.mrb[0].mxu0
      %v518 = vadd.f32 %v430, %v517
      %v519 = vpop.f32.mrb[0].mxu0
      %v520 = vpop.f32.mrb[0].mxu0
      %v521 = vpop.f32.mrb[0].mxu0
      %522 = vdwg.mxu0
      %v523 = vld [vmem:[%s345] sm:$0x1]
      %v525 = vlaneseq
      %v526 = vshrl.u32 %v525, 7
      %v527 = vsub.s32 0, %v526
      %v528 = vrot.slane %v523, %v527
      %v530 = vadd.f32 %v518, %v528
      %v531 = vmax.f32 %v530, 0.0
      %v532 = vpack.c.bf16 %v531, %v531
      %v533 = vld [vmem:[%s350] sm:$0xf]
      %v534 = vld [vmem:[%s350 + $0x4] sm:$0xf]
      %v535 = vld [vmem:[%s350 + $0x8] sm:$0xf]
      %v536 = vld [vmem:[%s350 + $0xc] sm:$0xf]
      %v537 = vld [vmem:[%s353] sm:$0x1]
      %v539 = vlaneseq
      %v540 = vshrl.u32 %v539, 7
      %v541 = vsub.s32 0, %v540
      %v542 = vrot.slane %v537, %v541
      %v548 = vunpack.c.l.b16 %v533
      %v549 = vunpack.c.l.b16 %v534
      %v550 = vunpack.c.l.b16 %v535
      %v551 = vunpack.c.l.b16 %v536
      %v552 = vpack.c.b16 %v549, %v548
      %v553 = vpack.c.b16 %v551, %v550
      %vm556 = vcmask 261120
      %v558 = vsel %vm556, %v532, 0
      %560 = vmatprep.subr.bf16.mxu0 0
      %561 = vmatpush1.bf16.msra.mxu0 %v552
      %562 = vmatprep.subr.bf16.mxu0 0
      %563 = vmatpush1.bf16.msra.mxu0 %v553
      %564 = vmatprep.subr.bf16.mxu0 0
      %565 = vmatpush1.bf16.msra.mxu0 0
      %566 = vmatprep.subr.bf16.mxu0 0
      %567 = vmatpush1.bf16.msra.mxu0 0
      %568 = vmatprep.subr.bf16.mxu0 0
      %569 = vmatpush1.bf16.msra.mxu0 0
      %570 = vmatprep.subr.bf16.mxu0 0
      %571 = vmatpush1.bf16.msra.mxu0 0
      %572 = vmatprep.subr.bf16.mxu0 0
      %573 = vmatpush1.bf16.msra.mxu0 0
      %574 = vmatprep.subr.bf16.mxu0 0
      %575 = vmatpush1.bf16.msra.mxu0 0
      %576 = vmatprep.subr.bf16.mxu0 0
      %577 = vmatpush1.bf16.msra.mxu0 0
      %578 = vmatprep.subr.bf16.mxu0 0
      %579 = vmatpush1.bf16.msra.mxu0 0
      %580 = vmatprep.subr.bf16.mxu0 0
      %581 = vmatpush1.bf16.msra.mxu0 0
      %582 = vmatprep.subr.bf16.mxu0 0
      %583 = vmatpush1.bf16.msra.mxu0 0
      %584 = vmatprep.subr.bf16.mxu0 0
      %585 = vmatpush1.bf16.msra.mxu0 0
      %586 = vmatprep.subr.bf16.mxu0 0
      %587 = vmatpush1.bf16.msra.mxu0 0
      %588 = vmatprep.subr.bf16.mxu0 0
      %589 = vmatpush1.bf16.msra.mxu0 0
      %590 = vmatprep.subr.bf16.mxu0 0
      %591 = vmatpush1.bf16.msra.mxu0 0
      %592 = vmatprep.mubr.bf16.mxu0 0
      %593 = vmatmul.mubr.bf16.gmra.mrb[0].mxu0 %v558
      %v594 = vpop.f32.mrb[0].mxu0
      %v595 = vadd.f32 %v542, %v594
      %v596 = vpop.f32.mrb[0].mxu0
      %v597 = vpop.f32.mrb[0].mxu0
      %v598 = vpop.f32.mrb[0].mxu0
      %599 = vdwg.mxu0
      %vm600 = vcmask 123904
      %601 = vst.msk [vmem:[%s361] sm:$0x3] %vm600, %v595
      %p602 = scmp.lt.s32.totalorder %s18, 2
      %s603 = scalar_select %p602, %s18, 2
      %s604 = smul.addr %s603, 2
      %s605 = scalar_lea.vmem %s7, %s604
      // Predicated region
      $region49: #{traditional_model_forward.5} parent=47 // pred_check
        %p606 = pneg %p213
      $region50: #{traditional_model_forward.5} parent=47 // pred_check_branch
        %608 = sbr.rel (%p606) target = $region52
      $region51: #{traditional_model_forward.5} parent=47 // pred_region
        _
      $region52: #{traditional_model_forward.5} parent=47 // pred_fallthru
        _
    $region48: #{traditional_model_forward.5} parent=5 // pred_fallthru
      _
    %p609 = scmp.le.s32.totalorder 2, %s13
    // Predicated region
    $region53: #{traditional_model_forward.5} parent=5 // pred_check
      %p610 = pneg %p609
    $region54: #{traditional_model_forward.5} parent=5 // pred_check_branch
      %612 = sbr.rel (%p610) target = $region56
    $region55: #{traditional_model_forward.5} parent=5 // pred_region
      %s613 = ssub.s32 %s13, 2
      // Predicated region
      $region57: #{traditional_model_forward.5} parent=55 // pred_check
        %p614 = pneg %p219
      $region58: #{traditional_model_forward.5} parent=55 // pred_check_branch
        %616 = sbr.rel (%p614) target = $region60
      $region59: #{traditional_model_forward.5} parent=55 // pred_region
        %p617 = scmp.lt.s32.totalorder %s19, 2
        %s618 = scalar_select %p617, %s19, 2
        %s619 = smul.addr %s618, 2
        %s620 = scalar_lea.vmem %s7, %s619
      $region60: #{traditional_model_forward.5} parent=55 // pred_fallthru
        _
    $region56: #{traditional_model_forward.5} parent=5 // pred_fallthru
      _
  $region6: #{traditional_model_forward.5} parent=0 // loop_footer
    %s17 = sadd.s32 1, %s13
  $region7: #{traditional_model_forward.5} parent=0 // loop_footer_branch
    %12 = sbr.rel target = $region3
  $region8: #{traditional_model_forward.5} parent=0 // loop_exit
    _

// kernel: traditional_model_forward.3
$region0: #{traditional_model_forward.3}
  #allocation0 [shape = 'u32[]', space=smem, size = 0x4, offset = 0x4, fixed_abs, tag = 'smem constant byte address 0x4 - core index']
  #allocation1 [shape = 'u32[144,128]{1,0:T(1,128)}', space=vmem, size = 0x12000, scoped, tag = 'internal scratch']
  #allocation2 [shape = 'f32[168,64]{1,0:T(8,128)}', space=vmem, size = 0x15000, scoped, tag = 'scratch operand']
  #allocation3 [shape = 'f32[56,128]{1,0:T(8,128)}', space=vmem, size = 0x7000, scoped, tag = 'scratch operand']
  #allocation4 [shape = 'f32[512,64]{1,0:T(8,128)}', space=vmem, size = 0x40000, scoped, tag = 'scratch operand']
  #allocation5 [shape = 'f32[128,128]{1,0:T(8,128)}', space=vmem, size = 0x10000, scoped, tag = 'scratch operand']
  %s0 = inlined_call_operand.vmem [shape: bf16[2,512,36], index: 0, kind: input, shape index: {}]
  %s1 = inlined_call_operand.vmem [shape: bf16[36,64], index: 1, kind: input, shape index: {}]
  %s2 = inlined_call_operand.vmem [shape: f32[1,64], index: 2, kind: input, shape index: {}]
  %s3 = inlined_call_operand.vmem [shape: bf16[576,128], index: 3, kind: input, shape index: {}]
  %s4 = inlined_call_operand.vmem [shape: f32[1,128], index: 4, kind: input, shape index: {}]
  %s5 = inlined_call_operand.vmem [shape: bf16[1152,256], index: 5, kind: input, shape index: {}]
  %s6 = inlined_call_operand.vmem [shape: f32[1,256], index: 6, kind: input, shape index: {}]
  %s7 = inlined_call_operand.vmem [shape: bf16[2,16,256], index: 7, kind: output, shape index: {}]
  %s8 = sld [smem:[#allocation0]]
  $region61: #{traditional_model_forward.3} parent=0
    _
  %s10 = ssub.s32 1, %s8
  %s11 = scalar_select 0, %s10, %s8
  loop: start=0, step=1, limit=4
  $region2: #{traditional_model_forward.3} parent=0 // loop_pre_header
    _
  $region3: #{traditional_model_forward.3} parent=0 // loop_header
    %s13 = sphi 0, %s17
    %p14 = scmp.ge.s32.totalorder %s13, 4
    %s23 = sphi 0, %s25
    %s26 = sphi 0, %s23
    %s27 = sphi 0, %s26
    %s43 = sphi 0, %s27
    %s47 = sphi 0, %s47
    %s49 = sphi 0, %s47
    %s50 = sphi 0, %s49
    %s64 = sphi 0, %s50
    %s68 = sphi 0, %s68
    %s70 = sphi 0, %s68
    %s71 = sphi 0, %s70
    %s85 = sphi 0, %s71
    %s89 = sphi 0, %s89
    %s91 = sphi 0, %s89
    %s92 = sphi 0, %s91
    %s106 = sphi 0, %s92
    %s110 = sphi 0, %s110
    %s112 = sphi 0, %s110
    %s113 = sphi 0, %s112
    %s127 = sphi 0, %s113
    %s131 = sphi 0, %s131
    %s133 = sphi 0, %s131
    %s134 = sphi 0, %s133
    %s148 = sphi 0, %s134
    %s152 = sphi 0, %s152
    %s154 = sphi 0, %s152
    %s155 = sphi 0, %s154
    %s169 = sphi 0, %s155
    %s175 = sphi 0, %s177
    %s178 = sphi 0, %s175
    %s179 = sphi 0, %s178
    %s195 = sphi 0, %s179
  $region4: #{traditional_model_forward.3} parent=0 // loop_header_branch
    %16 = sbr.rel (%p14) target = $region8
  $region5: #{traditional_model_forward.3} parent=0 // loop_body
    %s18 = ssub.s32 %s13, 1
    %s19 = ssub.s32 %s13, 2
    %s20 = sadd.s32 %s13, 1
    %s21 = ssub.s32 %s13, %s20
    %p22 = scmp.eq.s32.totalorder %s21, 0
    %s24 = sadd.s32 %s23, 1
    %s25 = scalar_select %p22, %s23, %s24
    %p28 = pneg %p22
    %p29 = scmp.eq.s32.totalorder %s13, 1
    %p30 = por %p28, %p29
    %p31 = scmp.ne.s32.totalorder %s23, %s26
    %p32 = scmp.eq.s32.totalorder %s13, 0
    %p33 = por %p31, %p32
    %p34 = scmp.ne.s32.totalorder %s23, %s26
    %p35 = scmp.eq.s32.totalorder %s18, 1
    %p36 = por %p34, %p35
    %p37 = scmp.ne.s32.totalorder %s26, %s27
    %p38 = scmp.eq.s32.totalorder %s18, 0
    %p39 = por %p37, %p38
    %p40 = scmp.ne.s32.totalorder %s26, %s27
    %p41 = scmp.eq.s32.totalorder %s19, 1
    %p42 = por %p40, %p41
    %p44 = scmp.ne.s32.totalorder %s27, %s43
    %p45 = scmp.eq.s32.totalorder %s19, 0
    %p46 = por %p44, %p45
    %s48 = sadd.s32 %s47, 1
    %p51 = scmp.eq.s32.totalorder %s13, 1
    %p52 = scmp.ne.s32.totalorder %s47, %s49
    %p53 = scmp.eq.s32.totalorder %s13, 0
    %p54 = por %p52, %p53
    %p55 = scmp.ne.s32.totalorder %s47, %s49
    %p56 = scmp.eq.s32.totalorder %s18, 1
    %p57 = por %p55, %p56
    %p58 = scmp.ne.s32.totalorder %s49, %s50
    %p59 = scmp.eq.s32.totalorder %s18, 0
    %p60 = por %p58, %p59
    %p61 = scmp.ne.s32.totalorder %s49, %s50
    %p62 = scmp.eq.s32.totalorder %s19, 1
    %p63 = por %p61, %p62
    %p65 = scmp.ne.s32.totalorder %s50, %s64
    %p66 = scmp.eq.s32.totalorder %s19, 0
    %p67 = por %p65, %p66
    %s69 = sadd.s32 %s68, 1
    %p72 = scmp.eq.s32.totalorder %s13, 1
    %p73 = scmp.ne.s32.totalorder %s68, %s70
    %p74 = scmp.eq.s32.totalorder %s13, 0
    %p75 = por %p73, %p74
    %p76 = scmp.ne.s32.totalorder %s68, %s70
    %p77 = scmp.eq.s32.totalorder %s18, 1
    %p78 = por %p76, %p77
    %p79 = scmp.ne.s32.totalorder %s70, %s71
    %p80 = scmp.eq.s32.totalorder %s18, 0
    %p81 = por %p79, %p80
    %p82 = scmp.ne.s32.totalorder %s70, %s71
    %p83 = scmp.eq.s32.totalorder %s19, 1
    %p84 = por %p82, %p83
    %p86 = scmp.ne.s32.totalorder %s71, %s85
    %p87 = scmp.eq.s32.totalorder %s19, 0
    %p88 = por %p86, %p87
    %s90 = sadd.s32 %s89, 1
    %p93 = scmp.eq.s32.totalorder %s13, 1
    %p94 = scmp.ne.s32.totalorder %s89, %s91
    %p95 = scmp.eq.s32.totalorder %s13, 0
    %p96 = por %p94, %p95
    %p97 = scmp.ne.s32.totalorder %s89, %s91
    %p98 = scmp.eq.s32.totalorder %s18, 1
    %p99 = por %p97, %p98
    %p100 = scmp.ne.s32.totalorder %s91, %s92
    %p101 = scmp.eq.s32.totalorder %s18, 0
    %p102 = por %p100, %p101
    %p103 = scmp.ne.s32.totalorder %s91, %s92
    %p104 = scmp.eq.s32.totalorder %s19, 1
    %p105 = por %p103, %p104
    %p107 = scmp.ne.s32.totalorder %s92, %s106
    %p108 = scmp.eq.s32.totalorder %s19, 0
    %p109 = por %p107, %p108
    %s111 = sadd.s32 %s110, 1
    %p114 = scmp.eq.s32.totalorder %s13, 1
    %p115 = scmp.ne.s32.totalorder %s110, %s112
    %p116 = scmp.eq.s32.totalorder %s13, 0
    %p117 = por %p115, %p116
    %p118 = scmp.ne.s32.totalorder %s110, %s112
    %p119 = scmp.eq.s32.totalorder %s18, 1
    %p120 = por %p118, %p119
    %p121 = scmp.ne.s32.totalorder %s112, %s113
    %p122 = scmp.eq.s32.totalorder %s18, 0
    %p123 = por %p121, %p122
    %p124 = scmp.ne.s32.totalorder %s112, %s113
    %p125 = scmp.eq.s32.totalorder %s19, 1
    %p126 = por %p124, %p125
    %p128 = scmp.ne.s32.totalorder %s113, %s127
    %p129 = scmp.eq.s32.totalorder %s19, 0
    %p130 = por %p128, %p129
    %s132 = sadd.s32 %s131, 1
    %p135 = scmp.eq.s32.totalorder %s13, 1
    %p136 = scmp.ne.s32.totalorder %s131, %s133
    %p137 = scmp.eq.s32.totalorder %s13, 0
    %p138 = por %p136, %p137
    %p139 = scmp.ne.s32.totalorder %s131, %s133
    %p140 = scmp.eq.s32.totalorder %s18, 1
    %p141 = por %p139, %p140
    %p142 = scmp.ne.s32.totalorder %s133, %s134
    %p143 = scmp.eq.s32.totalorder %s18, 0
    %p144 = por %p142, %p143
    %p145 = scmp.ne.s32.totalorder %s133, %s134
    %p146 = scmp.eq.s32.totalorder %s19, 1
    %p147 = por %p145, %p146
    %p149 = scmp.ne.s32.totalorder %s134, %s148
    %p150 = scmp.eq.s32.totalorder %s19, 0
    %p151 = por %p149, %p150
    %s153 = sadd.s32 %s152, 1
    %p156 = scmp.eq.s32.totalorder %s13, 1
    %p157 = scmp.ne.s32.totalorder %s152, %s154
    %p158 = scmp.eq.s32.totalorder %s13, 0
    %p159 = por %p157, %p158
    %p160 = scmp.ne.s32.totalorder %s152, %s154
    %p161 = scmp.eq.s32.totalorder %s18, 1
    %p162 = por %p160, %p161
    %p163 = scmp.ne.s32.totalorder %s154, %s155
    %p164 = scmp.eq.s32.totalorder %s18, 0
    %p165 = por %p163, %p164
    %p166 = scmp.ne.s32.totalorder %s154, %s155
    %p167 = scmp.eq.s32.totalorder %s19, 1
    %p168 = por %p166, %p167
    %p170 = scmp.ne.s32.totalorder %s155, %s169
    %p171 = scmp.eq.s32.totalorder %s19, 0
    %p172 = por %p170, %p171
    %s173 = ssub.s32 %s13, %s20
    %p174 = scmp.eq.s32.totalorder %s173, 0
    %s176 = sadd.s32 %s175, 1
    %s177 = scalar_select %p174, %s175, %s176
    %p180 = pneg %p174
    %p181 = scmp.eq.s32.totalorder %s13, 1
    %p182 = por %p180, %p181
    %p183 = scmp.ne.s32.totalorder %s175, %s178
    %p184 = scmp.eq.s32.totalorder %s13, 0
    %p185 = por %p183, %p184
    %p186 = scmp.ne.s32.totalorder %s175, %s178
    %p187 = scmp.eq.s32.totalorder %s18, 1
    %p188 = por %p186, %p187
    %p189 = scmp.ne.s32.totalorder %s178, %s179
    %p190 = scmp.eq.s32.totalorder %s18, 0
    %p191 = por %p189, %p190
    %p192 = scmp.ne.s32.totalorder %s178, %s179
    %p193 = scmp.eq.s32.totalorder %s19, 1
    %p194 = por %p192, %p193
    %p196 = scmp.ne.s32.totalorder %s179, %s195
    %p197 = scmp.eq.s32.totalorder %s19, 0
    %p198 = por %p196, %p197
    %p199 = scmp.le.s32.totalorder 1, %s13
    %p200 = scmp.lt.s32.totalorder %s13, 3
    %p201 = pnand %p199, %p200
    %p202 = pneg %p201
    // Predicated region
    $region9: #{traditional_model_forward.3} parent=5 // pred_check
      _
    $region10: #{traditional_model_forward.3} parent=5 // pred_check_branch
      %204 = sbr.rel (%p201) target = $region12
    $region11: #{traditional_model_forward.3} parent=5 // pred_region
      %s205 = ssub.s32 %s13, 1
      // Predicated region
      $region13: #{traditional_model_forward.3} parent=11 // pred_check
        %p206 = pneg %p60
      $region14: #{traditional_model_forward.3} parent=11 // pred_check_branch
        %208 = sbr.rel (%p206) target = $region16
      $region15: #{traditional_model_forward.3} parent=11 // pred_region
        _
      $region16: #{traditional_model_forward.3} parent=11 // pred_fallthru
        _
      // Predicated region
      $region17: #{traditional_model_forward.3} parent=11 // pred_check
        %p209 = pneg %p81
      $region18: #{traditional_model_forward.3} parent=11 // pred_check_branch
        %211 = sbr.rel (%p209) target = $region20
      $region19: #{traditional_model_forward.3} parent=11 // pred_region
        _
      $region20: #{traditional_model_forward.3} parent=11 // pred_fallthru
        _
      // Predicated region
      $region21: #{traditional_model_forward.3} parent=11 // pred_check
        %p212 = pneg %p102
      $region22: #{traditional_model_forward.3} parent=11 // pred_check_branch
        %214 = sbr.rel (%p212) target = $region24
      $region23: #{traditional_model_forward.3} parent=11 // pred_region
        _
      $region24: #{traditional_model_forward.3} parent=11 // pred_fallthru
        _
      // Predicated region
      $region25: #{traditional_model_forward.3} parent=11 // pred_check
        %p215 = pneg %p123
      $region26: #{traditional_model_forward.3} parent=11 // pred_check_branch
        %217 = sbr.rel (%p215) target = $region28
      $region27: #{traditional_model_forward.3} parent=11 // pred_region
        _
      $region28: #{traditional_model_forward.3} parent=11 // pred_fallthru
        _
      // Predicated region
      $region29: #{traditional_model_forward.3} parent=11 // pred_check
        %p218 = pneg %p144
      $region30: #{traditional_model_forward.3} parent=11 // pred_check_branch
        %220 = sbr.rel (%p218) target = $region32
      $region31: #{traditional_model_forward.3} parent=11 // pred_region
        _
      $region32: #{traditional_model_forward.3} parent=11 // pred_fallthru
        _
      // Predicated region
      $region33: #{traditional_model_forward.3} parent=11 // pred_check
        %p221 = pneg %p165
      $region34: #{traditional_model_forward.3} parent=11 // pred_check_branch
        %223 = sbr.rel (%p221) target = $region36
      $region35: #{traditional_model_forward.3} parent=11 // pred_region
        _
      $region36: #{traditional_model_forward.3} parent=11 // pred_fallthru
        _
    $region12: #{traditional_model_forward.3} parent=5 // pred_fallthru
      _
    %p224 = scmp.lt.s32.totalorder %s13, 2
    // Predicated region
    $region37: #{traditional_model_forward.3} parent=5 // pred_check
      %p225 = pneg %p224
    $region38: #{traditional_model_forward.3} parent=5 // pred_check_branch
      %227 = sbr.rel (%p225) target = $region40
    $region39: #{traditional_model_forward.3} parent=5 // pred_region
      // Predicated region
      $region41: #{traditional_model_forward.3} parent=39 // pred_check
        %p228 = pneg %p33
      $region42: #{traditional_model_forward.3} parent=39 // pred_check_branch
        %230 = sbr.rel (%p228) target = $region44
      $region43: #{traditional_model_forward.3} parent=39 // pred_region
        %p231 = scmp.lt.s32.totalorder %s13, 1
        %s232 = scalar_select %p231, %s13, 1
        %s233 = smul.addr %s232, 64
        %s234 = smul.addr %s233, 4
        %s235 = scalar_lea.vmem %s0, %s234
      $region44: #{traditional_model_forward.3} parent=39 // pred_fallthru
        _
    $region40: #{traditional_model_forward.3} parent=5 // pred_fallthru
      _
    %p236 = scmp.le.s32.totalorder 1, %s13
    %p237 = scmp.lt.s32.totalorder %s13, 3
    %p238 = pnand %p236, %p237
    %p239 = pneg %p238
    // Predicated region
    $region45: #{traditional_model_forward.3} parent=5 // pred_check
      _
    $region46: #{traditional_model_forward.3} parent=5 // pred_check_branch
      %241 = sbr.rel (%p238) target = $region48
    $region47: #{traditional_model_forward.3} parent=5 // pred_region
      %s242 = ssub.s32 %s13, 1
      %p243 = scmp.lt.s32.totalorder %s18, 1
      %s244 = scalar_select %p243, %s18, 1
      %s245 = smul.addr %s244, 64
      %s246 = smul.addr %s245, 4
      %s247 = scalar_lea.vmem %s0, %s246
      %p248 = pneg %p39
      %p249 = pneg %p36
      %p250 = pneg %p60
      %p251 = pneg %p57
      %p252 = pneg %p81
      %p253 = pneg %p78
      %p254 = pneg %p102
      %p255 = pneg %p99
      %p256 = pneg %p123
      %p257 = pneg %p120
      %p258 = pneg %p144
      %p259 = pneg %p141
      %p260 = pneg %p165
      %p261 = pneg %p162
      %p262 = pneg %p191
      %p263 = pneg %p188
      %p264 = scmp.lt.s32.totalorder %s18, 1
      %s265 = scalar_select %p264, %s18, 1
      %s266 = smul.addr %s265, 4
      %s267 = smul.addr %s266, 4
      %s268 = scalar_lea.vmem %s7, %s267
      %p269 = scmp.lt.s32.totalorder %s18, 1
      %s270 = scalar_select %p269, %s18, 1
      %s271 = smul.addr %s270, 64
      %s272 = smul.addr %s271, 4
      %s273 = scalar_lea.vmem %s0, %s272
      %p274 = scmp.lt.s32.totalorder %s18, 1
      %s275 = scalar_select %p274, %s18, 1
      %s276 = smul.addr %s275, 4
      %s277 = smul.addr %s276, 4
      %s278 = scalar_lea.vmem %s7, %s277
      %v280 = vld [vmem:[%s273] sm:$0xf]
      %v281 = vld [vmem:[%s273 + $0x4] sm:$0xf]
      %v282 = vld [vmem:[%s273 + $0x8] sm:$0xf]
      %v283 = vld [vmem:[%s273 + $0xc] sm:$0xf]
      %v284 = vld [vmem:[%s273 + $0x10] sm:$0xf]
      %v285 = vld [vmem:[%s273 + $0x14] sm:$0xf]
      %v286 = vld [vmem:[%s273 + $0x18] sm:$0xf]
      %v287 = vld [vmem:[%s273 + $0x1c] sm:$0xf]
      %v288 = vld [vmem:[%s273 + $0x20] sm:$0xf]
      %v289 = vld [vmem:[%s273 + $0x24] sm:$0xf]
      %v290 = vld [vmem:[%s273 + $0x28] sm:$0xf]
      %v291 = vld [vmem:[%s273 + $0x2c] sm:$0xf]
      %v292 = vld [vmem:[%s273 + $0x30] sm:$0xf]
      %v293 = vld [vmem:[%s273 + $0x34] sm:$0xf]
      %v294 = vld [vmem:[%s273 + $0x38] sm:$0xf]
      %v295 = vld [vmem:[%s273 + $0x3c] sm:$0xf]
      %v296 = vld [vmem:[%s273 + $0x40] sm:$0xf]
      %v297 = vld [vmem:[%s273 + $0x44] sm:$0xf]
      %v298 = vld [vmem:[%s273 + $0x48] sm:$0xf]
      %v299 = vld [vmem:[%s273 + $0x4c] sm:$0xf]
      %v300 = vld [vmem:[%s273 + $0x50] sm:$0xf]
      %v301 = vld [vmem:[%s273 + $0x54] sm:$0xf]
      %v302 = vld [vmem:[%s273 + $0x58] sm:$0xf]
      %v303 = vld [vmem:[%s273 + $0x5c] sm:$0xf]
      %v304 = vld [vmem:[%s273 + $0x60] sm:$0xf]
      %v305 = vld [vmem:[%s273 + $0x64] sm:$0xf]
      %v306 = vld [vmem:[%s273 + $0x68] sm:$0xf]
      %v307 = vld [vmem:[%s273 + $0x6c] sm:$0xf]
      %v308 = vld [vmem:[%s273 + $0x70] sm:$0xf]
      %v309 = vld [vmem:[%s273 + $0x74] sm:$0xf]
      %v310 = vld [vmem:[%s273 + $0x78] sm:$0xf]
      %v311 = vld [vmem:[%s273 + $0x7c] sm:$0xf]
      %v312 = vld [vmem:[%s273 + $0x80] sm:$0xf]
      %v313 = vld [vmem:[%s273 + $0x84] sm:$0xf]
      %v314 = vld [vmem:[%s273 + $0x88] sm:$0xf]
      %v315 = vld [vmem:[%s273 + $0x8c] sm:$0xf]
      %v316 = vld [vmem:[%s273 + $0x90] sm:$0xf]
      %v317 = vld [vmem:[%s273 + $0x94] sm:$0xf]
      %v318 = vld [vmem:[%s273 + $0x98] sm:$0xf]
      %v319 = vld [vmem:[%s273 + $0x9c] sm:$0xf]
      %v320 = vld [vmem:[%s273 + $0xa0] sm:$0xf]
      %v321 = vld [vmem:[%s273 + $0xa4] sm:$0xf]
      %v322 = vld [vmem:[%s273 + $0xa8] sm:$0xf]
      %v323 = vld [vmem:[%s273 + $0xac] sm:$0xf]
      %v324 = vld [vmem:[%s273 + $0xb0] sm:$0xf]
      %v325 = vld [vmem:[%s273 + $0xb4] sm:$0xf]
      %v326 = vld [vmem:[%s273 + $0xb8] sm:$0xf]
      %v327 = vld [vmem:[%s273 + $0xbc] sm:$0xf]
      %v328 = vld [vmem:[%s273 + $0xc0] sm:$0xf]
      %v329 = vld [vmem:[%s273 + $0xc4] sm:$0xf]
      %v330 = vld [vmem:[%s273 + $0xc8] sm:$0xf]
      %v331 = vld [vmem:[%s273 + $0xcc] sm:$0xf]
      %v332 = vld [vmem:[%s273 + $0xd0] sm:$0xf]
      %v333 = vld [vmem:[%s273 + $0xd4] sm:$0xf]
      %v334 = vld [vmem:[%s273 + $0xd8] sm:$0xf]
      %v335 = vld [vmem:[%s273 + $0xdc] sm:$0xf]
      %v336 = vld [vmem:[%s273 + $0xe0] sm:$0xf]
      %v337 = vld [vmem:[%s273 + $0xe4] sm:$0xf]
      %v338 = vld [vmem:[%s273 + $0xe8] sm:$0xf]
      %v339 = vld [vmem:[%s273 + $0xec] sm:$0xf]
      %v340 = vld [vmem:[%s273 + $0xf0] sm:$0xf]
      %v341 = vld [vmem:[%s273 + $0xf4] sm:$0xf]
      %v342 = vld [vmem:[%s273 + $0xf8] sm:$0xf]
      %v343 = vld [vmem:[%s273 + $0xfc] sm:$0xf]
      %v344 = vld [vmem:[%s1] sm:$0xf]
      %v345 = vld [vmem:[%s1 + $0x4] sm:$0xf]
      %v346 = vld [vmem:[%s1 + $0x8] sm:$0xf]
      %v347 = vld [vmem:[%s1 + $0xc] sm:$0xf]
      %v348 = vld [vmem:[%s1 + $0x10] sm:$0x3]
      %v349 = vld [vmem:[%s2] sm:$0x1]
      %v351 = vlaneseq
      %v352 = vshrl.u32 %v351, 7
      %v353 = vsub.s32 0, %v352
      %v354 = vrot.slane %v349, %v353
      %v420 = vunpack.c.l.b16 %v280
      %v421 = vunpack.c.l.b16 %v281
      %v422 = vunpack.c.l.b16 %v282
      %v423 = vunpack.c.l.b16 %v283
      %v424 = vunpack.c.l.b16 %v284
      %v425 = vunpack.c.l.b16 %v285
      %v426 = vunpack.c.l.b16 %v286
      %v427 = vunpack.c.l.b16 %v287
      %v428 = vunpack.c.l.b16 %v288
      %v429 = vunpack.c.l.b16 %v289
      %v430 = vunpack.c.l.b16 %v290
      %v431 = vunpack.c.l.b16 %v291
      %v432 = vunpack.c.l.b16 %v292
      %v433 = vunpack.c.l.b16 %v293
      %v434 = vunpack.c.l.b16 %v294
      %v435 = vunpack.c.l.b16 %v295
      %v436 = vunpack.c.l.b16 %v296
      %v437 = vunpack.c.l.b16 %v297
      %v438 = vunpack.c.l.b16 %v298
      %v439 = vunpack.c.l.b16 %v299
      %v440 = vunpack.c.l.b16 %v300
      %v441 = vunpack.c.l.b16 %v301
      %v442 = vunpack.c.l.b16 %v302
      %v443 = vunpack.c.l.b16 %v303
      %v444 = vunpack.c.l.b16 %v304
      %v445 = vunpack.c.l.b16 %v305
      %v446 = vunpack.c.l.b16 %v306
      %v447 = vunpack.c.l.b16 %v307
      %v448 = vunpack.c.l.b16 %v308
      %v449 = vunpack.c.l.b16 %v309
      %v450 = vunpack.c.l.b16 %v310
      %v451 = vunpack.c.l.b16 %v311
      %v452 = vunpack.c.l.b16 %v312
      %v453 = vunpack.c.l.b16 %v313
      %v454 = vunpack.c.l.b16 %v314
      %v455 = vunpack.c.l.b16 %v315
      %v456 = vunpack.c.l.b16 %v316
      %v457 = vunpack.c.l.b16 %v317
      %v458 = vunpack.c.l.b16 %v318
      %v459 = vunpack.c.l.b16 %v319
      %v460 = vunpack.c.l.b16 %v320
      %v461 = vunpack.c.l.b16 %v321
      %v462 = vunpack.c.l.b16 %v322
      %v463 = vunpack.c.l.b16 %v323
      %v464 = vunpack.c.l.b16 %v324
      %v465 = vunpack.c.l.b16 %v325
      %v466 = vunpack.c.l.b16 %v326
      %v467 = vunpack.c.l.b16 %v327
      %v468 = vunpack.c.l.b16 %v328
      %v469 = vunpack.c.l.b16 %v329
      %v470 = vunpack.c.l.b16 %v330
      %v471 = vunpack.c.l.b16 %v331
      %v472 = vunpack.c.l.b16 %v332
      %v473 = vunpack.c.l.b16 %v333
      %v474 = vunpack.c.l.b16 %v334
      %v475 = vunpack.c.l.b16 %v335
      %v476 = vunpack.c.l.b16 %v336
      %v477 = vunpack.c.l.b16 %v337
      %v478 = vunpack.c.l.b16 %v338
      %v479 = vunpack.c.l.b16 %v339
      %v480 = vunpack.c.l.b16 %v340
      %v481 = vunpack.c.l.b16 %v341
      %v482 = vunpack.c.l.b16 %v342
      %v483 = vunpack.c.l.b16 %v343
      %v484 = vpack.c.b16 %v421, %v420
      %v485 = vpack.c.b16 %v423, %v422
      %v486 = vpack.c.b16 %v425, %v424
      %v487 = vpack.c.b16 %v427, %v426
      %v488 = vpack.c.b16 %v429, %v428
      %v489 = vpack.c.b16 %v431, %v430
      %v490 = vpack.c.b16 %v433, %v432
      %v491 = vpack.c.b16 %v435, %v434
      %v492 = vpack.c.b16 %v437, %v436
      %v493 = vpack.c.b16 %v439, %v438
      %v494 = vpack.c.b16 %v441, %v440
      %v495 = vpack.c.b16 %v443, %v442
      %v496 = vpack.c.b16 %v445, %v444
      %v497 = vpack.c.b16 %v447, %v446
      %v498 = vpack.c.b16 %v449, %v448
      %v499 = vpack.c.b16 %v451, %v450
      %v500 = vpack.c.b16 %v453, %v452
      %v501 = vpack.c.b16 %v455, %v454
      %v502 = vpack.c.b16 %v457, %v456
      %v503 = vpack.c.b16 %v459, %v458
      %v504 = vpack.c.b16 %v461, %v460
      %v505 = vpack.c.b16 %v463, %v462
      %v506 = vpack.c.b16 %v465, %v464
      %v507 = vpack.c.b16 %v467, %v466
      %v508 = vpack.c.b16 %v469, %v468
      %v509 = vpack.c.b16 %v471, %v470
      %v510 = vpack.c.b16 %v473, %v472
      %v511 = vpack.c.b16 %v475, %v474
      %v512 = vpack.c.b16 %v477, %v476
      %v513 = vpack.c.b16 %v479, %v478
      %v514 = vpack.c.b16 %v481, %v480
      %v515 = vpack.c.b16 %v483, %v482
      %v521 = vunpack.c.l.b16 %v344
      %v522 = vunpack.c.l.b16 %v345
      %v523 = vunpack.c.l.b16 %v346
      %v524 = vunpack.c.l.b16 %v347
      %v525 = vunpack.c.l.b16 %v348
      %v526 = vpack.c.b16 %v522, %v521
      %v527 = vpack.c.b16 %v524, %v523
      %v528 = vpack.c.b16 %v525, %v525
      %vm531 = vcmask 293888
      %v533 = vsel %vm531, %v484, 0
      %v536 = vsel %vm531, %v485, 0
      %v539 = vsel %vm531, %v486, 0
      %v542 = vsel %vm531, %v487, 0
      %v545 = vsel %vm531, %v488, 0
      %v548 = vsel %vm531, %v489, 0
      %v551 = vsel %vm531, %v490, 0
      %v554 = vsel %vm531, %v491, 0
      %v557 = vsel %vm531, %v492, 0
      %v560 = vsel %vm531, %v493, 0
      %v563 = vsel %vm531, %v494, 0
      %v566 = vsel %vm531, %v495, 0
      %v569 = vsel %vm531, %v496, 0
      %v572 = vsel %vm531, %v497, 0
      %v575 = vsel %vm531, %v498, 0
      %v578 = vsel %vm531, %v499, 0
      %v581 = vsel %vm531, %v500, 0
      %v584 = vsel %vm531, %v501, 0
      %v587 = vsel %vm531, %v502, 0
      %v590 = vsel %vm531, %v503, 0
      %v593 = vsel %vm531, %v504, 0
      %v596 = vsel %vm531, %v505, 0
      %v599 = vsel %vm531, %v506, 0
      %v602 = vsel %vm531, %v507, 0
      %v605 = vsel %vm531, %v508, 0
      %v608 = vsel %vm531, %v509, 0
      %v611 = vsel %vm531, %v510, 0
      %v614 = vsel %vm531, %v511, 0
      %v617 = vsel %vm531, %v512, 0
      %v620 = vsel %vm531, %v513, 0
      %v623 = vsel %vm531, %v514, 0
      %v626 = vsel %vm531, %v515, 0
      %vm628 = vcmask 1041408
      %v630 = vsel %vm628, %v528, 0
      %632 = vmatprep.subr.bf16.mxu0 0
      %633 = vmatpush1.bf16.msra.mxu0 %v526
      %634 = vmatprep.subr.bf16.mxu0 0
      %635 = vmatpush1.bf16.msra.mxu0 %v527
      %636 = vmatprep.subr.bf16.mxu0 0
      %637 = vmatpush1.bf16.msra.mxu0 %v630
      %638 = vmatprep.subr.bf16.mxu0 0
      %639 = vmatpush1.bf16.msra.mxu0 0
      %640 = vmatprep.subr.bf16.mxu0 0
      %641 = vmatpush1.bf16.msra.mxu0 0
      %642 = vmatprep.subr.bf16.mxu0 0
      %643 = vmatpush1.bf16.msra.mxu0 0
      %644 = vmatprep.subr.bf16.mxu0 0
      %645 = vmatpush1.bf16.msra.mxu0 0
      %646 = vmatprep.subr.bf16.mxu0 0
      %647 = vmatpush1.bf16.msra.mxu0 0
      %648 = vmatprep.subr.bf16.mxu0 0
      %649 = vmatpush1.bf16.msra.mxu0 0
      %650 = vmatprep.subr.bf16.mxu0 0
      %651 = vmatpush1.bf16.msra.mxu0 0
      %652 = vmatprep.subr.bf16.mxu0 0
      %653 = vmatpush1.bf16.msra.mxu0 0
      %654 = vmatprep.subr.bf16.mxu0 0
      %655 = vmatpush1.bf16.msra.mxu0 0
      %656 = vmatprep.subr.bf16.mxu0 0
      %657 = vmatpush1.bf16.msra.mxu0 0
      %658 = vmatprep.subr.bf16.mxu0 0
      %659 = vmatpush1.bf16.msra.mxu0 0
      %660 = vmatprep.subr.bf16.mxu0 0
      %661 = vmatpush1.bf16.msra.mxu0 0
      %662 = vmatprep.subr.bf16.mxu0 0
      %663 = vmatpush1.bf16.msra.mxu0 0
      %664 = vmatprep.mubr.bf16.mxu0 0
      %665 = vmatmul.mubr.bf16.gmra.mrb[0].mxu0 %v533
      %v666 = vpop.f32.mrb[0].mxu0
      %v667 = vadd.f32 %v354, %v666
      %v668 = vpop.f32.mrb[0].mxu0
      %v669 = vpop.f32.mrb[0].mxu0
      %v670 = vadd.f32 %v354, %v669
      %v671 = vpop.f32.mrb[0].mxu0
      %672 = vmatprep.mubr.bf16.mxu0 0
      %673 = vmatmul.mubr.bf16.gmra.mrb[0].mxu0 %v536
      %v674 = vpop.f32.mrb[0].mxu0
      %v675 = vadd.f32 %v354, %v674
      %v676 = vpop.f32.mrb[0].mxu0
      %v677 = vpop.f32.mrb[0].mxu0
      %v678 = vadd.f32 %v354, %v677
      %v679 = vpop.f32.mrb[0].mxu0
      %680 = vmatprep.mubr.bf16.mxu0 0
      %681 = vmatmul.mubr.bf16.gmra.mrb[0].mxu0 %v539
      %v682 = vpop.f32.mrb[0].mxu0
      %v683 = vadd.f32 %v354, %v682
      %v684 = vpop.f32.mrb[0].mxu0
      %v685 = vpop.f32.mrb[0].mxu0
      %v686 = vadd.f32 %v354, %v685
      %v687 = vpop.f32.mrb[0].mxu0
      %688 = vmatprep.mubr.bf16.mxu0 0
      %689 = vmatmul.mubr.bf16.gmra.mrb[0].mxu0 %v542
      %v690 = vpop.f32.mrb[0].mxu0
      %v691 = vadd.f32 %v354, %v690
      %v692 = vpop.f32.mrb[0].mxu0
      %v693 = vpop.f32.mrb[0].mxu0
      %v694 = vadd.f32 %v354, %v693
      %v695 = vpop.f32.mrb[0].mxu0
      %696 = vmatprep.mubr.bf16.mxu0 0
      %697 = vmatmul.mubr.bf16.gmra.mrb[0].mxu0 %v545
      %v698 = vpop.f32.mrb[0].mxu0
      %v699 = vadd.f32 %v354, %v698
      %v700 = vpop.f32.mrb[0].mxu0
      %v701 = vpop.f32.mrb[0].mxu0
      %v702 = vadd.f32 %v354, %v701
      %v703 = vpop.f32.mrb[0].mxu0
      %704 = vmatprep.mubr.bf16.mxu0 0
      %705 = vmatmul.mubr.bf16.gmra.mrb[0].mxu0 %v548
      %v706 = vpop.f32.mrb[0].mxu0
      %v707 = vadd.f32 %v354, %v706
      %v708 = vpop.f32.mrb[0].mxu0
      %v709 = vpop.f32.mrb[0].mxu0
      %v710 = vadd.f32 %v354, %v709
      %v711 = vpop.f32.mrb[0].mxu0
      %712 = vmatprep.mubr.bf16.mxu0 0
      %713 = vmatmul.mubr.bf16.gmra.mrb[0].mxu0 %v551
      %v714 = vpop.f32.mrb[0].mxu0
      %v715 = vadd.f32 %v354, %v714
      %v716 = vpop.f32.mrb[0].mxu0
      %v717 = vpop.f32.mrb[0].mxu0
      %v718 = vadd.f32 %v354, %v717
      %v719 = vpop.f32.mrb[0].mxu0
      %720 = vmatprep.mubr.bf16.mxu0 0
      %721 = vmatmul.mubr.bf16.gmra.mrb[0].mxu0 %v554
      %v722 = vpop.f32.mrb[0].mxu0
      %v723 = vadd.f32 %v354, %v722
      %v724 = vpop.f32.mrb[0].mxu0
      %v725 = vpop.f32.mrb[0].mxu0
      %v726 = vadd.f32 %v354, %v725
      %v727 = vpop.f32.mrb[0].mxu0
      %728 = vmatprep.mubr.bf16.mxu0 0
      %729 = vmatmul.mubr.bf16.gmra.mrb[0].mxu0 %v557
      %v730 = vpop.f32.mrb[0].mxu0
      %v731 = vadd.f32 %v354, %v730
      %v732 = vpop.f32.mrb[0].mxu0
      %v733 = vpop.f32.mrb[0].mxu0
      %v734 = vadd.f32 %v354, %v733
      %v735 = vpop.f32.mrb[0].mxu0
      %736 = vmatprep.mubr.bf16.mxu0 0
      %737 = vmatmul.mubr.bf16.gmra.mrb[0].mxu0 %v560
      %v738 = vpop.f32.mrb[0].mxu0
      %v739 = vadd.f32 %v354, %v738
      %v740 = vpop.f32.mrb[0].mxu0
      %v741 = vpop.f32.mrb[0].mxu0
      %v742 = vadd.f32 %v354, %v741
      %v743 = vpop.f32.mrb[0].mxu0
      %744 = vmatprep.mubr.bf16.mxu0 0
      %745 = vmatmul.mubr.bf16.gmra.mrb[0].mxu0 %v563
      %v746 = vpop.f32.mrb[0].mxu0
      %v747 = vadd.f32 %v354, %v746
      %v748 = vpop.f32.mrb[0].mxu0
      %v749 = vpop.f32.mrb[0].mxu0
      %v750 = vadd.f32 %v354, %v749
      %v751 = vpop.f32.mrb[0].mxu0
      %752 = vmatprep.mubr.bf16.mxu0 0
      %753 = vmatmul.mubr.bf16.gmra.mrb[0].mxu0 %v566
      %v754 = vpop.f32.mrb[0].mxu0
      %v755 = vadd.f32 %v354, %v754
      %v756 = vpop.f32.mrb[0].mxu0
      %v757 = vpop.f32.mrb[0].mxu0
      %v758 = vadd.f32 %v354, %v757
      %v759 = vpop.f32.mrb[0].mxu0
      %760 = vmatprep.mubr.bf16.mxu0 0
      %761 = vmatmul.mubr.bf16.gmra.mrb[0].mxu0 %v569
      %v762 = vpop.f32.mrb[0].mxu0
      %v763 = vadd.f32 %v354, %v762
      %v764 = vpop.f32.mrb[0].mxu0
      %v765 = vpop.f32.mrb[0].mxu0
      %v766 = vadd.f32 %v354, %v765
      %v767 = vpop.f32.mrb[0].mxu0
      %768 = vmatprep.mubr.bf16.mxu0 0
      %769 = vmatmul.mubr.bf16.gmra.mrb[0].mxu0 %v572
      %v770 = vpop.f32.mrb[0].mxu0
      %v771 = vadd.f32 %v354, %v770
      %v772 = vpop.f32.mrb[0].mxu0
      %v773 = vpop.f32.mrb[0].mxu0
      %v774 = vadd.f32 %v354, %v773
      %v775 = vpop.f32.mrb[0].mxu0
      %776 = vmatprep.mubr.bf16.mxu0 0
      %777 = vmatmul.mubr.bf16.gmra.mrb[0].mxu0 %v575
      %v778 = vpop.f32.mrb[0].mxu0
      %v779 = vadd.f32 %v354, %v778
      %v780 = vpop.f32.mrb[0].mxu0
      %v781 = vpop.f32.mrb[0].mxu0
      %v782 = vadd.f32 %v354, %v781
      %v783 = vpop.f32.mrb[0].mxu0
      %784 = vmatprep.mubr.bf16.mxu0 0
      %785 = vmatmul.mubr.bf16.gmra.mrb[0].mxu0 %v578
      %v786 = vpop.f32.mrb[0].mxu0
      %v787 = vadd.f32 %v354, %v786
      %v788 = vpop.f32.mrb[0].mxu0
      %v789 = vpop.f32.mrb[0].mxu0
      %v790 = vadd.f32 %v354, %v789
      %v791 = vpop.f32.mrb[0].mxu0
      %792 = vmatprep.mubr.bf16.mxu0 0
      %793 = vmatmul.mubr.bf16.gmra.mrb[0].mxu0 %v581
      %v794 = vpop.f32.mrb[0].mxu0
      %v795 = vadd.f32 %v354, %v794
      %v796 = vpop.f32.mrb[0].mxu0
      %v797 = vpop.f32.mrb[0].mxu0
      %v798 = vadd.f32 %v354, %v797
      %v799 = vpop.f32.mrb[0].mxu0
      %800 = vmatprep.mubr.bf16.mxu0 0
      %801 = vmatmul.mubr.bf16.gmra.mrb[0].mxu0 %v584
      %v802 = vpop.f32.mrb[0].mxu0
      %v803 = vadd.f32 %v354, %v802
      %v804 = vpop.f32.mrb[0].mxu0
      %v805 = vpop.f32.mrb[0].mxu0
      %v806 = vadd.f32 %v354, %v805
      %v807 = vpop.f32.mrb[0].mxu0
      %808 = vmatprep.mubr.bf16.mxu0 0
      %809 = vmatmul.mubr.bf16.gmra.mrb[0].mxu0 %v587
      %v810 = vpop.f32.mrb[0].mxu0
      %v811 = vadd.f32 %v354, %v810
      %v812 = vpop.f32.mrb[0].mxu0
      %v813 = vpop.f32.mrb[0].mxu0
      %v814 = vadd.f32 %v354, %v813
      %v815 = vpop.f32.mrb[0].mxu0
      %816 = vmatprep.mubr.bf16.mxu0 0
      %817 = vmatmul.mubr.bf16.gmra.mrb[0].mxu0 %v590
      %v818 = vpop.f32.mrb[0].mxu0
      %v819 = vadd.f32 %v354, %v818
      %v820 = vpop.f32.mrb[0].mxu0
      %v821 = vpop.f32.mrb[0].mxu0
      %v822 = vadd.f32 %v354, %v821
      %v823 = vpop.f32.mrb[0].mxu0
      %824 = vmatprep.mubr.bf16.mxu0 0
      %825 = vmatmul.mubr.bf16.gmra.mrb[0].mxu0 %v593
      %v826 = vpop.f32.mrb[0].mxu0
      %v827 = vadd.f32 %v354, %v826
      %v828 = vpop.f32.mrb[0].mxu0
      %v829 = vpop.f32.mrb[0].mxu0
      %v830 = vadd.f32 %v354, %v829
      %v831 = vpop.f32.mrb[0].mxu0
      %832 = vmatprep.mubr.bf16.mxu0 0
      %833 = vmatmul.mubr.bf16.gmra.mrb[0].mxu0 %v596
      %v834 = vpop.f32.mrb[0].mxu0
      %v835 = vadd.f32 %v354, %v834
      %v836 = vpop.f32.mrb[0].mxu0
      %v837 = vpop.f32.mrb[0].mxu0
      %v838 = vadd.f32 %v354, %v837
      %v839 = vpop.f32.mrb[0].mxu0
      %840 = vmatprep.mubr.bf16.mxu0 0
      %841 = vmatmul.mubr.bf16.gmra.mrb[0].mxu0 %v599
      %v842 = vpop.f32.mrb[0].mxu0
      %v843 = vadd.f32 %v354, %v842
      %v844 = vpop.f32.mrb[0].mxu0
      %v845 = vpop.f32.mrb[0].mxu0
      %v846 = vadd.f32 %v354, %v845
      %v847 = vpop.f32.mrb[0].mxu0
      %848 = vmatprep.mubr.bf16.mxu0 0
      %849 = vmatmul.mubr.bf16.gmra.mrb[0].mxu0 %v602
      %v850 = vpop.f32.mrb[0].mxu0
      %v851 = vadd.f32 %v354, %v850
      %v852 = vpop.f32.mrb[0].mxu0
      %v853 = vpop.f32.mrb[0].mxu0
      %v854 = vadd.f32 %v354, %v853
      %v855 = vpop.f32.mrb[0].mxu0
      %856 = vmatprep.mubr.bf16.mxu0 0
      %857 = vmatmul.mubr.bf16.gmra.mrb[0].mxu0 %v605
      %v858 = vpop.f32.mrb[0].mxu0
      %v859 = vadd.f32 %v354, %v858
      %v860 = vpop.f32.mrb[0].mxu0
      %v861 = vpop.f32.mrb[0].mxu0
      %v862 = vadd.f32 %v354, %v861
      %v863 = vpop.f32.mrb[0].mxu0
      %864 = vmatprep.mubr.bf16.mxu0 0
      %865 = vmatmul.mubr.bf16.gmra.mrb[0].mxu0 %v608
      %v866 = vpop.f32.mrb[0].mxu0
      %v867 = vadd.f32 %v354, %v866
      %v868 = vpop.f32.mrb[0].mxu0
      %v869 = vpop.f32.mrb[0].mxu0
      %v870 = vadd.f32 %v354, %v869
      %v871 = vpop.f32.mrb[0].mxu0
      %872 = vmatprep.mubr.bf16.mxu0 0
      %873 = vmatmul.mubr.bf16.gmra.mrb[0].mxu0 %v611
      %v874 = vpop.f32.mrb[0].mxu0
      %v875 = vadd.f32 %v354, %v874
      %v876 = vpop.f32.mrb[0].mxu0
      %v877 = vpop.f32.mrb[0].mxu0
      %v878 = vadd.f32 %v354, %v877
      %v879 = vpop.f32.mrb[0].mxu0
      %880 = vmatprep.mubr.bf16.mxu0 0
      %881 = vmatmul.mubr.bf16.gmra.mrb[0].mxu0 %v614
      %v882 = vpop.f32.mrb[0].mxu0
      %v883 = vadd.f32 %v354, %v882
      %v884 = vpop.f32.mrb[0].mxu0
      %v885 = vpop.f32.mrb[0].mxu0
      %v886 = vadd.f32 %v354, %v885
      %v887 = vpop.f32.mrb[0].mxu0
      %888 = vmatprep.mubr.bf16.mxu0 0
      %889 = vmatmul.mubr.bf16.gmra.mrb[0].mxu0 %v617
      %v890 = vpop.f32.mrb[0].mxu0
      %v891 = vadd.f32 %v354, %v890
      %v892 = vpop.f32.mrb[0].mxu0
      %v893 = vpop.f32.mrb[0].mxu0
      %v894 = vadd.f32 %v354, %v893
      %v895 = vpop.f32.mrb[0].mxu0
      %896 = vmatprep.mubr.bf16.mxu0 0
      %897 = vmatmul.mubr.bf16.gmra.mrb[0].mxu0 %v620
      %v898 = vpop.f32.mrb[0].mxu0
      %v899 = vadd.f32 %v354, %v898
      %v900 = vpop.f32.mrb[0].mxu0
      %v901 = vpop.f32.mrb[0].mxu0
      %v902 = vadd.f32 %v354, %v901
      %v903 = vpop.f32.mrb[0].mxu0
      %904 = vmatprep.mubr.bf16.mxu0 0
      %905 = vmatmul.mubr.bf16.gmra.mrb[0].mxu0 %v623
      %v906 = vpop.f32.mrb[0].mxu0
      %v907 = vadd.f32 %v354, %v906
      %v908 = vpop.f32.mrb[0].mxu0
      %v909 = vpop.f32.mrb[0].mxu0
      %v910 = vadd.f32 %v354, %v909
      %v911 = vpop.f32.mrb[0].mxu0
      %912 = vmatprep.mubr.bf16.mxu0 0
      %913 = vmatmul.mubr.bf16.gmra.mrb[0].mxu0 %v626
      %v914 = vpop.f32.mrb[0].mxu0
      %v915 = vadd.f32 %v354, %v914
      %v916 = vpop.f32.mrb[0].mxu0
      %v917 = vpop.f32.mrb[0].mxu0
      %v918 = vadd.f32 %v354, %v917
      %v919 = vpop.f32.mrb[0].mxu0
      %920 = vdwg.mxu0
      %v921 = vmax.f32 %v667, 0.0
      %v922 = vmax.f32 %v670, 0.0
      %v923 = vmax.f32 %v675, 0.0
      %v924 = vmax.f32 %v678, 0.0
      %v925 = vmax.f32 %v683, 0.0
      %v926 = vmax.f32 %v686, 0.0
      %v927 = vmax.f32 %v691, 0.0
      %v928 = vmax.f32 %v694, 0.0
      %v929 = vmax.f32 %v699, 0.0
      %v930 = vmax.f32 %v702, 0.0
      %v931 = vmax.f32 %v707, 0.0
      %v932 = vmax.f32 %v710, 0.0
      %v933 = vmax.f32 %v715, 0.0
      %v934 = vmax.f32 %v718, 0.0
      %v935 = vmax.f32 %v723, 0.0
      %v936 = vmax.f32 %v726, 0.0
      %v937 = vmax.f32 %v731, 0.0
      %v938 = vmax.f32 %v734, 0.0
      %v939 = vmax.f32 %v739, 0.0
      %v940 = vmax.f32 %v742, 0.0
      %v941 = vmax.f32 %v747, 0.0
      %v942 = vmax.f32 %v750, 0.0
      %v943 = vmax.f32 %v755, 0.0
      %v944 = vmax.f32 %v758, 0.0
      %v945 = vmax.f32 %v763, 0.0
      %v946 = vmax.f32 %v766, 0.0
      %v947 = vmax.f32 %v771, 0.0
      %v948 = vmax.f32 %v774, 0.0
      %v949 = vmax.f32 %v779, 0.0
      %v950 = vmax.f32 %v782, 0.0
      %v951 = vmax.f32 %v787, 0.0
      %v952 = vmax.f32 %v790, 0.0
      %v953 = vmax.f32 %v795, 0.0
      %v954 = vmax.f32 %v798, 0.0
      %v955 = vmax.f32 %v803, 0.0
      %v956 = vmax.f32 %v806, 0.0
      %v957 = vmax.f32 %v811, 0.0
      %v958 = vmax.f32 %v814, 0.0
      %v959 = vmax.f32 %v819, 0.0
      %v960 = vmax.f32 %v822, 0.0
      %v961 = vmax.f32 %v827, 0.0
      %v962 = vmax.f32 %v830, 0.0
      %v963 = vmax.f32 %v835, 0.0
      %v964 = vmax.f32 %v838, 0.0
      %v965 = vmax.f32 %v843, 0.0
      %v966 = vmax.f32 %v846, 0.0
      %v967 = vmax.f32 %v851, 0.0
      %v968 = vmax.f32 %v854, 0.0
      %v969 = vmax.f32 %v859, 0.0
      %v970 = vmax.f32 %v862, 0.0
      %v971 = vmax.f32 %v867, 0.0
      %v972 = vmax.f32 %v870, 0.0
      %v973 = vmax.f32 %v875, 0.0
      %v974 = vmax.f32 %v878, 0.0
      %v975 = vmax.f32 %v883, 0.0
      %v976 = vmax.f32 %v886, 0.0
      %v977 = vmax.f32 %v891, 0.0
      %v978 = vmax.f32 %v894, 0.0
      %v979 = vmax.f32 %v899, 0.0
      %v980 = vmax.f32 %v902, 0.0
      %v981 = vmax.f32 %v907, 0.0
      %v982 = vmax.f32 %v910, 0.0
      %v983 = vmax.f32 %v915, 0.0
      %v984 = vmax.f32 %v918, 0.0
      %vm985 = vcmask 523264
      %986 = vst.msk [vmem:[#allocation4] sm:$0xff] %vm985, %v921
      %987 = vst.msk [vmem:[#allocation4 + $0x8] sm:$0xff] %vm985, %v922
      %988 = vst.msk [vmem:[#allocation4 + $0x10] sm:$0xff] %vm985, %v923
      %989 = vst.msk [vmem:[#allocation4 + $0x18] sm:$0xff] %vm985, %v924
      %990 = vst.msk [vmem:[#allocation4 + $0x20] sm:$0xff] %vm985, %v925
      %991 = vst.msk [vmem:[#allocation4 + $0x28] sm:$0xff] %vm985, %v926
      %992 = vst.msk [vmem:[#allocation4 + $0x30] sm:$0xff] %vm985, %v927
      %993 = vst.msk [vmem:[#allocation4 + $0x38] sm:$0xff] %vm985, %v928
      %994 = vst.msk [vmem:[#allocation4 + $0x40] sm:$0xff] %vm985, %v929
      %995 = vst.msk [vmem:[#allocation4 + $0x48] sm:$0xff] %vm985, %v930
      %996 = vst.msk [vmem:[#allocation4 + $0x50] sm:$0xff] %vm985, %v931
      %997 = vst.msk [vmem:[#allocation4 + $0x58] sm:$0xff] %vm985, %v932
      %998 = vst.msk [vmem:[#allocation4 + $0x60] sm:$0xff] %vm985, %v933
      %999 = vst.msk [vmem:[#allocation4 + $0x68] sm:$0xff] %vm985, %v934
      %1000 = vst.msk [vmem:[#allocation4 + $0x70] sm:$0xff] %vm985, %v935
      %1001 = vst.msk [vmem:[#allocation4 + $0x78] sm:$0xff] %vm985, %v936
      %1002 = vst.msk [vmem:[#allocation4 + $0x80] sm:$0xff] %vm985, %v937
      %1003 = vst.msk [vmem:[#allocation4 + $0x88] sm:$0xff] %vm985, %v938
      %1004 = vst.msk [vmem:[#allocation4 + $0x90] sm:$0xff] %vm985, %v939
      %1005 = vst.msk [vmem:[#allocation4 + $0x98] sm:$0xff] %vm985, %v940
      %1006 = vst.msk [vmem:[#allocation4 + $0xa0] sm:$0xff] %vm985, %v941
      %1007 = vst.msk [vmem:[#allocation4 + $0xa8] sm:$0xff] %vm985, %v942
      %1008 = vst.msk [vmem:[#allocation4 + $0xb0] sm:$0xff] %vm985, %v943
      %1009 = vst.msk [vmem:[#allocation4 + $0xb8] sm:$0xff] %vm985, %v944
      %1010 = vst.msk [vmem:[#allocation4 + $0xc0] sm:$0xff] %vm985, %v945
      %1011 = vst.msk [vmem:[#allocation4 + $0xc8] sm:$0xff] %vm985, %v946
      %1012 = vst.msk [vmem:[#allocation4 + $0xd0] sm:$0xff] %vm985, %v947
      %1013 = vst.msk [vmem:[#allocation4 + $0xd8] sm:$0xff] %vm985, %v948
      %1014 = vst.msk [vmem:[#allocation4 + $0xe0] sm:$0xff] %vm985, %v949
      %1015 = vst.msk [vmem:[#allocation4 + $0xe8] sm:$0xff] %vm985, %v950
      %1016 = vst.msk [vmem:[#allocation4 + $0xf0] sm:$0xff] %vm985, %v951
      %1017 = vst.msk [vmem:[#allocation4 + $0xf8] sm:$0xff] %vm985, %v952
      %1018 = vst.msk [vmem:[#allocation4 + $0x100] sm:$0xff] %vm985, %v953
      %1019 = vst.msk [vmem:[#allocation4 + $0x108] sm:$0xff] %vm985, %v954
      %1020 = vst.msk [vmem:[#allocation4 + $0x110] sm:$0xff] %vm985, %v955
      %1021 = vst.msk [vmem:[#allocation4 + $0x118] sm:$0xff] %vm985, %v956
      %1022 = vst.msk [vmem:[#allocation4 + $0x120] sm:$0xff] %vm985, %v957
      %1023 = vst.msk [vmem:[#allocation4 + $0x128] sm:$0xff] %vm985, %v958
      %1024 = vst.msk [vmem:[#allocation4 + $0x130] sm:$0xff] %vm985, %v959
      %1025 = vst.msk [vmem:[#allocation4 + $0x138] sm:$0xff] %vm985, %v960
      %1026 = vst.msk [vmem:[#allocation4 + $0x140] sm:$0xff] %vm985, %v961
      %1027 = vst.msk [vmem:[#allocation4 + $0x148] sm:$0xff] %vm985, %v962
      %1028 = vst.msk [vmem:[#allocation4 + $0x150] sm:$0xff] %vm985, %v963
      %1029 = vst.msk [vmem:[#allocation4 + $0x158] sm:$0xff] %vm985, %v964
      %1030 = vst.msk [vmem:[#allocation4 + $0x160] sm:$0xff] %vm985, %v965
      %1031 = vst.msk [vmem:[#allocation4 + $0x168] sm:$0xff] %vm985, %v966
      %1032 = vst.msk [vmem:[#allocation4 + $0x170] sm:$0xff] %vm985, %v967
      %1033 = vst.msk [vmem:[#allocation4 + $0x178] sm:$0xff] %vm985, %v968
      %1034 = vst.msk [vmem:[#allocation4 + $0x180] sm:$0xff] %vm985, %v969
      %1035 = vst.msk [vmem:[#allocation4 + $0x188] sm:$0xff] %vm985, %v970
      %1036 = vst.msk [vmem:[#allocation4 + $0x190] sm:$0xff] %vm985, %v971
      %1037 = vst.msk [vmem:[#allocation4 + $0x198] sm:$0xff] %vm985, %v972
      %1038 = vst.msk [vmem:[#allocation4 + $0x1a0] sm:$0xff] %vm985, %v973
      %1039 = vst.msk [vmem:[#allocation4 + $0x1a8] sm:$0xff] %vm985, %v974
      %1040 = vst.msk [vmem:[#allocation4 + $0x1b0] sm:$0xff] %vm985, %v975
      %1041 = vst.msk [vmem:[#allocation4 + $0x1b8] sm:$0xff] %vm985, %v976
      %1042 = vst.msk [vmem:[#allocation4 + $0x1c0] sm:$0xff] %vm985, %v977
      %1043 = vst.msk [vmem:[#allocation4 + $0x1c8] sm:$0xff] %vm985, %v978
      %1044 = vst.msk [vmem:[#allocation4 + $0x1d0] sm:$0xff] %vm985, %v979
      %1045 = vst.msk [vmem:[#allocation4 + $0x1d8] sm:$0xff] %vm985, %v980
      %1046 = vst.msk [vmem:[#allocation4 + $0x1e0] sm:$0xff] %vm985, %v981
      %1047 = vst.msk [vmem:[#allocation4 + $0x1e8] sm:$0xff] %vm985, %v982
      %1048 = vst.msk [vmem:[#allocation4 + $0x1f0] sm:$0xff] %vm985, %v983
      %1049 = vst.msk [vmem:[#allocation4 + $0x1f8] sm:$0xff] %vm985, %v984
      %v1050 = vld [vmem:[#allocation4] ss:$2 sm:$0xff]
      %s1051 = scalar_lea.vmem [#allocation4], 32
      %v1052 = vld [vmem:[%s1051] ss:$2 sm:$0xff]
      %s1053 = scalar_lea.vmem [#allocation4], 64
      %v1054 = vld [vmem:[%s1053] ss:$2 sm:$0xff]
      %s1055 = scalar_lea.vmem [#allocation4], 96
      %v1056 = vld [vmem:[%s1055] ss:$2 sm:$0xff]
      %s1057 = scalar_lea.vmem [#allocation4], 128
      %v1058 = vld [vmem:[%s1057] ss:$2 sm:$0xff]
      %s1059 = scalar_lea.vmem [#allocation4], 160
      %v1060 = vld [vmem:[%s1059] ss:$2 sm:$0xff]
      %s1061 = scalar_lea.vmem [#allocation4], 192
      %v1062 = vld [vmem:[%s1061] ss:$2 sm:$0xff]
      %s1063 = scalar_lea.vmem [#allocation4], 224
      %v1064 = vld [vmem:[%s1063] ss:$2 sm:$0xff]
      %s1065 = scalar_lea.vmem [#allocation4], 256
      %v1066 = vld [vmem:[%s1065] ss:$2 sm:$0xff]
      %s1067 = scalar_lea.vmem [#allocation4], 288
      %v1068 = vld [vmem:[%s1067] ss:$2 sm:$0xff]
      %s1069 = scalar_lea.vmem [#allocation4], 320
      %v1070 = vld [vmem:[%s1069] ss:$2 sm:$0xff]
      %s1071 = scalar_lea.vmem [#allocation4], 352
      %v1072 = vld [vmem:[%s1071] ss:$2 sm:$0xff]
      %s1073 = scalar_lea.vmem [#allocation4], 384
      %v1074 = vld [vmem:[%s1073] ss:$2 sm:$0xff]
      %s1075 = scalar_lea.vmem [#allocation4], 416
      %v1076 = vld [vmem:[%s1075] ss:$2 sm:$0xff]
      %s1077 = scalar_lea.vmem [#allocation4], 448
      %v1078 = vld [vmem:[%s1077] ss:$2 sm:$0xff]
      %s1079 = scalar_lea.vmem [#allocation4], 480
      %v1080 = vld [vmem:[%s1079] ss:$2 sm:$0xff]
      %s1081 = scalar_lea.vmem [#allocation4], 1
      %v1082 = vld [vmem:[%s1081] ss:$2 sm:$0xff]
      %s1083 = scalar_lea.vmem [#allocation4], 33
      %v1084 = vld [vmem:[%s1083] ss:$2 sm:$0xff]
      %s1085 = scalar_lea.vmem [#allocation4], 65
      %v1086 = vld [vmem:[%s1085] ss:$2 sm:$0xff]
      %s1087 = scalar_lea.vmem [#allocation4], 97
      %v1088 = vld [vmem:[%s1087] ss:$2 sm:$0xff]
      %s1089 = scalar_lea.vmem [#allocation4], 129
      %v1090 = vld [vmem:[%s1089] ss:$2 sm:$0xff]
      %s1091 = scalar_lea.vmem [#allocation4], 161
      %v1092 = vld [vmem:[%s1091] ss:$2 sm:$0xff]
      %s1093 = scalar_lea.vmem [#allocation4], 193
      %v1094 = vld [vmem:[%s1093] ss:$2 sm:$0xff]
      %s1095 = scalar_lea.vmem [#allocation4], 225
      %v1096 = vld [vmem:[%s1095] ss:$2 sm:$0xff]
      %s1097 = scalar_lea.vmem [#allocation4], 257
      %v1098 = vld [vmem:[%s1097] ss:$2 sm:$0xff]
      %s1099 = scalar_lea.vmem [#allocation4], 289
      %v1100 = vld [vmem:[%s1099] ss:$2 sm:$0xff]
      %s1101 = scalar_lea.vmem [#allocation4], 321
      %v1102 = vld [vmem:[%s1101] ss:$2 sm:$0xff]
      %s1103 = scalar_lea.vmem [#allocation4], 353
      %v1104 = vld [vmem:[%s1103] ss:$2 sm:$0xff]
      %s1105 = scalar_lea.vmem [#allocation4], 385
      %v1106 = vld [vmem:[%s1105] ss:$2 sm:$0xff]
      %s1107 = scalar_lea.vmem [#allocation4], 417
      %v1108 = vld [vmem:[%s1107] ss:$2 sm:$0xff]
      %s1109 = scalar_lea.vmem [#allocation4], 449
      %v1110 = vld [vmem:[%s1109] ss:$2 sm:$0xff]
      %s1111 = scalar_lea.vmem [#allocation4], 481
      %v1112 = vld [vmem:[%s1111] ss:$2 sm:$0xff]
      %v1113 = vmax.f32 %v1050, %v1082
      %v1114 = vmax.f32 %v1052, %v1084
      %v1115 = vmax.f32 %v1054, %v1086
      %v1116 = vmax.f32 %v1056, %v1088
      %v1117 = vmax.f32 %v1058, %v1090
      %v1118 = vmax.f32 %v1060, %v1092
      %v1119 = vmax.f32 %v1062, %v1094
      %v1120 = vmax.f32 %v1064, %v1096
      %v1121 = vmax.f32 %v1066, %v1098
      %v1122 = vmax.f32 %v1068, %v1100
      %v1123 = vmax.f32 %v1070, %v1102
      %v1124 = vmax.f32 %v1072, %v1104
      %v1125 = vmax.f32 %v1074, %v1106
      %v1126 = vmax.f32 %v1076, %v1108
      %v1127 = vmax.f32 %v1078, %v1110
      %v1128 = vmax.f32 %v1080, %v1112
      %1129 = vst.msk [vmem:[#allocation2] sm:$0xff] %vm985, 0.0
      %1130 = vst.msk [vmem:[#allocation2 + $0x8] sm:$0xff] %vm985, 0.0
      %1131 = vst.msk [vmem:[#allocation2 + $0x10] sm:$0xff] %vm985, 0.0
      %1132 = vst.msk [vmem:[#allocation2 + $0x18] sm:$0xff] %vm985, 0.0
      %1133 = vst.msk [vmem:[#allocation2 + $0x20] sm:$0xff] %vm985, 0.0
      %1134 = vst.msk [vmem:[#allocation2 + $0x28] sm:$0xff] %vm985, 0.0
      %1135 = vst.msk [vmem:[#allocation2 + $0x30] sm:$0xff] %vm985, 0.0
      %1136 = vst.msk [vmem:[#allocation2 + $0x38] sm:$0xff] %vm985, 0.0
      %1137 = vst.msk [vmem:[#allocation2 + $0x40] sm:$0xff] %vm985, 0.0
      %1138 = vst.msk [vmem:[#allocation2 + $0x48] sm:$0xff] %vm985, 0.0
      %1139 = vst.msk [vmem:[#allocation2 + $0x50] sm:$0xff] %vm985, 0.0
      %1140 = vst.msk [vmem:[#allocation2 + $0x58] sm:$0xff] %vm985, 0.0
      %1141 = vst.msk [vmem:[#allocation2 + $0x60] sm:$0xff] %vm985, 0.0
      %1142 = vst.msk [vmem:[#allocation2 + $0x68] sm:$0xff] %vm985, 0.0
      %1143 = vst.msk [vmem:[#allocation2 + $0x70] sm:$0xff] %vm985, 0.0
      %1144 = vst.msk [vmem:[#allocation2 + $0x78] sm:$0xff] %vm985, 0.0
      %1145 = vst.msk [vmem:[#allocation2 + $0x80] sm:$0xff] %vm985, 0.0
      %1146 = vst.msk [vmem:[#allocation2 + $0x88] sm:$0xff] %vm985, 0.0
      %1147 = vst.msk [vmem:[#allocation2 + $0x90] sm:$0xff] %vm985, 0.0
      %1148 = vst.msk [vmem:[#allocation2 + $0x98] sm:$0xff] %vm985, 0.0
      %1149 = vst.msk [vmem:[#allocation2 + $0xa0] sm:$0xff] %vm985, 0.0
      %v1150 = vmax.f32 %v1113, %v1114
      %1151 = vst.msk [vmem:[#allocation2 + $0x11] sm:$0xff] %vm985, %v1150
      %v1152 = vmax.f32 %v1115, %v1116
      %1153 = vst.msk [vmem:[#allocation2 + $0x21] sm:$0xff] %vm985, %v1152
      %v1154 = vmax.f32 %v1117, %v1118
      %1155 = vst.msk [vmem:[#allocation2 + $0x31] sm:$0xff] %vm985, %v1154
      %v1156 = vmax.f32 %v1119, %v1120
      %1157 = vst.msk [vmem:[#allocation2 + $0x41] sm:$0xff] %vm985, %v1156
      %v1158 = vmax.f32 %v1121, %v1122
      %1159 = vst.msk [vmem:[#allocation2 + $0x51] sm:$0xff] %vm985, %v1158
      %v1160 = vmax.f32 %v1123, %v1124
      %1161 = vst.msk [vmem:[#allocation2 + $0x61] sm:$0xff] %vm985, %v1160
      %v1162 = vmax.f32 %v1125, %v1126
      %1163 = vst.msk [vmem:[#allocation2 + $0x71] sm:$0xff] %vm985, %v1162
      %v1164 = vmax.f32 %v1127, %v1128
      %1165 = vst.msk [vmem:[#allocation2 + $0x81] sm:$0xff] %vm985, %v1164
      %v1166 = vld [vmem:[#allocation2] sm:$0xff]
      %v1167 = vld [vmem:[#allocation2 + $0x8] sm:$0xff]
      %v1168 = vld [vmem:[#allocation2 + $0x10] sm:$0xff]
      %v1169 = vld [vmem:[#allocation2 + $0x18] sm:$0xff]
      %v1170 = vld [vmem:[#allocation2 + $0x20] sm:$0xff]
      %v1171 = vld [vmem:[#allocation2 + $0x28] sm:$0xff]
      %v1172 = vld [vmem:[#allocation2 + $0x30] sm:$0xff]
      %v1173 = vld [vmem:[#allocation2 + $0x38] sm:$0xff]
      %v1174 = vld [vmem:[#allocation2 + $0x40] sm:$0xff]
      %v1175 = vld [vmem:[#allocation2 + $0x48] sm:$0xff]
      %v1176 = vld [vmem:[#allocation2 + $0x50] sm:$0xff]
      %v1177 = vld [vmem:[#allocation2 + $0x58] sm:$0xff]
      %v1178 = vld [vmem:[#allocation2 + $0x60] sm:$0xff]
      %v1179 = vld [vmem:[#allocation2 + $0x68] sm:$0xff]
      %v1180 = vld [vmem:[#allocation2 + $0x70] sm:$0xff]
      %v1181 = vld [vmem:[#allocation2 + $0x78] sm:$0xff]
      %v1182 = vpack.c.bf16 %v1167, %v1166
      %v1183 = vpack.c.bf16 %v1169, %v1168
      %v1184 = vpack.c.bf16 %v1171, %v1170
      %v1185 = vpack.c.bf16 %v1173, %v1172
      %v1186 = vpack.c.bf16 %v1175, %v1174
      %v1187 = vpack.c.bf16 %v1177, %v1176
      %v1188 = vpack.c.bf16 %v1179, %v1178
      %v1189 = vpack.c.bf16 %v1181, %v1180
      %v1190 = vld [vmem:[#allocation2 + $0x1] sm:$0xff]
      %v1191 = vld [vmem:[#allocation2 + $0x9] sm:$0xff]
      %v1192 = vld [vmem:[#allocation2 + $0x11] sm:$0xff]
      %v1193 = vld [vmem:[#allocation2 + $0x19] sm:$0xff]
      %v1194 = vld [vmem:[#allocation2 + $0x21] sm:$0xff]
      %v1195 = vld [vmem:[#allocation2 + $0x29] sm:$0xff]
      %v1196 = vld [vmem:[#allocation2 + $0x31] sm:$0xff]
      %v1197 = vld [vmem:[#allocation2 + $0x39] sm:$0xff]
      %v1198 = vld [vmem:[#allocation2 + $0x41] sm:$0xff]
      %v1199 = vld [vmem:[#allocation2 + $0x49] sm:$0xff]
      %v1200 = vld [vmem:[#allocation2 + $0x51] sm:$0xff]
      %v1201 = vld [vmem:[#allocation2 + $0x59] sm:$0xff]
      %v1202 = vld [vmem:[#allocation2 + $0x61] sm:$0xff]
      %v1203 = vld [vmem:[#allocation2 + $0x69] sm:$0xff]
      %v1204 = vld [vmem:[#allocation2 + $0x71] sm:$0xff]
      %v1205 = vld [vmem:[#allocation2 + $0x79] sm:$0xff]
      %v1206 = vpack.c.bf16 %v1191, %v1190
      %v1207 = vpack.c.bf16 %v1193, %v1192
      %v1208 = vpack.c.bf16 %v1195, %v1194
      %v1209 = vpack.c.bf16 %v1197, %v1196
      %v1210 = vpack.c.bf16 %v1199, %v1198
      %v1211 = vpack.c.bf16 %v1201, %v1200
      %v1212 = vpack.c.bf16 %v1203, %v1202
      %v1213 = vpack.c.bf16 %v1205, %v1204
      %v1214 = vld [vmem:[#allocation2 + $0x2] sm:$0xff]
      %v1215 = vld [vmem:[#allocation2 + $0xa] sm:$0xff]
      %v1216 = vld [vmem:[#allocation2 + $0x12] sm:$0xff]
      %v1217 = vld [vmem:[#allocation2 + $0x1a] sm:$0xff]
      %v1218 = vld [vmem:[#allocation2 + $0x22] sm:$0xff]
      %v1219 = vld [vmem:[#allocation2 + $0x2a] sm:$0xff]
      %v1220 = vld [vmem:[#allocation2 + $0x32] sm:$0xff]
      %v1221 = vld [vmem:[#allocation2 + $0x3a] sm:$0xff]
      %v1222 = vld [vmem:[#allocation2 + $0x42] sm:$0xff]
      %v1223 = vld [vmem:[#allocation2 + $0x4a] sm:$0xff]
      %v1224 = vld [vmem:[#allocation2 + $0x52] sm:$0xff]
      %v1225 = vld [vmem:[#allocation2 + $0x5a] sm:$0xff]
      %v1226 = vld [vmem:[#allocation2 + $0x62] sm:$0xff]
      %v1227 = vld [vmem:[#allocation2 + $0x6a] sm:$0xff]
      %v1228 = vld [vmem:[#allocation2 + $0x72] sm:$0xff]
      %v1229 = vld [vmem:[#allocation2 + $0x7a] sm:$0xff]
      %v1230 = vpack.c.bf16 %v1215, %v1214
      %v1231 = vpack.c.bf16 %v1217, %v1216
      %v1232 = vpack.c.bf16 %v1219, %v1218
      %v1233 = vpack.c.bf16 %v1221, %v1220
      %v1234 = vpack.c.bf16 %v1223, %v1222
      %v1235 = vpack.c.bf16 %v1225, %v1224
      %v1236 = vpack.c.bf16 %v1227, %v1226
      %v1237 = vpack.c.bf16 %v1229, %v1228
      %v1238 = vld [vmem:[#allocation2 + $0x80] sm:$0xff]
      %v1239 = vld [vmem:[#allocation2 + $0x88] sm:$0xff]
      %v1240 = vpack.c.bf16 %v1239, %v1238
      %v1241 = vld [vmem:[#allocation2 + $0x81] sm:$0xff]
      %v1242 = vld [vmem:[#allocation2 + $0x89] sm:$0xff]
      %v1243 = vpack.c.bf16 %v1242, %v1241
      %v1244 = vld [vmem:[#allocation2 + $0x82] sm:$0xff]
      %v1245 = vld [vmem:[#allocation2 + $0x8a] sm:$0xff]
      %v1246 = vpack.c.bf16 %v1245, %v1244
      %v1247 = vld [vmem:[#allocation2 + $0x90] sm:$0xff]
      %v1248 = vld [vmem:[#allocation2 + $0x98] sm:$0xff]
      %v1249 = vpack.c.bf16 %v1248, %v1247
      %v1250 = vld [vmem:[#allocation2 + $0x91] sm:$0xff]
      %v1251 = vld [vmem:[#allocation2 + $0x99] sm:$0xff]
      %v1252 = vpack.c.bf16 %v1251, %v1250
      %v1253 = vld [vmem:[#allocation2 + $0x92] sm:$0xff]
      %v1254 = vld [vmem:[#allocation2 + $0x9a] sm:$0xff]
      %v1255 = vpack.c.bf16 %v1254, %v1253
      %1264 = vrot.lane.b32.xlu0 %v1206, 64
      %v1265 = vpop.permute.xlu0 %1264
      %1266 = vrot.lane.b32.xlu0 %v1207, 64
      %v1267 = vpop.permute.xlu0 %1266
      %1268 = vrot.lane.b32.xlu0 %v1208, 64
      %v1269 = vpop.permute.xlu0 %1268
      %1270 = vrot.lane.b32.xlu0 %v1209, 64
      %v1271 = vpop.permute.xlu0 %1270
      %1272 = vrot.lane.b32.xlu0 %v1210, 64
      %v1273 = vpop.permute.xlu0 %1272
      %1274 = vrot.lane.b32.xlu0 %v1211, 64
      %v1275 = vpop.permute.xlu0 %1274
      %1276 = vrot.lane.b32.xlu0 %v1212, 64
      %v1277 = vpop.permute.xlu0 %1276
      %1278 = vrot.lane.b32.xlu0 %v1213, 64
      %v1279 = vpop.permute.xlu0 %1278
      %1288 = vrot.lane.b32.xlu0 %v1183, 64
      %v1289 = vpop.permute.xlu0 %1288
      %1290 = vrot.lane.b32.xlu0 %v1184, 64
      %v1291 = vpop.permute.xlu0 %1290
      %1292 = vrot.lane.b32.xlu0 %v1185, 64
      %v1293 = vpop.permute.xlu0 %1292
      %1294 = vrot.lane.b32.xlu0 %v1186, 64
      %v1295 = vpop.permute.xlu0 %1294
      %1296 = vrot.lane.b32.xlu0 %v1187, 64
      %v1297 = vpop.permute.xlu0 %1296
      %1298 = vrot.lane.b32.xlu0 %v1188, 64
      %v1299 = vpop.permute.xlu0 %1298
      %1300 = vrot.lane.b32.xlu0 %v1189, 64
      %v1301 = vpop.permute.xlu0 %1300
      %1302 = vrot.lane.b32.xlu0 %v1240, 64
      %v1303 = vpop.permute.xlu0 %1302
      %1312 = vrot.lane.b32.xlu0 %v1231, 64
      %v1313 = vpop.permute.xlu0 %1312
      %1314 = vrot.lane.b32.xlu0 %v1232, 64
      %v1315 = vpop.permute.xlu0 %1314
      %1316 = vrot.lane.b32.xlu0 %v1233, 64
      %v1317 = vpop.permute.xlu0 %1316
      %1318 = vrot.lane.b32.xlu0 %v1234, 64
      %v1319 = vpop.permute.xlu0 %1318
      %1320 = vrot.lane.b32.xlu0 %v1235, 64
      %v1321 = vpop.permute.xlu0 %1320
      %1322 = vrot.lane.b32.xlu0 %v1236, 64
      %v1323 = vpop.permute.xlu0 %1322
      %1324 = vrot.lane.b32.xlu0 %v1237, 64
      %v1325 = vpop.permute.xlu0 %1324
      %1326 = vrot.lane.b32.xlu0 %v1246, 64
      %v1327 = vpop.permute.xlu0 %1326
      %1330 = vrot.lane.b32.xlu0 %v1243, 64
      %v1331 = vpop.permute.xlu0 %1330
      %1332 = vrot.lane.b32.xlu0 %v1252, 64
      %v1333 = vpop.permute.xlu0 %1332
      %v1336 = vsel %vm985, %v1182, %v1265
      %v1340 = vsel %vm985, %v1183, %v1267
      %v1344 = vsel %vm985, %v1184, %v1269
      %v1348 = vsel %vm985, %v1185, %v1271
      %v1352 = vsel %vm985, %v1186, %v1273
      %v1356 = vsel %vm985, %v1187, %v1275
      %v1360 = vsel %vm985, %v1188, %v1277
      %v1364 = vsel %vm985, %v1189, %v1279
      %v1368 = vsel %vm985, %v1230, %v1289
      %v1372 = vsel %vm985, %v1231, %v1291
      %v1376 = vsel %vm985, %v1232, %v1293
      %v1380 = vsel %vm985, %v1233, %v1295
      %v1384 = vsel %vm985, %v1234, %v1297
      %v1388 = vsel %vm985, %v1235, %v1299
      %v1392 = vsel %vm985, %v1236, %v1301
      %v1396 = vsel %vm985, %v1237, %v1303
      %v1400 = vsel %vm985, %v1207, %v1313
      %v1404 = vsel %vm985, %v1208, %v1315
      %v1408 = vsel %vm985, %v1209, %v1317
      %v1412 = vsel %vm985, %v1210, %v1319
      %v1416 = vsel %vm985, %v1211, %v1321
      %v1420 = vsel %vm985, %v1212, %v1323
      %v1424 = vsel %vm985, %v1213, %v1325
      %v1428 = vsel %vm985, %v1243, %v1327
      %v1432 = vsel %vm985, %v1240, %v1331
      %v1436 = vsel %vm985, %v1249, %v1333
      %v1438 = vld [vmem:[%s3] sm:$0xf]
      %v1439 = vld [vmem:[%s3 + $0x4] sm:$0xf]
      %v1440 = vld [vmem:[%s3 + $0x8] sm:$0xf]
      %v1441 = vld [vmem:[%s3 + $0xc] sm:$0xf]
      %v1442 = vld [vmem:[%s3 + $0x10] sm:$0xf]
      %v1443 = vld [vmem:[%s3 + $0x14] sm:$0xf]
      %v1444 = vld [vmem:[%s3 + $0x18] sm:$0xf]
      %v1445 = vld [vmem:[%s3 + $0x1c] sm:$0xf]
      %v1446 = vld [vmem:[%s3 + $0x20] sm:$0xf]
      %v1447 = vld [vmem:[%s3 + $0x24] sm:$0xf]
      %v1448 = vld [vmem:[%s3 + $0x28] sm:$0xf]
      %v1449 = vld [vmem:[%s3 + $0x2c] sm:$0xf]
      %v1450 = vld [vmem:[%s3 + $0x30] sm:$0xf]
      %v1451 = vld [vmem:[%s3 + $0x34] sm:$0xf]
      %v1452 = vld [vmem:[%s3 + $0x38] sm:$0xf]
      %v1453 = vld [vmem:[%s3 + $0x3c] sm:$0xf]
      %v1454 = vld [vmem:[%s3 + $0x40] sm:$0xf]
      %v1455 = vld [vmem:[%s3 + $0x44] sm:$0xf]
      %v1456 = vld [vmem:[%s3 + $0x48] sm:$0xf]
      %v1457 = vld [vmem:[%s3 + $0x4c] sm:$0xf]
      %v1458 = vld [vmem:[%s3 + $0x50] sm:$0xf]
      %v1459 = vld [vmem:[%s3 + $0x54] sm:$0xf]
      %v1460 = vld [vmem:[%s3 + $0x58] sm:$0xf]
      %v1461 = vld [vmem:[%s3 + $0x5c] sm:$0xf]
      %v1462 = vld [vmem:[%s3 + $0x60] sm:$0xf]
      %v1463 = vld [vmem:[%s3 + $0x64] sm:$0xf]
      %v1464 = vld [vmem:[%s3 + $0x68] sm:$0xf]
      %v1465 = vld [vmem:[%s3 + $0x6c] sm:$0xf]
      %v1466 = vld [vmem:[%s3 + $0x70] sm:$0xf]
      %v1467 = vld [vmem:[%s3 + $0x74] sm:$0xf]
      %v1468 = vld [vmem:[%s3 + $0x78] sm:$0xf]
      %v1469 = vld [vmem:[%s3 + $0x7c] sm:$0xf]
      %v1470 = vld [vmem:[%s3 + $0x80] sm:$0xf]
      %v1471 = vld [vmem:[%s3 + $0x84] sm:$0xf]
      %v1472 = vld [vmem:[%s3 + $0x88] sm:$0xf]
      %v1473 = vld [vmem:[%s3 + $0x8c] sm:$0xf]
      %v1474 = vld [vmem:[%s3 + $0x90] sm:$0xf]
      %v1475 = vld [vmem:[%s3 + $0x94] sm:$0xf]
      %v1476 = vld [vmem:[%s3 + $0x98] sm:$0xf]
      %v1477 = vld [vmem:[%s3 + $0x9c] sm:$0xf]
      %v1478 = vld [vmem:[%s3 + $0xa0] sm:$0xf]
      %v1479 = vld [vmem:[%s3 + $0xa4] sm:$0xf]
      %v1480 = vld [vmem:[%s3 + $0xa8] sm:$0xf]
      %v1481 = vld [vmem:[%s3 + $0xac] sm:$0xf]
      %v1482 = vld [vmem:[%s3 + $0xb0] sm:$0xf]
      %v1483 = vld [vmem:[%s3 + $0xb4] sm:$0xf]
      %v1484 = vld [vmem:[%s3 + $0xb8] sm:$0xf]
      %v1485 = vld [vmem:[%s3 + $0xbc] sm:$0xf]
      %v1486 = vld [vmem:[%s3 + $0xc0] sm:$0xf]
      %v1487 = vld [vmem:[%s3 + $0xc4] sm:$0xf]
      %v1488 = vld [vmem:[%s3 + $0xc8] sm:$0xf]
      %v1489 = vld [vmem:[%s3 + $0xcc] sm:$0xf]
      %v1490 = vld [vmem:[%s3 + $0xd0] sm:$0xf]
      %v1491 = vld [vmem:[%s3 + $0xd4] sm:$0xf]
      %v1492 = vld [vmem:[%s3 + $0xd8] sm:$0xf]
      %v1493 = vld [vmem:[%s3 + $0xdc] sm:$0xf]
      %v1494 = vld [vmem:[%s3 + $0xe0] sm:$0xf]
      %v1495 = vld [vmem:[%s3 + $0xe4] sm:$0xf]
      %v1496 = vld [vmem:[%s3 + $0xe8] sm:$0xf]
      %v1497 = vld [vmem:[%s3 + $0xec] sm:$0xf]
      %v1498 = vld [vmem:[%s3 + $0xf0] sm:$0xf]
      %v1499 = vld [vmem:[%s3 + $0xf4] sm:$0xf]
      %v1500 = vld [vmem:[%s3 + $0xf8] sm:$0xf]
      %v1501 = vld [vmem:[%s3 + $0xfc] sm:$0xf]
      %v1502 = vld [vmem:[%s3 + $0x100] sm:$0xf]
      %v1503 = vld [vmem:[%s3 + $0x104] sm:$0xf]
      %v1504 = vld [vmem:[%s3 + $0x108] sm:$0xf]
      %v1505 = vld [vmem:[%s3 + $0x10c] sm:$0xf]
      %v1506 = vld [vmem:[%s3 + $0x110] sm:$0xf]
      %v1507 = vld [vmem:[%s3 + $0x114] sm:$0xf]
      %v1508 = vld [vmem:[%s3 + $0x118] sm:$0xf]
      %v1509 = vld [vmem:[%s3 + $0x11c] sm:$0xf]
      %v1510 = vld [vmem:[%s4] sm:$0x1]
      %v1512 = vlaneseq
      %v1513 = vshrl.u32 %v1512, 7
      %v1514 = vsub.s32 0, %v1513
      %v1515 = vrot.slane %v1510, %v1514
      %v1589 = vunpack.c.l.b16 %v1438
      %v1590 = vunpack.c.l.b16 %v1439
      %v1591 = vunpack.c.l.b16 %v1440
      %v1592 = vunpack.c.l.b16 %v1441
      %v1593 = vunpack.c.l.b16 %v1442
      %v1594 = vunpack.c.l.b16 %v1443
      %v1595 = vunpack.c.l.b16 %v1444
      %v1596 = vunpack.c.l.b16 %v1445
      %v1597 = vunpack.c.l.b16 %v1446
      %v1598 = vunpack.c.l.b16 %v1447
      %v1599 = vunpack.c.l.b16 %v1448
      %v1600 = vunpack.c.l.b16 %v1449
      %v1601 = vunpack.c.l.b16 %v1450
      %v1602 = vunpack.c.l.b16 %v1451
      %v1603 = vunpack.c.l.b16 %v1452
      %v1604 = vunpack.c.l.b16 %v1453
      %v1605 = vunpack.c.l.b16 %v1454
      %v1606 = vunpack.c.l.b16 %v1455
      %v1607 = vunpack.c.l.b16 %v1456
      %v1608 = vunpack.c.l.b16 %v1457
      %v1609 = vunpack.c.l.b16 %v1458
      %v1610 = vunpack.c.l.b16 %v1459
      %v1611 = vunpack.c.l.b16 %v1460
      %v1612 = vunpack.c.l.b16 %v1461
      %v1613 = vunpack.c.l.b16 %v1462
      %v1614 = vunpack.c.l.b16 %v1463
      %v1615 = vunpack.c.l.b16 %v1464
      %v1616 = vunpack.c.l.b16 %v1465
      %v1617 = vunpack.c.l.b16 %v1466
      %v1618 = vunpack.c.l.b16 %v1467
      %v1619 = vunpack.c.l.b16 %v1468
      %v1620 = vunpack.c.l.b16 %v1469
      %v1621 = vunpack.c.l.b16 %v1470
      %v1622 = vunpack.c.l.b16 %v1471
      %v1623 = vunpack.c.l.b16 %v1472
      %v1624 = vunpack.c.l.b16 %v1473
      %v1625 = vunpack.c.l.b16 %v1474
      %v1626 = vunpack.c.l.b16 %v1475
      %v1627 = vunpack.c.l.b16 %v1476
      %v1628 = vunpack.c.l.b16 %v1477
      %v1629 = vunpack.c.l.b16 %v1478
      %v1630 = vunpack.c.l.b16 %v1479
      %v1631 = vunpack.c.l.b16 %v1480
      %v1632 = vunpack.c.l.b16 %v1481
      %v1633 = vunpack.c.l.b16 %v1482
      %v1634 = vunpack.c.l.b16 %v1483
      %v1635 = vunpack.c.l.b16 %v1484
      %v1636 = vunpack.c.l.b16 %v1485
      %v1637 = vunpack.c.l.b16 %v1486
      %v1638 = vunpack.c.l.b16 %v1487
      %v1639 = vunpack.c.l.b16 %v1488
      %v1640 = vunpack.c.l.b16 %v1489
      %v1641 = vunpack.c.l.b16 %v1490
      %v1642 = vunpack.c.l.b16 %v1491
      %v1643 = vunpack.c.l.b16 %v1492
      %v1644 = vunpack.c.l.b16 %v1493
      %v1645 = vunpack.c.l.b16 %v1494
      %v1646 = vunpack.c.l.b16 %v1495
      %v1647 = vunpack.c.l.b16 %v1496
      %v1648 = vunpack.c.l.b16 %v1497
      %v1649 = vunpack.c.l.b16 %v1498
      %v1650 = vunpack.c.l.b16 %v1499
      %v1651 = vunpack.c.l.b16 %v1500
      %v1652 = vunpack.c.l.b16 %v1501
      %v1653 = vunpack.c.l.b16 %v1502
      %v1654 = vunpack.c.l.b16 %v1503
      %v1655 = vunpack.c.l.b16 %v1504
      %v1656 = vunpack.c.l.b16 %v1505
      %v1657 = vunpack.c.l.b16 %v1506
      %v1658 = vunpack.c.l.b16 %v1507
      %v1659 = vunpack.c.l.b16 %v1508
      %v1660 = vunpack.c.l.b16 %v1509
      %v1661 = vpack.c.b16 %v1590, %v1589
      %v1662 = vpack.c.b16 %v1592, %v1591
      %v1663 = vpack.c.b16 %v1594, %v1593
      %v1664 = vpack.c.b16 %v1596, %v1595
      %v1665 = vpack.c.b16 %v1598, %v1597
      %v1666 = vpack.c.b16 %v1600, %v1599
      %v1667 = vpack.c.b16 %v1602, %v1601
      %v1668 = vpack.c.b16 %v1604, %v1603
      %v1669 = vpack.c.b16 %v1606, %v1605
      %v1670 = vpack.c.b16 %v1608, %v1607
      %v1671 = vpack.c.b16 %v1610, %v1609
      %v1672 = vpack.c.b16 %v1612, %v1611
      %v1673 = vpack.c.b16 %v1614, %v1613
      %v1674 = vpack.c.b16 %v1616, %v1615
      %v1675 = vpack.c.b16 %v1618, %v1617
      %v1676 = vpack.c.b16 %v1620, %v1619
      %v1677 = vpack.c.b16 %v1622, %v1621
      %v1678 = vpack.c.b16 %v1624, %v1623
      %v1679 = vpack.c.b16 %v1626, %v1625
      %v1680 = vpack.c.b16 %v1628, %v1627
      %v1681 = vpack.c.b16 %v1630, %v1629
      %v1682 = vpack.c.b16 %v1632, %v1631
      %v1683 = vpack.c.b16 %v1634, %v1633
      %v1684 = vpack.c.b16 %v1636, %v1635
      %v1685 = vpack.c.b16 %v1638, %v1637
      %v1686 = vpack.c.b16 %v1640, %v1639
      %v1687 = vpack.c.b16 %v1642, %v1641
      %v1688 = vpack.c.b16 %v1644, %v1643
      %v1689 = vpack.c.b16 %v1646, %v1645
      %v1690 = vpack.c.b16 %v1648, %v1647
      %v1691 = vpack.c.b16 %v1650, %v1649
      %v1692 = vpack.c.b16 %v1652, %v1651
      %v1693 = vpack.c.b16 %v1654, %v1653
      %v1694 = vpack.c.b16 %v1656, %v1655
      %v1695 = vpack.c.b16 %v1658, %v1657
      %v1696 = vpack.c.b16 %v1660, %v1659
      %v1733 = vsel %vm985, %v1232, 0
      %v1735 = vsel %vm985, %v1233, 0
      %v1737 = vsel %vm985, %v1234, 0
      %v1739 = vsel %vm985, %v1235, 0
      %v1741 = vsel %vm985, %v1236, 0
      %v1743 = vsel %vm985, %v1237, 0
      %v1746 = vsel %vm985, %v1246, 0
      %v1749 = vsel %vm985, %v1255, 0
      %1751 = vmatprep.subr.bf16.mxu0 0
      %1752 = vmatpush1.bf16.msra.mxu0 %v1661
      %1753 = vmatprep.subr.bf16.mxu0 0
      %1754 = vmatpush1.bf16.msra.mxu0 %v1662
      %1755 = vmatprep.subr.bf16.mxu0 0
      %1756 = vmatpush1.bf16.msra.mxu0 %v1663
      %1757 = vmatprep.subr.bf16.mxu0 0
      %1758 = vmatpush1.bf16.msra.mxu0 %v1664
      %1759 = vmatprep.subr.bf16.mxu0 0
      %1760 = vmatpush1.bf16.msra.mxu0 %v1665
      %1761 = vmatprep.subr.bf16.mxu0 0
      %1762 = vmatpush1.bf16.msra.mxu0 %v1666
      %1763 = vmatprep.subr.bf16.mxu0 0
      %1764 = vmatpush1.bf16.msra.mxu0 %v1667
      %1765 = vmatprep.subr.bf16.mxu0 0
      %1766 = vmatpush1.bf16.msra.mxu0 %v1668
      %1767 = vmatprep.subr.bf16.mxu0 0
      %1768 = vmatpush1.bf16.msra.mxu0 %v1669
      %1769 = vmatprep.subr.bf16.mxu0 0
      %1770 = vmatpush1.bf16.msra.mxu0 %v1670
      %1771 = vmatprep.subr.bf16.mxu0 0
      %1772 = vmatpush1.bf16.msra.mxu0 %v1671
      %1773 = vmatprep.subr.bf16.mxu0 0
      %1774 = vmatpush1.bf16.msra.mxu0 %v1672
      %1775 = vmatprep.subr.bf16.mxu0 0
      %1776 = vmatpush1.bf16.msra.mxu0 %v1673
      %1777 = vmatprep.subr.bf16.mxu0 0
      %1778 = vmatpush1.bf16.msra.mxu0 %v1674
      %1779 = vmatprep.subr.bf16.mxu0 0
      %1780 = vmatpush1.bf16.msra.mxu0 %v1675
      %1781 = vmatprep.subr.bf16.mxu0 0
      %1782 = vmatpush1.bf16.msra.mxu0 %v1676
      %1783 = vmatprep.mubr.bf16.mxu0 %v1368
      %1784 = vmatmul.mubr.bf16.gmra.mrb[0].mxu0 %v1336
      %v1785 = vpop.f32.mrb[0].mxu0
      %v1786 = vadd.f32 %v1515, %v1785
      %v1787 = vpop.f32.mrb[0].mxu0
      %v1788 = vpop.f32.mrb[0].mxu0
      %v1789 = vadd.f32 %v1515, %v1788
      %v1790 = vpop.f32.mrb[0].mxu0
      %1791 = vmatprep.mubr.bf16.mxu0 %v1372
      %1792 = vmatmul.mubr.bf16.gmra.mrb[0].mxu0 %v1340
      %v1793 = vpop.f32.mrb[0].mxu0
      %v1794 = vadd.f32 %v1515, %v1793
      %v1795 = vpop.f32.mrb[0].mxu0
      %v1796 = vpop.f32.mrb[0].mxu0
      %v1797 = vadd.f32 %v1515, %v1796
      %v1798 = vpop.f32.mrb[0].mxu0
      %1799 = vmatprep.mubr.bf16.mxu0 %v1376
      %1800 = vmatmul.mubr.bf16.gmra.mrb[0].mxu0 %v1344
      %v1801 = vpop.f32.mrb[0].mxu0
      %v1802 = vadd.f32 %v1515, %v1801
      %v1803 = vpop.f32.mrb[0].mxu0
      %v1804 = vpop.f32.mrb[0].mxu0
      %v1805 = vadd.f32 %v1515, %v1804
      %v1806 = vpop.f32.mrb[0].mxu0
      %1807 = vmatprep.mubr.bf16.mxu0 %v1380
      %1808 = vmatmul.mubr.bf16.gmra.mrb[0].mxu0 %v1348
      %v1809 = vpop.f32.mrb[0].mxu0
      %v1810 = vadd.f32 %v1515, %v1809
      %v1811 = vpop.f32.mrb[0].mxu0
      %v1812 = vpop.f32.mrb[0].mxu0
      %v1813 = vadd.f32 %v1515, %v1812
      %v1814 = vpop.f32.mrb[0].mxu0
      %1815 = vmatprep.mubr.bf16.mxu0 %v1384
      %1816 = vmatmul.mubr.bf16.gmra.mrb[0].mxu0 %v1352
      %v1817 = vpop.f32.mrb[0].mxu0
      %v1818 = vadd.f32 %v1515, %v1817
      %v1819 = vpop.f32.mrb[0].mxu0
      %v1820 = vpop.f32.mrb[0].mxu0
      %v1821 = vadd.f32 %v1515, %v1820
      %v1822 = vpop.f32.mrb[0].mxu0
      %1823 = vmatprep.mubr.bf16.mxu0 %v1388
      %1824 = vmatmul.mubr.bf16.gmra.mrb[0].mxu0 %v1356
      %v1825 = vpop.f32.mrb[0].mxu0
      %v1826 = vadd.f32 %v1515, %v1825
      %v1827 = vpop.f32.mrb[0].mxu0
      %v1828 = vpop.f32.mrb[0].mxu0
      %v1829 = vadd.f32 %v1515, %v1828
      %v1830 = vpop.f32.mrb[0].mxu0
      %1831 = vmatprep.mubr.bf16.mxu0 %v1392
      %1832 = vmatmul.mubr.bf16.gmra.mrb[0].mxu0 %v1360
      %v1833 = vpop.f32.mrb[0].mxu0
      %v1834 = vadd.f32 %v1515, %v1833
      %v1835 = vpop.f32.mrb[0].mxu0
      %v1836 = vpop.f32.mrb[0].mxu0
      %v1837 = vadd.f32 %v1515, %v1836
      %v1838 = vpop.f32.mrb[0].mxu0
      %1839 = vmatprep.mubr.bf16.mxu0 %v1396
      %1840 = vmatmul.mubr.bf16.gmra.mrb[0].mxu0 %v1364
      %v1841 = vpop.f32.mrb[0].mxu0
      %v1842 = vadd.f32 %v1515, %v1841
      %v1843 = vpop.f32.mrb[0].mxu0
      %v1844 = vpop.f32.mrb[0].mxu0
      %v1845 = vadd.f32 %v1515, %v1844
      %v1846 = vpop.f32.mrb[0].mxu0
      %1847 = vdwg.mxu0
      %1848 = vmatprep.subr.bf16.mxu0 0
      %1849 = vmatpush1.bf16.msra.mxu0 %v1677
      %1850 = vmatprep.subr.bf16.mxu0 0
      %1851 = vmatpush1.bf16.msra.mxu0 %v1678
      %1852 = vmatprep.subr.bf16.mxu0 0
      %1853 = vmatpush1.bf16.msra.mxu0 %v1679
      %1854 = vmatprep.subr.bf16.mxu0 0
      %1855 = vmatpush1.bf16.msra.mxu0 %v1680
      %1856 = vmatprep.subr.bf16.mxu0 0
      %1857 = vmatpush1.bf16.msra.mxu0 %v1681
      %1858 = vmatprep.subr.bf16.mxu0 0
      %1859 = vmatpush1.bf16.msra.mxu0 %v1682
      %1860 = vmatprep.subr.bf16.mxu0 0
      %1861 = vmatpush1.bf16.msra.mxu0 %v1683
      %1862 = vmatprep.subr.bf16.mxu0 0
      %1863 = vmatpush1.bf16.msra.mxu0 %v1684
      %1864 = vmatprep.subr.bf16.mxu0 0
      %1865 = vmatpush1.bf16.msra.mxu0 %v1685
      %1866 = vmatprep.subr.bf16.mxu0 0
      %1867 = vmatpush1.bf16.msra.mxu0 %v1686
      %1868 = vmatprep.subr.bf16.mxu0 0
      %1869 = vmatpush1.bf16.msra.mxu0 %v1687
      %1870 = vmatprep.subr.bf16.mxu0 0
      %1871 = vmatpush1.bf16.msra.mxu0 %v1688
      %1872 = vmatprep.subr.bf16.mxu0 0
      %1873 = vmatpush1.bf16.msra.mxu0 %v1689
      %1874 = vmatprep.subr.bf16.mxu0 0
      %1875 = vmatpush1.bf16.msra.mxu0 %v1690
      %1876 = vmatprep.subr.bf16.mxu0 0
      %1877 = vmatpush1.bf16.msra.mxu0 %v1691
      %1878 = vmatprep.subr.bf16.mxu0 0
      %1879 = vmatpush1.bf16.msra.mxu0 %v1692
      %1880 = vmatprep.mubr.bf16.mxu0 %v1344
      %1881 = vmatmul.mubr.bf16.gmra.mrb[0].mxu0 %v1400
      %v1882 = vpop.f32.mrb[0].mxu0
      %v1883 = vadd.f32 %v1786, %v1882
      %v1884 = vpop.f32.mrb[0].mxu0
      %v1885 = vpop.f32.mrb[0].mxu0
      %v1886 = vadd.f32 %v1789, %v1885
      %v1887 = vpop.f32.mrb[0].mxu0
      %1888 = vmatprep.mubr.bf16.mxu0 %v1348
      %1889 = vmatmul.mubr.bf16.gmra.mrb[0].mxu0 %v1404
      %v1890 = vpop.f32.mrb[0].mxu0
      %v1891 = vadd.f32 %v1794, %v1890
      %v1892 = vpop.f32.mrb[0].mxu0
      %v1893 = vpop.f32.mrb[0].mxu0
      %v1894 = vadd.f32 %v1797, %v1893
      %v1895 = vpop.f32.mrb[0].mxu0
      %1896 = vmatprep.mubr.bf16.mxu0 %v1352
      %1897 = vmatmul.mubr.bf16.gmra.mrb[0].mxu0 %v1408
      %v1898 = vpop.f32.mrb[0].mxu0
      %v1899 = vadd.f32 %v1802, %v1898
      %v1900 = vpop.f32.mrb[0].mxu0
      %v1901 = vpop.f32.mrb[0].mxu0
      %v1902 = vadd.f32 %v1805, %v1901
      %v1903 = vpop.f32.mrb[0].mxu0
      %1904 = vmatprep.mubr.bf16.mxu0 %v1356
      %1905 = vmatmul.mubr.bf16.gmra.mrb[0].mxu0 %v1412
      %v1906 = vpop.f32.mrb[0].mxu0
      %v1907 = vadd.f32 %v1810, %v1906
      %v1908 = vpop.f32.mrb[0].mxu0
      %v1909 = vpop.f32.mrb[0].mxu0
      %v1910 = vadd.f32 %v1813, %v1909
      %v1911 = vpop.f32.mrb[0].mxu0
      %1912 = vmatprep.mubr.bf16.mxu0 %v1360
      %1913 = vmatmul.mubr.bf16.gmra.mrb[0].mxu0 %v1416
      %v1914 = vpop.f32.mrb[0].mxu0
      %v1915 = vadd.f32 %v1818, %v1914
      %v1916 = vpop.f32.mrb[0].mxu0
      %v1917 = vpop.f32.mrb[0].mxu0
      %v1918 = vadd.f32 %v1821, %v1917
      %v1919 = vpop.f32.mrb[0].mxu0
      %1920 = vmatprep.mubr.bf16.mxu0 %v1364
      %1921 = vmatmul.mubr.bf16.gmra.mrb[0].mxu0 %v1420
      %v1922 = vpop.f32.mrb[0].mxu0
      %v1923 = vadd.f32 %v1826, %v1922
      %v1924 = vpop.f32.mrb[0].mxu0
      %v1925 = vpop.f32.mrb[0].mxu0
      %v1926 = vadd.f32 %v1829, %v1925
      %v1927 = vpop.f32.mrb[0].mxu0
      %1928 = vmatprep.mubr.bf16.mxu0 %v1432
      %1929 = vmatmul.mubr.bf16.gmra.mrb[0].mxu0 %v1424
      %v1930 = vpop.f32.mrb[0].mxu0
      %v1931 = vadd.f32 %v1834, %v1930
      %v1932 = vpop.f32.mrb[0].mxu0
      %v1933 = vpop.f32.mrb[0].mxu0
      %v1934 = vadd.f32 %v1837, %v1933
      %v1935 = vpop.f32.mrb[0].mxu0
      %1936 = vmatprep.mubr.bf16.mxu0 %v1436
      %1937 = vmatmul.mubr.bf16.gmra.mrb[0].mxu0 %v1428
      %v1938 = vpop.f32.mrb[0].mxu0
      %v1939 = vadd.f32 %v1842, %v1938
      %v1940 = vpop.f32.mrb[0].mxu0
      %v1941 = vpop.f32.mrb[0].mxu0
      %v1942 = vadd.f32 %v1845, %v1941
      %v1943 = vpop.f32.mrb[0].mxu0
      %1944 = vdwg.mxu0
      %1945 = vmatprep.subr.bf16.mxu0 0
      %1946 = vmatpush1.bf16.msra.mxu0 %v1693
      %1947 = vmatprep.subr.bf16.mxu0 0
      %1948 = vmatpush1.bf16.msra.mxu0 %v1694
      %1949 = vmatprep.subr.bf16.mxu0 0
      %1950 = vmatpush1.bf16.msra.mxu0 %v1695
      %1951 = vmatprep.subr.bf16.mxu0 0
      %1952 = vmatpush1.bf16.msra.mxu0 %v1696
      %1953 = vmatprep.subr.bf16.mxu0 0
      %1954 = vmatpush1.bf16.msra.mxu0 0
      %1955 = vmatprep.subr.bf16.mxu0 0
      %1956 = vmatpush1.bf16.msra.mxu0 0
      %1957 = vmatprep.subr.bf16.mxu0 0
      %1958 = vmatpush1.bf16.msra.mxu0 0
      %1959 = vmatprep.subr.bf16.mxu0 0
      %1960 = vmatpush1.bf16.msra.mxu0 0
      %1961 = vmatprep.subr.bf16.mxu0 0
      %1962 = vmatpush1.bf16.msra.mxu0 0
      %1963 = vmatprep.subr.bf16.mxu0 0
      %1964 = vmatpush1.bf16.msra.mxu0 0
      %1965 = vmatprep.subr.bf16.mxu0 0
      %1966 = vmatpush1.bf16.msra.mxu0 0
      %1967 = vmatprep.subr.bf16.mxu0 0
      %1968 = vmatpush1.bf16.msra.mxu0 0
      %1969 = vmatprep.subr.bf16.mxu0 0
      %1970 = vmatpush1.bf16.msra.mxu0 0
      %1971 = vmatprep.subr.bf16.mxu0 0
      %1972 = vmatpush1.bf16.msra.mxu0 0
      %1973 = vmatprep.subr.bf16.mxu0 0
      %1974 = vmatpush1.bf16.msra.mxu0 0
      %1975 = vmatprep.subr.bf16.mxu0 0
      %1976 = vmatpush1.bf16.msra.mxu0 0
      %1977 = vmatprep.mubr.bf16.mxu0 0
      %1978 = vmatmul.mubr.bf16.gmra.mrb[0].mxu0 %v1733
      %v1979 = vpop.f32.mrb[0].mxu0
      %v1980 = vadd.f32 %v1883, %v1979
      %v1981 = vpop.f32.mrb[0].mxu0
      %v1982 = vpop.f32.mrb[0].mxu0
      %v1983 = vadd.f32 %v1886, %v1982
      %v1984 = vpop.f32.mrb[0].mxu0
      %1985 = vmatprep.mubr.bf16.mxu0 0
      %1986 = vmatmul.mubr.bf16.gmra.mrb[0].mxu0 %v1735
      %v1987 = vpop.f32.mrb[0].mxu0
      %v1988 = vadd.f32 %v1891, %v1987
      %v1989 = vpop.f32.mrb[0].mxu0
      %v1990 = vpop.f32.mrb[0].mxu0
      %v1991 = vadd.f32 %v1894, %v1990
      %v1992 = vpop.f32.mrb[0].mxu0
      %1993 = vmatprep.mubr.bf16.mxu0 0
      %1994 = vmatmul.mubr.bf16.gmra.mrb[0].mxu0 %v1737
      %v1995 = vpop.f32.mrb[0].mxu0
      %v1996 = vadd.f32 %v1899, %v1995
      %v1997 = vpop.f32.mrb[0].mxu0
      %v1998 = vpop.f32.mrb[0].mxu0
      %v1999 = vadd.f32 %v1902, %v1998
      %v2000 = vpop.f32.mrb[0].mxu0
      %2001 = vmatprep.mubr.bf16.mxu0 0
      %2002 = vmatmul.mubr.bf16.gmra.mrb[0].mxu0 %v1739
      %v2003 = vpop.f32.mrb[0].mxu0
      %v2004 = vadd.f32 %v1907, %v2003
      %v2005 = vpop.f32.mrb[0].mxu0
      %v2006 = vpop.f32.mrb[0].mxu0
      %v2007 = vadd.f32 %v1910, %v2006
      %v2008 = vpop.f32.mrb[0].mxu0
      %2009 = vmatprep.mubr.bf16.mxu0 0
      %2010 = vmatmul.mubr.bf16.gmra.mrb[0].mxu0 %v1741
      %v2011 = vpop.f32.mrb[0].mxu0
      %v2012 = vadd.f32 %v1915, %v2011
      %v2013 = vpop.f32.mrb[0].mxu0
      %v2014 = vpop.f32.mrb[0].mxu0
      %v2015 = vadd.f32 %v1918, %v2014
      %v2016 = vpop.f32.mrb[0].mxu0
      %2017 = vmatprep.mubr.bf16.mxu0 0
      %2018 = vmatmul.mubr.bf16.gmra.mrb[0].mxu0 %v1743
      %v2019 = vpop.f32.mrb[0].mxu0
      %v2020 = vadd.f32 %v1923, %v2019
      %v2021 = vpop.f32.mrb[0].mxu0
      %v2022 = vpop.f32.mrb[0].mxu0
      %v2023 = vadd.f32 %v1926, %v2022
      %v2024 = vpop.f32.mrb[0].mxu0
      %2025 = vmatprep.mubr.bf16.mxu0 0
      %2026 = vmatmul.mubr.bf16.gmra.mrb[0].mxu0 %v1746
      %v2027 = vpop.f32.mrb[0].mxu0
      %v2028 = vadd.f32 %v1931, %v2027
      %v2029 = vpop.f32.mrb[0].mxu0
      %v2030 = vpop.f32.mrb[0].mxu0
      %v2031 = vadd.f32 %v1934, %v2030
      %v2032 = vpop.f32.mrb[0].mxu0
      %2033 = vmatprep.mubr.bf16.mxu0 0
      %2034 = vmatmul.mubr.bf16.gmra.mrb[0].mxu0 %v1749
      %v2035 = vpop.f32.mrb[0].mxu0
      %v2036 = vadd.f32 %v1939, %v2035
      %v2037 = vpop.f32.mrb[0].mxu0
      %v2038 = vpop.f32.mrb[0].mxu0
      %v2039 = vadd.f32 %v1942, %v2038
      %v2040 = vpop.f32.mrb[0].mxu0
      %2041 = vdwg.mxu0
      %v2042 = vmax.f32 %v1980, 0.0
      %v2043 = vmax.f32 %v1983, 0.0
      %v2044 = vmax.f32 %v1988, 0.0
      %v2045 = vmax.f32 %v1991, 0.0
      %v2046 = vmax.f32 %v1996, 0.0
      %v2047 = vmax.f32 %v1999, 0.0
      %v2048 = vmax.f32 %v2004, 0.0
      %v2049 = vmax.f32 %v2007, 0.0
      %v2050 = vmax.f32 %v2012, 0.0
      %v2051 = vmax.f32 %v2015, 0.0
      %v2052 = vmax.f32 %v2020, 0.0
      %v2053 = vmax.f32 %v2023, 0.0
      %v2054 = vmax.f32 %v2028, 0.0
      %v2055 = vmax.f32 %v2031, 0.0
      %v2056 = vmax.f32 %v2036, 0.0
      %v2057 = vmax.f32 %v2039, 0.0
      %2058 = vst [vmem:[#allocation5] sm:$0xff] %v2042
      %2059 = vst [vmem:[#allocation5 + $0x8] sm:$0xff] %v2043
      %2060 = vst [vmem:[#allocation5 + $0x10] sm:$0xff] %v2044
      %2061 = vst [vmem:[#allocation5 + $0x18] sm:$0xff] %v2045
      %2062 = vst [vmem:[#allocation5 + $0x20] sm:$0xff] %v2046
      %2063 = vst [vmem:[#allocation5 + $0x28] sm:$0xff] %v2047
      %2064 = vst [vmem:[#allocation5 + $0x30] sm:$0xff] %v2048
      %2065 = vst [vmem:[#allocation5 + $0x38] sm:$0xff] %v2049
      %2066 = vst [vmem:[#allocation5 + $0x40] sm:$0xff] %v2050
      %2067 = vst [vmem:[#allocation5 + $0x48] sm:$0xff] %v2051
      %2068 = vst [vmem:[#allocation5 + $0x50] sm:$0xff] %v2052
      %2069 = vst [vmem:[#allocation5 + $0x58] sm:$0xff] %v2053
      %2070 = vst [vmem:[#allocation5 + $0x60] sm:$0xff] %v2054
      %2071 = vst [vmem:[#allocation5 + $0x68] sm:$0xff] %v2055
      %2072 = vst [vmem:[#allocation5 + $0x70] sm:$0xff] %v2056
      %2073 = vst [vmem:[#allocation5 + $0x78] sm:$0xff] %v2057
      %v2074 = vld [vmem:[#allocation5] ss:$2 sm:$0xff]
      %s2075 = scalar_lea.vmem [#allocation5], 16
      %v2076 = vld [vmem:[%s2075] ss:$2 sm:$0xff]
      %s2077 = scalar_lea.vmem [#allocation5], 32
      %v2078 = vld [vmem:[%s2077] ss:$2 sm:$0xff]
      %s2079 = scalar_lea.vmem [#allocation5], 48
      %v2080 = vld [vmem:[%s2079] ss:$2 sm:$0xff]
      %s2081 = scalar_lea.vmem [#allocation5], 64
      %v2082 = vld [vmem:[%s2081] ss:$2 sm:$0xff]
      %s2083 = scalar_lea.vmem [#allocation5], 80
      %v2084 = vld [vmem:[%s2083] ss:$2 sm:$0xff]
      %s2085 = scalar_lea.vmem [#allocation5], 96
      %v2086 = vld [vmem:[%s2085] ss:$2 sm:$0xff]
      %s2087 = scalar_lea.vmem [#allocation5], 112
      %v2088 = vld [vmem:[%s2087] ss:$2 sm:$0xff]
      %s2089 = scalar_lea.vmem [#allocation5], 1
      %v2090 = vld [vmem:[%s2089] ss:$2 sm:$0xff]
      %s2091 = scalar_lea.vmem [#allocation5], 17
      %v2092 = vld [vmem:[%s2091] ss:$2 sm:$0xff]
      %s2093 = scalar_lea.vmem [#allocation5], 33
      %v2094 = vld [vmem:[%s2093] ss:$2 sm:$0xff]
      %s2095 = scalar_lea.vmem [#allocation5], 49
      %v2096 = vld [vmem:[%s2095] ss:$2 sm:$0xff]
      %s2097 = scalar_lea.vmem [#allocation5], 65
      %v2098 = vld [vmem:[%s2097] ss:$2 sm:$0xff]
      %s2099 = scalar_lea.vmem [#allocation5], 81
      %v2100 = vld [vmem:[%s2099] ss:$2 sm:$0xff]
      %s2101 = scalar_lea.vmem [#allocation5], 97
      %v2102 = vld [vmem:[%s2101] ss:$2 sm:$0xff]
      %s2103 = scalar_lea.vmem [#allocation5], 113
      %v2104 = vld [vmem:[%s2103] ss:$2 sm:$0xff]
      %v2105 = vmax.f32 %v2074, %v2090
      %v2106 = vmax.f32 %v2076, %v2092
      %v2107 = vmax.f32 %v2078, %v2094
      %v2108 = vmax.f32 %v2080, %v2096
      %v2109 = vmax.f32 %v2082, %v2098
      %v2110 = vmax.f32 %v2084, %v2100
      %v2111 = vmax.f32 %v2086, %v2102
      %v2112 = vmax.f32 %v2088, %v2104
      %2113 = vst [vmem:[#allocation3] sm:$0xff] 0.0
      %2114 = vst [vmem:[#allocation3 + $0x8] sm:$0xff] 0.0
      %2115 = vst [vmem:[#allocation3 + $0x10] sm:$0xff] 0.0
      %2116 = vst [vmem:[#allocation3 + $0x18] sm:$0xff] 0.0
      %2117 = vst [vmem:[#allocation3 + $0x20] sm:$0xff] 0.0
      %2118 = vst [vmem:[#allocation3 + $0x28] sm:$0xff] 0.0
      %2119 = vst [vmem:[#allocation3 + $0x30] sm:$0xff] 0.0
      %v2120 = vmax.f32 %v2105, %v2106
      %2121 = vst [vmem:[#allocation3 + $0x9] sm:$0xf] %v2120
      %v2122 = vmax.f32 %v2107, %v2108
      %2123 = vst [vmem:[#allocation3 + $0x11] sm:$0xf] %v2122
      %v2124 = vmax.f32 %v2109, %v2110
      %2125 = vst [vmem:[#allocation3 + $0x19] sm:$0xf] %v2124
      %v2126 = vmax.f32 %v2111, %v2112
      %2127 = vst [vmem:[#allocation3 + $0x21] sm:$0xf] %v2126
      %v2128 = vld [vmem:[#allocation3] sm:$0xff]
      %v2129 = vld [vmem:[#allocation3 + $0x8] sm:$0xff]
      %v2130 = vld [vmem:[#allocation3 + $0x10] sm:$0xff]
      %v2131 = vld [vmem:[#allocation3 + $0x18] sm:$0xff]
      %v2132 = vpack.c.bf16 %v2129, %v2128
      %v2133 = vpack.c.bf16 %v2131, %v2130
      %v2134 = vld [vmem:[#allocation3 + $0x1] sm:$0xff]
      %v2135 = vld [vmem:[#allocation3 + $0x9] sm:$0xff]
      %v2136 = vld [vmem:[#allocation3 + $0x11] sm:$0xff]
      %v2137 = vld [vmem:[#allocation3 + $0x19] sm:$0xff]
      %v2138 = vpack.c.bf16 %v2135, %v2134
      %v2139 = vpack.c.bf16 %v2137, %v2136
      %v2140 = vld [vmem:[#allocation3 + $0x2] sm:$0xff]
      %v2141 = vld [vmem:[#allocation3 + $0xa] sm:$0xff]
      %v2142 = vld [vmem:[#allocation3 + $0x12] sm:$0xff]
      %v2143 = vld [vmem:[#allocation3 + $0x1a] sm:$0xff]
      %v2144 = vpack.c.bf16 %v2141, %v2140
      %v2145 = vpack.c.bf16 %v2143, %v2142
      %v2146 = vld [vmem:[#allocation3 + $0x20] sm:$0xff]
      %v2147 = vpack.c.bf16 %v2130, %v2129
      %v2148 = vpack.c.bf16 %v2146, %v2131
      %v2149 = vld [vmem:[#allocation3 + $0x21] sm:$0xff]
      %v2150 = vpack.c.bf16 %v2136, %v2135
      %v2151 = vpack.c.bf16 %v2149, %v2137
      %v2152 = vld [vmem:[#allocation3 + $0x22] sm:$0xff]
      %v2153 = vpack.c.bf16 %v2142, %v2141
      %v2154 = vpack.c.bf16 %v2152, %v2143
      %v2155 = vld [vmem:[#allocation3 + $0x28] sm:$0xff]
      %v2156 = vpack.c.bf16 %v2155, %v2146
      %v2157 = vld [vmem:[#allocation3 + $0x29] sm:$0xff]
      %v2158 = vpack.c.bf16 %v2157, %v2149
      %v2159 = vld [vmem:[#allocation3 + $0x2a] sm:$0xff]
      %v2160 = vpack.c.bf16 %v2159, %v2152
      %v2161 = vld [vmem:[%s5] sm:$0xff]
      %v2162 = vld [vmem:[%s5 + $0x8] sm:$0xff]
      %v2163 = vld [vmem:[%s5 + $0x10] sm:$0xff]
      %v2164 = vld [vmem:[%s5 + $0x18] sm:$0xff]
      %v2165 = vld [vmem:[%s5 + $0x20] sm:$0xff]
      %v2166 = vld [vmem:[%s5 + $0x28] sm:$0xff]
      %v2167 = vld [vmem:[%s5 + $0x30] sm:$0xff]
      %v2168 = vld [vmem:[%s5 + $0x38] sm:$0xff]
      %v2169 = vld [vmem:[%s5 + $0x40] sm:$0xff]
      %v2170 = vld [vmem:[%s5 + $0x48] sm:$0xff]
      %v2171 = vld [vmem:[%s5 + $0x50] sm:$0xff]
      %v2172 = vld [vmem:[%s5 + $0x58] sm:$0xff]
      %v2173 = vld [vmem:[%s5 + $0x60] sm:$0xff]
      %v2174 = vld [vmem:[%s5 + $0x68] sm:$0xff]
      %v2175 = vld [vmem:[%s5 + $0x70] sm:$0xff]
      %v2176 = vld [vmem:[%s5 + $0x78] sm:$0xff]
      %v2177 = vld [vmem:[%s5 + $0x80] sm:$0xff]
      %v2178 = vld [vmem:[%s5 + $0x88] sm:$0xff]
      %v2179 = vld [vmem:[%s5 + $0x90] sm:$0xff]
      %v2180 = vld [vmem:[%s5 + $0x98] sm:$0xff]
      %v2181 = vld [vmem:[%s5 + $0xa0] sm:$0xff]
      %v2182 = vld [vmem:[%s5 + $0xa8] sm:$0xff]
      %v2183 = vld [vmem:[%s5 + $0xb0] sm:$0xff]
      %v2184 = vld [vmem:[%s5 + $0xb8] sm:$0xff]
      %v2185 = vld [vmem:[%s5 + $0xc0] sm:$0xff]
      %v2186 = vld [vmem:[%s5 + $0xc8] sm:$0xff]
      %v2187 = vld [vmem:[%s5 + $0xd0] sm:$0xff]
      %v2188 = vld [vmem:[%s5 + $0xd8] sm:$0xff]
      %v2189 = vld [vmem:[%s5 + $0xe0] sm:$0xff]
      %v2190 = vld [vmem:[%s5 + $0xe8] sm:$0xff]
      %v2191 = vld [vmem:[%s5 + $0xf0] sm:$0xff]
      %v2192 = vld [vmem:[%s5 + $0xf8] sm:$0xff]
      %v2193 = vld [vmem:[%s5 + $0x100] sm:$0xff]
      %v2194 = vld [vmem:[%s5 + $0x108] sm:$0xff]
      %v2195 = vld [vmem:[%s5 + $0x110] sm:$0xff]
      %v2196 = vld [vmem:[%s5 + $0x118] sm:$0xff]
      %v2197 = vld [vmem:[%s5 + $0x120] sm:$0xff]
      %v2198 = vld [vmem:[%s5 + $0x128] sm:$0xff]
      %v2199 = vld [vmem:[%s5 + $0x130] sm:$0xff]
      %v2200 = vld [vmem:[%s5 + $0x138] sm:$0xff]
      %v2201 = vld [vmem:[%s5 + $0x140] sm:$0xff]
      %v2202 = vld [vmem:[%s5 + $0x148] sm:$0xff]
      %v2203 = vld [vmem:[%s5 + $0x150] sm:$0xff]
      %v2204 = vld [vmem:[%s5 + $0x158] sm:$0xff]
      %v2205 = vld [vmem:[%s5 + $0x160] sm:$0xff]
      %v2206 = vld [vmem:[%s5 + $0x168] sm:$0xff]
      %v2207 = vld [vmem:[%s5 + $0x170] sm:$0xff]
      %v2208 = vld [vmem:[%s5 + $0x178] sm:$0xff]
      %v2209 = vld [vmem:[%s5 + $0x180] sm:$0xff]
      %v2210 = vld [vmem:[%s5 + $0x188] sm:$0xff]
      %v2211 = vld [vmem:[%s5 + $0x190] sm:$0xff]
      %v2212 = vld [vmem:[%s5 + $0x198] sm:$0xff]
      %v2213 = vld [vmem:[%s5 + $0x1a0] sm:$0xff]
      %v2214 = vld [vmem:[%s5 + $0x1a8] sm:$0xff]
      %v2215 = vld [vmem:[%s5 + $0x1b0] sm:$0xff]
      %v2216 = vld [vmem:[%s5 + $0x1b8] sm:$0xff]
      %v2217 = vld [vmem:[%s5 + $0x1c0] sm:$0xff]
      %v2218 = vld [vmem:[%s5 + $0x1c8] sm:$0xff]
      %v2219 = vld [vmem:[%s5 + $0x1d0] sm:$0xff]
      %v2220 = vld [vmem:[%s5 + $0x1d8] sm:$0xff]
      %v2221 = vld [vmem:[%s5 + $0x1e0] sm:$0xff]
      %v2222 = vld [vmem:[%s5 + $0x1e8] sm:$0xff]
      %v2223 = vld [vmem:[%s5 + $0x1f0] sm:$0xff]
      %v2224 = vld [vmem:[%s5 + $0x1f8] sm:$0xff]
      %v2225 = vld [vmem:[%s5 + $0x200] sm:$0xff]
      %v2226 = vld [vmem:[%s5 + $0x208] sm:$0xff]
      %v2227 = vld [vmem:[%s5 + $0x210] sm:$0xff]
      %v2228 = vld [vmem:[%s5 + $0x218] sm:$0xff]
      %v2229 = vld [vmem:[%s5 + $0x220] sm:$0xff]
      %v2230 = vld [vmem:[%s5 + $0x228] sm:$0xff]
      %v2231 = vld [vmem:[%s5 + $0x230] sm:$0xff]
      %v2232 = vld [vmem:[%s5 + $0x238] sm:$0xff]
      %v2233 = vld [vmem:[%s5 + $0x240] sm:$0xff]
      %v2234 = vld [vmem:[%s5 + $0x248] sm:$0xff]
      %v2235 = vld [vmem:[%s5 + $0x250] sm:$0xff]
      %v2236 = vld [vmem:[%s5 + $0x258] sm:$0xff]
      %v2237 = vld [vmem:[%s5 + $0x260] sm:$0xff]
      %v2238 = vld [vmem:[%s5 + $0x268] sm:$0xff]
      %v2239 = vld [vmem:[%s5 + $0x270] sm:$0xff]
      %v2240 = vld [vmem:[%s5 + $0x278] sm:$0xff]
      %v2241 = vld [vmem:[%s5 + $0x280] sm:$0xff]
      %v2242 = vld [vmem:[%s5 + $0x288] sm:$0xff]
      %v2243 = vld [vmem:[%s5 + $0x290] sm:$0xff]
      %v2244 = vld [vmem:[%s5 + $0x298] sm:$0xff]
      %v2245 = vld [vmem:[%s5 + $0x2a0] sm:$0xff]
      %v2246 = vld [vmem:[%s5 + $0x2a8] sm:$0xff]
      %v2247 = vld [vmem:[%s5 + $0x2b0] sm:$0xff]
      %v2248 = vld [vmem:[%s5 + $0x2b8] sm:$0xff]
      %v2249 = vld [vmem:[%s5 + $0x2c0] sm:$0xff]
      %v2250 = vld [vmem:[%s5 + $0x2c8] sm:$0xff]
      %v2251 = vld [vmem:[%s5 + $0x2d0] sm:$0xff]
      %v2252 = vld [vmem:[%s5 + $0x2d8] sm:$0xff]
      %v2253 = vld [vmem:[%s5 + $0x2e0] sm:$0xff]
      %v2254 = vld [vmem:[%s5 + $0x2e8] sm:$0xff]
      %v2255 = vld [vmem:[%s5 + $0x2f0] sm:$0xff]
      %v2256 = vld [vmem:[%s5 + $0x2f8] sm:$0xff]
      %v2257 = vld [vmem:[%s5 + $0x300] sm:$0xff]
      %v2258 = vld [vmem:[%s5 + $0x308] sm:$0xff]
      %v2259 = vld [vmem:[%s5 + $0x310] sm:$0xff]
      %v2260 = vld [vmem:[%s5 + $0x318] sm:$0xff]
      %v2261 = vld [vmem:[%s5 + $0x320] sm:$0xff]
      %v2262 = vld [vmem:[%s5 + $0x328] sm:$0xff]
      %v2263 = vld [vmem:[%s5 + $0x330] sm:$0xff]
      %v2264 = vld [vmem:[%s5 + $0x338] sm:$0xff]
      %v2265 = vld [vmem:[%s5 + $0x340] sm:$0xff]
      %v2266 = vld [vmem:[%s5 + $0x348] sm:$0xff]
      %v2267 = vld [vmem:[%s5 + $0x350] sm:$0xff]
      %v2268 = vld [vmem:[%s5 + $0x358] sm:$0xff]
      %v2269 = vld [vmem:[%s5 + $0x360] sm:$0xff]
      %v2270 = vld [vmem:[%s5 + $0x368] sm:$0xff]
      %v2271 = vld [vmem:[%s5 + $0x370] sm:$0xff]
      %v2272 = vld [vmem:[%s5 + $0x378] sm:$0xff]
      %v2273 = vld [vmem:[%s5 + $0x380] sm:$0xff]
      %v2274 = vld [vmem:[%s5 + $0x388] sm:$0xff]
      %v2275 = vld [vmem:[%s5 + $0x390] sm:$0xff]
      %v2276 = vld [vmem:[%s5 + $0x398] sm:$0xff]
      %v2277 = vld [vmem:[%s5 + $0x3a0] sm:$0xff]
      %v2278 = vld [vmem:[%s5 + $0x3a8] sm:$0xff]
      %v2279 = vld [vmem:[%s5 + $0x3b0] sm:$0xff]
      %v2280 = vld [vmem:[%s5 + $0x3b8] sm:$0xff]
      %v2281 = vld [vmem:[%s5 + $0x3c0] sm:$0xff]
      %v2282 = vld [vmem:[%s5 + $0x3c8] sm:$0xff]
      %v2283 = vld [vmem:[%s5 + $0x3d0] sm:$0xff]
      %v2284 = vld [vmem:[%s5 + $0x3d8] sm:$0xff]
      %v2285 = vld [vmem:[%s5 + $0x3e0] sm:$0xff]
      %v2286 = vld [vmem:[%s5 + $0x3e8] sm:$0xff]
      %v2287 = vld [vmem:[%s5 + $0x3f0] sm:$0xff]
      %v2288 = vld [vmem:[%s5 + $0x3f8] sm:$0xff]
      %v2289 = vld [vmem:[%s5 + $0x400] sm:$0xff]
      %v2290 = vld [vmem:[%s5 + $0x408] sm:$0xff]
      %v2291 = vld [vmem:[%s5 + $0x410] sm:$0xff]
      %v2292 = vld [vmem:[%s5 + $0x418] sm:$0xff]
      %v2293 = vld [vmem:[%s5 + $0x420] sm:$0xff]
      %v2294 = vld [vmem:[%s5 + $0x428] sm:$0xff]
      %v2295 = vld [vmem:[%s5 + $0x430] sm:$0xff]
      %v2296 = vld [vmem:[%s5 + $0x438] sm:$0xff]
      %v2297 = vld [vmem:[%s5 + $0x440] sm:$0xff]
      %v2298 = vld [vmem:[%s5 + $0x448] sm:$0xff]
      %v2299 = vld [vmem:[%s5 + $0x450] sm:$0xff]
      %v2300 = vld [vmem:[%s5 + $0x458] sm:$0xff]
      %v2301 = vld [vmem:[%s5 + $0x460] sm:$0xff]
      %v2302 = vld [vmem:[%s5 + $0x468] sm:$0xff]
      %v2303 = vld [vmem:[%s5 + $0x470] sm:$0xff]
      %v2304 = vld [vmem:[%s5 + $0x478] sm:$0xff]
      %v2305 = vld [vmem:[%s6] sm:$0x3]
      %v2307 = vlaneseq
      %v2308 = vshrl.u32 %v2307, 7
      %v2309 = vsub.s32 0, %v2308
      %v2310 = vrot.slane %v2305, %v2309
      %v2311 = vlaneseq
      %v2312 = vshrl.u32 %v2311, 7
      %v2313 = vsub.s32 1, %v2312
      %v2314 = vrot.slane %v2305, %v2313
      %v2461 = vunpack.c.l.b16 %v2161
      %v2462 = vunpack.c.h.b16 %v2161
      %v2463 = vunpack.c.l.b16 %v2162
      %v2464 = vunpack.c.h.b16 %v2162
      %v2465 = vunpack.c.l.b16 %v2163
      %v2466 = vunpack.c.h.b16 %v2163
      %v2467 = vunpack.c.l.b16 %v2164
      %v2468 = vunpack.c.h.b16 %v2164
      %v2469 = vunpack.c.l.b16 %v2165
      %v2470 = vunpack.c.h.b16 %v2165
      %v2471 = vunpack.c.l.b16 %v2166
      %v2472 = vunpack.c.h.b16 %v2166
      %v2473 = vunpack.c.l.b16 %v2167
      %v2474 = vunpack.c.h.b16 %v2167
      %v2475 = vunpack.c.l.b16 %v2168
      %v2476 = vunpack.c.h.b16 %v2168
      %v2477 = vunpack.c.l.b16 %v2169
      %v2478 = vunpack.c.h.b16 %v2169
      %v2479 = vunpack.c.l.b16 %v2170
      %v2480 = vunpack.c.h.b16 %v2170
      %v2481 = vunpack.c.l.b16 %v2171
      %v2482 = vunpack.c.h.b16 %v2171
      %v2483 = vunpack.c.l.b16 %v2172
      %v2484 = vunpack.c.h.b16 %v2172
      %v2485 = vunpack.c.l.b16 %v2173
      %v2486 = vunpack.c.h.b16 %v2173
      %v2487 = vunpack.c.l.b16 %v2174
      %v2488 = vunpack.c.h.b16 %v2174
      %v2489 = vunpack.c.l.b16 %v2175
      %v2490 = vunpack.c.h.b16 %v2175
      %v2491 = vunpack.c.l.b16 %v2176
      %v2492 = vunpack.c.h.b16 %v2176
      %v2493 = vunpack.c.l.b16 %v2177
      %v2494 = vunpack.c.h.b16 %v2177
      %v2495 = vunpack.c.l.b16 %v2178
      %v2496 = vunpack.c.h.b16 %v2178
      %v2497 = vunpack.c.l.b16 %v2179
      %v2498 = vunpack.c.h.b16 %v2179
      %v2499 = vunpack.c.l.b16 %v2180
      %v2500 = vunpack.c.h.b16 %v2180
      %v2501 = vunpack.c.l.b16 %v2181
      %v2502 = vunpack.c.h.b16 %v2181
      %v2503 = vunpack.c.l.b16 %v2182
      %v2504 = vunpack.c.h.b16 %v2182
      %v2505 = vunpack.c.l.b16 %v2183
      %v2506 = vunpack.c.h.b16 %v2183
      %v2507 = vunpack.c.l.b16 %v2184
      %v2508 = vunpack.c.h.b16 %v2184
      %v2509 = vunpack.c.l.b16 %v2185
      %v2510 = vunpack.c.h.b16 %v2185
      %v2511 = vunpack.c.l.b16 %v2186
      %v2512 = vunpack.c.h.b16 %v2186
      %v2513 = vunpack.c.l.b16 %v2187
      %v2514 = vunpack.c.h.b16 %v2187
      %v2515 = vunpack.c.l.b16 %v2188
      %v2516 = vunpack.c.h.b16 %v2188
      %v2517 = vunpack.c.l.b16 %v2189
      %v2518 = vunpack.c.h.b16 %v2189
      %v2519 = vunpack.c.l.b16 %v2190
      %v2520 = vunpack.c.h.b16 %v2190
      %v2521 = vunpack.c.l.b16 %v2191
      %v2522 = vunpack.c.h.b16 %v2191
      %v2523 = vunpack.c.l.b16 %v2192
      %v2524 = vunpack.c.h.b16 %v2192
      %v2525 = vunpack.c.l.b16 %v2193
      %v2526 = vunpack.c.h.b16 %v2193
      %v2527 = vunpack.c.l.b16 %v2194
      %v2528 = vunpack.c.h.b16 %v2194
      %v2529 = vunpack.c.l.b16 %v2195
      %v2530 = vunpack.c.h.b16 %v2195
      %v2531 = vunpack.c.l.b16 %v2196
      %v2532 = vunpack.c.h.b16 %v2196
      %v2533 = vunpack.c.l.b16 %v2197
      %v2534 = vunpack.c.h.b16 %v2197
      %v2535 = vunpack.c.l.b16 %v2198
      %v2536 = vunpack.c.h.b16 %v2198
      %v2537 = vunpack.c.l.b16 %v2199
      %v2538 = vunpack.c.h.b16 %v2199
      %v2539 = vunpack.c.l.b16 %v2200
      %v2540 = vunpack.c.h.b16 %v2200
      %v2541 = vunpack.c.l.b16 %v2201
      %v2542 = vunpack.c.h.b16 %v2201
      %v2543 = vunpack.c.l.b16 %v2202
      %v2544 = vunpack.c.h.b16 %v2202
      %v2545 = vunpack.c.l.b16 %v2203
      %v2546 = vunpack.c.h.b16 %v2203
      %v2547 = vunpack.c.l.b16 %v2204
      %v2548 = vunpack.c.h.b16 %v2204
      %v2549 = vunpack.c.l.b16 %v2205
      %v2550 = vunpack.c.h.b16 %v2205
      %v2551 = vunpack.c.l.b16 %v2206
      %v2552 = vunpack.c.h.b16 %v2206
      %v2553 = vunpack.c.l.b16 %v2207
      %v2554 = vunpack.c.h.b16 %v2207
      %v2555 = vunpack.c.l.b16 %v2208
      %v2556 = vunpack.c.h.b16 %v2208
      %v2557 = vunpack.c.l.b16 %v2209
      %v2558 = vunpack.c.h.b16 %v2209
      %v2559 = vunpack.c.l.b16 %v2210
      %v2560 = vunpack.c.h.b16 %v2210
      %v2561 = vunpack.c.l.b16 %v2211
      %v2562 = vunpack.c.h.b16 %v2211
      %v2563 = vunpack.c.l.b16 %v2212
      %v2564 = vunpack.c.h.b16 %v2212
      %v2565 = vunpack.c.l.b16 %v2213
      %v2566 = vunpack.c.h.b16 %v2213
      %v2567 = vunpack.c.l.b16 %v2214
      %v2568 = vunpack.c.h.b16 %v2214
      %v2569 = vunpack.c.l.b16 %v2215
      %v2570 = vunpack.c.h.b16 %v2215
      %v2571 = vunpack.c.l.b16 %v2216
      %v2572 = vunpack.c.h.b16 %v2216
      %v2573 = vunpack.c.l.b16 %v2217
      %v2574 = vunpack.c.h.b16 %v2217
      %v2575 = vunpack.c.l.b16 %v2218
      %v2576 = vunpack.c.h.b16 %v2218
      %v2577 = vunpack.c.l.b16 %v2219
      %v2578 = vunpack.c.h.b16 %v2219
      %v2579 = vunpack.c.l.b16 %v2220
      %v2580 = vunpack.c.h.b16 %v2220
      %v2581 = vunpack.c.l.b16 %v2221
      %v2582 = vunpack.c.h.b16 %v2221
      %v2583 = vunpack.c.l.b16 %v2222
      %v2584 = vunpack.c.h.b16 %v2222
      %v2585 = vunpack.c.l.b16 %v2223
      %v2586 = vunpack.c.h.b16 %v2223
      %v2587 = vunpack.c.l.b16 %v2224
      %v2588 = vunpack.c.h.b16 %v2224
      %v2589 = vunpack.c.l.b16 %v2225
      %v2590 = vunpack.c.h.b16 %v2225
      %v2591 = vunpack.c.l.b16 %v2226
      %v2592 = vunpack.c.h.b16 %v2226
      %v2593 = vunpack.c.l.b16 %v2227
      %v2594 = vunpack.c.h.b16 %v2227
      %v2595 = vunpack.c.l.b16 %v2228
      %v2596 = vunpack.c.h.b16 %v2228
      %v2597 = vunpack.c.l.b16 %v2229
      %v2598 = vunpack.c.h.b16 %v2229
      %v2599 = vunpack.c.l.b16 %v2230
      %v2600 = vunpack.c.h.b16 %v2230
      %v2601 = vunpack.c.l.b16 %v2231
      %v2602 = vunpack.c.h.b16 %v2231
      %v2603 = vunpack.c.l.b16 %v2232
      %v2604 = vunpack.c.h.b16 %v2232
      %v2605 = vunpack.c.l.b16 %v2233
      %v2606 = vunpack.c.h.b16 %v2233
      %v2607 = vunpack.c.l.b16 %v2234
      %v2608 = vunpack.c.h.b16 %v2234
      %v2609 = vunpack.c.l.b16 %v2235
      %v2610 = vunpack.c.h.b16 %v2235
      %v2611 = vunpack.c.l.b16 %v2236
      %v2612 = vunpack.c.h.b16 %v2236
      %v2613 = vunpack.c.l.b16 %v2237
      %v2614 = vunpack.c.h.b16 %v2237
      %v2615 = vunpack.c.l.b16 %v2238
      %v2616 = vunpack.c.h.b16 %v2238
      %v2617 = vunpack.c.l.b16 %v2239
      %v2618 = vunpack.c.h.b16 %v2239
      %v2619 = vunpack.c.l.b16 %v2240
      %v2620 = vunpack.c.h.b16 %v2240
      %v2621 = vunpack.c.l.b16 %v2241
      %v2622 = vunpack.c.h.b16 %v2241
      %v2623 = vunpack.c.l.b16 %v2242
      %v2624 = vunpack.c.h.b16 %v2242
      %v2625 = vunpack.c.l.b16 %v2243
      %v2626 = vunpack.c.h.b16 %v2243
      %v2627 = vunpack.c.l.b16 %v2244
      %v2628 = vunpack.c.h.b16 %v2244
      %v2629 = vunpack.c.l.b16 %v2245
      %v2630 = vunpack.c.h.b16 %v2245
      %v2631 = vunpack.c.l.b16 %v2246
      %v2632 = vunpack.c.h.b16 %v2246
      %v2633 = vunpack.c.l.b16 %v2247
      %v2634 = vunpack.c.h.b16 %v2247
      %v2635 = vunpack.c.l.b16 %v2248
      %v2636 = vunpack.c.h.b16 %v2248
      %v2637 = vunpack.c.l.b16 %v2249
      %v2638 = vunpack.c.h.b16 %v2249
      %v2639 = vunpack.c.l.b16 %v2250
      %v2640 = vunpack.c.h.b16 %v2250
      %v2641 = vunpack.c.l.b16 %v2251
      %v2642 = vunpack.c.h.b16 %v2251
      %v2643 = vunpack.c.l.b16 %v2252
      %v2644 = vunpack.c.h.b16 %v2252
      %v2645 = vunpack.c.l.b16 %v2253
      %v2646 = vunpack.c.h.b16 %v2253
      %v2647 = vunpack.c.l.b16 %v2254
      %v2648 = vunpack.c.h.b16 %v2254
      %v2649 = vunpack.c.l.b16 %v2255
      %v2650 = vunpack.c.h.b16 %v2255
      %v2651 = vunpack.c.l.b16 %v2256
      %v2652 = vunpack.c.h.b16 %v2256
      %v2653 = vunpack.c.l.b16 %v2257
      %v2654 = vunpack.c.h.b16 %v2257
      %v2655 = vunpack.c.l.b16 %v2258
      %v2656 = vunpack.c.h.b16 %v2258
      %v2657 = vunpack.c.l.b16 %v2259
      %v2658 = vunpack.c.h.b16 %v2259
      %v2659 = vunpack.c.l.b16 %v2260
      %v2660 = vunpack.c.h.b16 %v2260
      %v2661 = vunpack.c.l.b16 %v2261
      %v2662 = vunpack.c.h.b16 %v2261
      %v2663 = vunpack.c.l.b16 %v2262
      %v2664 = vunpack.c.h.b16 %v2262
      %v2665 = vunpack.c.l.b16 %v2263
      %v2666 = vunpack.c.h.b16 %v2263
      %v2667 = vunpack.c.l.b16 %v2264
      %v2668 = vunpack.c.h.b16 %v2264
      %v2669 = vunpack.c.l.b16 %v2265
      %v2670 = vunpack.c.h.b16 %v2265
      %v2671 = vunpack.c.l.b16 %v2266
      %v2672 = vunpack.c.h.b16 %v2266
      %v2673 = vunpack.c.l.b16 %v2267
      %v2674 = vunpack.c.h.b16 %v2267
      %v2675 = vunpack.c.l.b16 %v2268
      %v2676 = vunpack.c.h.b16 %v2268
      %v2677 = vunpack.c.l.b16 %v2269
      %v2678 = vunpack.c.h.b16 %v2269
      %v2679 = vunpack.c.l.b16 %v2270
      %v2680 = vunpack.c.h.b16 %v2270
      %v2681 = vunpack.c.l.b16 %v2271
      %v2682 = vunpack.c.h.b16 %v2271
      %v2683 = vunpack.c.l.b16 %v2272
      %v2684 = vunpack.c.h.b16 %v2272
      %v2685 = vunpack.c.l.b16 %v2273
      %v2686 = vunpack.c.h.b16 %v2273
      %v2687 = vunpack.c.l.b16 %v2274
      %v2688 = vunpack.c.h.b16 %v2274
      %v2689 = vunpack.c.l.b16 %v2275
      %v2690 = vunpack.c.h.b16 %v2275
      %v2691 = vunpack.c.l.b16 %v2276
      %v2692 = vunpack.c.h.b16 %v2276
      %v2693 = vunpack.c.l.b16 %v2277
      %v2694 = vunpack.c.h.b16 %v2277
      %v2695 = vunpack.c.l.b16 %v2278
      %v2696 = vunpack.c.h.b16 %v2278
      %v2697 = vunpack.c.l.b16 %v2279
      %v2698 = vunpack.c.h.b16 %v2279
      %v2699 = vunpack.c.l.b16 %v2280
      %v2700 = vunpack.c.h.b16 %v2280
      %v2701 = vunpack.c.l.b16 %v2281
      %v2702 = vunpack.c.h.b16 %v2281
      %v2703 = vunpack.c.l.b16 %v2282
      %v2704 = vunpack.c.h.b16 %v2282
      %v2705 = vunpack.c.l.b16 %v2283
      %v2706 = vunpack.c.h.b16 %v2283
      %v2707 = vunpack.c.l.b16 %v2284
      %v2708 = vunpack.c.h.b16 %v2284
      %v2709 = vunpack.c.l.b16 %v2285
      %v2710 = vunpack.c.h.b16 %v2285
      %v2711 = vunpack.c.l.b16 %v2286
      %v2712 = vunpack.c.h.b16 %v2286
      %v2713 = vunpack.c.l.b16 %v2287
      %v2714 = vunpack.c.h.b16 %v2287
      %v2715 = vunpack.c.l.b16 %v2288
      %v2716 = vunpack.c.h.b16 %v2288
      %v2717 = vunpack.c.l.b16 %v2289
      %v2718 = vunpack.c.h.b16 %v2289
      %v2719 = vunpack.c.l.b16 %v2290
      %v2720 = vunpack.c.h.b16 %v2290
      %v2721 = vunpack.c.l.b16 %v2291
      %v2722 = vunpack.c.h.b16 %v2291
      %v2723 = vunpack.c.l.b16 %v2292
      %v2724 = vunpack.c.h.b16 %v2292
      %v2725 = vunpack.c.l.b16 %v2293
      %v2726 = vunpack.c.h.b16 %v2293
      %v2727 = vunpack.c.l.b16 %v2294
      %v2728 = vunpack.c.h.b16 %v2294
      %v2729 = vunpack.c.l.b16 %v2295
      %v2730 = vunpack.c.h.b16 %v2295
      %v2731 = vunpack.c.l.b16 %v2296
      %v2732 = vunpack.c.h.b16 %v2296
      %v2733 = vunpack.c.l.b16 %v2297
      %v2734 = vunpack.c.h.b16 %v2297
      %v2735 = vunpack.c.l.b16 %v2298
      %v2736 = vunpack.c.h.b16 %v2298
      %v2737 = vunpack.c.l.b16 %v2299
      %v2738 = vunpack.c.h.b16 %v2299
      %v2739 = vunpack.c.l.b16 %v2300
      %v2740 = vunpack.c.h.b16 %v2300
      %v2741 = vunpack.c.l.b16 %v2301
      %v2742 = vunpack.c.h.b16 %v2301
      %v2743 = vunpack.c.l.b16 %v2302
      %v2744 = vunpack.c.h.b16 %v2302
      %v2745 = vunpack.c.l.b16 %v2303
      %v2746 = vunpack.c.h.b16 %v2303
      %v2747 = vunpack.c.l.b16 %v2304
      %v2748 = vunpack.c.h.b16 %v2304
      %v2749 = vpack.c.b16 %v2463, %v2461
      %v2750 = vpack.c.b16 %v2464, %v2462
      %v2751 = vpack.c.b16 %v2467, %v2465
      %v2752 = vpack.c.b16 %v2468, %v2466
      %v2753 = vpack.c.b16 %v2471, %v2469
      %v2754 = vpack.c.b16 %v2472, %v2470
      %v2755 = vpack.c.b16 %v2475, %v2473
      %v2756 = vpack.c.b16 %v2476, %v2474
      %v2757 = vpack.c.b16 %v2479, %v2477
      %v2758 = vpack.c.b16 %v2480, %v2478
      %v2759 = vpack.c.b16 %v2483, %v2481
      %v2760 = vpack.c.b16 %v2484, %v2482
      %v2761 = vpack.c.b16 %v2487, %v2485
      %v2762 = vpack.c.b16 %v2488, %v2486
      %v2763 = vpack.c.b16 %v2491, %v2489
      %v2764 = vpack.c.b16 %v2492, %v2490
      %v2765 = vpack.c.b16 %v2495, %v2493
      %v2766 = vpack.c.b16 %v2496, %v2494
      %v2767 = vpack.c.b16 %v2499, %v2497
      %v2768 = vpack.c.b16 %v2500, %v2498
      %v2769 = vpack.c.b16 %v2503, %v2501
      %v2770 = vpack.c.b16 %v2504, %v2502
      %v2771 = vpack.c.b16 %v2507, %v2505
      %v2772 = vpack.c.b16 %v2508, %v2506
      %v2773 = vpack.c.b16 %v2511, %v2509
      %v2774 = vpack.c.b16 %v2512, %v2510
      %v2775 = vpack.c.b16 %v2515, %v2513
      %v2776 = vpack.c.b16 %v2516, %v2514
      %v2777 = vpack.c.b16 %v2519, %v2517
      %v2778 = vpack.c.b16 %v2520, %v2518
      %v2779 = vpack.c.b16 %v2523, %v2521
      %v2780 = vpack.c.b16 %v2524, %v2522
      %v2781 = vpack.c.b16 %v2527, %v2525
      %v2782 = vpack.c.b16 %v2528, %v2526
      %v2783 = vpack.c.b16 %v2531, %v2529
      %v2784 = vpack.c.b16 %v2532, %v2530
      %v2785 = vpack.c.b16 %v2535, %v2533
      %v2786 = vpack.c.b16 %v2536, %v2534
      %v2787 = vpack.c.b16 %v2539, %v2537
      %v2788 = vpack.c.b16 %v2540, %v2538
      %v2789 = vpack.c.b16 %v2543, %v2541
      %v2790 = vpack.c.b16 %v2544, %v2542
      %v2791 = vpack.c.b16 %v2547, %v2545
      %v2792 = vpack.c.b16 %v2548, %v2546
      %v2793 = vpack.c.b16 %v2551, %v2549
      %v2794 = vpack.c.b16 %v2552, %v2550
      %v2795 = vpack.c.b16 %v2555, %v2553
      %v2796 = vpack.c.b16 %v2556, %v2554
      %v2797 = vpack.c.b16 %v2559, %v2557
      %v2798 = vpack.c.b16 %v2560, %v2558
      %v2799 = vpack.c.b16 %v2563, %v2561
      %v2800 = vpack.c.b16 %v2564, %v2562
      %v2801 = vpack.c.b16 %v2567, %v2565
      %v2802 = vpack.c.b16 %v2568, %v2566
      %v2803 = vpack.c.b16 %v2571, %v2569
      %v2804 = vpack.c.b16 %v2572, %v2570
      %v2805 = vpack.c.b16 %v2575, %v2573
      %v2806 = vpack.c.b16 %v2576, %v2574
      %v2807 = vpack.c.b16 %v2579, %v2577
      %v2808 = vpack.c.b16 %v2580, %v2578
      %v2809 = vpack.c.b16 %v2583, %v2581
      %v2810 = vpack.c.b16 %v2584, %v2582
      %v2811 = vpack.c.b16 %v2587, %v2585
      %v2812 = vpack.c.b16 %v2588, %v2586
      %v2813 = vpack.c.b16 %v2591, %v2589
      %v2814 = vpack.c.b16 %v2592, %v2590
      %v2815 = vpack.c.b16 %v2595, %v2593
      %v2816 = vpack.c.b16 %v2596, %v2594
      %v2817 = vpack.c.b16 %v2599, %v2597
      %v2818 = vpack.c.b16 %v2600, %v2598
      %v2819 = vpack.c.b16 %v2603, %v2601
      %v2820 = vpack.c.b16 %v2604, %v2602
      %v2821 = vpack.c.b16 %v2607, %v2605
      %v2822 = vpack.c.b16 %v2608, %v2606
      %v2823 = vpack.c.b16 %v2611, %v2609
      %v2824 = vpack.c.b16 %v2612, %v2610
      %v2825 = vpack.c.b16 %v2615, %v2613
      %v2826 = vpack.c.b16 %v2616, %v2614
      %v2827 = vpack.c.b16 %v2619, %v2617
      %v2828 = vpack.c.b16 %v2620, %v2618
      %v2829 = vpack.c.b16 %v2623, %v2621
      %v2830 = vpack.c.b16 %v2624, %v2622
      %v2831 = vpack.c.b16 %v2627, %v2625
      %v2832 = vpack.c.b16 %v2628, %v2626
      %v2833 = vpack.c.b16 %v2631, %v2629
      %v2834 = vpack.c.b16 %v2632, %v2630
      %v2835 = vpack.c.b16 %v2635, %v2633
      %v2836 = vpack.c.b16 %v2636, %v2634
      %v2837 = vpack.c.b16 %v2639, %v2637
      %v2838 = vpack.c.b16 %v2640, %v2638
      %v2839 = vpack.c.b16 %v2643, %v2641
      %v2840 = vpack.c.b16 %v2644, %v2642
      %v2841 = vpack.c.b16 %v2647, %v2645
      %v2842 = vpack.c.b16 %v2648, %v2646
      %v2843 = vpack.c.b16 %v2651, %v2649
      %v2844 = vpack.c.b16 %v2652, %v2650
      %v2845 = vpack.c.b16 %v2655, %v2653
      %v2846 = vpack.c.b16 %v2656, %v2654
      %v2847 = vpack.c.b16 %v2659, %v2657
      %v2848 = vpack.c.b16 %v2660, %v2658
      %v2849 = vpack.c.b16 %v2663, %v2661
      %v2850 = vpack.c.b16 %v2664, %v2662
      %v2851 = vpack.c.b16 %v2667, %v2665
      %v2852 = vpack.c.b16 %v2668, %v2666
      %v2853 = vpack.c.b16 %v2671, %v2669
      %v2854 = vpack.c.b16 %v2672, %v2670
      %v2855 = vpack.c.b16 %v2675, %v2673
      %v2856 = vpack.c.b16 %v2676, %v2674
      %v2857 = vpack.c.b16 %v2679, %v2677
      %v2858 = vpack.c.b16 %v2680, %v2678
      %v2859 = vpack.c.b16 %v2683, %v2681
      %v2860 = vpack.c.b16 %v2684, %v2682
      %v2861 = vpack.c.b16 %v2687, %v2685
      %v2862 = vpack.c.b16 %v2688, %v2686
      %v2863 = vpack.c.b16 %v2691, %v2689
      %v2864 = vpack.c.b16 %v2692, %v2690
      %v2865 = vpack.c.b16 %v2695, %v2693
      %v2866 = vpack.c.b16 %v2696, %v2694
      %v2867 = vpack.c.b16 %v2699, %v2697
      %v2868 = vpack.c.b16 %v2700, %v2698
      %v2869 = vpack.c.b16 %v2703, %v2701
      %v2870 = vpack.c.b16 %v2704, %v2702
      %v2871 = vpack.c.b16 %v2707, %v2705
      %v2872 = vpack.c.b16 %v2708, %v2706
      %v2873 = vpack.c.b16 %v2711, %v2709
      %v2874 = vpack.c.b16 %v2712, %v2710
      %v2875 = vpack.c.b16 %v2715, %v2713
      %v2876 = vpack.c.b16 %v2716, %v2714
      %v2877 = vpack.c.b16 %v2719, %v2717
      %v2878 = vpack.c.b16 %v2720, %v2718
      %v2879 = vpack.c.b16 %v2723, %v2721
      %v2880 = vpack.c.b16 %v2724, %v2722
      %v2881 = vpack.c.b16 %v2727, %v2725
      %v2882 = vpack.c.b16 %v2728, %v2726
      %v2883 = vpack.c.b16 %v2731, %v2729
      %v2884 = vpack.c.b16 %v2732, %v2730
      %v2885 = vpack.c.b16 %v2735, %v2733
      %v2886 = vpack.c.b16 %v2736, %v2734
      %v2887 = vpack.c.b16 %v2739, %v2737
      %v2888 = vpack.c.b16 %v2740, %v2738
      %v2889 = vpack.c.b16 %v2743, %v2741
      %v2890 = vpack.c.b16 %v2744, %v2742
      %v2891 = vpack.c.b16 %v2747, %v2745
      %v2892 = vpack.c.b16 %v2748, %v2746
      %3037 = vmatprep.subr.bf16.mxu0 %v2750
      %3038 = vmatpush1.bf16.msra.mxu0 %v2749
      %3039 = vmatprep.subr.bf16.mxu0 %v2752
      %3040 = vmatpush1.bf16.msra.mxu0 %v2751
      %3041 = vmatprep.subr.bf16.mxu0 %v2754
      %3042 = vmatpush1.bf16.msra.mxu0 %v2753
      %3043 = vmatprep.subr.bf16.mxu0 %v2756
      %3044 = vmatpush1.bf16.msra.mxu0 %v2755
      %3045 = vmatprep.subr.bf16.mxu0 %v2758
      %3046 = vmatpush1.bf16.msra.mxu0 %v2757
      %3047 = vmatprep.subr.bf16.mxu0 %v2760
      %3048 = vmatpush1.bf16.msra.mxu0 %v2759
      %3049 = vmatprep.subr.bf16.mxu0 %v2762
      %3050 = vmatpush1.bf16.msra.mxu0 %v2761
      %3051 = vmatprep.subr.bf16.mxu0 %v2764
      %3052 = vmatpush1.bf16.msra.mxu0 %v2763
      %3053 = vmatprep.subr.bf16.mxu0 %v2766
      %3054 = vmatpush1.bf16.msra.mxu0 %v2765
      %3055 = vmatprep.subr.bf16.mxu0 %v2768
      %3056 = vmatpush1.bf16.msra.mxu0 %v2767
      %3057 = vmatprep.subr.bf16.mxu0 %v2770
      %3058 = vmatpush1.bf16.msra.mxu0 %v2769
      %3059 = vmatprep.subr.bf16.mxu0 %v2772
      %3060 = vmatpush1.bf16.msra.mxu0 %v2771
      %3061 = vmatprep.subr.bf16.mxu0 %v2774
      %3062 = vmatpush1.bf16.msra.mxu0 %v2773
      %3063 = vmatprep.subr.bf16.mxu0 %v2776
      %3064 = vmatpush1.bf16.msra.mxu0 %v2775
      %3065 = vmatprep.subr.bf16.mxu0 %v2778
      %3066 = vmatpush1.bf16.msra.mxu0 %v2777
      %3067 = vmatprep.subr.bf16.mxu0 %v2780
      %3068 = vmatpush1.bf16.msra.mxu0 %v2779
      %3069 = vmatprep.mubr.bf16.mxu0 %v2138
      %3070 = vmatmul.mubr.bf16.gmra.mrb[0].mxu0 %v2132
      %v3071 = vpop.f32.mrb[0].mxu0
      %v3072 = vadd.f32 %v2310, %v3071
      %v3073 = vpop.f32.mrb[0].mxu0
      %v3074 = vadd.f32 %v2314, %v3073
      %v3075 = vpop.f32.mrb[0].mxu0
      %v3076 = vadd.f32 %v2310, %v3075
      %v3077 = vpop.f32.mrb[0].mxu0
      %v3078 = vadd.f32 %v2314, %v3077
      %3079 = vmatprep.mubr.bf16.mxu0 %v2139
      %3080 = vmatmul.mubr.bf16.gmra.mrb[0].mxu0 %v2133
      %v3081 = vpop.f32.mrb[0].mxu0
      %v3082 = vadd.f32 %v2310, %v3081
      %v3083 = vpop.f32.mrb[0].mxu0
      %v3084 = vadd.f32 %v2314, %v3083
      %v3085 = vpop.f32.mrb[0].mxu0
      %v3086 = vadd.f32 %v2310, %v3085
      %v3087 = vpop.f32.mrb[0].mxu0
      %v3088 = vadd.f32 %v2314, %v3087
      %3089 = vdwg.mxu0
      %3090 = vmatprep.subr.bf16.mxu0 %v2782
      %3091 = vmatpush1.bf16.msra.mxu0 %v2781
      %3092 = vmatprep.subr.bf16.mxu0 %v2784
      %3093 = vmatpush1.bf16.msra.mxu0 %v2783
      %3094 = vmatprep.subr.bf16.mxu0 %v2786
      %3095 = vmatpush1.bf16.msra.mxu0 %v2785
      %3096 = vmatprep.subr.bf16.mxu0 %v2788
      %3097 = vmatpush1.bf16.msra.mxu0 %v2787
      %3098 = vmatprep.subr.bf16.mxu0 %v2790
      %3099 = vmatpush1.bf16.msra.mxu0 %v2789
      %3100 = vmatprep.subr.bf16.mxu0 %v2792
      %3101 = vmatpush1.bf16.msra.mxu0 %v2791
      %3102 = vmatprep.subr.bf16.mxu0 %v2794
      %3103 = vmatpush1.bf16.msra.mxu0 %v2793
      %3104 = vmatprep.subr.bf16.mxu0 %v2796
      %3105 = vmatpush1.bf16.msra.mxu0 %v2795
      %3106 = vmatprep.subr.bf16.mxu0 %v2798
      %3107 = vmatpush1.bf16.msra.mxu0 %v2797
      %3108 = vmatprep.subr.bf16.mxu0 %v2800
      %3109 = vmatpush1.bf16.msra.mxu0 %v2799
      %3110 = vmatprep.subr.bf16.mxu0 %v2802
      %3111 = vmatpush1.bf16.msra.mxu0 %v2801
      %3112 = vmatprep.subr.bf16.mxu0 %v2804
      %3113 = vmatpush1.bf16.msra.mxu0 %v2803
      %3114 = vmatprep.subr.bf16.mxu0 %v2806
      %3115 = vmatpush1.bf16.msra.mxu0 %v2805
      %3116 = vmatprep.subr.bf16.mxu0 %v2808
      %3117 = vmatpush1.bf16.msra.mxu0 %v2807
      %3118 = vmatprep.subr.bf16.mxu0 %v2810
      %3119 = vmatpush1.bf16.msra.mxu0 %v2809
      %3120 = vmatprep.subr.bf16.mxu0 %v2812
      %3121 = vmatpush1.bf16.msra.mxu0 %v2811
      %3122 = vmatprep.mubr.bf16.mxu0 %v2147
      %3123 = vmatmul.mubr.bf16.gmra.mrb[0].mxu0 %v2144
      %v3124 = vpop.f32.mrb[0].mxu0
      %v3125 = vadd.f32 %v3072, %v3124
      %v3126 = vpop.f32.mrb[0].mxu0
      %v3127 = vadd.f32 %v3074, %v3126
      %v3128 = vpop.f32.mrb[0].mxu0
      %v3129 = vadd.f32 %v3076, %v3128
      %v3130 = vpop.f32.mrb[0].mxu0
      %v3131 = vadd.f32 %v3078, %v3130
      %3132 = vmatprep.mubr.bf16.mxu0 %v2148
      %3133 = vmatmul.mubr.bf16.gmra.mrb[0].mxu0 %v2145
      %v3134 = vpop.f32.mrb[0].mxu0
      %v3135 = vadd.f32 %v3082, %v3134
      %v3136 = vpop.f32.mrb[0].mxu0
      %v3137 = vadd.f32 %v3084, %v3136
      %v3138 = vpop.f32.mrb[0].mxu0
      %v3139 = vadd.f32 %v3086, %v3138
      %v3140 = vpop.f32.mrb[0].mxu0
      %v3141 = vadd.f32 %v3088, %v3140
      %3142 = vdwg.mxu0
      %3143 = vmatprep.subr.bf16.mxu0 %v2814
      %3144 = vmatpush1.bf16.msra.mxu0 %v2813
      %3145 = vmatprep.subr.bf16.mxu0 %v2816
      %3146 = vmatpush1.bf16.msra.mxu0 %v2815
      %3147 = vmatprep.subr.bf16.mxu0 %v2818
      %3148 = vmatpush1.bf16.msra.mxu0 %v2817
      %3149 = vmatprep.subr.bf16.mxu0 %v2820
      %3150 = vmatpush1.bf16.msra.mxu0 %v2819
      %3151 = vmatprep.subr.bf16.mxu0 %v2822
      %3152 = vmatpush1.bf16.msra.mxu0 %v2821
      %3153 = vmatprep.subr.bf16.mxu0 %v2824
      %3154 = vmatpush1.bf16.msra.mxu0 %v2823
      %3155 = vmatprep.subr.bf16.mxu0 %v2826
      %3156 = vmatpush1.bf16.msra.mxu0 %v2825
      %3157 = vmatprep.subr.bf16.mxu0 %v2828
      %3158 = vmatpush1.bf16.msra.mxu0 %v2827
      %3159 = vmatprep.subr.bf16.mxu0 %v2830
      %3160 = vmatpush1.bf16.msra.mxu0 %v2829
      %3161 = vmatprep.subr.bf16.mxu0 %v2832
      %3162 = vmatpush1.bf16.msra.mxu0 %v2831
      %3163 = vmatprep.subr.bf16.mxu0 %v2834
      %3164 = vmatpush1.bf16.msra.mxu0 %v2833
      %3165 = vmatprep.subr.bf16.mxu0 %v2836
      %3166 = vmatpush1.bf16.msra.mxu0 %v2835
      %3167 = vmatprep.subr.bf16.mxu0 %v2838
      %3168 = vmatpush1.bf16.msra.mxu0 %v2837
      %3169 = vmatprep.subr.bf16.mxu0 %v2840
      %3170 = vmatpush1.bf16.msra.mxu0 %v2839
      %3171 = vmatprep.subr.bf16.mxu0 %v2842
      %3172 = vmatpush1.bf16.msra.mxu0 %v2841
      %3173 = vmatprep.subr.bf16.mxu0 %v2844
      %3174 = vmatpush1.bf16.msra.mxu0 %v2843
      %3175 = vmatprep.mubr.bf16.mxu0 %v2153
      %3176 = vmatmul.mubr.bf16.gmra.mrb[0].mxu0 %v2150
      %v3177 = vpop.f32.mrb[0].mxu0
      %v3178 = vadd.f32 %v3125, %v3177
      %v3179 = vpop.f32.mrb[0].mxu0
      %v3180 = vadd.f32 %v3127, %v3179
      %v3181 = vpop.f32.mrb[0].mxu0
      %v3182 = vadd.f32 %v3129, %v3181
      %v3183 = vpop.f32.mrb[0].mxu0
      %v3184 = vadd.f32 %v3131, %v3183
      %3185 = vmatprep.mubr.bf16.mxu0 %v2154
      %3186 = vmatmul.mubr.bf16.gmra.mrb[0].mxu0 %v2151
      %v3187 = vpop.f32.mrb[0].mxu0
      %v3188 = vadd.f32 %v3135, %v3187
      %v3189 = vpop.f32.mrb[0].mxu0
      %v3190 = vadd.f32 %v3137, %v3189
      %v3191 = vpop.f32.mrb[0].mxu0
      %v3192 = vadd.f32 %v3139, %v3191
      %v3193 = vpop.f32.mrb[0].mxu0
      %v3194 = vadd.f32 %v3141, %v3193
      %3195 = vdwg.mxu0
      %3196 = vmatprep.subr.bf16.mxu0 %v2846
      %3197 = vmatpush1.bf16.msra.mxu0 %v2845
      %3198 = vmatprep.subr.bf16.mxu0 %v2848
      %3199 = vmatpush1.bf16.msra.mxu0 %v2847
      %3200 = vmatprep.subr.bf16.mxu0 %v2850
      %3201 = vmatpush1.bf16.msra.mxu0 %v2849
      %3202 = vmatprep.subr.bf16.mxu0 %v2852
      %3203 = vmatpush1.bf16.msra.mxu0 %v2851
      %3204 = vmatprep.subr.bf16.mxu0 %v2854
      %3205 = vmatpush1.bf16.msra.mxu0 %v2853
      %3206 = vmatprep.subr.bf16.mxu0 %v2856
      %3207 = vmatpush1.bf16.msra.mxu0 %v2855
      %3208 = vmatprep.subr.bf16.mxu0 %v2858
      %3209 = vmatpush1.bf16.msra.mxu0 %v2857
      %3210 = vmatprep.subr.bf16.mxu0 %v2860
      %3211 = vmatpush1.bf16.msra.mxu0 %v2859
      %3212 = vmatprep.subr.bf16.mxu0 %v2862
      %3213 = vmatpush1.bf16.msra.mxu0 %v2861
      %3214 = vmatprep.subr.bf16.mxu0 %v2864
      %3215 = vmatpush1.bf16.msra.mxu0 %v2863
      %3216 = vmatprep.subr.bf16.mxu0 %v2866
      %3217 = vmatpush1.bf16.msra.mxu0 %v2865
      %3218 = vmatprep.subr.bf16.mxu0 %v2868
      %3219 = vmatpush1.bf16.msra.mxu0 %v2867
      %3220 = vmatprep.subr.bf16.mxu0 %v2870
      %3221 = vmatpush1.bf16.msra.mxu0 %v2869
      %3222 = vmatprep.subr.bf16.mxu0 %v2872
      %3223 = vmatpush1.bf16.msra.mxu0 %v2871
      %3224 = vmatprep.subr.bf16.mxu0 %v2874
      %3225 = vmatpush1.bf16.msra.mxu0 %v2873
      %3226 = vmatprep.subr.bf16.mxu0 %v2876
      %3227 = vmatpush1.bf16.msra.mxu0 %v2875
      %3228 = vmatprep.mubr.bf16.mxu0 %v2139
      %3229 = vmatmul.mubr.bf16.gmra.mrb[0].mxu0 %v2133
      %v3230 = vpop.f32.mrb[0].mxu0
      %v3231 = vadd.f32 %v3178, %v3230
      %v3232 = vpop.f32.mrb[0].mxu0
      %v3233 = vadd.f32 %v3180, %v3232
      %v3234 = vpop.f32.mrb[0].mxu0
      %v3235 = vadd.f32 %v3182, %v3234
      %v3236 = vpop.f32.mrb[0].mxu0
      %v3237 = vadd.f32 %v3184, %v3236
      %3238 = vmatprep.mubr.bf16.mxu0 %v2158
      %3239 = vmatmul.mubr.bf16.gmra.mrb[0].mxu0 %v2156
      %v3240 = vpop.f32.mrb[0].mxu0
      %v3241 = vadd.f32 %v3188, %v3240
      %v3242 = vpop.f32.mrb[0].mxu0
      %v3243 = vadd.f32 %v3190, %v3242
      %v3244 = vpop.f32.mrb[0].mxu0
      %v3245 = vadd.f32 %v3192, %v3244
      %v3246 = vpop.f32.mrb[0].mxu0
      %v3247 = vadd.f32 %v3194, %v3246
      %3248 = vdwg.mxu0
      %3249 = vmatprep.subr.bf16.mxu0 %v2878
      %3250 = vmatpush1.bf16.msra.mxu0 %v2877
      %3251 = vmatprep.subr.bf16.mxu0 %v2880
      %3252 = vmatpush1.bf16.msra.mxu0 %v2879
      %3253 = vmatprep.subr.bf16.mxu0 %v2882
      %3254 = vmatpush1.bf16.msra.mxu0 %v2881
      %3255 = vmatprep.subr.bf16.mxu0 %v2884
      %3256 = vmatpush1.bf16.msra.mxu0 %v2883
      %3257 = vmatprep.subr.bf16.mxu0 %v2886
      %3258 = vmatpush1.bf16.msra.mxu0 %v2885
      %3259 = vmatprep.subr.bf16.mxu0 %v2888
      %3260 = vmatpush1.bf16.msra.mxu0 %v2887
      %3261 = vmatprep.subr.bf16.mxu0 %v2890
      %3262 = vmatpush1.bf16.msra.mxu0 %v2889
      %3263 = vmatprep.subr.bf16.mxu0 %v2892
      %3264 = vmatpush1.bf16.msra.mxu0 %v2891
      %3265 = vmatprep.subr.bf16.mxu0 0
      %3266 = vmatpush1.bf16.msra.mxu0 0
      %3267 = vmatprep.subr.bf16.mxu0 0
      %3268 = vmatpush1.bf16.msra.mxu0 0
      %3269 = vmatprep.subr.bf16.mxu0 0
      %3270 = vmatpush1.bf16.msra.mxu0 0
      %3271 = vmatprep.subr.bf16.mxu0 0
      %3272 = vmatpush1.bf16.msra.mxu0 0
      %3273 = vmatprep.subr.bf16.mxu0 0
      %3274 = vmatpush1.bf16.msra.mxu0 0
      %3275 = vmatprep.subr.bf16.mxu0 0
      %3276 = vmatpush1.bf16.msra.mxu0 0
      %3277 = vmatprep.subr.bf16.mxu0 0
      %3278 = vmatpush1.bf16.msra.mxu0 0
      %3279 = vmatprep.subr.bf16.mxu0 0
      %3280 = vmatpush1.bf16.msra.mxu0 0
      %3281 = vmatprep.mubr.bf16.mxu0 0
      %3282 = vmatmul.mubr.bf16.gmra.mrb[0].mxu0 %v2145
      %v3283 = vpop.f32.mrb[0].mxu0
      %v3284 = vadd.f32 %v3231, %v3283
      %v3285 = vpop.f32.mrb[0].mxu0
      %v3286 = vadd.f32 %v3233, %v3285
      %v3287 = vpop.f32.mrb[0].mxu0
      %v3288 = vadd.f32 %v3235, %v3287
      %v3289 = vpop.f32.mrb[0].mxu0
      %v3290 = vadd.f32 %v3237, %v3289
      %3291 = vmatprep.mubr.bf16.mxu0 0
      %3292 = vmatmul.mubr.bf16.gmra.mrb[0].mxu0 %v2160
      %v3293 = vpop.f32.mrb[0].mxu0
      %v3294 = vadd.f32 %v3241, %v3293
      %v3295 = vpop.f32.mrb[0].mxu0
      %v3296 = vadd.f32 %v3243, %v3295
      %v3297 = vpop.f32.mrb[0].mxu0
      %v3298 = vadd.f32 %v3245, %v3297
      %v3299 = vpop.f32.mrb[0].mxu0
      %v3300 = vadd.f32 %v3247, %v3299
      %3301 = vdwg.mxu0
      %v3302 = vmax.f32 %v3284, 0.0
      %v3303 = vmax.f32 %v3286, 0.0
      %v3304 = vmax.f32 %v3288, 0.0
      %v3305 = vmax.f32 %v3290, 0.0
      %v3306 = vmax.f32 %v3294, 0.0
      %v3307 = vmax.f32 %v3296, 0.0
      %v3308 = vmax.f32 %v3298, 0.0
      %v3309 = vmax.f32 %v3300, 0.0
      %v3310 = vpack.c.bf16 %v3302, %v3302
      %v3311 = vpack.c.bf16 %v3303, %v3303
      %v3314 = vunpack.c.l.b16 %v3310
      %v3315 = vunpack.c.l.b16 %v3311
      %v3316 = vpack.c.b16 %v3315, %v3314
      %3318 = vst [vmem:[%s278] sm:$0x33] %v3316
      %v3319 = vpack.c.bf16 %v3304, %v3304
      %v3320 = vpack.c.bf16 %v3305, %v3305
      %v3323 = vunpack.c.l.b16 %v3319
      %v3324 = vunpack.c.l.b16 %v3320
      %v3325 = vpack.c.b16 %v3324, %v3323
      %v3326 = vrot.slane %v3325, 6
      %3328 = vst [vmem:[%s278] sm:$0xcc] %v3326
      %v3329 = vpack.c.bf16 %v3306, %v3306
      %v3330 = vpack.c.bf16 %v3307, %v3307
      %v3333 = vunpack.c.l.b16 %v3329
      %v3334 = vunpack.c.l.b16 %v3330
      %v3335 = vpack.c.b16 %v3334, %v3333
      %3337 = vst [vmem:[%s278 + $0x8] sm:$0x33] %v3335
      %v3338 = vpack.c.bf16 %v3308, %v3308
      %v3339 = vpack.c.bf16 %v3309, %v3309
      %v3342 = vunpack.c.l.b16 %v3338
      %v3343 = vunpack.c.l.b16 %v3339
      %v3344 = vpack.c.b16 %v3343, %v3342
      %v3345 = vrot.slane %v3344, 6
      %3347 = vst [vmem:[%s278 + $0x8] sm:$0xcc] %v3345
      %p3348 = scmp.lt.s32.totalorder %s18, 1
      %s3349 = scalar_select %p3348, %s18, 1
      %s3350 = smul.addr %s3349, 4
      %s3351 = smul.addr %s3350, 4
      %s3352 = scalar_lea.vmem %s7, %s3351
      // Predicated region
      $region49: #{traditional_model_forward.3} parent=47 // pred_check
        %p3353 = pneg %p188
      $region50: #{traditional_model_forward.3} parent=47 // pred_check_branch
        %3355 = sbr.rel (%p3353) target = $region52
      $region51: #{traditional_model_forward.3} parent=47 // pred_region
        _
      $region52: #{traditional_model_forward.3} parent=47 // pred_fallthru
        _
    $region48: #{traditional_model_forward.3} parent=5 // pred_fallthru
      _
    %p3356 = scmp.le.s32.totalorder 2, %s13
    // Predicated region
    $region53: #{traditional_model_forward.3} parent=5 // pred_check
      %p3357 = pneg %p3356
    $region54: #{traditional_model_forward.3} parent=5 // pred_check_branch
      %3359 = sbr.rel (%p3357) target = $region56
    $region55: #{traditional_model_forward.3} parent=5 // pred_region
      %s3360 = ssub.s32 %s13, 2
      // Predicated region
      $region57: #{traditional_model_forward.3} parent=55 // pred_check
        %p3361 = pneg %p194
      $region58: #{traditional_model_forward.3} parent=55 // pred_check_branch
        %3363 = sbr.rel (%p3361) target = $region60
      $region59: #{traditional_model_forward.3} parent=55 // pred_region
        %p3364 = scmp.lt.s32.totalorder %s19, 1
        %s3365 = scalar_select %p3364, %s19, 1
        %s3366 = smul.addr %s3365, 4
        %s3367 = smul.addr %s3366, 4
        %s3368 = scalar_lea.vmem %s7, %s3367
      $region60: #{traditional_model_forward.3} parent=55 // pred_fallthru
        _
    $region56: #{traditional_model_forward.3} parent=5 // pred_fallthru
      _
  $region6: #{traditional_model_forward.3} parent=0 // loop_footer
    %s17 = sadd.s32 1, %s13
  $region7: #{traditional_model_forward.3} parent=0 // loop_footer_branch
    %12 = sbr.rel target = $region3
  $region8: #{traditional_model_forward.3} parent=0 // loop_exit
    _

// kernel: traditional_model_forward.4
$region0: #{traditional_model_forward.4}
  #allocation0 [shape = 'u32[]', space=smem, size = 0x4, offset = 0x4, fixed_abs, tag = 'smem constant byte address 0x4 - core index']
  #allocation1 [shape = 'u32[144,128]{1,0:T(1,128)}', space=vmem, size = 0x12000, scoped, tag = 'internal scratch']
  %s0 = inlined_call_operand.vmem [shape: bf16[2,4096], index: 0, kind: input, shape index: {}]
  %s1 = inlined_call_operand.vmem [shape: bf16[4096,256], index: 1, kind: input, shape index: {}]
  %s2 = inlined_call_operand.vmem [shape: f32[1,256], index: 2, kind: input, shape index: {}]
  %s3 = inlined_call_operand.vmem [shape: bf16[256,128], index: 3, kind: input, shape index: {}]
  %s4 = inlined_call_operand.vmem [shape: f32[1,128], index: 4, kind: input, shape index: {}]
  %s5 = inlined_call_operand.vmem [shape: f32[2,128], index: 5, kind: output, shape index: {}]
  %s6 = sld [smem:[#allocation0]]
  $region30: #{traditional_model_forward.4} parent=0
    _
  %s8 = ssub.s32 1, %s6
  %s9 = scalar_select 0, %s8, %s6
  // Predicated region
  $region2: #{traditional_model_forward.4} parent=0 // pred_check
    _
  $region3: #{traditional_model_forward.4} parent=0 // pred_check_branch
    %11 = sbr.rel (0) target = $region5
  $region4: #{traditional_model_forward.4} parent=0 // pred_region
    _
  $region5: #{traditional_model_forward.4} parent=0 // pred_fallthru
    _
  // Predicated region
  $region6: #{traditional_model_forward.4} parent=0 // pred_check
    _
  $region7: #{traditional_model_forward.4} parent=0 // pred_check_branch
    %13 = sbr.rel (0) target = $region9
  $region8: #{traditional_model_forward.4} parent=0 // pred_region
    _
  $region9: #{traditional_model_forward.4} parent=0 // pred_fallthru
    _
  // Predicated region
  $region10: #{traditional_model_forward.4} parent=0 // pred_check
    _
  $region11: #{traditional_model_forward.4} parent=0 // pred_check_branch
    %15 = sbr.rel (0) target = $region13
  $region12: #{traditional_model_forward.4} parent=0 // pred_region
    _
  $region13: #{traditional_model_forward.4} parent=0 // pred_fallthru
    _
  // Predicated region
  $region14: #{traditional_model_forward.4} parent=0 // pred_check
    _
  $region15: #{traditional_model_forward.4} parent=0 // pred_check_branch
    %17 = sbr.rel (0) target = $region17
  $region16: #{traditional_model_forward.4} parent=0 // pred_region
    _
  $region17: #{traditional_model_forward.4} parent=0 // pred_fallthru
    _
  // Predicated region
  $region18: #{traditional_model_forward.4} parent=0 // pred_check
    _
  $region19: #{traditional_model_forward.4} parent=0 // pred_check_branch
    %19 = sbr.rel (0) target = $region21
  $region20: #{traditional_model_forward.4} parent=0 // pred_region
    _
  $region21: #{traditional_model_forward.4} parent=0 // pred_fallthru
    _
  %v21 = vld [vmem:[%s0] sm:$0xff]
  %v22 = vld [vmem:[%s0 + $0x8] sm:$0xff]
  %v23 = vld [vmem:[%s0 + $0x10] sm:$0xff]
  %v24 = vld [vmem:[%s0 + $0x18] sm:$0xff]
  %v25 = vld [vmem:[%s1] sm:$0xff]
  %v26 = vld [vmem:[%s1 + $0x8] sm:$0xff]
  %v27 = vld [vmem:[%s1 + $0x10] sm:$0xff]
  %v28 = vld [vmem:[%s1 + $0x18] sm:$0xff]
  %v29 = vld [vmem:[%s1 + $0x20] sm:$0xff]
  %v30 = vld [vmem:[%s1 + $0x28] sm:$0xff]
  %v31 = vld [vmem:[%s1 + $0x30] sm:$0xff]
  %v32 = vld [vmem:[%s1 + $0x38] sm:$0xff]
  %v33 = vld [vmem:[%s1 + $0x40] sm:$0xff]
  %v34 = vld [vmem:[%s1 + $0x48] sm:$0xff]
  %v35 = vld [vmem:[%s1 + $0x50] sm:$0xff]
  %v36 = vld [vmem:[%s1 + $0x58] sm:$0xff]
  %v37 = vld [vmem:[%s1 + $0x60] sm:$0xff]
  %v38 = vld [vmem:[%s1 + $0x68] sm:$0xff]
  %v39 = vld [vmem:[%s1 + $0x70] sm:$0xff]
  %v40 = vld [vmem:[%s1 + $0x78] sm:$0xff]
  %v41 = vld [vmem:[%s1 + $0x80] sm:$0xff]
  %v42 = vld [vmem:[%s1 + $0x88] sm:$0xff]
  %v43 = vld [vmem:[%s1 + $0x90] sm:$0xff]
  %v44 = vld [vmem:[%s1 + $0x98] sm:$0xff]
  %v45 = vld [vmem:[%s1 + $0xa0] sm:$0xff]
  %v46 = vld [vmem:[%s1 + $0xa8] sm:$0xff]
  %v47 = vld [vmem:[%s1 + $0xb0] sm:$0xff]
  %v48 = vld [vmem:[%s1 + $0xb8] sm:$0xff]
  %v49 = vld [vmem:[%s1 + $0xc0] sm:$0xff]
  %v50 = vld [vmem:[%s1 + $0xc8] sm:$0xff]
  %v51 = vld [vmem:[%s1 + $0xd0] sm:$0xff]
  %v52 = vld [vmem:[%s1 + $0xd8] sm:$0xff]
  %v53 = vld [vmem:[%s1 + $0xe0] sm:$0xff]
  %v54 = vld [vmem:[%s1 + $0xe8] sm:$0xff]
  %v55 = vld [vmem:[%s1 + $0xf0] sm:$0xff]
  %v56 = vld [vmem:[%s1 + $0xf8] sm:$0xff]
  %v57 = vld [vmem:[%s1 + $0x100] sm:$0xff]
  %v58 = vld [vmem:[%s1 + $0x108] sm:$0xff]
  %v59 = vld [vmem:[%s1 + $0x110] sm:$0xff]
  %v60 = vld [vmem:[%s1 + $0x118] sm:$0xff]
  %v61 = vld [vmem:[%s1 + $0x120] sm:$0xff]
  %v62 = vld [vmem:[%s1 + $0x128] sm:$0xff]
  %v63 = vld [vmem:[%s1 + $0x130] sm:$0xff]
  %v64 = vld [vmem:[%s1 + $0x138] sm:$0xff]
  %v65 = vld [vmem:[%s1 + $0x140] sm:$0xff]
  %v66 = vld [vmem:[%s1 + $0x148] sm:$0xff]
  %v67 = vld [vmem:[%s1 + $0x150] sm:$0xff]
  %v68 = vld [vmem:[%s1 + $0x158] sm:$0xff]
  %v69 = vld [vmem:[%s1 + $0x160] sm:$0xff]
  %v70 = vld [vmem:[%s1 + $0x168] sm:$0xff]
  %v71 = vld [vmem:[%s1 + $0x170] sm:$0xff]
  %v72 = vld [vmem:[%s1 + $0x178] sm:$0xff]
  %v73 = vld [vmem:[%s1 + $0x180] sm:$0xff]
  %v74 = vld [vmem:[%s1 + $0x188] sm:$0xff]
  %v75 = vld [vmem:[%s1 + $0x190] sm:$0xff]
  %v76 = vld [vmem:[%s1 + $0x198] sm:$0xff]
  %v77 = vld [vmem:[%s1 + $0x1a0] sm:$0xff]
  %v78 = vld [vmem:[%s1 + $0x1a8] sm:$0xff]
  %v79 = vld [vmem:[%s1 + $0x1b0] sm:$0xff]
  %v80 = vld [vmem:[%s1 + $0x1b8] sm:$0xff]
  %v81 = vld [vmem:[%s1 + $0x1c0] sm:$0xff]
  %v82 = vld [vmem:[%s1 + $0x1c8] sm:$0xff]
  %v83 = vld [vmem:[%s1 + $0x1d0] sm:$0xff]
  %v84 = vld [vmem:[%s1 + $0x1d8] sm:$0xff]
  %v85 = vld [vmem:[%s1 + $0x1e0] sm:$0xff]
  %v86 = vld [vmem:[%s1 + $0x1e8] sm:$0xff]
  %v87 = vld [vmem:[%s1 + $0x1f0] sm:$0xff]
  %v88 = vld [vmem:[%s1 + $0x1f8] sm:$0xff]
  %v89 = vld [vmem:[%s1 + $0x200] sm:$0xff]
  %v90 = vld [vmem:[%s1 + $0x208] sm:$0xff]
  %v91 = vld [vmem:[%s1 + $0x210] sm:$0xff]
  %v92 = vld [vmem:[%s1 + $0x218] sm:$0xff]
  %v93 = vld [vmem:[%s1 + $0x220] sm:$0xff]
  %v94 = vld [vmem:[%s1 + $0x228] sm:$0xff]
  %v95 = vld [vmem:[%s1 + $0x230] sm:$0xff]
  %v96 = vld [vmem:[%s1 + $0x238] sm:$0xff]
  %v97 = vld [vmem:[%s1 + $0x240] sm:$0xff]
  %v98 = vld [vmem:[%s1 + $0x248] sm:$0xff]
  %v99 = vld [vmem:[%s1 + $0x250] sm:$0xff]
  %v100 = vld [vmem:[%s1 + $0x258] sm:$0xff]
  %v101 = vld [vmem:[%s1 + $0x260] sm:$0xff]
  %v102 = vld [vmem:[%s1 + $0x268] sm:$0xff]
  %v103 = vld [vmem:[%s1 + $0x270] sm:$0xff]
  %v104 = vld [vmem:[%s1 + $0x278] sm:$0xff]
  %v105 = vld [vmem:[%s1 + $0x280] sm:$0xff]
  %v106 = vld [vmem:[%s1 + $0x288] sm:$0xff]
  %v107 = vld [vmem:[%s1 + $0x290] sm:$0xff]
  %v108 = vld [vmem:[%s1 + $0x298] sm:$0xff]
  %v109 = vld [vmem:[%s1 + $0x2a0] sm:$0xff]
  %v110 = vld [vmem:[%s1 + $0x2a8] sm:$0xff]
  %v111 = vld [vmem:[%s1 + $0x2b0] sm:$0xff]
  %v112 = vld [vmem:[%s1 + $0x2b8] sm:$0xff]
  %v113 = vld [vmem:[%s1 + $0x2c0] sm:$0xff]
  %v114 = vld [vmem:[%s1 + $0x2c8] sm:$0xff]
  %v115 = vld [vmem:[%s1 + $0x2d0] sm:$0xff]
  %v116 = vld [vmem:[%s1 + $0x2d8] sm:$0xff]
  %v117 = vld [vmem:[%s1 + $0x2e0] sm:$0xff]
  %v118 = vld [vmem:[%s1 + $0x2e8] sm:$0xff]
  %v119 = vld [vmem:[%s1 + $0x2f0] sm:$0xff]
  %v120 = vld [vmem:[%s1 + $0x2f8] sm:$0xff]
  %v121 = vld [vmem:[%s1 + $0x300] sm:$0xff]
  %v122 = vld [vmem:[%s1 + $0x308] sm:$0xff]
  %v123 = vld [vmem:[%s1 + $0x310] sm:$0xff]
  %v124 = vld [vmem:[%s1 + $0x318] sm:$0xff]
  %v125 = vld [vmem:[%s1 + $0x320] sm:$0xff]
  %v126 = vld [vmem:[%s1 + $0x328] sm:$0xff]
  %v127 = vld [vmem:[%s1 + $0x330] sm:$0xff]
  %v128 = vld [vmem:[%s1 + $0x338] sm:$0xff]
  %v129 = vld [vmem:[%s1 + $0x340] sm:$0xff]
  %v130 = vld [vmem:[%s1 + $0x348] sm:$0xff]
  %v131 = vld [vmem:[%s1 + $0x350] sm:$0xff]
  %v132 = vld [vmem:[%s1 + $0x358] sm:$0xff]
  %v133 = vld [vmem:[%s1 + $0x360] sm:$0xff]
  %v134 = vld [vmem:[%s1 + $0x368] sm:$0xff]
  %v135 = vld [vmem:[%s1 + $0x370] sm:$0xff]
  %v136 = vld [vmem:[%s1 + $0x378] sm:$0xff]
  %v137 = vld [vmem:[%s1 + $0x380] sm:$0xff]
  %v138 = vld [vmem:[%s1 + $0x388] sm:$0xff]
  %v139 = vld [vmem:[%s1 + $0x390] sm:$0xff]
  %v140 = vld [vmem:[%s1 + $0x398] sm:$0xff]
  %v141 = vld [vmem:[%s1 + $0x3a0] sm:$0xff]
  %v142 = vld [vmem:[%s1 + $0x3a8] sm:$0xff]
  %v143 = vld [vmem:[%s1 + $0x3b0] sm:$0xff]
  %v144 = vld [vmem:[%s1 + $0x3b8] sm:$0xff]
  %v145 = vld [vmem:[%s1 + $0x3c0] sm:$0xff]
  %v146 = vld [vmem:[%s1 + $0x3c8] sm:$0xff]
  %v147 = vld [vmem:[%s1 + $0x3d0] sm:$0xff]
  %v148 = vld [vmem:[%s1 + $0x3d8] sm:$0xff]
  %v149 = vld [vmem:[%s1 + $0x3e0] sm:$0xff]
  %v150 = vld [vmem:[%s1 + $0x3e8] sm:$0xff]
  %v151 = vld [vmem:[%s1 + $0x3f0] sm:$0xff]
  %v152 = vld [vmem:[%s1 + $0x3f8] sm:$0xff]
  %v153 = vld [vmem:[%s1 + $0x400] sm:$0xff]
  %v154 = vld [vmem:[%s1 + $0x408] sm:$0xff]
  %v155 = vld [vmem:[%s1 + $0x410] sm:$0xff]
  %v156 = vld [vmem:[%s1 + $0x418] sm:$0xff]
  %v157 = vld [vmem:[%s1 + $0x420] sm:$0xff]
  %v158 = vld [vmem:[%s1 + $0x428] sm:$0xff]
  %v159 = vld [vmem:[%s1 + $0x430] sm:$0xff]
  %v160 = vld [vmem:[%s1 + $0x438] sm:$0xff]
  %v161 = vld [vmem:[%s1 + $0x440] sm:$0xff]
  %v162 = vld [vmem:[%s1 + $0x448] sm:$0xff]
  %v163 = vld [vmem:[%s1 + $0x450] sm:$0xff]
  %v164 = vld [vmem:[%s1 + $0x458] sm:$0xff]
  %v165 = vld [vmem:[%s1 + $0x460] sm:$0xff]
  %v166 = vld [vmem:[%s1 + $0x468] sm:$0xff]
  %v167 = vld [vmem:[%s1 + $0x470] sm:$0xff]
  %v168 = vld [vmem:[%s1 + $0x478] sm:$0xff]
  %v169 = vld [vmem:[%s1 + $0x480] sm:$0xff]
  %v170 = vld [vmem:[%s1 + $0x488] sm:$0xff]
  %v171 = vld [vmem:[%s1 + $0x490] sm:$0xff]
  %v172 = vld [vmem:[%s1 + $0x498] sm:$0xff]
  %v173 = vld [vmem:[%s1 + $0x4a0] sm:$0xff]
  %v174 = vld [vmem:[%s1 + $0x4a8] sm:$0xff]
  %v175 = vld [vmem:[%s1 + $0x4b0] sm:$0xff]
  %v176 = vld [vmem:[%s1 + $0x4b8] sm:$0xff]
  %v177 = vld [vmem:[%s1 + $0x4c0] sm:$0xff]
  %v178 = vld [vmem:[%s1 + $0x4c8] sm:$0xff]
  %v179 = vld [vmem:[%s1 + $0x4d0] sm:$0xff]
  %v180 = vld [vmem:[%s1 + $0x4d8] sm:$0xff]
  %v181 = vld [vmem:[%s1 + $0x4e0] sm:$0xff]
  %v182 = vld [vmem:[%s1 + $0x4e8] sm:$0xff]
  %v183 = vld [vmem:[%s1 + $0x4f0] sm:$0xff]
  %v184 = vld [vmem:[%s1 + $0x4f8] sm:$0xff]
  %v185 = vld [vmem:[%s1 + $0x500] sm:$0xff]
  %v186 = vld [vmem:[%s1 + $0x508] sm:$0xff]
  %v187 = vld [vmem:[%s1 + $0x510] sm:$0xff]
  %v188 = vld [vmem:[%s1 + $0x518] sm:$0xff]
  %v189 = vld [vmem:[%s1 + $0x520] sm:$0xff]
  %v190 = vld [vmem:[%s1 + $0x528] sm:$0xff]
  %v191 = vld [vmem:[%s1 + $0x530] sm:$0xff]
  %v192 = vld [vmem:[%s1 + $0x538] sm:$0xff]
  %v193 = vld [vmem:[%s1 + $0x540] sm:$0xff]
  %v194 = vld [vmem:[%s1 + $0x548] sm:$0xff]
  %v195 = vld [vmem:[%s1 + $0x550] sm:$0xff]
  %v196 = vld [vmem:[%s1 + $0x558] sm:$0xff]
  %v197 = vld [vmem:[%s1 + $0x560] sm:$0xff]
  %v198 = vld [vmem:[%s1 + $0x568] sm:$0xff]
  %v199 = vld [vmem:[%s1 + $0x570] sm:$0xff]
  %v200 = vld [vmem:[%s1 + $0x578] sm:$0xff]
  %v201 = vld [vmem:[%s1 + $0x580] sm:$0xff]
  %v202 = vld [vmem:[%s1 + $0x588] sm:$0xff]
  %v203 = vld [vmem:[%s1 + $0x590] sm:$0xff]
  %v204 = vld [vmem:[%s1 + $0x598] sm:$0xff]
  %v205 = vld [vmem:[%s1 + $0x5a0] sm:$0xff]
  %v206 = vld [vmem:[%s1 + $0x5a8] sm:$0xff]
  %v207 = vld [vmem:[%s1 + $0x5b0] sm:$0xff]
  %v208 = vld [vmem:[%s1 + $0x5b8] sm:$0xff]
  %v209 = vld [vmem:[%s1 + $0x5c0] sm:$0xff]
  %v210 = vld [vmem:[%s1 + $0x5c8] sm:$0xff]
  %v211 = vld [vmem:[%s1 + $0x5d0] sm:$0xff]
  %v212 = vld [vmem:[%s1 + $0x5d8] sm:$0xff]
  %v213 = vld [vmem:[%s1 + $0x5e0] sm:$0xff]
  %v214 = vld [vmem:[%s1 + $0x5e8] sm:$0xff]
  %v215 = vld [vmem:[%s1 + $0x5f0] sm:$0xff]
  %v216 = vld [vmem:[%s1 + $0x5f8] sm:$0xff]
  %v217 = vld [vmem:[%s1 + $0x600] sm:$0xff]
  %v218 = vld [vmem:[%s1 + $0x608] sm:$0xff]
  %v219 = vld [vmem:[%s1 + $0x610] sm:$0xff]
  %v220 = vld [vmem:[%s1 + $0x618] sm:$0xff]
  %v221 = vld [vmem:[%s1 + $0x620] sm:$0xff]
  %v222 = vld [vmem:[%s1 + $0x628] sm:$0xff]
  %v223 = vld [vmem:[%s1 + $0x630] sm:$0xff]
  %v224 = vld [vmem:[%s1 + $0x638] sm:$0xff]
  %v225 = vld [vmem:[%s1 + $0x640] sm:$0xff]
  %v226 = vld [vmem:[%s1 + $0x648] sm:$0xff]
  %v227 = vld [vmem:[%s1 + $0x650] sm:$0xff]
  %v228 = vld [vmem:[%s1 + $0x658] sm:$0xff]
  %v229 = vld [vmem:[%s1 + $0x660] sm:$0xff]
  %v230 = vld [vmem:[%s1 + $0x668] sm:$0xff]
  %v231 = vld [vmem:[%s1 + $0x670] sm:$0xff]
  %v232 = vld [vmem:[%s1 + $0x678] sm:$0xff]
  %v233 = vld [vmem:[%s1 + $0x680] sm:$0xff]
  %v234 = vld [vmem:[%s1 + $0x688] sm:$0xff]
  %v235 = vld [vmem:[%s1 + $0x690] sm:$0xff]
  %v236 = vld [vmem:[%s1 + $0x698] sm:$0xff]
  %v237 = vld [vmem:[%s1 + $0x6a0] sm:$0xff]
  %v238 = vld [vmem:[%s1 + $0x6a8] sm:$0xff]
  %v239 = vld [vmem:[%s1 + $0x6b0] sm:$0xff]
  %v240 = vld [vmem:[%s1 + $0x6b8] sm:$0xff]
  %v241 = vld [vmem:[%s1 + $0x6c0] sm:$0xff]
  %v242 = vld [vmem:[%s1 + $0x6c8] sm:$0xff]
  %v243 = vld [vmem:[%s1 + $0x6d0] sm:$0xff]
  %v244 = vld [vmem:[%s1 + $0x6d8] sm:$0xff]
  %v245 = vld [vmem:[%s1 + $0x6e0] sm:$0xff]
  %v246 = vld [vmem:[%s1 + $0x6e8] sm:$0xff]
  %v247 = vld [vmem:[%s1 + $0x6f0] sm:$0xff]
  %v248 = vld [vmem:[%s1 + $0x6f8] sm:$0xff]
  %v249 = vld [vmem:[%s1 + $0x700] sm:$0xff]
  %v250 = vld [vmem:[%s1 + $0x708] sm:$0xff]
  %v251 = vld [vmem:[%s1 + $0x710] sm:$0xff]
  %v252 = vld [vmem:[%s1 + $0x718] sm:$0xff]
  %v253 = vld [vmem:[%s1 + $0x720] sm:$0xff]
  %v254 = vld [vmem:[%s1 + $0x728] sm:$0xff]
  %v255 = vld [vmem:[%s1 + $0x730] sm:$0xff]
  %v256 = vld [vmem:[%s1 + $0x738] sm:$0xff]
  %v257 = vld [vmem:[%s1 + $0x740] sm:$0xff]
  %v258 = vld [vmem:[%s1 + $0x748] sm:$0xff]
  %v259 = vld [vmem:[%s1 + $0x750] sm:$0xff]
  %v260 = vld [vmem:[%s1 + $0x758] sm:$0xff]
  %v261 = vld [vmem:[%s1 + $0x760] sm:$0xff]
  %v262 = vld [vmem:[%s1 + $0x768] sm:$0xff]
  %v263 = vld [vmem:[%s1 + $0x770] sm:$0xff]
  %v264 = vld [vmem:[%s1 + $0x778] sm:$0xff]
  %v265 = vld [vmem:[%s1 + $0x780] sm:$0xff]
  %v266 = vld [vmem:[%s1 + $0x788] sm:$0xff]
  %v267 = vld [vmem:[%s1 + $0x790] sm:$0xff]
  %v268 = vld [vmem:[%s1 + $0x798] sm:$0xff]
  %v269 = vld [vmem:[%s1 + $0x7a0] sm:$0xff]
  %v270 = vld [vmem:[%s1 + $0x7a8] sm:$0xff]
  %v271 = vld [vmem:[%s1 + $0x7b0] sm:$0xff]
  %v272 = vld [vmem:[%s1 + $0x7b8] sm:$0xff]
  %v273 = vld [vmem:[%s1 + $0x7c0] sm:$0xff]
  %v274 = vld [vmem:[%s1 + $0x7c8] sm:$0xff]
  %v275 = vld [vmem:[%s1 + $0x7d0] sm:$0xff]
  %v276 = vld [vmem:[%s1 + $0x7d8] sm:$0xff]
  %v277 = vld [vmem:[%s1 + $0x7e0] sm:$0xff]
  %v278 = vld [vmem:[%s1 + $0x7e8] sm:$0xff]
  %v279 = vld [vmem:[%s1 + $0x7f0] sm:$0xff]
  %v280 = vld [vmem:[%s1 + $0x7f8] sm:$0xff]
  %v281 = vld [vmem:[%s1 + $0x800] sm:$0xff]
  %v282 = vld [vmem:[%s1 + $0x808] sm:$0xff]
  %v283 = vld [vmem:[%s1 + $0x810] sm:$0xff]
  %v284 = vld [vmem:[%s1 + $0x818] sm:$0xff]
  %v285 = vld [vmem:[%s1 + $0x820] sm:$0xff]
  %v286 = vld [vmem:[%s1 + $0x828] sm:$0xff]
  %v287 = vld [vmem:[%s1 + $0x830] sm:$0xff]
  %v288 = vld [vmem:[%s1 + $0x838] sm:$0xff]
  %v289 = vld [vmem:[%s1 + $0x840] sm:$0xff]
  %v290 = vld [vmem:[%s1 + $0x848] sm:$0xff]
  %v291 = vld [vmem:[%s1 + $0x850] sm:$0xff]
  %v292 = vld [vmem:[%s1 + $0x858] sm:$0xff]
  %v293 = vld [vmem:[%s1 + $0x860] sm:$0xff]
  %v294 = vld [vmem:[%s1 + $0x868] sm:$0xff]
  %v295 = vld [vmem:[%s1 + $0x870] sm:$0xff]
  %v296 = vld [vmem:[%s1 + $0x878] sm:$0xff]
  %v297 = vld [vmem:[%s1 + $0x880] sm:$0xff]
  %v298 = vld [vmem:[%s1 + $0x888] sm:$0xff]
  %v299 = vld [vmem:[%s1 + $0x890] sm:$0xff]
  %v300 = vld [vmem:[%s1 + $0x898] sm:$0xff]
  %v301 = vld [vmem:[%s1 + $0x8a0] sm:$0xff]
  %v302 = vld [vmem:[%s1 + $0x8a8] sm:$0xff]
  %v303 = vld [vmem:[%s1 + $0x8b0] sm:$0xff]
  %v304 = vld [vmem:[%s1 + $0x8b8] sm:$0xff]
  %v305 = vld [vmem:[%s1 + $0x8c0] sm:$0xff]
  %v306 = vld [vmem:[%s1 + $0x8c8] sm:$0xff]
  %v307 = vld [vmem:[%s1 + $0x8d0] sm:$0xff]
  %v308 = vld [vmem:[%s1 + $0x8d8] sm:$0xff]
  %v309 = vld [vmem:[%s1 + $0x8e0] sm:$0xff]
  %v310 = vld [vmem:[%s1 + $0x8e8] sm:$0xff]
  %v311 = vld [vmem:[%s1 + $0x8f0] sm:$0xff]
  %v312 = vld [vmem:[%s1 + $0x8f8] sm:$0xff]
  %v313 = vld [vmem:[%s1 + $0x900] sm:$0xff]
  %v314 = vld [vmem:[%s1 + $0x908] sm:$0xff]
  %v315 = vld [vmem:[%s1 + $0x910] sm:$0xff]
  %v316 = vld [vmem:[%s1 + $0x918] sm:$0xff]
  %v317 = vld [vmem:[%s1 + $0x920] sm:$0xff]
  %v318 = vld [vmem:[%s1 + $0x928] sm:$0xff]
  %v319 = vld [vmem:[%s1 + $0x930] sm:$0xff]
  %v320 = vld [vmem:[%s1 + $0x938] sm:$0xff]
  %v321 = vld [vmem:[%s1 + $0x940] sm:$0xff]
  %v322 = vld [vmem:[%s1 + $0x948] sm:$0xff]
  %v323 = vld [vmem:[%s1 + $0x950] sm:$0xff]
  %v324 = vld [vmem:[%s1 + $0x958] sm:$0xff]
  %v325 = vld [vmem:[%s1 + $0x960] sm:$0xff]
  %v326 = vld [vmem:[%s1 + $0x968] sm:$0xff]
  %v327 = vld [vmem:[%s1 + $0x970] sm:$0xff]
  %v328 = vld [vmem:[%s1 + $0x978] sm:$0xff]
  %v329 = vld [vmem:[%s1 + $0x980] sm:$0xff]
  %v330 = vld [vmem:[%s1 + $0x988] sm:$0xff]
  %v331 = vld [vmem:[%s1 + $0x990] sm:$0xff]
  %v332 = vld [vmem:[%s1 + $0x998] sm:$0xff]
  %v333 = vld [vmem:[%s1 + $0x9a0] sm:$0xff]
  %v334 = vld [vmem:[%s1 + $0x9a8] sm:$0xff]
  %v335 = vld [vmem:[%s1 + $0x9b0] sm:$0xff]
  %v336 = vld [vmem:[%s1 + $0x9b8] sm:$0xff]
  %v337 = vld [vmem:[%s1 + $0x9c0] sm:$0xff]
  %v338 = vld [vmem:[%s1 + $0x9c8] sm:$0xff]
  %v339 = vld [vmem:[%s1 + $0x9d0] sm:$0xff]
  %v340 = vld [vmem:[%s1 + $0x9d8] sm:$0xff]
  %v341 = vld [vmem:[%s1 + $0x9e0] sm:$0xff]
  %v342 = vld [vmem:[%s1 + $0x9e8] sm:$0xff]
  %v343 = vld [vmem:[%s1 + $0x9f0] sm:$0xff]
  %v344 = vld [vmem:[%s1 + $0x9f8] sm:$0xff]
  %v345 = vld [vmem:[%s1 + $0xa00] sm:$0xff]
  %v346 = vld [vmem:[%s1 + $0xa08] sm:$0xff]
  %v347 = vld [vmem:[%s1 + $0xa10] sm:$0xff]
  %v348 = vld [vmem:[%s1 + $0xa18] sm:$0xff]
  %v349 = vld [vmem:[%s1 + $0xa20] sm:$0xff]
  %v350 = vld [vmem:[%s1 + $0xa28] sm:$0xff]
  %v351 = vld [vmem:[%s1 + $0xa30] sm:$0xff]
  %v352 = vld [vmem:[%s1 + $0xa38] sm:$0xff]
  %v353 = vld [vmem:[%s1 + $0xa40] sm:$0xff]
  %v354 = vld [vmem:[%s1 + $0xa48] sm:$0xff]
  %v355 = vld [vmem:[%s1 + $0xa50] sm:$0xff]
  %v356 = vld [vmem:[%s1 + $0xa58] sm:$0xff]
  %v357 = vld [vmem:[%s1 + $0xa60] sm:$0xff]
  %v358 = vld [vmem:[%s1 + $0xa68] sm:$0xff]
  %v359 = vld [vmem:[%s1 + $0xa70] sm:$0xff]
  %v360 = vld [vmem:[%s1 + $0xa78] sm:$0xff]
  %v361 = vld [vmem:[%s1 + $0xa80] sm:$0xff]
  %v362 = vld [vmem:[%s1 + $0xa88] sm:$0xff]
  %v363 = vld [vmem:[%s1 + $0xa90] sm:$0xff]
  %v364 = vld [vmem:[%s1 + $0xa98] sm:$0xff]
  %v365 = vld [vmem:[%s1 + $0xaa0] sm:$0xff]
  %v366 = vld [vmem:[%s1 + $0xaa8] sm:$0xff]
  %v367 = vld [vmem:[%s1 + $0xab0] sm:$0xff]
  %v368 = vld [vmem:[%s1 + $0xab8] sm:$0xff]
  %v369 = vld [vmem:[%s1 + $0xac0] sm:$0xff]
  %v370 = vld [vmem:[%s1 + $0xac8] sm:$0xff]
  %v371 = vld [vmem:[%s1 + $0xad0] sm:$0xff]
  %v372 = vld [vmem:[%s1 + $0xad8] sm:$0xff]
  %v373 = vld [vmem:[%s1 + $0xae0] sm:$0xff]
  %v374 = vld [vmem:[%s1 + $0xae8] sm:$0xff]
  %v375 = vld [vmem:[%s1 + $0xaf0] sm:$0xff]
  %v376 = vld [vmem:[%s1 + $0xaf8] sm:$0xff]
  %v377 = vld [vmem:[%s1 + $0xb00] sm:$0xff]
  %v378 = vld [vmem:[%s1 + $0xb08] sm:$0xff]
  %v379 = vld [vmem:[%s1 + $0xb10] sm:$0xff]
  %v380 = vld [vmem:[%s1 + $0xb18] sm:$0xff]
  %v381 = vld [vmem:[%s1 + $0xb20] sm:$0xff]
  %v382 = vld [vmem:[%s1 + $0xb28] sm:$0xff]
  %v383 = vld [vmem:[%s1 + $0xb30] sm:$0xff]
  %v384 = vld [vmem:[%s1 + $0xb38] sm:$0xff]
  %v385 = vld [vmem:[%s1 + $0xb40] sm:$0xff]
  %v386 = vld [vmem:[%s1 + $0xb48] sm:$0xff]
  %v387 = vld [vmem:[%s1 + $0xb50] sm:$0xff]
  %v388 = vld [vmem:[%s1 + $0xb58] sm:$0xff]
  %v389 = vld [vmem:[%s1 + $0xb60] sm:$0xff]
  %v390 = vld [vmem:[%s1 + $0xb68] sm:$0xff]
  %v391 = vld [vmem:[%s1 + $0xb70] sm:$0xff]
  %v392 = vld [vmem:[%s1 + $0xb78] sm:$0xff]
  %v393 = vld [vmem:[%s1 + $0xb80] sm:$0xff]
  %v394 = vld [vmem:[%s1 + $0xb88] sm:$0xff]
  %v395 = vld [vmem:[%s1 + $0xb90] sm:$0xff]
  %v396 = vld [vmem:[%s1 + $0xb98] sm:$0xff]
  %v397 = vld [vmem:[%s1 + $0xba0] sm:$0xff]
  %v398 = vld [vmem:[%s1 + $0xba8] sm:$0xff]
  %v399 = vld [vmem:[%s1 + $0xbb0] sm:$0xff]
  %v400 = vld [vmem:[%s1 + $0xbb8] sm:$0xff]
  %v401 = vld [vmem:[%s1 + $0xbc0] sm:$0xff]
  %v402 = vld [vmem:[%s1 + $0xbc8] sm:$0xff]
  %v403 = vld [vmem:[%s1 + $0xbd0] sm:$0xff]
  %v404 = vld [vmem:[%s1 + $0xbd8] sm:$0xff]
  %v405 = vld [vmem:[%s1 + $0xbe0] sm:$0xff]
  %v406 = vld [vmem:[%s1 + $0xbe8] sm:$0xff]
  %v407 = vld [vmem:[%s1 + $0xbf0] sm:$0xff]
  %v408 = vld [vmem:[%s1 + $0xbf8] sm:$0xff]
  %v409 = vld [vmem:[%s1 + $0xc00] sm:$0xff]
  %v410 = vld [vmem:[%s1 + $0xc08] sm:$0xff]
  %v411 = vld [vmem:[%s1 + $0xc10] sm:$0xff]
  %v412 = vld [vmem:[%s1 + $0xc18] sm:$0xff]
  %v413 = vld [vmem:[%s1 + $0xc20] sm:$0xff]
  %v414 = vld [vmem:[%s1 + $0xc28] sm:$0xff]
  %v415 = vld [vmem:[%s1 + $0xc30] sm:$0xff]
  %v416 = vld [vmem:[%s1 + $0xc38] sm:$0xff]
  %v417 = vld [vmem:[%s1 + $0xc40] sm:$0xff]
  %v418 = vld [vmem:[%s1 + $0xc48] sm:$0xff]
  %v419 = vld [vmem:[%s1 + $0xc50] sm:$0xff]
  %v420 = vld [vmem:[%s1 + $0xc58] sm:$0xff]
  %v421 = vld [vmem:[%s1 + $0xc60] sm:$0xff]
  %v422 = vld [vmem:[%s1 + $0xc68] sm:$0xff]
  %v423 = vld [vmem:[%s1 + $0xc70] sm:$0xff]
  %v424 = vld [vmem:[%s1 + $0xc78] sm:$0xff]
  %v425 = vld [vmem:[%s1 + $0xc80] sm:$0xff]
  %v426 = vld [vmem:[%s1 + $0xc88] sm:$0xff]
  %v427 = vld [vmem:[%s1 + $0xc90] sm:$0xff]
  %v428 = vld [vmem:[%s1 + $0xc98] sm:$0xff]
  %v429 = vld [vmem:[%s1 + $0xca0] sm:$0xff]
  %v430 = vld [vmem:[%s1 + $0xca8] sm:$0xff]
  %v431 = vld [vmem:[%s1 + $0xcb0] sm:$0xff]
  %v432 = vld [vmem:[%s1 + $0xcb8] sm:$0xff]
  %v433 = vld [vmem:[%s1 + $0xcc0] sm:$0xff]
  %v434 = vld [vmem:[%s1 + $0xcc8] sm:$0xff]
  %v435 = vld [vmem:[%s1 + $0xcd0] sm:$0xff]
  %v436 = vld [vmem:[%s1 + $0xcd8] sm:$0xff]
  %v437 = vld [vmem:[%s1 + $0xce0] sm:$0xff]
  %v438 = vld [vmem:[%s1 + $0xce8] sm:$0xff]
  %v439 = vld [vmem:[%s1 + $0xcf0] sm:$0xff]
  %v440 = vld [vmem:[%s1 + $0xcf8] sm:$0xff]
  %v441 = vld [vmem:[%s1 + $0xd00] sm:$0xff]
  %v442 = vld [vmem:[%s1 + $0xd08] sm:$0xff]
  %v443 = vld [vmem:[%s1 + $0xd10] sm:$0xff]
  %v444 = vld [vmem:[%s1 + $0xd18] sm:$0xff]
  %v445 = vld [vmem:[%s1 + $0xd20] sm:$0xff]
  %v446 = vld [vmem:[%s1 + $0xd28] sm:$0xff]
  %v447 = vld [vmem:[%s1 + $0xd30] sm:$0xff]
  %v448 = vld [vmem:[%s1 + $0xd38] sm:$0xff]
  %v449 = vld [vmem:[%s1 + $0xd40] sm:$0xff]
  %v450 = vld [vmem:[%s1 + $0xd48] sm:$0xff]
  %v451 = vld [vmem:[%s1 + $0xd50] sm:$0xff]
  %v452 = vld [vmem:[%s1 + $0xd58] sm:$0xff]
  %v453 = vld [vmem:[%s1 + $0xd60] sm:$0xff]
  %v454 = vld [vmem:[%s1 + $0xd68] sm:$0xff]
  %v455 = vld [vmem:[%s1 + $0xd70] sm:$0xff]
  %v456 = vld [vmem:[%s1 + $0xd78] sm:$0xff]
  %v457 = vld [vmem:[%s1 + $0xd80] sm:$0xff]
  %v458 = vld [vmem:[%s1 + $0xd88] sm:$0xff]
  %v459 = vld [vmem:[%s1 + $0xd90] sm:$0xff]
  %v460 = vld [vmem:[%s1 + $0xd98] sm:$0xff]
  %v461 = vld [vmem:[%s1 + $0xda0] sm:$0xff]
  %v462 = vld [vmem:[%s1 + $0xda8] sm:$0xff]
  %v463 = vld [vmem:[%s1 + $0xdb0] sm:$0xff]
  %v464 = vld [vmem:[%s1 + $0xdb8] sm:$0xff]
  %v465 = vld [vmem:[%s1 + $0xdc0] sm:$0xff]
  %v466 = vld [vmem:[%s1 + $0xdc8] sm:$0xff]
  %v467 = vld [vmem:[%s1 + $0xdd0] sm:$0xff]
  %v468 = vld [vmem:[%s1 + $0xdd8] sm:$0xff]
  %v469 = vld [vmem:[%s1 + $0xde0] sm:$0xff]
  %v470 = vld [vmem:[%s1 + $0xde8] sm:$0xff]
  %v471 = vld [vmem:[%s1 + $0xdf0] sm:$0xff]
  %v472 = vld [vmem:[%s1 + $0xdf8] sm:$0xff]
  %v473 = vld [vmem:[%s1 + $0xe00] sm:$0xff]
  %v474 = vld [vmem:[%s1 + $0xe08] sm:$0xff]
  %v475 = vld [vmem:[%s1 + $0xe10] sm:$0xff]
  %v476 = vld [vmem:[%s1 + $0xe18] sm:$0xff]
  %v477 = vld [vmem:[%s1 + $0xe20] sm:$0xff]
  %v478 = vld [vmem:[%s1 + $0xe28] sm:$0xff]
  %v479 = vld [vmem:[%s1 + $0xe30] sm:$0xff]
  %v480 = vld [vmem:[%s1 + $0xe38] sm:$0xff]
  %v481 = vld [vmem:[%s1 + $0xe40] sm:$0xff]
  %v482 = vld [vmem:[%s1 + $0xe48] sm:$0xff]
  %v483 = vld [vmem:[%s1 + $0xe50] sm:$0xff]
  %v484 = vld [vmem:[%s1 + $0xe58] sm:$0xff]
  %v485 = vld [vmem:[%s1 + $0xe60] sm:$0xff]
  %v486 = vld [vmem:[%s1 + $0xe68] sm:$0xff]
  %v487 = vld [vmem:[%s1 + $0xe70] sm:$0xff]
  %v488 = vld [vmem:[%s1 + $0xe78] sm:$0xff]
  %v489 = vld [vmem:[%s1 + $0xe80] sm:$0xff]
  %v490 = vld [vmem:[%s1 + $0xe88] sm:$0xff]
  %v491 = vld [vmem:[%s1 + $0xe90] sm:$0xff]
  %v492 = vld [vmem:[%s1 + $0xe98] sm:$0xff]
  %v493 = vld [vmem:[%s1 + $0xea0] sm:$0xff]
  %v494 = vld [vmem:[%s1 + $0xea8] sm:$0xff]
  %v495 = vld [vmem:[%s1 + $0xeb0] sm:$0xff]
  %v496 = vld [vmem:[%s1 + $0xeb8] sm:$0xff]
  %v497 = vld [vmem:[%s1 + $0xec0] sm:$0xff]
  %v498 = vld [vmem:[%s1 + $0xec8] sm:$0xff]
  %v499 = vld [vmem:[%s1 + $0xed0] sm:$0xff]
  %v500 = vld [vmem:[%s1 + $0xed8] sm:$0xff]
  %v501 = vld [vmem:[%s1 + $0xee0] sm:$0xff]
  %v502 = vld [vmem:[%s1 + $0xee8] sm:$0xff]
  %v503 = vld [vmem:[%s1 + $0xef0] sm:$0xff]
  %v504 = vld [vmem:[%s1 + $0xef8] sm:$0xff]
  %v505 = vld [vmem:[%s1 + $0xf00] sm:$0xff]
  %v506 = vld [vmem:[%s1 + $0xf08] sm:$0xff]
  %v507 = vld [vmem:[%s1 + $0xf10] sm:$0xff]
  %v508 = vld [vmem:[%s1 + $0xf18] sm:$0xff]
  %v509 = vld [vmem:[%s1 + $0xf20] sm:$0xff]
  %v510 = vld [vmem:[%s1 + $0xf28] sm:$0xff]
  %v511 = vld [vmem:[%s1 + $0xf30] sm:$0xff]
  %v512 = vld [vmem:[%s1 + $0xf38] sm:$0xff]
  %v513 = vld [vmem:[%s1 + $0xf40] sm:$0xff]
  %v514 = vld [vmem:[%s1 + $0xf48] sm:$0xff]
  %v515 = vld [vmem:[%s1 + $0xf50] sm:$0xff]
  %v516 = vld [vmem:[%s1 + $0xf58] sm:$0xff]
  %v517 = vld [vmem:[%s1 + $0xf60] sm:$0xff]
  %v518 = vld [vmem:[%s1 + $0xf68] sm:$0xff]
  %v519 = vld [vmem:[%s1 + $0xf70] sm:$0xff]
  %v520 = vld [vmem:[%s1 + $0xf78] sm:$0xff]
  %v521 = vld [vmem:[%s1 + $0xf80] sm:$0xff]
  %v522 = vld [vmem:[%s1 + $0xf88] sm:$0xff]
  %v523 = vld [vmem:[%s1 + $0xf90] sm:$0xff]
  %v524 = vld [vmem:[%s1 + $0xf98] sm:$0xff]
  %v525 = vld [vmem:[%s1 + $0xfa0] sm:$0xff]
  %v526 = vld [vmem:[%s1 + $0xfa8] sm:$0xff]
  %v527 = vld [vmem:[%s1 + $0xfb0] sm:$0xff]
  %v528 = vld [vmem:[%s1 + $0xfb8] sm:$0xff]
  %v529 = vld [vmem:[%s1 + $0xfc0] sm:$0xff]
  %v530 = vld [vmem:[%s1 + $0xfc8] sm:$0xff]
  %v531 = vld [vmem:[%s1 + $0xfd0] sm:$0xff]
  %v532 = vld [vmem:[%s1 + $0xfd8] sm:$0xff]
  %v533 = vld [vmem:[%s1 + $0xfe0] sm:$0xff]
  %v534 = vld [vmem:[%s1 + $0xfe8] sm:$0xff]
  %v535 = vld [vmem:[%s1 + $0xff0] sm:$0xff]
  %v536 = vld [vmem:[%s1 + $0xff8] sm:$0xff]
  %v537 = vld [vmem:[%s2] sm:$0x3]
  %v539 = vlaneseq
  %v540 = vshrl.u32 %v539, 7
  %v541 = vsub.s32 0, %v540
  %v542 = vrot.slane %v537, %v541
  %v543 = vlaneseq
  %v544 = vshrl.u32 %v543, 7
  %v545 = vsub.s32 1, %v544
  %v546 = vrot.slane %v537, %v545
  %v553 = vcombine.high %v21, %v21
  %v555 = vunpack.c.l.s4 1966171168
  %v556 = vunpack.c.0.s8 %v555
  %v557 = vlaneseq
  %v558 = vshrl.u32 %v557, 7
  %v559 = vsub.s32 %v556, %v558
  %v560 = vrot.slane %v21, %v559
  %v562 = vunpack.c.l.s4 1966171168
  %v563 = vunpack.c.0.s8 %v562
  %v564 = vlaneseq
  %v565 = vshrl.u32 %v564, 7
  %v566 = vsub.s32 %v563, %v565
  %v567 = vrot.slane %v553, %v566
  %v568 = vcombine.high %v560, %v560
  %v569 = vcombine.high %v567, %v567
  %v571 = vunpack.c.l.s4 1966171168
  %v572 = vunpack.c.0.s8 %v571
  %v573 = vlaneseq
  %v574 = vshrl.u32 %v573, 7
  %v575 = vsub.s32 %v572, %v574
  %v576 = vrot.slane %v560, %v575
  %v578 = vunpack.c.l.s4 1966171168
  %v579 = vunpack.c.0.s8 %v578
  %v580 = vlaneseq
  %v581 = vshrl.u32 %v580, 7
  %v582 = vsub.s32 %v579, %v581
  %v583 = vrot.slane %v567, %v582
  %v585 = vunpack.c.l.s4 1966171168
  %v586 = vunpack.c.0.s8 %v585
  %v587 = vlaneseq
  %v588 = vshrl.u32 %v587, 7
  %v589 = vsub.s32 %v586, %v588
  %v590 = vrot.slane %v568, %v589
  %v592 = vunpack.c.l.s4 1966171168
  %v593 = vunpack.c.0.s8 %v592
  %v594 = vlaneseq
  %v595 = vshrl.u32 %v594, 7
  %v596 = vsub.s32 %v593, %v595
  %v597 = vrot.slane %v569, %v596
  %v598 = vcombine.high %v576, %v576
  %v599 = vcombine.high %v583, %v583
  %v600 = vcombine.high %v590, %v590
  %v601 = vcombine.high %v597, %v597
  %v602 = vcombine.high %v22, %v22
  %v604 = vunpack.c.l.s4 1966171168
  %v605 = vunpack.c.0.s8 %v604
  %v606 = vlaneseq
  %v607 = vshrl.u32 %v606, 7
  %v608 = vsub.s32 %v605, %v607
  %v609 = vrot.slane %v22, %v608
  %v611 = vunpack.c.l.s4 1966171168
  %v612 = vunpack.c.0.s8 %v611
  %v613 = vlaneseq
  %v614 = vshrl.u32 %v613, 7
  %v615 = vsub.s32 %v612, %v614
  %v616 = vrot.slane %v602, %v615
  %v617 = vcombine.high %v609, %v609
  %v618 = vcombine.high %v616, %v616
  %v620 = vunpack.c.l.s4 1966171168
  %v621 = vunpack.c.0.s8 %v620
  %v622 = vlaneseq
  %v623 = vshrl.u32 %v622, 7
  %v624 = vsub.s32 %v621, %v623
  %v625 = vrot.slane %v609, %v624
  %v627 = vunpack.c.l.s4 1966171168
  %v628 = vunpack.c.0.s8 %v627
  %v629 = vlaneseq
  %v630 = vshrl.u32 %v629, 7
  %v631 = vsub.s32 %v628, %v630
  %v632 = vrot.slane %v616, %v631
  %v634 = vunpack.c.l.s4 1966171168
  %v635 = vunpack.c.0.s8 %v634
  %v636 = vlaneseq
  %v637 = vshrl.u32 %v636, 7
  %v638 = vsub.s32 %v635, %v637
  %v639 = vrot.slane %v617, %v638
  %v641 = vunpack.c.l.s4 1966171168
  %v642 = vunpack.c.0.s8 %v641
  %v643 = vlaneseq
  %v644 = vshrl.u32 %v643, 7
  %v645 = vsub.s32 %v642, %v644
  %v646 = vrot.slane %v618, %v645
  %v647 = vcombine.high %v625, %v625
  %v648 = vcombine.high %v632, %v632
  %v649 = vcombine.high %v639, %v639
  %v650 = vcombine.high %v646, %v646
  %v651 = vcombine.high %v23, %v23
  %v653 = vunpack.c.l.s4 1966171168
  %v654 = vunpack.c.0.s8 %v653
  %v655 = vlaneseq
  %v656 = vshrl.u32 %v655, 7
  %v657 = vsub.s32 %v654, %v656
  %v658 = vrot.slane %v23, %v657
  %v660 = vunpack.c.l.s4 1966171168
  %v661 = vunpack.c.0.s8 %v660
  %v662 = vlaneseq
  %v663 = vshrl.u32 %v662, 7
  %v664 = vsub.s32 %v661, %v663
  %v665 = vrot.slane %v651, %v664
  %v666 = vcombine.high %v658, %v658
  %v667 = vcombine.high %v665, %v665
  %v669 = vunpack.c.l.s4 1966171168
  %v670 = vunpack.c.0.s8 %v669
  %v671 = vlaneseq
  %v672 = vshrl.u32 %v671, 7
  %v673 = vsub.s32 %v670, %v672
  %v674 = vrot.slane %v658, %v673
  %v676 = vunpack.c.l.s4 1966171168
  %v677 = vunpack.c.0.s8 %v676
  %v678 = vlaneseq
  %v679 = vshrl.u32 %v678, 7
  %v680 = vsub.s32 %v677, %v679
  %v681 = vrot.slane %v665, %v680
  %v683 = vunpack.c.l.s4 1966171168
  %v684 = vunpack.c.0.s8 %v683
  %v685 = vlaneseq
  %v686 = vshrl.u32 %v685, 7
  %v687 = vsub.s32 %v684, %v686
  %v688 = vrot.slane %v666, %v687
  %v690 = vunpack.c.l.s4 1966171168
  %v691 = vunpack.c.0.s8 %v690
  %v692 = vlaneseq
  %v693 = vshrl.u32 %v692, 7
  %v694 = vsub.s32 %v691, %v693
  %v695 = vrot.slane %v667, %v694
  %v696 = vcombine.high %v674, %v674
  %v697 = vcombine.high %v681, %v681
  %v698 = vcombine.high %v688, %v688
  %v699 = vcombine.high %v695, %v695
  %v700 = vcombine.high %v24, %v24
  %v702 = vunpack.c.l.s4 1966171168
  %v703 = vunpack.c.0.s8 %v702
  %v704 = vlaneseq
  %v705 = vshrl.u32 %v704, 7
  %v706 = vsub.s32 %v703, %v705
  %v707 = vrot.slane %v24, %v706
  %v709 = vunpack.c.l.s4 1966171168
  %v710 = vunpack.c.0.s8 %v709
  %v711 = vlaneseq
  %v712 = vshrl.u32 %v711, 7
  %v713 = vsub.s32 %v710, %v712
  %v714 = vrot.slane %v700, %v713
  %v715 = vcombine.high %v707, %v707
  %v716 = vcombine.high %v714, %v714
  %v718 = vunpack.c.l.s4 1966171168
  %v719 = vunpack.c.0.s8 %v718
  %v720 = vlaneseq
  %v721 = vshrl.u32 %v720, 7
  %v722 = vsub.s32 %v719, %v721
  %v723 = vrot.slane %v707, %v722
  %v725 = vunpack.c.l.s4 1966171168
  %v726 = vunpack.c.0.s8 %v725
  %v727 = vlaneseq
  %v728 = vshrl.u32 %v727, 7
  %v729 = vsub.s32 %v726, %v728
  %v730 = vrot.slane %v714, %v729
  %v732 = vunpack.c.l.s4 1966171168
  %v733 = vunpack.c.0.s8 %v732
  %v734 = vlaneseq
  %v735 = vshrl.u32 %v734, 7
  %v736 = vsub.s32 %v733, %v735
  %v737 = vrot.slane %v715, %v736
  %v739 = vunpack.c.l.s4 1966171168
  %v740 = vunpack.c.0.s8 %v739
  %v741 = vlaneseq
  %v742 = vshrl.u32 %v741, 7
  %v743 = vsub.s32 %v740, %v742
  %v744 = vrot.slane %v716, %v743
  %v745 = vcombine.high %v723, %v723
  %v746 = vcombine.high %v730, %v730
  %v747 = vcombine.high %v737, %v737
  %v748 = vcombine.high %v744, %v744
  %v1293 = vunpack.c.l.b16 %v25
  %v1294 = vunpack.c.h.b16 %v25
  %v1295 = vunpack.c.l.b16 %v26
  %v1296 = vunpack.c.h.b16 %v26
  %v1297 = vunpack.c.l.b16 %v27
  %v1298 = vunpack.c.h.b16 %v27
  %v1299 = vunpack.c.l.b16 %v28
  %v1300 = vunpack.c.h.b16 %v28
  %v1301 = vunpack.c.l.b16 %v29
  %v1302 = vunpack.c.h.b16 %v29
  %v1303 = vunpack.c.l.b16 %v30
  %v1304 = vunpack.c.h.b16 %v30
  %v1305 = vunpack.c.l.b16 %v31
  %v1306 = vunpack.c.h.b16 %v31
  %v1307 = vunpack.c.l.b16 %v32
  %v1308 = vunpack.c.h.b16 %v32
  %v1309 = vunpack.c.l.b16 %v33
  %v1310 = vunpack.c.h.b16 %v33
  %v1311 = vunpack.c.l.b16 %v34
  %v1312 = vunpack.c.h.b16 %v34
  %v1313 = vunpack.c.l.b16 %v35
  %v1314 = vunpack.c.h.b16 %v35
  %v1315 = vunpack.c.l.b16 %v36
  %v1316 = vunpack.c.h.b16 %v36
  %v1317 = vunpack.c.l.b16 %v37
  %v1318 = vunpack.c.h.b16 %v37
  %v1319 = vunpack.c.l.b16 %v38
  %v1320 = vunpack.c.h.b16 %v38
  %v1321 = vunpack.c.l.b16 %v39
  %v1322 = vunpack.c.h.b16 %v39
  %v1323 = vunpack.c.l.b16 %v40
  %v1324 = vunpack.c.h.b16 %v40
  %v1325 = vunpack.c.l.b16 %v41
  %v1326 = vunpack.c.h.b16 %v41
  %v1327 = vunpack.c.l.b16 %v42
  %v1328 = vunpack.c.h.b16 %v42
  %v1329 = vunpack.c.l.b16 %v43
  %v1330 = vunpack.c.h.b16 %v43
  %v1331 = vunpack.c.l.b16 %v44
  %v1332 = vunpack.c.h.b16 %v44
  %v1333 = vunpack.c.l.b16 %v45
  %v1334 = vunpack.c.h.b16 %v45
  %v1335 = vunpack.c.l.b16 %v46
  %v1336 = vunpack.c.h.b16 %v46
  %v1337 = vunpack.c.l.b16 %v47
  %v1338 = vunpack.c.h.b16 %v47
  %v1339 = vunpack.c.l.b16 %v48
  %v1340 = vunpack.c.h.b16 %v48
  %v1341 = vunpack.c.l.b16 %v49
  %v1342 = vunpack.c.h.b16 %v49
  %v1343 = vunpack.c.l.b16 %v50
  %v1344 = vunpack.c.h.b16 %v50
  %v1345 = vunpack.c.l.b16 %v51
  %v1346 = vunpack.c.h.b16 %v51
  %v1347 = vunpack.c.l.b16 %v52
  %v1348 = vunpack.c.h.b16 %v52
  %v1349 = vunpack.c.l.b16 %v53
  %v1350 = vunpack.c.h.b16 %v53
  %v1351 = vunpack.c.l.b16 %v54
  %v1352 = vunpack.c.h.b16 %v54
  %v1353 = vunpack.c.l.b16 %v55
  %v1354 = vunpack.c.h.b16 %v55
  %v1355 = vunpack.c.l.b16 %v56
  %v1356 = vunpack.c.h.b16 %v56
  %v1357 = vunpack.c.l.b16 %v57
  %v1358 = vunpack.c.h.b16 %v57
  %v1359 = vunpack.c.l.b16 %v58
  %v1360 = vunpack.c.h.b16 %v58
  %v1361 = vunpack.c.l.b16 %v59
  %v1362 = vunpack.c.h.b16 %v59
  %v1363 = vunpack.c.l.b16 %v60
  %v1364 = vunpack.c.h.b16 %v60
  %v1365 = vunpack.c.l.b16 %v61
  %v1366 = vunpack.c.h.b16 %v61
  %v1367 = vunpack.c.l.b16 %v62
  %v1368 = vunpack.c.h.b16 %v62
  %v1369 = vunpack.c.l.b16 %v63
  %v1370 = vunpack.c.h.b16 %v63
  %v1371 = vunpack.c.l.b16 %v64
  %v1372 = vunpack.c.h.b16 %v64
  %v1373 = vunpack.c.l.b16 %v65
  %v1374 = vunpack.c.h.b16 %v65
  %v1375 = vunpack.c.l.b16 %v66
  %v1376 = vunpack.c.h.b16 %v66
  %v1377 = vunpack.c.l.b16 %v67
  %v1378 = vunpack.c.h.b16 %v67
  %v1379 = vunpack.c.l.b16 %v68
  %v1380 = vunpack.c.h.b16 %v68
  %v1381 = vunpack.c.l.b16 %v69
  %v1382 = vunpack.c.h.b16 %v69
  %v1383 = vunpack.c.l.b16 %v70
  %v1384 = vunpack.c.h.b16 %v70
  %v1385 = vunpack.c.l.b16 %v71
  %v1386 = vunpack.c.h.b16 %v71
  %v1387 = vunpack.c.l.b16 %v72
  %v1388 = vunpack.c.h.b16 %v72
  %v1389 = vunpack.c.l.b16 %v73
  %v1390 = vunpack.c.h.b16 %v73
  %v1391 = vunpack.c.l.b16 %v74
  %v1392 = vunpack.c.h.b16 %v74
  %v1393 = vunpack.c.l.b16 %v75
  %v1394 = vunpack.c.h.b16 %v75
  %v1395 = vunpack.c.l.b16 %v76
  %v1396 = vunpack.c.h.b16 %v76
  %v1397 = vunpack.c.l.b16 %v77
  %v1398 = vunpack.c.h.b16 %v77
  %v1399 = vunpack.c.l.b16 %v78
  %v1400 = vunpack.c.h.b16 %v78
  %v1401 = vunpack.c.l.b16 %v79
  %v1402 = vunpack.c.h.b16 %v79
  %v1403 = vunpack.c.l.b16 %v80
  %v1404 = vunpack.c.h.b16 %v80
  %v1405 = vunpack.c.l.b16 %v81
  %v1406 = vunpack.c.h.b16 %v81
  %v1407 = vunpack.c.l.b16 %v82
  %v1408 = vunpack.c.h.b16 %v82
  %v1409 = vunpack.c.l.b16 %v83
  %v1410 = vunpack.c.h.b16 %v83
  %v1411 = vunpack.c.l.b16 %v84
  %v1412 = vunpack.c.h.b16 %v84
  %v1413 = vunpack.c.l.b16 %v85
  %v1414 = vunpack.c.h.b16 %v85
  %v1415 = vunpack.c.l.b16 %v86
  %v1416 = vunpack.c.h.b16 %v86
  %v1417 = vunpack.c.l.b16 %v87
  %v1418 = vunpack.c.h.b16 %v87
  %v1419 = vunpack.c.l.b16 %v88
  %v1420 = vunpack.c.h.b16 %v88
  %v1421 = vunpack.c.l.b16 %v89
  %v1422 = vunpack.c.h.b16 %v89
  %v1423 = vunpack.c.l.b16 %v90
  %v1424 = vunpack.c.h.b16 %v90
  %v1425 = vunpack.c.l.b16 %v91
  %v1426 = vunpack.c.h.b16 %v91
  %v1427 = vunpack.c.l.b16 %v92
  %v1428 = vunpack.c.h.b16 %v92
  %v1429 = vunpack.c.l.b16 %v93
  %v1430 = vunpack.c.h.b16 %v93
  %v1431 = vunpack.c.l.b16 %v94
  %v1432 = vunpack.c.h.b16 %v94
  %v1433 = vunpack.c.l.b16 %v95
  %v1434 = vunpack.c.h.b16 %v95
  %v1435 = vunpack.c.l.b16 %v96
  %v1436 = vunpack.c.h.b16 %v96
  %v1437 = vunpack.c.l.b16 %v97
  %v1438 = vunpack.c.h.b16 %v97
  %v1439 = vunpack.c.l.b16 %v98
  %v1440 = vunpack.c.h.b16 %v98
  %v1441 = vunpack.c.l.b16 %v99
  %v1442 = vunpack.c.h.b16 %v99
  %v1443 = vunpack.c.l.b16 %v100
  %v1444 = vunpack.c.h.b16 %v100
  %v1445 = vunpack.c.l.b16 %v101
  %v1446 = vunpack.c.h.b16 %v101
  %v1447 = vunpack.c.l.b16 %v102
  %v1448 = vunpack.c.h.b16 %v102
  %v1449 = vunpack.c.l.b16 %v103
  %v1450 = vunpack.c.h.b16 %v103
  %v1451 = vunpack.c.l.b16 %v104
  %v1452 = vunpack.c.h.b16 %v104
  %v1453 = vunpack.c.l.b16 %v105
  %v1454 = vunpack.c.h.b16 %v105
  %v1455 = vunpack.c.l.b16 %v106
  %v1456 = vunpack.c.h.b16 %v106
  %v1457 = vunpack.c.l.b16 %v107
  %v1458 = vunpack.c.h.b16 %v107
  %v1459 = vunpack.c.l.b16 %v108
  %v1460 = vunpack.c.h.b16 %v108
  %v1461 = vunpack.c.l.b16 %v109
  %v1462 = vunpack.c.h.b16 %v109
  %v1463 = vunpack.c.l.b16 %v110
  %v1464 = vunpack.c.h.b16 %v110
  %v1465 = vunpack.c.l.b16 %v111
  %v1466 = vunpack.c.h.b16 %v111
  %v1467 = vunpack.c.l.b16 %v112
  %v1468 = vunpack.c.h.b16 %v112
  %v1469 = vunpack.c.l.b16 %v113
  %v1470 = vunpack.c.h.b16 %v113
  %v1471 = vunpack.c.l.b16 %v114
  %v1472 = vunpack.c.h.b16 %v114
  %v1473 = vunpack.c.l.b16 %v115
  %v1474 = vunpack.c.h.b16 %v115
  %v1475 = vunpack.c.l.b16 %v116
  %v1476 = vunpack.c.h.b16 %v116
  %v1477 = vunpack.c.l.b16 %v117
  %v1478 = vunpack.c.h.b16 %v117
  %v1479 = vunpack.c.l.b16 %v118
  %v1480 = vunpack.c.h.b16 %v118
  %v1481 = vunpack.c.l.b16 %v119
  %v1482 = vunpack.c.h.b16 %v119
  %v1483 = vunpack.c.l.b16 %v120
  %v1484 = vunpack.c.h.b16 %v120
  %v1485 = vunpack.c.l.b16 %v121
  %v1486 = vunpack.c.h.b16 %v121
  %v1487 = vunpack.c.l.b16 %v122
  %v1488 = vunpack.c.h.b16 %v122
  %v1489 = vunpack.c.l.b16 %v123
  %v1490 = vunpack.c.h.b16 %v123
  %v1491 = vunpack.c.l.b16 %v124
  %v1492 = vunpack.c.h.b16 %v124
  %v1493 = vunpack.c.l.b16 %v125
  %v1494 = vunpack.c.h.b16 %v125
  %v1495 = vunpack.c.l.b16 %v126
  %v1496 = vunpack.c.h.b16 %v126
  %v1497 = vunpack.c.l.b16 %v127
  %v1498 = vunpack.c.h.b16 %v127
  %v1499 = vunpack.c.l.b16 %v128
  %v1500 = vunpack.c.h.b16 %v128
  %v1501 = vunpack.c.l.b16 %v129
  %v1502 = vunpack.c.h.b16 %v129
  %v1503 = vunpack.c.l.b16 %v130
  %v1504 = vunpack.c.h.b16 %v130
  %v1505 = vunpack.c.l.b16 %v131
  %v1506 = vunpack.c.h.b16 %v131
  %v1507 = vunpack.c.l.b16 %v132
  %v1508 = vunpack.c.h.b16 %v132
  %v1509 = vunpack.c.l.b16 %v133
  %v1510 = vunpack.c.h.b16 %v133
  %v1511 = vunpack.c.l.b16 %v134
  %v1512 = vunpack.c.h.b16 %v134
  %v1513 = vunpack.c.l.b16 %v135
  %v1514 = vunpack.c.h.b16 %v135
  %v1515 = vunpack.c.l.b16 %v136
  %v1516 = vunpack.c.h.b16 %v136
  %v1517 = vunpack.c.l.b16 %v137
  %v1518 = vunpack.c.h.b16 %v137
  %v1519 = vunpack.c.l.b16 %v138
  %v1520 = vunpack.c.h.b16 %v138
  %v1521 = vunpack.c.l.b16 %v139
  %v1522 = vunpack.c.h.b16 %v139
  %v1523 = vunpack.c.l.b16 %v140
  %v1524 = vunpack.c.h.b16 %v140
  %v1525 = vunpack.c.l.b16 %v141
  %v1526 = vunpack.c.h.b16 %v141
  %v1527 = vunpack.c.l.b16 %v142
  %v1528 = vunpack.c.h.b16 %v142
  %v1529 = vunpack.c.l.b16 %v143
  %v1530 = vunpack.c.h.b16 %v143
  %v1531 = vunpack.c.l.b16 %v144
  %v1532 = vunpack.c.h.b16 %v144
  %v1533 = vunpack.c.l.b16 %v145
  %v1534 = vunpack.c.h.b16 %v145
  %v1535 = vunpack.c.l.b16 %v146
  %v1536 = vunpack.c.h.b16 %v146
  %v1537 = vunpack.c.l.b16 %v147
  %v1538 = vunpack.c.h.b16 %v147
  %v1539 = vunpack.c.l.b16 %v148
  %v1540 = vunpack.c.h.b16 %v148
  %v1541 = vunpack.c.l.b16 %v149
  %v1542 = vunpack.c.h.b16 %v149
  %v1543 = vunpack.c.l.b16 %v150
  %v1544 = vunpack.c.h.b16 %v150
  %v1545 = vunpack.c.l.b16 %v151
  %v1546 = vunpack.c.h.b16 %v151
  %v1547 = vunpack.c.l.b16 %v152
  %v1548 = vunpack.c.h.b16 %v152
  %v1549 = vunpack.c.l.b16 %v153
  %v1550 = vunpack.c.h.b16 %v153
  %v1551 = vunpack.c.l.b16 %v154
  %v1552 = vunpack.c.h.b16 %v154
  %v1553 = vunpack.c.l.b16 %v155
  %v1554 = vunpack.c.h.b16 %v155
  %v1555 = vunpack.c.l.b16 %v156
  %v1556 = vunpack.c.h.b16 %v156
  %v1557 = vunpack.c.l.b16 %v157
  %v1558 = vunpack.c.h.b16 %v157
  %v1559 = vunpack.c.l.b16 %v158
  %v1560 = vunpack.c.h.b16 %v158
  %v1561 = vunpack.c.l.b16 %v159
  %v1562 = vunpack.c.h.b16 %v159
  %v1563 = vunpack.c.l.b16 %v160
  %v1564 = vunpack.c.h.b16 %v160
  %v1565 = vunpack.c.l.b16 %v161
  %v1566 = vunpack.c.h.b16 %v161
  %v1567 = vunpack.c.l.b16 %v162
  %v1568 = vunpack.c.h.b16 %v162
  %v1569 = vunpack.c.l.b16 %v163
  %v1570 = vunpack.c.h.b16 %v163
  %v1571 = vunpack.c.l.b16 %v164
  %v1572 = vunpack.c.h.b16 %v164
  %v1573 = vunpack.c.l.b16 %v165
  %v1574 = vunpack.c.h.b16 %v165
  %v1575 = vunpack.c.l.b16 %v166
  %v1576 = vunpack.c.h.b16 %v166
  %v1577 = vunpack.c.l.b16 %v167
  %v1578 = vunpack.c.h.b16 %v167
  %v1579 = vunpack.c.l.b16 %v168
  %v1580 = vunpack.c.h.b16 %v168
  %v1581 = vunpack.c.l.b16 %v169
  %v1582 = vunpack.c.h.b16 %v169
  %v1583 = vunpack.c.l.b16 %v170
  %v1584 = vunpack.c.h.b16 %v170
  %v1585 = vunpack.c.l.b16 %v171
  %v1586 = vunpack.c.h.b16 %v171
  %v1587 = vunpack.c.l.b16 %v172
  %v1588 = vunpack.c.h.b16 %v172
  %v1589 = vunpack.c.l.b16 %v173
  %v1590 = vunpack.c.h.b16 %v173
  %v1591 = vunpack.c.l.b16 %v174
  %v1592 = vunpack.c.h.b16 %v174
  %v1593 = vunpack.c.l.b16 %v175
  %v1594 = vunpack.c.h.b16 %v175
  %v1595 = vunpack.c.l.b16 %v176
  %v1596 = vunpack.c.h.b16 %v176
  %v1597 = vunpack.c.l.b16 %v177
  %v1598 = vunpack.c.h.b16 %v177
  %v1599 = vunpack.c.l.b16 %v178
  %v1600 = vunpack.c.h.b16 %v178
  %v1601 = vunpack.c.l.b16 %v179
  %v1602 = vunpack.c.h.b16 %v179
  %v1603 = vunpack.c.l.b16 %v180
  %v1604 = vunpack.c.h.b16 %v180
  %v1605 = vunpack.c.l.b16 %v181
  %v1606 = vunpack.c.h.b16 %v181
  %v1607 = vunpack.c.l.b16 %v182
  %v1608 = vunpack.c.h.b16 %v182
  %v1609 = vunpack.c.l.b16 %v183
  %v1610 = vunpack.c.h.b16 %v183
  %v1611 = vunpack.c.l.b16 %v184
  %v1612 = vunpack.c.h.b16 %v184
  %v1613 = vunpack.c.l.b16 %v185
  %v1614 = vunpack.c.h.b16 %v185
  %v1615 = vunpack.c.l.b16 %v186
  %v1616 = vunpack.c.h.b16 %v186
  %v1617 = vunpack.c.l.b16 %v187
  %v1618 = vunpack.c.h.b16 %v187
  %v1619 = vunpack.c.l.b16 %v188
  %v1620 = vunpack.c.h.b16 %v188
  %v1621 = vunpack.c.l.b16 %v189
  %v1622 = vunpack.c.h.b16 %v189
  %v1623 = vunpack.c.l.b16 %v190
  %v1624 = vunpack.c.h.b16 %v190
  %v1625 = vunpack.c.l.b16 %v191
  %v1626 = vunpack.c.h.b16 %v191
  %v1627 = vunpack.c.l.b16 %v192
  %v1628 = vunpack.c.h.b16 %v192
  %v1629 = vunpack.c.l.b16 %v193
  %v1630 = vunpack.c.h.b16 %v193
  %v1631 = vunpack.c.l.b16 %v194
  %v1632 = vunpack.c.h.b16 %v194
  %v1633 = vunpack.c.l.b16 %v195
  %v1634 = vunpack.c.h.b16 %v195
  %v1635 = vunpack.c.l.b16 %v196
  %v1636 = vunpack.c.h.b16 %v196
  %v1637 = vunpack.c.l.b16 %v197
  %v1638 = vunpack.c.h.b16 %v197
  %v1639 = vunpack.c.l.b16 %v198
  %v1640 = vunpack.c.h.b16 %v198
  %v1641 = vunpack.c.l.b16 %v199
  %v1642 = vunpack.c.h.b16 %v199
  %v1643 = vunpack.c.l.b16 %v200
  %v1644 = vunpack.c.h.b16 %v200
  %v1645 = vunpack.c.l.b16 %v201
  %v1646 = vunpack.c.h.b16 %v201
  %v1647 = vunpack.c.l.b16 %v202
  %v1648 = vunpack.c.h.b16 %v202
  %v1649 = vunpack.c.l.b16 %v203
  %v1650 = vunpack.c.h.b16 %v203
  %v1651 = vunpack.c.l.b16 %v204
  %v1652 = vunpack.c.h.b16 %v204
  %v1653 = vunpack.c.l.b16 %v205
  %v1654 = vunpack.c.h.b16 %v205
  %v1655 = vunpack.c.l.b16 %v206
  %v1656 = vunpack.c.h.b16 %v206
  %v1657 = vunpack.c.l.b16 %v207
  %v1658 = vunpack.c.h.b16 %v207
  %v1659 = vunpack.c.l.b16 %v208
  %v1660 = vunpack.c.h.b16 %v208
  %v1661 = vunpack.c.l.b16 %v209
  %v1662 = vunpack.c.h.b16 %v209
  %v1663 = vunpack.c.l.b16 %v210
  %v1664 = vunpack.c.h.b16 %v210
  %v1665 = vunpack.c.l.b16 %v211
  %v1666 = vunpack.c.h.b16 %v211
  %v1667 = vunpack.c.l.b16 %v212
  %v1668 = vunpack.c.h.b16 %v212
  %v1669 = vunpack.c.l.b16 %v213
  %v1670 = vunpack.c.h.b16 %v213
  %v1671 = vunpack.c.l.b16 %v214
  %v1672 = vunpack.c.h.b16 %v214
  %v1673 = vunpack.c.l.b16 %v215
  %v1674 = vunpack.c.h.b16 %v215
  %v1675 = vunpack.c.l.b16 %v216
  %v1676 = vunpack.c.h.b16 %v216
  %v1677 = vunpack.c.l.b16 %v217
  %v1678 = vunpack.c.h.b16 %v217
  %v1679 = vunpack.c.l.b16 %v218
  %v1680 = vunpack.c.h.b16 %v218
  %v1681 = vunpack.c.l.b16 %v219
  %v1682 = vunpack.c.h.b16 %v219
  %v1683 = vunpack.c.l.b16 %v220
  %v1684 = vunpack.c.h.b16 %v220
  %v1685 = vunpack.c.l.b16 %v221
  %v1686 = vunpack.c.h.b16 %v221
  %v1687 = vunpack.c.l.b16 %v222
  %v1688 = vunpack.c.h.b16 %v222
  %v1689 = vunpack.c.l.b16 %v223
  %v1690 = vunpack.c.h.b16 %v223
  %v1691 = vunpack.c.l.b16 %v224
  %v1692 = vunpack.c.h.b16 %v224
  %v1693 = vunpack.c.l.b16 %v225
  %v1694 = vunpack.c.h.b16 %v225
  %v1695 = vunpack.c.l.b16 %v226
  %v1696 = vunpack.c.h.b16 %v226
  %v1697 = vunpack.c.l.b16 %v227
  %v1698 = vunpack.c.h.b16 %v227
  %v1699 = vunpack.c.l.b16 %v228
  %v1700 = vunpack.c.h.b16 %v228
  %v1701 = vunpack.c.l.b16 %v229
  %v1702 = vunpack.c.h.b16 %v229
  %v1703 = vunpack.c.l.b16 %v230
  %v1704 = vunpack.c.h.b16 %v230
  %v1705 = vunpack.c.l.b16 %v231
  %v1706 = vunpack.c.h.b16 %v231
  %v1707 = vunpack.c.l.b16 %v232
  %v1708 = vunpack.c.h.b16 %v232
  %v1709 = vunpack.c.l.b16 %v233
  %v1710 = vunpack.c.h.b16 %v233
  %v1711 = vunpack.c.l.b16 %v234
  %v1712 = vunpack.c.h.b16 %v234
  %v1713 = vunpack.c.l.b16 %v235
  %v1714 = vunpack.c.h.b16 %v235
  %v1715 = vunpack.c.l.b16 %v236
  %v1716 = vunpack.c.h.b16 %v236
  %v1717 = vunpack.c.l.b16 %v237
  %v1718 = vunpack.c.h.b16 %v237
  %v1719 = vunpack.c.l.b16 %v238
  %v1720 = vunpack.c.h.b16 %v238
  %v1721 = vunpack.c.l.b16 %v239
  %v1722 = vunpack.c.h.b16 %v239
  %v1723 = vunpack.c.l.b16 %v240
  %v1724 = vunpack.c.h.b16 %v240
  %v1725 = vunpack.c.l.b16 %v241
  %v1726 = vunpack.c.h.b16 %v241
  %v1727 = vunpack.c.l.b16 %v242
  %v1728 = vunpack.c.h.b16 %v242
  %v1729 = vunpack.c.l.b16 %v243
  %v1730 = vunpack.c.h.b16 %v243
  %v1731 = vunpack.c.l.b16 %v244
  %v1732 = vunpack.c.h.b16 %v244
  %v1733 = vunpack.c.l.b16 %v245
  %v1734 = vunpack.c.h.b16 %v245
  %v1735 = vunpack.c.l.b16 %v246
  %v1736 = vunpack.c.h.b16 %v246
  %v1737 = vunpack.c.l.b16 %v247
  %v1738 = vunpack.c.h.b16 %v247
  %v1739 = vunpack.c.l.b16 %v248
  %v1740 = vunpack.c.h.b16 %v248
  %v1741 = vunpack.c.l.b16 %v249
  %v1742 = vunpack.c.h.b16 %v249
  %v1743 = vunpack.c.l.b16 %v250
  %v1744 = vunpack.c.h.b16 %v250
  %v1745 = vunpack.c.l.b16 %v251
  %v1746 = vunpack.c.h.b16 %v251
  %v1747 = vunpack.c.l.b16 %v252
  %v1748 = vunpack.c.h.b16 %v252
  %v1749 = vunpack.c.l.b16 %v253
  %v1750 = vunpack.c.h.b16 %v253
  %v1751 = vunpack.c.l.b16 %v254
  %v1752 = vunpack.c.h.b16 %v254
  %v1753 = vunpack.c.l.b16 %v255
  %v1754 = vunpack.c.h.b16 %v255
  %v1755 = vunpack.c.l.b16 %v256
  %v1756 = vunpack.c.h.b16 %v256
  %v1757 = vunpack.c.l.b16 %v257
  %v1758 = vunpack.c.h.b16 %v257
  %v1759 = vunpack.c.l.b16 %v258
  %v1760 = vunpack.c.h.b16 %v258
  %v1761 = vunpack.c.l.b16 %v259
  %v1762 = vunpack.c.h.b16 %v259
  %v1763 = vunpack.c.l.b16 %v260
  %v1764 = vunpack.c.h.b16 %v260
  %v1765 = vunpack.c.l.b16 %v261
  %v1766 = vunpack.c.h.b16 %v261
  %v1767 = vunpack.c.l.b16 %v262
  %v1768 = vunpack.c.h.b16 %v262
  %v1769 = vunpack.c.l.b16 %v263
  %v1770 = vunpack.c.h.b16 %v263
  %v1771 = vunpack.c.l.b16 %v264
  %v1772 = vunpack.c.h.b16 %v264
  %v1773 = vunpack.c.l.b16 %v265
  %v1774 = vunpack.c.h.b16 %v265
  %v1775 = vunpack.c.l.b16 %v266
  %v1776 = vunpack.c.h.b16 %v266
  %v1777 = vunpack.c.l.b16 %v267
  %v1778 = vunpack.c.h.b16 %v267
  %v1779 = vunpack.c.l.b16 %v268
  %v1780 = vunpack.c.h.b16 %v268
  %v1781 = vunpack.c.l.b16 %v269
  %v1782 = vunpack.c.h.b16 %v269
  %v1783 = vunpack.c.l.b16 %v270
  %v1784 = vunpack.c.h.b16 %v270
  %v1785 = vunpack.c.l.b16 %v271
  %v1786 = vunpack.c.h.b16 %v271
  %v1787 = vunpack.c.l.b16 %v272
  %v1788 = vunpack.c.h.b16 %v272
  %v1789 = vunpack.c.l.b16 %v273
  %v1790 = vunpack.c.h.b16 %v273
  %v1791 = vunpack.c.l.b16 %v274
  %v1792 = vunpack.c.h.b16 %v274
  %v1793 = vunpack.c.l.b16 %v275
  %v1794 = vunpack.c.h.b16 %v275
  %v1795 = vunpack.c.l.b16 %v276
  %v1796 = vunpack.c.h.b16 %v276
  %v1797 = vunpack.c.l.b16 %v277
  %v1798 = vunpack.c.h.b16 %v277
  %v1799 = vunpack.c.l.b16 %v278
  %v1800 = vunpack.c.h.b16 %v278
  %v1801 = vunpack.c.l.b16 %v279
  %v1802 = vunpack.c.h.b16 %v279
  %v1803 = vunpack.c.l.b16 %v280
  %v1804 = vunpack.c.h.b16 %v280
  %v1805 = vunpack.c.l.b16 %v281
  %v1806 = vunpack.c.h.b16 %v281
  %v1807 = vunpack.c.l.b16 %v282
  %v1808 = vunpack.c.h.b16 %v282
  %v1809 = vunpack.c.l.b16 %v283
  %v1810 = vunpack.c.h.b16 %v283
  %v1811 = vunpack.c.l.b16 %v284
  %v1812 = vunpack.c.h.b16 %v284
  %v1813 = vunpack.c.l.b16 %v285
  %v1814 = vunpack.c.h.b16 %v285
  %v1815 = vunpack.c.l.b16 %v286
  %v1816 = vunpack.c.h.b16 %v286
  %v1817 = vunpack.c.l.b16 %v287
  %v1818 = vunpack.c.h.b16 %v287
  %v1819 = vunpack.c.l.b16 %v288
  %v1820 = vunpack.c.h.b16 %v288
  %v1821 = vunpack.c.l.b16 %v289
  %v1822 = vunpack.c.h.b16 %v289
  %v1823 = vunpack.c.l.b16 %v290
  %v1824 = vunpack.c.h.b16 %v290
  %v1825 = vunpack.c.l.b16 %v291
  %v1826 = vunpack.c.h.b16 %v291
  %v1827 = vunpack.c.l.b16 %v292
  %v1828 = vunpack.c.h.b16 %v292
  %v1829 = vunpack.c.l.b16 %v293
  %v1830 = vunpack.c.h.b16 %v293
  %v1831 = vunpack.c.l.b16 %v294
  %v1832 = vunpack.c.h.b16 %v294
  %v1833 = vunpack.c.l.b16 %v295
  %v1834 = vunpack.c.h.b16 %v295
  %v1835 = vunpack.c.l.b16 %v296
  %v1836 = vunpack.c.h.b16 %v296
  %v1837 = vunpack.c.l.b16 %v297
  %v1838 = vunpack.c.h.b16 %v297
  %v1839 = vunpack.c.l.b16 %v298
  %v1840 = vunpack.c.h.b16 %v298
  %v1841 = vunpack.c.l.b16 %v299
  %v1842 = vunpack.c.h.b16 %v299
  %v1843 = vunpack.c.l.b16 %v300
  %v1844 = vunpack.c.h.b16 %v300
  %v1845 = vunpack.c.l.b16 %v301
  %v1846 = vunpack.c.h.b16 %v301
  %v1847 = vunpack.c.l.b16 %v302
  %v1848 = vunpack.c.h.b16 %v302
  %v1849 = vunpack.c.l.b16 %v303
  %v1850 = vunpack.c.h.b16 %v303
  %v1851 = vunpack.c.l.b16 %v304
  %v1852 = vunpack.c.h.b16 %v304
  %v1853 = vunpack.c.l.b16 %v305
  %v1854 = vunpack.c.h.b16 %v305
  %v1855 = vunpack.c.l.b16 %v306
  %v1856 = vunpack.c.h.b16 %v306
  %v1857 = vunpack.c.l.b16 %v307
  %v1858 = vunpack.c.h.b16 %v307
  %v1859 = vunpack.c.l.b16 %v308
  %v1860 = vunpack.c.h.b16 %v308
  %v1861 = vunpack.c.l.b16 %v309
  %v1862 = vunpack.c.h.b16 %v309
  %v1863 = vunpack.c.l.b16 %v310
  %v1864 = vunpack.c.h.b16 %v310
  %v1865 = vunpack.c.l.b16 %v311
  %v1866 = vunpack.c.h.b16 %v311
  %v1867 = vunpack.c.l.b16 %v312
  %v1868 = vunpack.c.h.b16 %v312
  %v1869 = vunpack.c.l.b16 %v313
  %v1870 = vunpack.c.h.b16 %v313
  %v1871 = vunpack.c.l.b16 %v314
  %v1872 = vunpack.c.h.b16 %v314
  %v1873 = vunpack.c.l.b16 %v315
  %v1874 = vunpack.c.h.b16 %v315
  %v1875 = vunpack.c.l.b16 %v316
  %v1876 = vunpack.c.h.b16 %v316
  %v1877 = vunpack.c.l.b16 %v317
  %v1878 = vunpack.c.h.b16 %v317
  %v1879 = vunpack.c.l.b16 %v318
  %v1880 = vunpack.c.h.b16 %v318
  %v1881 = vunpack.c.l.b16 %v319
  %v1882 = vunpack.c.h.b16 %v319
  %v1883 = vunpack.c.l.b16 %v320
  %v1884 = vunpack.c.h.b16 %v320
  %v1885 = vunpack.c.l.b16 %v321
  %v1886 = vunpack.c.h.b16 %v321
  %v1887 = vunpack.c.l.b16 %v322
  %v1888 = vunpack.c.h.b16 %v322
  %v1889 = vunpack.c.l.b16 %v323
  %v1890 = vunpack.c.h.b16 %v323
  %v1891 = vunpack.c.l.b16 %v324
  %v1892 = vunpack.c.h.b16 %v324
  %v1893 = vunpack.c.l.b16 %v325
  %v1894 = vunpack.c.h.b16 %v325
  %v1895 = vunpack.c.l.b16 %v326
  %v1896 = vunpack.c.h.b16 %v326
  %v1897 = vunpack.c.l.b16 %v327
  %v1898 = vunpack.c.h.b16 %v327
  %v1899 = vunpack.c.l.b16 %v328
  %v1900 = vunpack.c.h.b16 %v328
  %v1901 = vunpack.c.l.b16 %v329
  %v1902 = vunpack.c.h.b16 %v329
  %v1903 = vunpack.c.l.b16 %v330
  %v1904 = vunpack.c.h.b16 %v330
  %v1905 = vunpack.c.l.b16 %v331
  %v1906 = vunpack.c.h.b16 %v331
  %v1907 = vunpack.c.l.b16 %v332
  %v1908 = vunpack.c.h.b16 %v332
  %v1909 = vunpack.c.l.b16 %v333
  %v1910 = vunpack.c.h.b16 %v333
  %v1911 = vunpack.c.l.b16 %v334
  %v1912 = vunpack.c.h.b16 %v334
  %v1913 = vunpack.c.l.b16 %v335
  %v1914 = vunpack.c.h.b16 %v335
  %v1915 = vunpack.c.l.b16 %v336
  %v1916 = vunpack.c.h.b16 %v336
  %v1917 = vunpack.c.l.b16 %v337
  %v1918 = vunpack.c.h.b16 %v337
  %v1919 = vunpack.c.l.b16 %v338
  %v1920 = vunpack.c.h.b16 %v338
  %v1921 = vunpack.c.l.b16 %v339
  %v1922 = vunpack.c.h.b16 %v339
  %v1923 = vunpack.c.l.b16 %v340
  %v1924 = vunpack.c.h.b16 %v340
  %v1925 = vunpack.c.l.b16 %v341
  %v1926 = vunpack.c.h.b16 %v341
  %v1927 = vunpack.c.l.b16 %v342
  %v1928 = vunpack.c.h.b16 %v342
  %v1929 = vunpack.c.l.b16 %v343
  %v1930 = vunpack.c.h.b16 %v343
  %v1931 = vunpack.c.l.b16 %v344
  %v1932 = vunpack.c.h.b16 %v344
  %v1933 = vunpack.c.l.b16 %v345
  %v1934 = vunpack.c.h.b16 %v345
  %v1935 = vunpack.c.l.b16 %v346
  %v1936 = vunpack.c.h.b16 %v346
  %v1937 = vunpack.c.l.b16 %v347
  %v1938 = vunpack.c.h.b16 %v347
  %v1939 = vunpack.c.l.b16 %v348
  %v1940 = vunpack.c.h.b16 %v348
  %v1941 = vunpack.c.l.b16 %v349
  %v1942 = vunpack.c.h.b16 %v349
  %v1943 = vunpack.c.l.b16 %v350
  %v1944 = vunpack.c.h.b16 %v350
  %v1945 = vunpack.c.l.b16 %v351
  %v1946 = vunpack.c.h.b16 %v351
  %v1947 = vunpack.c.l.b16 %v352
  %v1948 = vunpack.c.h.b16 %v352
  %v1949 = vunpack.c.l.b16 %v353
  %v1950 = vunpack.c.h.b16 %v353
  %v1951 = vunpack.c.l.b16 %v354
  %v1952 = vunpack.c.h.b16 %v354
  %v1953 = vunpack.c.l.b16 %v355
  %v1954 = vunpack.c.h.b16 %v355
  %v1955 = vunpack.c.l.b16 %v356
  %v1956 = vunpack.c.h.b16 %v356
  %v1957 = vunpack.c.l.b16 %v357
  %v1958 = vunpack.c.h.b16 %v357
  %v1959 = vunpack.c.l.b16 %v358
  %v1960 = vunpack.c.h.b16 %v358
  %v1961 = vunpack.c.l.b16 %v359
  %v1962 = vunpack.c.h.b16 %v359
  %v1963 = vunpack.c.l.b16 %v360
  %v1964 = vunpack.c.h.b16 %v360
  %v1965 = vunpack.c.l.b16 %v361
  %v1966 = vunpack.c.h.b16 %v361
  %v1967 = vunpack.c.l.b16 %v362
  %v1968 = vunpack.c.h.b16 %v362
  %v1969 = vunpack.c.l.b16 %v363
  %v1970 = vunpack.c.h.b16 %v363
  %v1971 = vunpack.c.l.b16 %v364
  %v1972 = vunpack.c.h.b16 %v364
  %v1973 = vunpack.c.l.b16 %v365
  %v1974 = vunpack.c.h.b16 %v365
  %v1975 = vunpack.c.l.b16 %v366
  %v1976 = vunpack.c.h.b16 %v366
  %v1977 = vunpack.c.l.b16 %v367
  %v1978 = vunpack.c.h.b16 %v367
  %v1979 = vunpack.c.l.b16 %v368
  %v1980 = vunpack.c.h.b16 %v368
  %v1981 = vunpack.c.l.b16 %v369
  %v1982 = vunpack.c.h.b16 %v369
  %v1983 = vunpack.c.l.b16 %v370
  %v1984 = vunpack.c.h.b16 %v370
  %v1985 = vunpack.c.l.b16 %v371
  %v1986 = vunpack.c.h.b16 %v371
  %v1987 = vunpack.c.l.b16 %v372
  %v1988 = vunpack.c.h.b16 %v372
  %v1989 = vunpack.c.l.b16 %v373
  %v1990 = vunpack.c.h.b16 %v373
  %v1991 = vunpack.c.l.b16 %v374
  %v1992 = vunpack.c.h.b16 %v374
  %v1993 = vunpack.c.l.b16 %v375
  %v1994 = vunpack.c.h.b16 %v375
  %v1995 = vunpack.c.l.b16 %v376
  %v1996 = vunpack.c.h.b16 %v376
  %v1997 = vunpack.c.l.b16 %v377
  %v1998 = vunpack.c.h.b16 %v377
  %v1999 = vunpack.c.l.b16 %v378
  %v2000 = vunpack.c.h.b16 %v378
  %v2001 = vunpack.c.l.b16 %v379
  %v2002 = vunpack.c.h.b16 %v379
  %v2003 = vunpack.c.l.b16 %v380
  %v2004 = vunpack.c.h.b16 %v380
  %v2005 = vunpack.c.l.b16 %v381
  %v2006 = vunpack.c.h.b16 %v381
  %v2007 = vunpack.c.l.b16 %v382
  %v2008 = vunpack.c.h.b16 %v382
  %v2009 = vunpack.c.l.b16 %v383
  %v2010 = vunpack.c.h.b16 %v383
  %v2011 = vunpack.c.l.b16 %v384
  %v2012 = vunpack.c.h.b16 %v384
  %v2013 = vunpack.c.l.b16 %v385
  %v2014 = vunpack.c.h.b16 %v385
  %v2015 = vunpack.c.l.b16 %v386
  %v2016 = vunpack.c.h.b16 %v386
  %v2017 = vunpack.c.l.b16 %v387
  %v2018 = vunpack.c.h.b16 %v387
  %v2019 = vunpack.c.l.b16 %v388
  %v2020 = vunpack.c.h.b16 %v388
  %v2021 = vunpack.c.l.b16 %v389
  %v2022 = vunpack.c.h.b16 %v389
  %v2023 = vunpack.c.l.b16 %v390
  %v2024 = vunpack.c.h.b16 %v390
  %v2025 = vunpack.c.l.b16 %v391
  %v2026 = vunpack.c.h.b16 %v391
  %v2027 = vunpack.c.l.b16 %v392
  %v2028 = vunpack.c.h.b16 %v392
  %v2029 = vunpack.c.l.b16 %v393
  %v2030 = vunpack.c.h.b16 %v393
  %v2031 = vunpack.c.l.b16 %v394
  %v2032 = vunpack.c.h.b16 %v394
  %v2033 = vunpack.c.l.b16 %v395
  %v2034 = vunpack.c.h.b16 %v395
  %v2035 = vunpack.c.l.b16 %v396
  %v2036 = vunpack.c.h.b16 %v396
  %v2037 = vunpack.c.l.b16 %v397
  %v2038 = vunpack.c.h.b16 %v397
  %v2039 = vunpack.c.l.b16 %v398
  %v2040 = vunpack.c.h.b16 %v398
  %v2041 = vunpack.c.l.b16 %v399
  %v2042 = vunpack.c.h.b16 %v399
  %v2043 = vunpack.c.l.b16 %v400
  %v2044 = vunpack.c.h.b16 %v400
  %v2045 = vunpack.c.l.b16 %v401
  %v2046 = vunpack.c.h.b16 %v401
  %v2047 = vunpack.c.l.b16 %v402
  %v2048 = vunpack.c.h.b16 %v402
  %v2049 = vunpack.c.l.b16 %v403
  %v2050 = vunpack.c.h.b16 %v403
  %v2051 = vunpack.c.l.b16 %v404
  %v2052 = vunpack.c.h.b16 %v404
  %v2053 = vunpack.c.l.b16 %v405
  %v2054 = vunpack.c.h.b16 %v405
  %v2055 = vunpack.c.l.b16 %v406
  %v2056 = vunpack.c.h.b16 %v406
  %v2057 = vunpack.c.l.b16 %v407
  %v2058 = vunpack.c.h.b16 %v407
  %v2059 = vunpack.c.l.b16 %v408
  %v2060 = vunpack.c.h.b16 %v408
  %v2061 = vunpack.c.l.b16 %v409
  %v2062 = vunpack.c.h.b16 %v409
  %v2063 = vunpack.c.l.b16 %v410
  %v2064 = vunpack.c.h.b16 %v410
  %v2065 = vunpack.c.l.b16 %v411
  %v2066 = vunpack.c.h.b16 %v411
  %v2067 = vunpack.c.l.b16 %v412
  %v2068 = vunpack.c.h.b16 %v412
  %v2069 = vunpack.c.l.b16 %v413
  %v2070 = vunpack.c.h.b16 %v413
  %v2071 = vunpack.c.l.b16 %v414
  %v2072 = vunpack.c.h.b16 %v414
  %v2073 = vunpack.c.l.b16 %v415
  %v2074 = vunpack.c.h.b16 %v415
  %v2075 = vunpack.c.l.b16 %v416
  %v2076 = vunpack.c.h.b16 %v416
  %v2077 = vunpack.c.l.b16 %v417
  %v2078 = vunpack.c.h.b16 %v417
  %v2079 = vunpack.c.l.b16 %v418
  %v2080 = vunpack.c.h.b16 %v418
  %v2081 = vunpack.c.l.b16 %v419
  %v2082 = vunpack.c.h.b16 %v419
  %v2083 = vunpack.c.l.b16 %v420
  %v2084 = vunpack.c.h.b16 %v420
  %v2085 = vunpack.c.l.b16 %v421
  %v2086 = vunpack.c.h.b16 %v421
  %v2087 = vunpack.c.l.b16 %v422
  %v2088 = vunpack.c.h.b16 %v422
  %v2089 = vunpack.c.l.b16 %v423
  %v2090 = vunpack.c.h.b16 %v423
  %v2091 = vunpack.c.l.b16 %v424
  %v2092 = vunpack.c.h.b16 %v424
  %v2093 = vunpack.c.l.b16 %v425
  %v2094 = vunpack.c.h.b16 %v425
  %v2095 = vunpack.c.l.b16 %v426
  %v2096 = vunpack.c.h.b16 %v426
  %v2097 = vunpack.c.l.b16 %v427
  %v2098 = vunpack.c.h.b16 %v427
  %v2099 = vunpack.c.l.b16 %v428
  %v2100 = vunpack.c.h.b16 %v428
  %v2101 = vunpack.c.l.b16 %v429
  %v2102 = vunpack.c.h.b16 %v429
  %v2103 = vunpack.c.l.b16 %v430
  %v2104 = vunpack.c.h.b16 %v430
  %v2105 = vunpack.c.l.b16 %v431
  %v2106 = vunpack.c.h.b16 %v431
  %v2107 = vunpack.c.l.b16 %v432
  %v2108 = vunpack.c.h.b16 %v432
  %v2109 = vunpack.c.l.b16 %v433
  %v2110 = vunpack.c.h.b16 %v433
  %v2111 = vunpack.c.l.b16 %v434
  %v2112 = vunpack.c.h.b16 %v434
  %v2113 = vunpack.c.l.b16 %v435
  %v2114 = vunpack.c.h.b16 %v435
  %v2115 = vunpack.c.l.b16 %v436
  %v2116 = vunpack.c.h.b16 %v436
  %v2117 = vunpack.c.l.b16 %v437
  %v2118 = vunpack.c.h.b16 %v437
  %v2119 = vunpack.c.l.b16 %v438
  %v2120 = vunpack.c.h.b16 %v438
  %v2121 = vunpack.c.l.b16 %v439
  %v2122 = vunpack.c.h.b16 %v439
  %v2123 = vunpack.c.l.b16 %v440
  %v2124 = vunpack.c.h.b16 %v440
  %v2125 = vunpack.c.l.b16 %v441
  %v2126 = vunpack.c.h.b16 %v441
  %v2127 = vunpack.c.l.b16 %v442
  %v2128 = vunpack.c.h.b16 %v442
  %v2129 = vunpack.c.l.b16 %v443
  %v2130 = vunpack.c.h.b16 %v443
  %v2131 = vunpack.c.l.b16 %v444
  %v2132 = vunpack.c.h.b16 %v444
  %v2133 = vunpack.c.l.b16 %v445
  %v2134 = vunpack.c.h.b16 %v445
  %v2135 = vunpack.c.l.b16 %v446
  %v2136 = vunpack.c.h.b16 %v446
  %v2137 = vunpack.c.l.b16 %v447
  %v2138 = vunpack.c.h.b16 %v447
  %v2139 = vunpack.c.l.b16 %v448
  %v2140 = vunpack.c.h.b16 %v448
  %v2141 = vunpack.c.l.b16 %v449
  %v2142 = vunpack.c.h.b16 %v449
  %v2143 = vunpack.c.l.b16 %v450
  %v2144 = vunpack.c.h.b16 %v450
  %v2145 = vunpack.c.l.b16 %v451
  %v2146 = vunpack.c.h.b16 %v451
  %v2147 = vunpack.c.l.b16 %v452
  %v2148 = vunpack.c.h.b16 %v452
  %v2149 = vunpack.c.l.b16 %v453
  %v2150 = vunpack.c.h.b16 %v453
  %v2151 = vunpack.c.l.b16 %v454
  %v2152 = vunpack.c.h.b16 %v454
  %v2153 = vunpack.c.l.b16 %v455
  %v2154 = vunpack.c.h.b16 %v455
  %v2155 = vunpack.c.l.b16 %v456
  %v2156 = vunpack.c.h.b16 %v456
  %v2157 = vunpack.c.l.b16 %v457
  %v2158 = vunpack.c.h.b16 %v457
  %v2159 = vunpack.c.l.b16 %v458
  %v2160 = vunpack.c.h.b16 %v458
  %v2161 = vunpack.c.l.b16 %v459
  %v2162 = vunpack.c.h.b16 %v459
  %v2163 = vunpack.c.l.b16 %v460
  %v2164 = vunpack.c.h.b16 %v460
  %v2165 = vunpack.c.l.b16 %v461
  %v2166 = vunpack.c.h.b16 %v461
  %v2167 = vunpack.c.l.b16 %v462
  %v2168 = vunpack.c.h.b16 %v462
  %v2169 = vunpack.c.l.b16 %v463
  %v2170 = vunpack.c.h.b16 %v463
  %v2171 = vunpack.c.l.b16 %v464
  %v2172 = vunpack.c.h.b16 %v464
  %v2173 = vunpack.c.l.b16 %v465
  %v2174 = vunpack.c.h.b16 %v465
  %v2175 = vunpack.c.l.b16 %v466
  %v2176 = vunpack.c.h.b16 %v466
  %v2177 = vunpack.c.l.b16 %v467
  %v2178 = vunpack.c.h.b16 %v467
  %v2179 = vunpack.c.l.b16 %v468
  %v2180 = vunpack.c.h.b16 %v468
  %v2181 = vunpack.c.l.b16 %v469
  %v2182 = vunpack.c.h.b16 %v469
  %v2183 = vunpack.c.l.b16 %v470
  %v2184 = vunpack.c.h.b16 %v470
  %v2185 = vunpack.c.l.b16 %v471
  %v2186 = vunpack.c.h.b16 %v471
  %v2187 = vunpack.c.l.b16 %v472
  %v2188 = vunpack.c.h.b16 %v472
  %v2189 = vunpack.c.l.b16 %v473
  %v2190 = vunpack.c.h.b16 %v473
  %v2191 = vunpack.c.l.b16 %v474
  %v2192 = vunpack.c.h.b16 %v474
  %v2193 = vunpack.c.l.b16 %v475
  %v2194 = vunpack.c.h.b16 %v475
  %v2195 = vunpack.c.l.b16 %v476
  %v2196 = vunpack.c.h.b16 %v476
  %v2197 = vunpack.c.l.b16 %v477
  %v2198 = vunpack.c.h.b16 %v477
  %v2199 = vunpack.c.l.b16 %v478
  %v2200 = vunpack.c.h.b16 %v478
  %v2201 = vunpack.c.l.b16 %v479
  %v2202 = vunpack.c.h.b16 %v479
  %v2203 = vunpack.c.l.b16 %v480
  %v2204 = vunpack.c.h.b16 %v480
  %v2205 = vunpack.c.l.b16 %v481
  %v2206 = vunpack.c.h.b16 %v481
  %v2207 = vunpack.c.l.b16 %v482
  %v2208 = vunpack.c.h.b16 %v482
  %v2209 = vunpack.c.l.b16 %v483
  %v2210 = vunpack.c.h.b16 %v483
  %v2211 = vunpack.c.l.b16 %v484
  %v2212 = vunpack.c.h.b16 %v484
  %v2213 = vunpack.c.l.b16 %v485
  %v2214 = vunpack.c.h.b16 %v485
  %v2215 = vunpack.c.l.b16 %v486
  %v2216 = vunpack.c.h.b16 %v486
  %v2217 = vunpack.c.l.b16 %v487
  %v2218 = vunpack.c.h.b16 %v487
  %v2219 = vunpack.c.l.b16 %v488
  %v2220 = vunpack.c.h.b16 %v488
  %v2221 = vunpack.c.l.b16 %v489
  %v2222 = vunpack.c.h.b16 %v489
  %v2223 = vunpack.c.l.b16 %v490
  %v2224 = vunpack.c.h.b16 %v490
  %v2225 = vunpack.c.l.b16 %v491
  %v2226 = vunpack.c.h.b16 %v491
  %v2227 = vunpack.c.l.b16 %v492
  %v2228 = vunpack.c.h.b16 %v492
  %v2229 = vunpack.c.l.b16 %v493
  %v2230 = vunpack.c.h.b16 %v493
  %v2231 = vunpack.c.l.b16 %v494
  %v2232 = vunpack.c.h.b16 %v494
  %v2233 = vunpack.c.l.b16 %v495
  %v2234 = vunpack.c.h.b16 %v495
  %v2235 = vunpack.c.l.b16 %v496
  %v2236 = vunpack.c.h.b16 %v496
  %v2237 = vunpack.c.l.b16 %v497
  %v2238 = vunpack.c.h.b16 %v497
  %v2239 = vunpack.c.l.b16 %v498
  %v2240 = vunpack.c.h.b16 %v498
  %v2241 = vunpack.c.l.b16 %v499
  %v2242 = vunpack.c.h.b16 %v499
  %v2243 = vunpack.c.l.b16 %v500
  %v2244 = vunpack.c.h.b16 %v500
  %v2245 = vunpack.c.l.b16 %v501
  %v2246 = vunpack.c.h.b16 %v501
  %v2247 = vunpack.c.l.b16 %v502
  %v2248 = vunpack.c.h.b16 %v502
  %v2249 = vunpack.c.l.b16 %v503
  %v2250 = vunpack.c.h.b16 %v503
  %v2251 = vunpack.c.l.b16 %v504
  %v2252 = vunpack.c.h.b16 %v504
  %v2253 = vunpack.c.l.b16 %v505
  %v2254 = vunpack.c.h.b16 %v505
  %v2255 = vunpack.c.l.b16 %v506
  %v2256 = vunpack.c.h.b16 %v506
  %v2257 = vunpack.c.l.b16 %v507
  %v2258 = vunpack.c.h.b16 %v507
  %v2259 = vunpack.c.l.b16 %v508
  %v2260 = vunpack.c.h.b16 %v508
  %v2261 = vunpack.c.l.b16 %v509
  %v2262 = vunpack.c.h.b16 %v509
  %v2263 = vunpack.c.l.b16 %v510
  %v2264 = vunpack.c.h.b16 %v510
  %v2265 = vunpack.c.l.b16 %v511
  %v2266 = vunpack.c.h.b16 %v511
  %v2267 = vunpack.c.l.b16 %v512
  %v2268 = vunpack.c.h.b16 %v512
  %v2269 = vunpack.c.l.b16 %v513
  %v2270 = vunpack.c.h.b16 %v513
  %v2271 = vunpack.c.l.b16 %v514
  %v2272 = vunpack.c.h.b16 %v514
  %v2273 = vunpack.c.l.b16 %v515
  %v2274 = vunpack.c.h.b16 %v515
  %v2275 = vunpack.c.l.b16 %v516
  %v2276 = vunpack.c.h.b16 %v516
  %v2277 = vunpack.c.l.b16 %v517
  %v2278 = vunpack.c.h.b16 %v517
  %v2279 = vunpack.c.l.b16 %v518
  %v2280 = vunpack.c.h.b16 %v518
  %v2281 = vunpack.c.l.b16 %v519
  %v2282 = vunpack.c.h.b16 %v519
  %v2283 = vunpack.c.l.b16 %v520
  %v2284 = vunpack.c.h.b16 %v520
  %v2285 = vunpack.c.l.b16 %v521
  %v2286 = vunpack.c.h.b16 %v521
  %v2287 = vunpack.c.l.b16 %v522
  %v2288 = vunpack.c.h.b16 %v522
  %v2289 = vunpack.c.l.b16 %v523
  %v2290 = vunpack.c.h.b16 %v523
  %v2291 = vunpack.c.l.b16 %v524
  %v2292 = vunpack.c.h.b16 %v524
  %v2293 = vunpack.c.l.b16 %v525
  %v2294 = vunpack.c.h.b16 %v525
  %v2295 = vunpack.c.l.b16 %v526
  %v2296 = vunpack.c.h.b16 %v526
  %v2297 = vunpack.c.l.b16 %v527
  %v2298 = vunpack.c.h.b16 %v527
  %v2299 = vunpack.c.l.b16 %v528
  %v2300 = vunpack.c.h.b16 %v528
  %v2301 = vunpack.c.l.b16 %v529
  %v2302 = vunpack.c.h.b16 %v529
  %v2303 = vunpack.c.l.b16 %v530
  %v2304 = vunpack.c.h.b16 %v530
  %v2305 = vunpack.c.l.b16 %v531
  %v2306 = vunpack.c.h.b16 %v531
  %v2307 = vunpack.c.l.b16 %v532
  %v2308 = vunpack.c.h.b16 %v532
  %v2309 = vunpack.c.l.b16 %v533
  %v2310 = vunpack.c.h.b16 %v533
  %v2311 = vunpack.c.l.b16 %v534
  %v2312 = vunpack.c.h.b16 %v534
  %v2313 = vunpack.c.l.b16 %v535
  %v2314 = vunpack.c.h.b16 %v535
  %v2315 = vunpack.c.l.b16 %v536
  %v2316 = vunpack.c.h.b16 %v536
  %v2317 = vpack.c.b16 %v1295, %v1293
  %v2318 = vpack.c.b16 %v1296, %v1294
  %v2319 = vpack.c.b16 %v1299, %v1297
  %v2320 = vpack.c.b16 %v1300, %v1298
  %v2321 = vpack.c.b16 %v1303, %v1301
  %v2322 = vpack.c.b16 %v1304, %v1302
  %v2323 = vpack.c.b16 %v1307, %v1305
  %v2324 = vpack.c.b16 %v1308, %v1306
  %v2325 = vpack.c.b16 %v1311, %v1309
  %v2326 = vpack.c.b16 %v1312, %v1310
  %v2327 = vpack.c.b16 %v1315, %v1313
  %v2328 = vpack.c.b16 %v1316, %v1314
  %v2329 = vpack.c.b16 %v1319, %v1317
  %v2330 = vpack.c.b16 %v1320, %v1318
  %v2331 = vpack.c.b16 %v1323, %v1321
  %v2332 = vpack.c.b16 %v1324, %v1322
  %v2333 = vpack.c.b16 %v1327, %v1325
  %v2334 = vpack.c.b16 %v1328, %v1326
  %v2335 = vpack.c.b16 %v1331, %v1329
  %v2336 = vpack.c.b16 %v1332, %v1330
  %v2337 = vpack.c.b16 %v1335, %v1333
  %v2338 = vpack.c.b16 %v1336, %v1334
  %v2339 = vpack.c.b16 %v1339, %v1337
  %v2340 = vpack.c.b16 %v1340, %v1338
  %v2341 = vpack.c.b16 %v1343, %v1341
  %v2342 = vpack.c.b16 %v1344, %v1342
  %v2343 = vpack.c.b16 %v1347, %v1345
  %v2344 = vpack.c.b16 %v1348, %v1346
  %v2345 = vpack.c.b16 %v1351, %v1349
  %v2346 = vpack.c.b16 %v1352, %v1350
  %v2347 = vpack.c.b16 %v1355, %v1353
  %v2348 = vpack.c.b16 %v1356, %v1354
  %v2349 = vpack.c.b16 %v1359, %v1357
  %v2350 = vpack.c.b16 %v1360, %v1358
  %v2351 = vpack.c.b16 %v1363, %v1361
  %v2352 = vpack.c.b16 %v1364, %v1362
  %v2353 = vpack.c.b16 %v1367, %v1365
  %v2354 = vpack.c.b16 %v1368, %v1366
  %v2355 = vpack.c.b16 %v1371, %v1369
  %v2356 = vpack.c.b16 %v1372, %v1370
  %v2357 = vpack.c.b16 %v1375, %v1373
  %v2358 = vpack.c.b16 %v1376, %v1374
  %v2359 = vpack.c.b16 %v1379, %v1377
  %v2360 = vpack.c.b16 %v1380, %v1378
  %v2361 = vpack.c.b16 %v1383, %v1381
  %v2362 = vpack.c.b16 %v1384, %v1382
  %v2363 = vpack.c.b16 %v1387, %v1385
  %v2364 = vpack.c.b16 %v1388, %v1386
  %v2365 = vpack.c.b16 %v1391, %v1389
  %v2366 = vpack.c.b16 %v1392, %v1390
  %v2367 = vpack.c.b16 %v1395, %v1393
  %v2368 = vpack.c.b16 %v1396, %v1394
  %v2369 = vpack.c.b16 %v1399, %v1397
  %v2370 = vpack.c.b16 %v1400, %v1398
  %v2371 = vpack.c.b16 %v1403, %v1401
  %v2372 = vpack.c.b16 %v1404, %v1402
  %v2373 = vpack.c.b16 %v1407, %v1405
  %v2374 = vpack.c.b16 %v1408, %v1406
  %v2375 = vpack.c.b16 %v1411, %v1409
  %v2376 = vpack.c.b16 %v1412, %v1410
  %v2377 = vpack.c.b16 %v1415, %v1413
  %v2378 = vpack.c.b16 %v1416, %v1414
  %v2379 = vpack.c.b16 %v1419, %v1417
  %v2380 = vpack.c.b16 %v1420, %v1418
  %v2381 = vpack.c.b16 %v1423, %v1421
  %v2382 = vpack.c.b16 %v1424, %v1422
  %v2383 = vpack.c.b16 %v1427, %v1425
  %v2384 = vpack.c.b16 %v1428, %v1426
  %v2385 = vpack.c.b16 %v1431, %v1429
  %v2386 = vpack.c.b16 %v1432, %v1430
  %v2387 = vpack.c.b16 %v1435, %v1433
  %v2388 = vpack.c.b16 %v1436, %v1434
  %v2389 = vpack.c.b16 %v1439, %v1437
  %v2390 = vpack.c.b16 %v1440, %v1438
  %v2391 = vpack.c.b16 %v1443, %v1441
  %v2392 = vpack.c.b16 %v1444, %v1442
  %v2393 = vpack.c.b16 %v1447, %v1445
  %v2394 = vpack.c.b16 %v1448, %v1446
  %v2395 = vpack.c.b16 %v1451, %v1449
  %v2396 = vpack.c.b16 %v1452, %v1450
  %v2397 = vpack.c.b16 %v1455, %v1453
  %v2398 = vpack.c.b16 %v1456, %v1454
  %v2399 = vpack.c.b16 %v1459, %v1457
  %v2400 = vpack.c.b16 %v1460, %v1458
  %v2401 = vpack.c.b16 %v1463, %v1461
  %v2402 = vpack.c.b16 %v1464, %v1462
  %v2403 = vpack.c.b16 %v1467, %v1465
  %v2404 = vpack.c.b16 %v1468, %v1466
  %v2405 = vpack.c.b16 %v1471, %v1469
  %v2406 = vpack.c.b16 %v1472, %v1470
  %v2407 = vpack.c.b16 %v1475, %v1473
  %v2408 = vpack.c.b16 %v1476, %v1474
  %v2409 = vpack.c.b16 %v1479, %v1477
  %v2410 = vpack.c.b16 %v1480, %v1478
  %v2411 = vpack.c.b16 %v1483, %v1481
  %v2412 = vpack.c.b16 %v1484, %v1482
  %v2413 = vpack.c.b16 %v1487, %v1485
  %v2414 = vpack.c.b16 %v1488, %v1486
  %v2415 = vpack.c.b16 %v1491, %v1489
  %v2416 = vpack.c.b16 %v1492, %v1490
  %v2417 = vpack.c.b16 %v1495, %v1493
  %v2418 = vpack.c.b16 %v1496, %v1494
  %v2419 = vpack.c.b16 %v1499, %v1497
  %v2420 = vpack.c.b16 %v1500, %v1498
  %v2421 = vpack.c.b16 %v1503, %v1501
  %v2422 = vpack.c.b16 %v1504, %v1502
  %v2423 = vpack.c.b16 %v1507, %v1505
  %v2424 = vpack.c.b16 %v1508, %v1506
  %v2425 = vpack.c.b16 %v1511, %v1509
  %v2426 = vpack.c.b16 %v1512, %v1510
  %v2427 = vpack.c.b16 %v1515, %v1513
  %v2428 = vpack.c.b16 %v1516, %v1514
  %v2429 = vpack.c.b16 %v1519, %v1517
  %v2430 = vpack.c.b16 %v1520, %v1518
  %v2431 = vpack.c.b16 %v1523, %v1521
  %v2432 = vpack.c.b16 %v1524, %v1522
  %v2433 = vpack.c.b16 %v1527, %v1525
  %v2434 = vpack.c.b16 %v1528, %v1526
  %v2435 = vpack.c.b16 %v1531, %v1529
  %v2436 = vpack.c.b16 %v1532, %v1530
  %v2437 = vpack.c.b16 %v1535, %v1533
  %v2438 = vpack.c.b16 %v1536, %v1534
  %v2439 = vpack.c.b16 %v1539, %v1537
  %v2440 = vpack.c.b16 %v1540, %v1538
  %v2441 = vpack.c.b16 %v1543, %v1541
  %v2442 = vpack.c.b16 %v1544, %v1542
  %v2443 = vpack.c.b16 %v1547, %v1545
  %v2444 = vpack.c.b16 %v1548, %v1546
  %v2445 = vpack.c.b16 %v1551, %v1549
  %v2446 = vpack.c.b16 %v1552, %v1550
  %v2447 = vpack.c.b16 %v1555, %v1553
  %v2448 = vpack.c.b16 %v1556, %v1554
  %v2449 = vpack.c.b16 %v1559, %v1557
  %v2450 = vpack.c.b16 %v1560, %v1558
  %v2451 = vpack.c.b16 %v1563, %v1561
  %v2452 = vpack.c.b16 %v1564, %v1562
  %v2453 = vpack.c.b16 %v1567, %v1565
  %v2454 = vpack.c.b16 %v1568, %v1566
  %v2455 = vpack.c.b16 %v1571, %v1569
  %v2456 = vpack.c.b16 %v1572, %v1570
  %v2457 = vpack.c.b16 %v1575, %v1573
  %v2458 = vpack.c.b16 %v1576, %v1574
  %v2459 = vpack.c.b16 %v1579, %v1577
  %v2460 = vpack.c.b16 %v1580, %v1578
  %v2461 = vpack.c.b16 %v1583, %v1581
  %v2462 = vpack.c.b16 %v1584, %v1582
  %v2463 = vpack.c.b16 %v1587, %v1585
  %v2464 = vpack.c.b16 %v1588, %v1586
  %v2465 = vpack.c.b16 %v1591, %v1589
  %v2466 = vpack.c.b16 %v1592, %v1590
  %v2467 = vpack.c.b16 %v1595, %v1593
  %v2468 = vpack.c.b16 %v1596, %v1594
  %v2469 = vpack.c.b16 %v1599, %v1597
  %v2470 = vpack.c.b16 %v1600, %v1598
  %v2471 = vpack.c.b16 %v1603, %v1601
  %v2472 = vpack.c.b16 %v1604, %v1602
  %v2473 = vpack.c.b16 %v1607, %v1605
  %v2474 = vpack.c.b16 %v1608, %v1606
  %v2475 = vpack.c.b16 %v1611, %v1609
  %v2476 = vpack.c.b16 %v1612, %v1610
  %v2477 = vpack.c.b16 %v1615, %v1613
  %v2478 = vpack.c.b16 %v1616, %v1614
  %v2479 = vpack.c.b16 %v1619, %v1617
  %v2480 = vpack.c.b16 %v1620, %v1618
  %v2481 = vpack.c.b16 %v1623, %v1621
  %v2482 = vpack.c.b16 %v1624, %v1622
  %v2483 = vpack.c.b16 %v1627, %v1625
  %v2484 = vpack.c.b16 %v1628, %v1626
  %v2485 = vpack.c.b16 %v1631, %v1629
  %v2486 = vpack.c.b16 %v1632, %v1630
  %v2487 = vpack.c.b16 %v1635, %v1633
  %v2488 = vpack.c.b16 %v1636, %v1634
  %v2489 = vpack.c.b16 %v1639, %v1637
  %v2490 = vpack.c.b16 %v1640, %v1638
  %v2491 = vpack.c.b16 %v1643, %v1641
  %v2492 = vpack.c.b16 %v1644, %v1642
  %v2493 = vpack.c.b16 %v1647, %v1645
  %v2494 = vpack.c.b16 %v1648, %v1646
  %v2495 = vpack.c.b16 %v1651, %v1649
  %v2496 = vpack.c.b16 %v1652, %v1650
  %v2497 = vpack.c.b16 %v1655, %v1653
  %v2498 = vpack.c.b16 %v1656, %v1654
  %v2499 = vpack.c.b16 %v1659, %v1657
  %v2500 = vpack.c.b16 %v1660, %v1658
  %v2501 = vpack.c.b16 %v1663, %v1661
  %v2502 = vpack.c.b16 %v1664, %v1662
  %v2503 = vpack.c.b16 %v1667, %v1665
  %v2504 = vpack.c.b16 %v1668, %v1666
  %v2505 = vpack.c.b16 %v1671, %v1669
  %v2506 = vpack.c.b16 %v1672, %v1670
  %v2507 = vpack.c.b16 %v1675, %v1673
  %v2508 = vpack.c.b16 %v1676, %v1674
  %v2509 = vpack.c.b16 %v1679, %v1677
  %v2510 = vpack.c.b16 %v1680, %v1678
  %v2511 = vpack.c.b16 %v1683, %v1681
  %v2512 = vpack.c.b16 %v1684, %v1682
  %v2513 = vpack.c.b16 %v1687, %v1685
  %v2514 = vpack.c.b16 %v1688, %v1686
  %v2515 = vpack.c.b16 %v1691, %v1689
  %v2516 = vpack.c.b16 %v1692, %v1690
  %v2517 = vpack.c.b16 %v1695, %v1693
  %v2518 = vpack.c.b16 %v1696, %v1694
  %v2519 = vpack.c.b16 %v1699, %v1697
  %v2520 = vpack.c.b16 %v1700, %v1698
  %v2521 = vpack.c.b16 %v1703, %v1701
  %v2522 = vpack.c.b16 %v1704, %v1702
  %v2523 = vpack.c.b16 %v1707, %v1705
  %v2524 = vpack.c.b16 %v1708, %v1706
  %v2525 = vpack.c.b16 %v1711, %v1709
  %v2526 = vpack.c.b16 %v1712, %v1710
  %v2527 = vpack.c.b16 %v1715, %v1713
  %v2528 = vpack.c.b16 %v1716, %v1714
  %v2529 = vpack.c.b16 %v1719, %v1717
  %v2530 = vpack.c.b16 %v1720, %v1718
  %v2531 = vpack.c.b16 %v1723, %v1721
  %v2532 = vpack.c.b16 %v1724, %v1722
  %v2533 = vpack.c.b16 %v1727, %v1725
  %v2534 = vpack.c.b16 %v1728, %v1726
  %v2535 = vpack.c.b16 %v1731, %v1729
  %v2536 = vpack.c.b16 %v1732, %v1730
  %v2537 = vpack.c.b16 %v1735, %v1733
  %v2538 = vpack.c.b16 %v1736, %v1734
  %v2539 = vpack.c.b16 %v1739, %v1737
  %v2540 = vpack.c.b16 %v1740, %v1738
  %v2541 = vpack.c.b16 %v1743, %v1741
  %v2542 = vpack.c.b16 %v1744, %v1742
  %v2543 = vpack.c.b16 %v1747, %v1745
  %v2544 = vpack.c.b16 %v1748, %v1746
  %v2545 = vpack.c.b16 %v1751, %v1749
  %v2546 = vpack.c.b16 %v1752, %v1750
  %v2547 = vpack.c.b16 %v1755, %v1753
  %v2548 = vpack.c.b16 %v1756, %v1754
  %v2549 = vpack.c.b16 %v1759, %v1757
  %v2550 = vpack.c.b16 %v1760, %v1758
  %v2551 = vpack.c.b16 %v1763, %v1761
  %v2552 = vpack.c.b16 %v1764, %v1762
  %v2553 = vpack.c.b16 %v1767, %v1765
  %v2554 = vpack.c.b16 %v1768, %v1766
  %v2555 = vpack.c.b16 %v1771, %v1769
  %v2556 = vpack.c.b16 %v1772, %v1770
  %v2557 = vpack.c.b16 %v1775, %v1773
  %v2558 = vpack.c.b16 %v1776, %v1774
  %v2559 = vpack.c.b16 %v1779, %v1777
  %v2560 = vpack.c.b16 %v1780, %v1778
  %v2561 = vpack.c.b16 %v1783, %v1781
  %v2562 = vpack.c.b16 %v1784, %v1782
  %v2563 = vpack.c.b16 %v1787, %v1785
  %v2564 = vpack.c.b16 %v1788, %v1786
  %v2565 = vpack.c.b16 %v1791, %v1789
  %v2566 = vpack.c.b16 %v1792, %v1790
  %v2567 = vpack.c.b16 %v1795, %v1793
  %v2568 = vpack.c.b16 %v1796, %v1794
  %v2569 = vpack.c.b16 %v1799, %v1797
  %v2570 = vpack.c.b16 %v1800, %v1798
  %v2571 = vpack.c.b16 %v1803, %v1801
  %v2572 = vpack.c.b16 %v1804, %v1802
  %v2573 = vpack.c.b16 %v1807, %v1805
  %v2574 = vpack.c.b16 %v1808, %v1806
  %v2575 = vpack.c.b16 %v1811, %v1809
  %v2576 = vpack.c.b16 %v1812, %v1810
  %v2577 = vpack.c.b16 %v1815, %v1813
  %v2578 = vpack.c.b16 %v1816, %v1814
  %v2579 = vpack.c.b16 %v1819, %v1817
  %v2580 = vpack.c.b16 %v1820, %v1818
  %v2581 = vpack.c.b16 %v1823, %v1821
  %v2582 = vpack.c.b16 %v1824, %v1822
  %v2583 = vpack.c.b16 %v1827, %v1825
  %v2584 = vpack.c.b16 %v1828, %v1826
  %v2585 = vpack.c.b16 %v1831, %v1829
  %v2586 = vpack.c.b16 %v1832, %v1830
  %v2587 = vpack.c.b16 %v1835, %v1833
  %v2588 = vpack.c.b16 %v1836, %v1834
  %v2589 = vpack.c.b16 %v1839, %v1837
  %v2590 = vpack.c.b16 %v1840, %v1838
  %v2591 = vpack.c.b16 %v1843, %v1841
  %v2592 = vpack.c.b16 %v1844, %v1842
  %v2593 = vpack.c.b16 %v1847, %v1845
  %v2594 = vpack.c.b16 %v1848, %v1846
  %v2595 = vpack.c.b16 %v1851, %v1849
  %v2596 = vpack.c.b16 %v1852, %v1850
  %v2597 = vpack.c.b16 %v1855, %v1853
  %v2598 = vpack.c.b16 %v1856, %v1854
  %v2599 = vpack.c.b16 %v1859, %v1857
  %v2600 = vpack.c.b16 %v1860, %v1858
  %v2601 = vpack.c.b16 %v1863, %v1861
  %v2602 = vpack.c.b16 %v1864, %v1862
  %v2603 = vpack.c.b16 %v1867, %v1865
  %v2604 = vpack.c.b16 %v1868, %v1866
  %v2605 = vpack.c.b16 %v1871, %v1869
  %v2606 = vpack.c.b16 %v1872, %v1870
  %v2607 = vpack.c.b16 %v1875, %v1873
  %v2608 = vpack.c.b16 %v1876, %v1874
  %v2609 = vpack.c.b16 %v1879, %v1877
  %v2610 = vpack.c.b16 %v1880, %v1878
  %v2611 = vpack.c.b16 %v1883, %v1881
  %v2612 = vpack.c.b16 %v1884, %v1882
  %v2613 = vpack.c.b16 %v1887, %v1885
  %v2614 = vpack.c.b16 %v1888, %v1886
  %v2615 = vpack.c.b16 %v1891, %v1889
  %v2616 = vpack.c.b16 %v1892, %v1890
  %v2617 = vpack.c.b16 %v1895, %v1893
  %v2618 = vpack.c.b16 %v1896, %v1894
  %v2619 = vpack.c.b16 %v1899, %v1897
  %v2620 = vpack.c.b16 %v1900, %v1898
  %v2621 = vpack.c.b16 %v1903, %v1901
  %v2622 = vpack.c.b16 %v1904, %v1902
  %v2623 = vpack.c.b16 %v1907, %v1905
  %v2624 = vpack.c.b16 %v1908, %v1906
  %v2625 = vpack.c.b16 %v1911, %v1909
  %v2626 = vpack.c.b16 %v1912, %v1910
  %v2627 = vpack.c.b16 %v1915, %v1913
  %v2628 = vpack.c.b16 %v1916, %v1914
  %v2629 = vpack.c.b16 %v1919, %v1917
  %v2630 = vpack.c.b16 %v1920, %v1918
  %v2631 = vpack.c.b16 %v1923, %v1921
  %v2632 = vpack.c.b16 %v1924, %v1922
  %v2633 = vpack.c.b16 %v1927, %v1925
  %v2634 = vpack.c.b16 %v1928, %v1926
  %v2635 = vpack.c.b16 %v1931, %v1929
  %v2636 = vpack.c.b16 %v1932, %v1930
  %v2637 = vpack.c.b16 %v1935, %v1933
  %v2638 = vpack.c.b16 %v1936, %v1934
  %v2639 = vpack.c.b16 %v1939, %v1937
  %v2640 = vpack.c.b16 %v1940, %v1938
  %v2641 = vpack.c.b16 %v1943, %v1941
  %v2642 = vpack.c.b16 %v1944, %v1942
  %v2643 = vpack.c.b16 %v1947, %v1945
  %v2644 = vpack.c.b16 %v1948, %v1946
  %v2645 = vpack.c.b16 %v1951, %v1949
  %v2646 = vpack.c.b16 %v1952, %v1950
  %v2647 = vpack.c.b16 %v1955, %v1953
  %v2648 = vpack.c.b16 %v1956, %v1954
  %v2649 = vpack.c.b16 %v1959, %v1957
  %v2650 = vpack.c.b16 %v1960, %v1958
  %v2651 = vpack.c.b16 %v1963, %v1961
  %v2652 = vpack.c.b16 %v1964, %v1962
  %v2653 = vpack.c.b16 %v1967, %v1965
  %v2654 = vpack.c.b16 %v1968, %v1966
  %v2655 = vpack.c.b16 %v1971, %v1969
  %v2656 = vpack.c.b16 %v1972, %v1970
  %v2657 = vpack.c.b16 %v1975, %v1973
  %v2658 = vpack.c.b16 %v1976, %v1974
  %v2659 = vpack.c.b16 %v1979, %v1977
  %v2660 = vpack.c.b16 %v1980, %v1978
  %v2661 = vpack.c.b16 %v1983, %v1981
  %v2662 = vpack.c.b16 %v1984, %v1982
  %v2663 = vpack.c.b16 %v1987, %v1985
  %v2664 = vpack.c.b16 %v1988, %v1986
  %v2665 = vpack.c.b16 %v1991, %v1989
  %v2666 = vpack.c.b16 %v1992, %v1990
  %v2667 = vpack.c.b16 %v1995, %v1993
  %v2668 = vpack.c.b16 %v1996, %v1994
  %v2669 = vpack.c.b16 %v1999, %v1997
  %v2670 = vpack.c.b16 %v2000, %v1998
  %v2671 = vpack.c.b16 %v2003, %v2001
  %v2672 = vpack.c.b16 %v2004, %v2002
  %v2673 = vpack.c.b16 %v2007, %v2005
  %v2674 = vpack.c.b16 %v2008, %v2006
  %v2675 = vpack.c.b16 %v2011, %v2009
  %v2676 = vpack.c.b16 %v2012, %v2010
  %v2677 = vpack.c.b16 %v2015, %v2013
  %v2678 = vpack.c.b16 %v2016, %v2014
  %v2679 = vpack.c.b16 %v2019, %v2017
  %v2680 = vpack.c.b16 %v2020, %v2018
  %v2681 = vpack.c.b16 %v2023, %v2021
  %v2682 = vpack.c.b16 %v2024, %v2022
  %v2683 = vpack.c.b16 %v2027, %v2025
  %v2684 = vpack.c.b16 %v2028, %v2026
  %v2685 = vpack.c.b16 %v2031, %v2029
  %v2686 = vpack.c.b16 %v2032, %v2030
  %v2687 = vpack.c.b16 %v2035, %v2033
  %v2688 = vpack.c.b16 %v2036, %v2034
  %v2689 = vpack.c.b16 %v2039, %v2037
  %v2690 = vpack.c.b16 %v2040, %v2038
  %v2691 = vpack.c.b16 %v2043, %v2041
  %v2692 = vpack.c.b16 %v2044, %v2042
  %v2693 = vpack.c.b16 %v2047, %v2045
  %v2694 = vpack.c.b16 %v2048, %v2046
  %v2695 = vpack.c.b16 %v2051, %v2049
  %v2696 = vpack.c.b16 %v2052, %v2050
  %v2697 = vpack.c.b16 %v2055, %v2053
  %v2698 = vpack.c.b16 %v2056, %v2054
  %v2699 = vpack.c.b16 %v2059, %v2057
  %v2700 = vpack.c.b16 %v2060, %v2058
  %v2701 = vpack.c.b16 %v2063, %v2061
  %v2702 = vpack.c.b16 %v2064, %v2062
  %v2703 = vpack.c.b16 %v2067, %v2065
  %v2704 = vpack.c.b16 %v2068, %v2066
  %v2705 = vpack.c.b16 %v2071, %v2069
  %v2706 = vpack.c.b16 %v2072, %v2070
  %v2707 = vpack.c.b16 %v2075, %v2073
  %v2708 = vpack.c.b16 %v2076, %v2074
  %v2709 = vpack.c.b16 %v2079, %v2077
  %v2710 = vpack.c.b16 %v2080, %v2078
  %v2711 = vpack.c.b16 %v2083, %v2081
  %v2712 = vpack.c.b16 %v2084, %v2082
  %v2713 = vpack.c.b16 %v2087, %v2085
  %v2714 = vpack.c.b16 %v2088, %v2086
  %v2715 = vpack.c.b16 %v2091, %v2089
  %v2716 = vpack.c.b16 %v2092, %v2090
  %v2717 = vpack.c.b16 %v2095, %v2093
  %v2718 = vpack.c.b16 %v2096, %v2094
  %v2719 = vpack.c.b16 %v2099, %v2097
  %v2720 = vpack.c.b16 %v2100, %v2098
  %v2721 = vpack.c.b16 %v2103, %v2101
  %v2722 = vpack.c.b16 %v2104, %v2102
  %v2723 = vpack.c.b16 %v2107, %v2105
  %v2724 = vpack.c.b16 %v2108, %v2106
  %v2725 = vpack.c.b16 %v2111, %v2109
  %v2726 = vpack.c.b16 %v2112, %v2110
  %v2727 = vpack.c.b16 %v2115, %v2113
  %v2728 = vpack.c.b16 %v2116, %v2114
  %v2729 = vpack.c.b16 %v2119, %v2117
  %v2730 = vpack.c.b16 %v2120, %v2118
  %v2731 = vpack.c.b16 %v2123, %v2121
  %v2732 = vpack.c.b16 %v2124, %v2122
  %v2733 = vpack.c.b16 %v2127, %v2125
  %v2734 = vpack.c.b16 %v2128, %v2126
  %v2735 = vpack.c.b16 %v2131, %v2129
  %v2736 = vpack.c.b16 %v2132, %v2130
  %v2737 = vpack.c.b16 %v2135, %v2133
  %v2738 = vpack.c.b16 %v2136, %v2134
  %v2739 = vpack.c.b16 %v2139, %v2137
  %v2740 = vpack.c.b16 %v2140, %v2138
  %v2741 = vpack.c.b16 %v2143, %v2141
  %v2742 = vpack.c.b16 %v2144, %v2142
  %v2743 = vpack.c.b16 %v2147, %v2145
  %v2744 = vpack.c.b16 %v2148, %v2146
  %v2745 = vpack.c.b16 %v2151, %v2149
  %v2746 = vpack.c.b16 %v2152, %v2150
  %v2747 = vpack.c.b16 %v2155, %v2153
  %v2748 = vpack.c.b16 %v2156, %v2154
  %v2749 = vpack.c.b16 %v2159, %v2157
  %v2750 = vpack.c.b16 %v2160, %v2158
  %v2751 = vpack.c.b16 %v2163, %v2161
  %v2752 = vpack.c.b16 %v2164, %v2162
  %v2753 = vpack.c.b16 %v2167, %v2165
  %v2754 = vpack.c.b16 %v2168, %v2166
  %v2755 = vpack.c.b16 %v2171, %v2169
  %v2756 = vpack.c.b16 %v2172, %v2170
  %v2757 = vpack.c.b16 %v2175, %v2173
  %v2758 = vpack.c.b16 %v2176, %v2174
  %v2759 = vpack.c.b16 %v2179, %v2177
  %v2760 = vpack.c.b16 %v2180, %v2178
  %v2761 = vpack.c.b16 %v2183, %v2181
  %v2762 = vpack.c.b16 %v2184, %v2182
  %v2763 = vpack.c.b16 %v2187, %v2185
  %v2764 = vpack.c.b16 %v2188, %v2186
  %v2765 = vpack.c.b16 %v2191, %v2189
  %v2766 = vpack.c.b16 %v2192, %v2190
  %v2767 = vpack.c.b16 %v2195, %v2193
  %v2768 = vpack.c.b16 %v2196, %v2194
  %v2769 = vpack.c.b16 %v2199, %v2197
  %v2770 = vpack.c.b16 %v2200, %v2198
  %v2771 = vpack.c.b16 %v2203, %v2201
  %v2772 = vpack.c.b16 %v2204, %v2202
  %v2773 = vpack.c.b16 %v2207, %v2205
  %v2774 = vpack.c.b16 %v2208, %v2206
  %v2775 = vpack.c.b16 %v2211, %v2209
  %v2776 = vpack.c.b16 %v2212, %v2210
  %v2777 = vpack.c.b16 %v2215, %v2213
  %v2778 = vpack.c.b16 %v2216, %v2214
  %v2779 = vpack.c.b16 %v2219, %v2217
  %v2780 = vpack.c.b16 %v2220, %v2218
  %v2781 = vpack.c.b16 %v2223, %v2221
  %v2782 = vpack.c.b16 %v2224, %v2222
  %v2783 = vpack.c.b16 %v2227, %v2225
  %v2784 = vpack.c.b16 %v2228, %v2226
  %v2785 = vpack.c.b16 %v2231, %v2229
  %v2786 = vpack.c.b16 %v2232, %v2230
  %v2787 = vpack.c.b16 %v2235, %v2233
  %v2788 = vpack.c.b16 %v2236, %v2234
  %v2789 = vpack.c.b16 %v2239, %v2237
  %v2790 = vpack.c.b16 %v2240, %v2238
  %v2791 = vpack.c.b16 %v2243, %v2241
  %v2792 = vpack.c.b16 %v2244, %v2242
  %v2793 = vpack.c.b16 %v2247, %v2245
  %v2794 = vpack.c.b16 %v2248, %v2246
  %v2795 = vpack.c.b16 %v2251, %v2249
  %v2796 = vpack.c.b16 %v2252, %v2250
  %v2797 = vpack.c.b16 %v2255, %v2253
  %v2798 = vpack.c.b16 %v2256, %v2254
  %v2799 = vpack.c.b16 %v2259, %v2257
  %v2800 = vpack.c.b16 %v2260, %v2258
  %v2801 = vpack.c.b16 %v2263, %v2261
  %v2802 = vpack.c.b16 %v2264, %v2262
  %v2803 = vpack.c.b16 %v2267, %v2265
  %v2804 = vpack.c.b16 %v2268, %v2266
  %v2805 = vpack.c.b16 %v2271, %v2269
  %v2806 = vpack.c.b16 %v2272, %v2270
  %v2807 = vpack.c.b16 %v2275, %v2273
  %v2808 = vpack.c.b16 %v2276, %v2274
  %v2809 = vpack.c.b16 %v2279, %v2277
  %v2810 = vpack.c.b16 %v2280, %v2278
  %v2811 = vpack.c.b16 %v2283, %v2281
  %v2812 = vpack.c.b16 %v2284, %v2282
  %v2813 = vpack.c.b16 %v2287, %v2285
  %v2814 = vpack.c.b16 %v2288, %v2286
  %v2815 = vpack.c.b16 %v2291, %v2289
  %v2816 = vpack.c.b16 %v2292, %v2290
  %v2817 = vpack.c.b16 %v2295, %v2293
  %v2818 = vpack.c.b16 %v2296, %v2294
  %v2819 = vpack.c.b16 %v2299, %v2297
  %v2820 = vpack.c.b16 %v2300, %v2298
  %v2821 = vpack.c.b16 %v2303, %v2301
  %v2822 = vpack.c.b16 %v2304, %v2302
  %v2823 = vpack.c.b16 %v2307, %v2305
  %v2824 = vpack.c.b16 %v2308, %v2306
  %v2825 = vpack.c.b16 %v2311, %v2309
  %v2826 = vpack.c.b16 %v2312, %v2310
  %v2827 = vpack.c.b16 %v2315, %v2313
  %v2828 = vpack.c.b16 %v2316, %v2314
  %3341 = vmatprep.subr.bf16.mxu0 %v2318
  %3342 = vmatpush1.bf16.msra.mxu0 %v2317
  %3343 = vmatprep.subr.bf16.mxu0 %v2320
  %3344 = vmatpush1.bf16.msra.mxu0 %v2319
  %3345 = vmatprep.subr.bf16.mxu0 %v2322
  %3346 = vmatpush1.bf16.msra.mxu0 %v2321
  %3347 = vmatprep.subr.bf16.mxu0 %v2324
  %3348 = vmatpush1.bf16.msra.mxu0 %v2323
  %3349 = vmatprep.subr.bf16.mxu0 %v2326
  %3350 = vmatpush1.bf16.msra.mxu0 %v2325
  %3351 = vmatprep.subr.bf16.mxu0 %v2328
  %3352 = vmatpush1.bf16.msra.mxu0 %v2327
  %3353 = vmatprep.subr.bf16.mxu0 %v2330
  %3354 = vmatpush1.bf16.msra.mxu0 %v2329
  %3355 = vmatprep.subr.bf16.mxu0 %v2332
  %3356 = vmatpush1.bf16.msra.mxu0 %v2331
  %3357 = vmatprep.subr.bf16.mxu0 %v2334
  %3358 = vmatpush1.bf16.msra.mxu0 %v2333
  %3359 = vmatprep.subr.bf16.mxu0 %v2336
  %3360 = vmatpush1.bf16.msra.mxu0 %v2335
  %3361 = vmatprep.subr.bf16.mxu0 %v2338
  %3362 = vmatpush1.bf16.msra.mxu0 %v2337
  %3363 = vmatprep.subr.bf16.mxu0 %v2340
  %3364 = vmatpush1.bf16.msra.mxu0 %v2339
  %3365 = vmatprep.subr.bf16.mxu0 %v2342
  %3366 = vmatpush1.bf16.msra.mxu0 %v2341
  %3367 = vmatprep.subr.bf16.mxu0 %v2344
  %3368 = vmatpush1.bf16.msra.mxu0 %v2343
  %3369 = vmatprep.subr.bf16.mxu0 %v2346
  %3370 = vmatpush1.bf16.msra.mxu0 %v2345
  %3371 = vmatprep.subr.bf16.mxu0 %v2348
  %3372 = vmatpush1.bf16.msra.mxu0 %v2347
  %3373 = vmatprep.mubr.bf16.mxu0 %v590
  %3374 = vmatmul.mubr.bf16.gmra.mrb[0].mxu0 %v576
  %v3375 = vpop.f32.mrb[0].mxu0
  %v3376 = vadd.f32 %v542, %v3375
  %v3377 = vpop.f32.mrb[0].mxu0
  %v3378 = vadd.f32 %v546, %v3377
  %v3379 = vpop.f32.mrb[0].mxu0
  %v3380 = vpop.f32.mrb[0].mxu0
  %3381 = vdwg.mxu0
  %3382 = vmatprep.subr.bf16.mxu0 %v2350
  %3383 = vmatpush1.bf16.msra.mxu0 %v2349
  %3384 = vmatprep.subr.bf16.mxu0 %v2352
  %3385 = vmatpush1.bf16.msra.mxu0 %v2351
  %3386 = vmatprep.subr.bf16.mxu0 %v2354
  %3387 = vmatpush1.bf16.msra.mxu0 %v2353
  %3388 = vmatprep.subr.bf16.mxu0 %v2356
  %3389 = vmatpush1.bf16.msra.mxu0 %v2355
  %3390 = vmatprep.subr.bf16.mxu0 %v2358
  %3391 = vmatpush1.bf16.msra.mxu0 %v2357
  %3392 = vmatprep.subr.bf16.mxu0 %v2360
  %3393 = vmatpush1.bf16.msra.mxu0 %v2359
  %3394 = vmatprep.subr.bf16.mxu0 %v2362
  %3395 = vmatpush1.bf16.msra.mxu0 %v2361
  %3396 = vmatprep.subr.bf16.mxu0 %v2364
  %3397 = vmatpush1.bf16.msra.mxu0 %v2363
  %3398 = vmatprep.subr.bf16.mxu0 %v2366
  %3399 = vmatpush1.bf16.msra.mxu0 %v2365
  %3400 = vmatprep.subr.bf16.mxu0 %v2368
  %3401 = vmatpush1.bf16.msra.mxu0 %v2367
  %3402 = vmatprep.subr.bf16.mxu0 %v2370
  %3403 = vmatpush1.bf16.msra.mxu0 %v2369
  %3404 = vmatprep.subr.bf16.mxu0 %v2372
  %3405 = vmatpush1.bf16.msra.mxu0 %v2371
  %3406 = vmatprep.subr.bf16.mxu0 %v2374
  %3407 = vmatpush1.bf16.msra.mxu0 %v2373
  %3408 = vmatprep.subr.bf16.mxu0 %v2376
  %3409 = vmatpush1.bf16.msra.mxu0 %v2375
  %3410 = vmatprep.subr.bf16.mxu0 %v2378
  %3411 = vmatpush1.bf16.msra.mxu0 %v2377
  %3412 = vmatprep.subr.bf16.mxu0 %v2380
  %3413 = vmatpush1.bf16.msra.mxu0 %v2379
  %3414 = vmatprep.mubr.bf16.mxu0 %v600
  %3415 = vmatmul.mubr.bf16.gmra.mrb[0].mxu0 %v598
  %v3416 = vpop.f32.mrb[0].mxu0
  %v3417 = vadd.f32 %v3376, %v3416
  %v3418 = vpop.f32.mrb[0].mxu0
  %v3419 = vadd.f32 %v3378, %v3418
  %v3420 = vpop.f32.mrb[0].mxu0
  %v3421 = vpop.f32.mrb[0].mxu0
  %3422 = vdwg.mxu0
  %3423 = vmatprep.subr.bf16.mxu0 %v2382
  %3424 = vmatpush1.bf16.msra.mxu0 %v2381
  %3425 = vmatprep.subr.bf16.mxu0 %v2384
  %3426 = vmatpush1.bf16.msra.mxu0 %v2383
  %3427 = vmatprep.subr.bf16.mxu0 %v2386
  %3428 = vmatpush1.bf16.msra.mxu0 %v2385
  %3429 = vmatprep.subr.bf16.mxu0 %v2388
  %3430 = vmatpush1.bf16.msra.mxu0 %v2387
  %3431 = vmatprep.subr.bf16.mxu0 %v2390
  %3432 = vmatpush1.bf16.msra.mxu0 %v2389
  %3433 = vmatprep.subr.bf16.mxu0 %v2392
  %3434 = vmatpush1.bf16.msra.mxu0 %v2391
  %3435 = vmatprep.subr.bf16.mxu0 %v2394
  %3436 = vmatpush1.bf16.msra.mxu0 %v2393
  %3437 = vmatprep.subr.bf16.mxu0 %v2396
  %3438 = vmatpush1.bf16.msra.mxu0 %v2395
  %3439 = vmatprep.subr.bf16.mxu0 %v2398
  %3440 = vmatpush1.bf16.msra.mxu0 %v2397
  %3441 = vmatprep.subr.bf16.mxu0 %v2400
  %3442 = vmatpush1.bf16.msra.mxu0 %v2399
  %3443 = vmatprep.subr.bf16.mxu0 %v2402
  %3444 = vmatpush1.bf16.msra.mxu0 %v2401
  %3445 = vmatprep.subr.bf16.mxu0 %v2404
  %3446 = vmatpush1.bf16.msra.mxu0 %v2403
  %3447 = vmatprep.subr.bf16.mxu0 %v2406
  %3448 = vmatpush1.bf16.msra.mxu0 %v2405
  %3449 = vmatprep.subr.bf16.mxu0 %v2408
  %3450 = vmatpush1.bf16.msra.mxu0 %v2407
  %3451 = vmatprep.subr.bf16.mxu0 %v2410
  %3452 = vmatpush1.bf16.msra.mxu0 %v2409
  %3453 = vmatprep.subr.bf16.mxu0 %v2412
  %3454 = vmatpush1.bf16.msra.mxu0 %v2411
  %3455 = vmatprep.mubr.bf16.mxu0 %v597
  %3456 = vmatmul.mubr.bf16.gmra.mrb[0].mxu0 %v583
  %v3457 = vpop.f32.mrb[0].mxu0
  %v3458 = vadd.f32 %v3417, %v3457
  %v3459 = vpop.f32.mrb[0].mxu0
  %v3460 = vadd.f32 %v3419, %v3459
  %v3461 = vpop.f32.mrb[0].mxu0
  %v3462 = vpop.f32.mrb[0].mxu0
  %3463 = vdwg.mxu0
  %3464 = vmatprep.subr.bf16.mxu0 %v2414
  %3465 = vmatpush1.bf16.msra.mxu0 %v2413
  %3466 = vmatprep.subr.bf16.mxu0 %v2416
  %3467 = vmatpush1.bf16.msra.mxu0 %v2415
  %3468 = vmatprep.subr.bf16.mxu0 %v2418
  %3469 = vmatpush1.bf16.msra.mxu0 %v2417
  %3470 = vmatprep.subr.bf16.mxu0 %v2420
  %3471 = vmatpush1.bf16.msra.mxu0 %v2419
  %3472 = vmatprep.subr.bf16.mxu0 %v2422
  %3473 = vmatpush1.bf16.msra.mxu0 %v2421
  %3474 = vmatprep.subr.bf16.mxu0 %v2424
  %3475 = vmatpush1.bf16.msra.mxu0 %v2423
  %3476 = vmatprep.subr.bf16.mxu0 %v2426
  %3477 = vmatpush1.bf16.msra.mxu0 %v2425
  %3478 = vmatprep.subr.bf16.mxu0 %v2428
  %3479 = vmatpush1.bf16.msra.mxu0 %v2427
  %3480 = vmatprep.subr.bf16.mxu0 %v2430
  %3481 = vmatpush1.bf16.msra.mxu0 %v2429
  %3482 = vmatprep.subr.bf16.mxu0 %v2432
  %3483 = vmatpush1.bf16.msra.mxu0 %v2431
  %3484 = vmatprep.subr.bf16.mxu0 %v2434
  %3485 = vmatpush1.bf16.msra.mxu0 %v2433
  %3486 = vmatprep.subr.bf16.mxu0 %v2436
  %3487 = vmatpush1.bf16.msra.mxu0 %v2435
  %3488 = vmatprep.subr.bf16.mxu0 %v2438
  %3489 = vmatpush1.bf16.msra.mxu0 %v2437
  %3490 = vmatprep.subr.bf16.mxu0 %v2440
  %3491 = vmatpush1.bf16.msra.mxu0 %v2439
  %3492 = vmatprep.subr.bf16.mxu0 %v2442
  %3493 = vmatpush1.bf16.msra.mxu0 %v2441
  %3494 = vmatprep.subr.bf16.mxu0 %v2444
  %3495 = vmatpush1.bf16.msra.mxu0 %v2443
  %3496 = vmatprep.mubr.bf16.mxu0 %v601
  %3497 = vmatmul.mubr.bf16.gmra.mrb[0].mxu0 %v599
  %v3498 = vpop.f32.mrb[0].mxu0
  %v3499 = vadd.f32 %v3458, %v3498
  %v3500 = vpop.f32.mrb[0].mxu0
  %v3501 = vadd.f32 %v3460, %v3500
  %v3502 = vpop.f32.mrb[0].mxu0
  %v3503 = vpop.f32.mrb[0].mxu0
  %3504 = vdwg.mxu0
  %3505 = vmatprep.subr.bf16.mxu0 %v2446
  %3506 = vmatpush1.bf16.msra.mxu0 %v2445
  %3507 = vmatprep.subr.bf16.mxu0 %v2448
  %3508 = vmatpush1.bf16.msra.mxu0 %v2447
  %3509 = vmatprep.subr.bf16.mxu0 %v2450
  %3510 = vmatpush1.bf16.msra.mxu0 %v2449
  %3511 = vmatprep.subr.bf16.mxu0 %v2452
  %3512 = vmatpush1.bf16.msra.mxu0 %v2451
  %3513 = vmatprep.subr.bf16.mxu0 %v2454
  %3514 = vmatpush1.bf16.msra.mxu0 %v2453
  %3515 = vmatprep.subr.bf16.mxu0 %v2456
  %3516 = vmatpush1.bf16.msra.mxu0 %v2455
  %3517 = vmatprep.subr.bf16.mxu0 %v2458
  %3518 = vmatpush1.bf16.msra.mxu0 %v2457
  %3519 = vmatprep.subr.bf16.mxu0 %v2460
  %3520 = vmatpush1.bf16.msra.mxu0 %v2459
  %3521 = vmatprep.subr.bf16.mxu0 %v2462
  %3522 = vmatpush1.bf16.msra.mxu0 %v2461
  %3523 = vmatprep.subr.bf16.mxu0 %v2464
  %3524 = vmatpush1.bf16.msra.mxu0 %v2463
  %3525 = vmatprep.subr.bf16.mxu0 %v2466
  %3526 = vmatpush1.bf16.msra.mxu0 %v2465
  %3527 = vmatprep.subr.bf16.mxu0 %v2468
  %3528 = vmatpush1.bf16.msra.mxu0 %v2467
  %3529 = vmatprep.subr.bf16.mxu0 %v2470
  %3530 = vmatpush1.bf16.msra.mxu0 %v2469
  %3531 = vmatprep.subr.bf16.mxu0 %v2472
  %3532 = vmatpush1.bf16.msra.mxu0 %v2471
  %3533 = vmatprep.subr.bf16.mxu0 %v2474
  %3534 = vmatpush1.bf16.msra.mxu0 %v2473
  %3535 = vmatprep.subr.bf16.mxu0 %v2476
  %3536 = vmatpush1.bf16.msra.mxu0 %v2475
  %3537 = vmatprep.mubr.bf16.mxu0 %v639
  %3538 = vmatmul.mubr.bf16.gmra.mrb[0].mxu0 %v625
  %v3539 = vpop.f32.mrb[0].mxu0
  %v3540 = vadd.f32 %v3499, %v3539
  %v3541 = vpop.f32.mrb[0].mxu0
  %v3542 = vadd.f32 %v3501, %v3541
  %v3543 = vpop.f32.mrb[0].mxu0
  %v3544 = vpop.f32.mrb[0].mxu0
  %3545 = vdwg.mxu0
  %3546 = vmatprep.subr.bf16.mxu0 %v2478
  %3547 = vmatpush1.bf16.msra.mxu0 %v2477
  %3548 = vmatprep.subr.bf16.mxu0 %v2480
  %3549 = vmatpush1.bf16.msra.mxu0 %v2479
  %3550 = vmatprep.subr.bf16.mxu0 %v2482
  %3551 = vmatpush1.bf16.msra.mxu0 %v2481
  %3552 = vmatprep.subr.bf16.mxu0 %v2484
  %3553 = vmatpush1.bf16.msra.mxu0 %v2483
  %3554 = vmatprep.subr.bf16.mxu0 %v2486
  %3555 = vmatpush1.bf16.msra.mxu0 %v2485
  %3556 = vmatprep.subr.bf16.mxu0 %v2488
  %3557 = vmatpush1.bf16.msra.mxu0 %v2487
  %3558 = vmatprep.subr.bf16.mxu0 %v2490
  %3559 = vmatpush1.bf16.msra.mxu0 %v2489
  %3560 = vmatprep.subr.bf16.mxu0 %v2492
  %3561 = vmatpush1.bf16.msra.mxu0 %v2491
  %3562 = vmatprep.subr.bf16.mxu0 %v2494
  %3563 = vmatpush1.bf16.msra.mxu0 %v2493
  %3564 = vmatprep.subr.bf16.mxu0 %v2496
  %3565 = vmatpush1.bf16.msra.mxu0 %v2495
  %3566 = vmatprep.subr.bf16.mxu0 %v2498
  %3567 = vmatpush1.bf16.msra.mxu0 %v2497
  %3568 = vmatprep.subr.bf16.mxu0 %v2500
  %3569 = vmatpush1.bf16.msra.mxu0 %v2499
  %3570 = vmatprep.subr.bf16.mxu0 %v2502
  %3571 = vmatpush1.bf16.msra.mxu0 %v2501
  %3572 = vmatprep.subr.bf16.mxu0 %v2504
  %3573 = vmatpush1.bf16.msra.mxu0 %v2503
  %3574 = vmatprep.subr.bf16.mxu0 %v2506
  %3575 = vmatpush1.bf16.msra.mxu0 %v2505
  %3576 = vmatprep.subr.bf16.mxu0 %v2508
  %3577 = vmatpush1.bf16.msra.mxu0 %v2507
  %3578 = vmatprep.mubr.bf16.mxu0 %v649
  %3579 = vmatmul.mubr.bf16.gmra.mrb[0].mxu0 %v647
  %v3580 = vpop.f32.mrb[0].mxu0
  %v3581 = vadd.f32 %v3540, %v3580
  %v3582 = vpop.f32.mrb[0].mxu0
  %v3583 = vadd.f32 %v3542, %v3582
  %v3584 = vpop.f32.mrb[0].mxu0
  %v3585 = vpop.f32.mrb[0].mxu0
  %3586 = vdwg.mxu0
  %3587 = vmatprep.subr.bf16.mxu0 %v2510
  %3588 = vmatpush1.bf16.msra.mxu0 %v2509
  %3589 = vmatprep.subr.bf16.mxu0 %v2512
  %3590 = vmatpush1.bf16.msra.mxu0 %v2511
  %3591 = vmatprep.subr.bf16.mxu0 %v2514
  %3592 = vmatpush1.bf16.msra.mxu0 %v2513
  %3593 = vmatprep.subr.bf16.mxu0 %v2516
  %3594 = vmatpush1.bf16.msra.mxu0 %v2515
  %3595 = vmatprep.subr.bf16.mxu0 %v2518
  %3596 = vmatpush1.bf16.msra.mxu0 %v2517
  %3597 = vmatprep.subr.bf16.mxu0 %v2520
  %3598 = vmatpush1.bf16.msra.mxu0 %v2519
  %3599 = vmatprep.subr.bf16.mxu0 %v2522
  %3600 = vmatpush1.bf16.msra.mxu0 %v2521
  %3601 = vmatprep.subr.bf16.mxu0 %v2524
  %3602 = vmatpush1.bf16.msra.mxu0 %v2523
  %3603 = vmatprep.subr.bf16.mxu0 %v2526
  %3604 = vmatpush1.bf16.msra.mxu0 %v2525
  %3605 = vmatprep.subr.bf16.mxu0 %v2528
  %3606 = vmatpush1.bf16.msra.mxu0 %v2527
  %3607 = vmatprep.subr.bf16.mxu0 %v2530
  %3608 = vmatpush1.bf16.msra.mxu0 %v2529
  %3609 = vmatprep.subr.bf16.mxu0 %v2532
  %3610 = vmatpush1.bf16.msra.mxu0 %v2531
  %3611 = vmatprep.subr.bf16.mxu0 %v2534
  %3612 = vmatpush1.bf16.msra.mxu0 %v2533
  %3613 = vmatprep.subr.bf16.mxu0 %v2536
  %3614 = vmatpush1.bf16.msra.mxu0 %v2535
  %3615 = vmatprep.subr.bf16.mxu0 %v2538
  %3616 = vmatpush1.bf16.msra.mxu0 %v2537
  %3617 = vmatprep.subr.bf16.mxu0 %v2540
  %3618 = vmatpush1.bf16.msra.mxu0 %v2539
  %3619 = vmatprep.mubr.bf16.mxu0 %v646
  %3620 = vmatmul.mubr.bf16.gmra.mrb[0].mxu0 %v632
  %v3621 = vpop.f32.mrb[0].mxu0
  %v3622 = vadd.f32 %v3581, %v3621
  %v3623 = vpop.f32.mrb[0].mxu0
  %v3624 = vadd.f32 %v3583, %v3623
  %v3625 = vpop.f32.mrb[0].mxu0
  %v3626 = vpop.f32.mrb[0].mxu0
  %3627 = vdwg.mxu0
  %3628 = vmatprep.subr.bf16.mxu0 %v2542
  %3629 = vmatpush1.bf16.msra.mxu0 %v2541
  %3630 = vmatprep.subr.bf16.mxu0 %v2544
  %3631 = vmatpush1.bf16.msra.mxu0 %v2543
  %3632 = vmatprep.subr.bf16.mxu0 %v2546
  %3633 = vmatpush1.bf16.msra.mxu0 %v2545
  %3634 = vmatprep.subr.bf16.mxu0 %v2548
  %3635 = vmatpush1.bf16.msra.mxu0 %v2547
  %3636 = vmatprep.subr.bf16.mxu0 %v2550
  %3637 = vmatpush1.bf16.msra.mxu0 %v2549
  %3638 = vmatprep.subr.bf16.mxu0 %v2552
  %3639 = vmatpush1.bf16.msra.mxu0 %v2551
  %3640 = vmatprep.subr.bf16.mxu0 %v2554
  %3641 = vmatpush1.bf16.msra.mxu0 %v2553
  %3642 = vmatprep.subr.bf16.mxu0 %v2556
  %3643 = vmatpush1.bf16.msra.mxu0 %v2555
  %3644 = vmatprep.subr.bf16.mxu0 %v2558
  %3645 = vmatpush1.bf16.msra.mxu0 %v2557
  %3646 = vmatprep.subr.bf16.mxu0 %v2560
  %3647 = vmatpush1.bf16.msra.mxu0 %v2559
  %3648 = vmatprep.subr.bf16.mxu0 %v2562
  %3649 = vmatpush1.bf16.msra.mxu0 %v2561
  %3650 = vmatprep.subr.bf16.mxu0 %v2564
  %3651 = vmatpush1.bf16.msra.mxu0 %v2563
  %3652 = vmatprep.subr.bf16.mxu0 %v2566
  %3653 = vmatpush1.bf16.msra.mxu0 %v2565
  %3654 = vmatprep.subr.bf16.mxu0 %v2568
  %3655 = vmatpush1.bf16.msra.mxu0 %v2567
  %3656 = vmatprep.subr.bf16.mxu0 %v2570
  %3657 = vmatpush1.bf16.msra.mxu0 %v2569
  %3658 = vmatprep.subr.bf16.mxu0 %v2572
  %3659 = vmatpush1.bf16.msra.mxu0 %v2571
  %3660 = vmatprep.mubr.bf16.mxu0 %v650
  %3661 = vmatmul.mubr.bf16.gmra.mrb[0].mxu0 %v648
  %v3662 = vpop.f32.mrb[0].mxu0
  %v3663 = vadd.f32 %v3622, %v3662
  %v3664 = vpop.f32.mrb[0].mxu0
  %v3665 = vadd.f32 %v3624, %v3664
  %v3666 = vpop.f32.mrb[0].mxu0
  %v3667 = vpop.f32.mrb[0].mxu0
  %3668 = vdwg.mxu0
  %3669 = vmatprep.subr.bf16.mxu0 %v2574
  %3670 = vmatpush1.bf16.msra.mxu0 %v2573
  %3671 = vmatprep.subr.bf16.mxu0 %v2576
  %3672 = vmatpush1.bf16.msra.mxu0 %v2575
  %3673 = vmatprep.subr.bf16.mxu0 %v2578
  %3674 = vmatpush1.bf16.msra.mxu0 %v2577
  %3675 = vmatprep.subr.bf16.mxu0 %v2580
  %3676 = vmatpush1.bf16.msra.mxu0 %v2579
  %3677 = vmatprep.subr.bf16.mxu0 %v2582
  %3678 = vmatpush1.bf16.msra.mxu0 %v2581
  %3679 = vmatprep.subr.bf16.mxu0 %v2584
  %3680 = vmatpush1.bf16.msra.mxu0 %v2583
  %3681 = vmatprep.subr.bf16.mxu0 %v2586
  %3682 = vmatpush1.bf16.msra.mxu0 %v2585
  %3683 = vmatprep.subr.bf16.mxu0 %v2588
  %3684 = vmatpush1.bf16.msra.mxu0 %v2587
  %3685 = vmatprep.subr.bf16.mxu0 %v2590
  %3686 = vmatpush1.bf16.msra.mxu0 %v2589
  %3687 = vmatprep.subr.bf16.mxu0 %v2592
  %3688 = vmatpush1.bf16.msra.mxu0 %v2591
  %3689 = vmatprep.subr.bf16.mxu0 %v2594
  %3690 = vmatpush1.bf16.msra.mxu0 %v2593
  %3691 = vmatprep.subr.bf16.mxu0 %v2596
  %3692 = vmatpush1.bf16.msra.mxu0 %v2595
  %3693 = vmatprep.subr.bf16.mxu0 %v2598
  %3694 = vmatpush1.bf16.msra.mxu0 %v2597
  %3695 = vmatprep.subr.bf16.mxu0 %v2600
  %3696 = vmatpush1.bf16.msra.mxu0 %v2599
  %3697 = vmatprep.subr.bf16.mxu0 %v2602
  %3698 = vmatpush1.bf16.msra.mxu0 %v2601
  %3699 = vmatprep.subr.bf16.mxu0 %v2604
  %3700 = vmatpush1.bf16.msra.mxu0 %v2603
  %3701 = vmatprep.mubr.bf16.mxu0 %v688
  %3702 = vmatmul.mubr.bf16.gmra.mrb[0].mxu0 %v674
  %v3703 = vpop.f32.mrb[0].mxu0
  %v3704 = vadd.f32 %v3663, %v3703
  %v3705 = vpop.f32.mrb[0].mxu0
  %v3706 = vadd.f32 %v3665, %v3705
  %v3707 = vpop.f32.mrb[0].mxu0
  %v3708 = vpop.f32.mrb[0].mxu0
  %3709 = vdwg.mxu0
  %3710 = vmatprep.subr.bf16.mxu0 %v2606
  %3711 = vmatpush1.bf16.msra.mxu0 %v2605
  %3712 = vmatprep.subr.bf16.mxu0 %v2608
  %3713 = vmatpush1.bf16.msra.mxu0 %v2607
  %3714 = vmatprep.subr.bf16.mxu0 %v2610
  %3715 = vmatpush1.bf16.msra.mxu0 %v2609
  %3716 = vmatprep.subr.bf16.mxu0 %v2612
  %3717 = vmatpush1.bf16.msra.mxu0 %v2611
  %3718 = vmatprep.subr.bf16.mxu0 %v2614
  %3719 = vmatpush1.bf16.msra.mxu0 %v2613
  %3720 = vmatprep.subr.bf16.mxu0 %v2616
  %3721 = vmatpush1.bf16.msra.mxu0 %v2615
  %3722 = vmatprep.subr.bf16.mxu0 %v2618
  %3723 = vmatpush1.bf16.msra.mxu0 %v2617
  %3724 = vmatprep.subr.bf16.mxu0 %v2620
  %3725 = vmatpush1.bf16.msra.mxu0 %v2619
  %3726 = vmatprep.subr.bf16.mxu0 %v2622
  %3727 = vmatpush1.bf16.msra.mxu0 %v2621
  %3728 = vmatprep.subr.bf16.mxu0 %v2624
  %3729 = vmatpush1.bf16.msra.mxu0 %v2623
  %3730 = vmatprep.subr.bf16.mxu0 %v2626
  %3731 = vmatpush1.bf16.msra.mxu0 %v2625
  %3732 = vmatprep.subr.bf16.mxu0 %v2628
  %3733 = vmatpush1.bf16.msra.mxu0 %v2627
  %3734 = vmatprep.subr.bf16.mxu0 %v2630
  %3735 = vmatpush1.bf16.msra.mxu0 %v2629
  %3736 = vmatprep.subr.bf16.mxu0 %v2632
  %3737 = vmatpush1.bf16.msra.mxu0 %v2631
  %3738 = vmatprep.subr.bf16.mxu0 %v2634
  %3739 = vmatpush1.bf16.msra.mxu0 %v2633
  %3740 = vmatprep.subr.bf16.mxu0 %v2636
  %3741 = vmatpush1.bf16.msra.mxu0 %v2635
  %3742 = vmatprep.mubr.bf16.mxu0 %v698
  %3743 = vmatmul.mubr.bf16.gmra.mrb[0].mxu0 %v696
  %v3744 = vpop.f32.mrb[0].mxu0
  %v3745 = vadd.f32 %v3704, %v3744
  %v3746 = vpop.f32.mrb[0].mxu0
  %v3747 = vadd.f32 %v3706, %v3746
  %v3748 = vpop.f32.mrb[0].mxu0
  %v3749 = vpop.f32.mrb[0].mxu0
  %3750 = vdwg.mxu0
  %3751 = vmatprep.subr.bf16.mxu0 %v2638
  %3752 = vmatpush1.bf16.msra.mxu0 %v2637
  %3753 = vmatprep.subr.bf16.mxu0 %v2640
  %3754 = vmatpush1.bf16.msra.mxu0 %v2639
  %3755 = vmatprep.subr.bf16.mxu0 %v2642
  %3756 = vmatpush1.bf16.msra.mxu0 %v2641
  %3757 = vmatprep.subr.bf16.mxu0 %v2644
  %3758 = vmatpush1.bf16.msra.mxu0 %v2643
  %3759 = vmatprep.subr.bf16.mxu0 %v2646
  %3760 = vmatpush1.bf16.msra.mxu0 %v2645
  %3761 = vmatprep.subr.bf16.mxu0 %v2648
  %3762 = vmatpush1.bf16.msra.mxu0 %v2647
  %3763 = vmatprep.subr.bf16.mxu0 %v2650
  %3764 = vmatpush1.bf16.msra.mxu0 %v2649
  %3765 = vmatprep.subr.bf16.mxu0 %v2652
  %3766 = vmatpush1.bf16.msra.mxu0 %v2651
  %3767 = vmatprep.subr.bf16.mxu0 %v2654
  %3768 = vmatpush1.bf16.msra.mxu0 %v2653
  %3769 = vmatprep.subr.bf16.mxu0 %v2656
  %3770 = vmatpush1.bf16.msra.mxu0 %v2655
  %3771 = vmatprep.subr.bf16.mxu0 %v2658
  %3772 = vmatpush1.bf16.msra.mxu0 %v2657
  %3773 = vmatprep.subr.bf16.mxu0 %v2660
  %3774 = vmatpush1.bf16.msra.mxu0 %v2659
  %3775 = vmatprep.subr.bf16.mxu0 %v2662
  %3776 = vmatpush1.bf16.msra.mxu0 %v2661
  %3777 = vmatprep.subr.bf16.mxu0 %v2664
  %3778 = vmatpush1.bf16.msra.mxu0 %v2663
  %3779 = vmatprep.subr.bf16.mxu0 %v2666
  %3780 = vmatpush1.bf16.msra.mxu0 %v2665
  %3781 = vmatprep.subr.bf16.mxu0 %v2668
  %3782 = vmatpush1.bf16.msra.mxu0 %v2667
  %3783 = vmatprep.mubr.bf16.mxu0 %v695
  %3784 = vmatmul.mubr.bf16.gmra.mrb[0].mxu0 %v681
  %v3785 = vpop.f32.mrb[0].mxu0
  %v3786 = vadd.f32 %v3745, %v3785
  %v3787 = vpop.f32.mrb[0].mxu0
  %v3788 = vadd.f32 %v3747, %v3787
  %v3789 = vpop.f32.mrb[0].mxu0
  %v3790 = vpop.f32.mrb[0].mxu0
  %3791 = vdwg.mxu0
  %3792 = vmatprep.subr.bf16.mxu0 %v2670
  %3793 = vmatpush1.bf16.msra.mxu0 %v2669
  %3794 = vmatprep.subr.bf16.mxu0 %v2672
  %3795 = vmatpush1.bf16.msra.mxu0 %v2671
  %3796 = vmatprep.subr.bf16.mxu0 %v2674
  %3797 = vmatpush1.bf16.msra.mxu0 %v2673
  %3798 = vmatprep.subr.bf16.mxu0 %v2676
  %3799 = vmatpush1.bf16.msra.mxu0 %v2675
  %3800 = vmatprep.subr.bf16.mxu0 %v2678
  %3801 = vmatpush1.bf16.msra.mxu0 %v2677
  %3802 = vmatprep.subr.bf16.mxu0 %v2680
  %3803 = vmatpush1.bf16.msra.mxu0 %v2679
  %3804 = vmatprep.subr.bf16.mxu0 %v2682
  %3805 = vmatpush1.bf16.msra.mxu0 %v2681
  %3806 = vmatprep.subr.bf16.mxu0 %v2684
  %3807 = vmatpush1.bf16.msra.mxu0 %v2683
  %3808 = vmatprep.subr.bf16.mxu0 %v2686
  %3809 = vmatpush1.bf16.msra.mxu0 %v2685
  %3810 = vmatprep.subr.bf16.mxu0 %v2688
  %3811 = vmatpush1.bf16.msra.mxu0 %v2687
  %3812 = vmatprep.subr.bf16.mxu0 %v2690
  %3813 = vmatpush1.bf16.msra.mxu0 %v2689
  %3814 = vmatprep.subr.bf16.mxu0 %v2692
  %3815 = vmatpush1.bf16.msra.mxu0 %v2691
  %3816 = vmatprep.subr.bf16.mxu0 %v2694
  %3817 = vmatpush1.bf16.msra.mxu0 %v2693
  %3818 = vmatprep.subr.bf16.mxu0 %v2696
  %3819 = vmatpush1.bf16.msra.mxu0 %v2695
  %3820 = vmatprep.subr.bf16.mxu0 %v2698
  %3821 = vmatpush1.bf16.msra.mxu0 %v2697
  %3822 = vmatprep.subr.bf16.mxu0 %v2700
  %3823 = vmatpush1.bf16.msra.mxu0 %v2699
  %3824 = vmatprep.mubr.bf16.mxu0 %v699
  %3825 = vmatmul.mubr.bf16.gmra.mrb[0].mxu0 %v697
  %v3826 = vpop.f32.mrb[0].mxu0
  %v3827 = vadd.f32 %v3786, %v3826
  %v3828 = vpop.f32.mrb[0].mxu0
  %v3829 = vadd.f32 %v3788, %v3828
  %v3830 = vpop.f32.mrb[0].mxu0
  %v3831 = vpop.f32.mrb[0].mxu0
  %3832 = vdwg.mxu0
  %3833 = vmatprep.subr.bf16.mxu0 %v2702
  %3834 = vmatpush1.bf16.msra.mxu0 %v2701
  %3835 = vmatprep.subr.bf16.mxu0 %v2704
  %3836 = vmatpush1.bf16.msra.mxu0 %v2703
  %3837 = vmatprep.subr.bf16.mxu0 %v2706
  %3838 = vmatpush1.bf16.msra.mxu0 %v2705
  %3839 = vmatprep.subr.bf16.mxu0 %v2708
  %3840 = vmatpush1.bf16.msra.mxu0 %v2707
  %3841 = vmatprep.subr.bf16.mxu0 %v2710
  %3842 = vmatpush1.bf16.msra.mxu0 %v2709
  %3843 = vmatprep.subr.bf16.mxu0 %v2712
  %3844 = vmatpush1.bf16.msra.mxu0 %v2711
  %3845 = vmatprep.subr.bf16.mxu0 %v2714
  %3846 = vmatpush1.bf16.msra.mxu0 %v2713
  %3847 = vmatprep.subr.bf16.mxu0 %v2716
  %3848 = vmatpush1.bf16.msra.mxu0 %v2715
  %3849 = vmatprep.subr.bf16.mxu0 %v2718
  %3850 = vmatpush1.bf16.msra.mxu0 %v2717
  %3851 = vmatprep.subr.bf16.mxu0 %v2720
  %3852 = vmatpush1.bf16.msra.mxu0 %v2719
  %3853 = vmatprep.subr.bf16.mxu0 %v2722
  %3854 = vmatpush1.bf16.msra.mxu0 %v2721
  %3855 = vmatprep.subr.bf16.mxu0 %v2724
  %3856 = vmatpush1.bf16.msra.mxu0 %v2723
  %3857 = vmatprep.subr.bf16.mxu0 %v2726
  %3858 = vmatpush1.bf16.msra.mxu0 %v2725
  %3859 = vmatprep.subr.bf16.mxu0 %v2728
  %3860 = vmatpush1.bf16.msra.mxu0 %v2727
  %3861 = vmatprep.subr.bf16.mxu0 %v2730
  %3862 = vmatpush1.bf16.msra.mxu0 %v2729
  %3863 = vmatprep.subr.bf16.mxu0 %v2732
  %3864 = vmatpush1.bf16.msra.mxu0 %v2731
  %3865 = vmatprep.mubr.bf16.mxu0 %v737
  %3866 = vmatmul.mubr.bf16.gmra.mrb[0].mxu0 %v723
  %v3867 = vpop.f32.mrb[0].mxu0
  %v3868 = vadd.f32 %v3827, %v3867
  %v3869 = vpop.f32.mrb[0].mxu0
  %v3870 = vadd.f32 %v3829, %v3869
  %v3871 = vpop.f32.mrb[0].mxu0
  %v3872 = vpop.f32.mrb[0].mxu0
  %3873 = vdwg.mxu0
  %3874 = vmatprep.subr.bf16.mxu0 %v2734
  %3875 = vmatpush1.bf16.msra.mxu0 %v2733
  %3876 = vmatprep.subr.bf16.mxu0 %v2736
  %3877 = vmatpush1.bf16.msra.mxu0 %v2735
  %3878 = vmatprep.subr.bf16.mxu0 %v2738
  %3879 = vmatpush1.bf16.msra.mxu0 %v2737
  %3880 = vmatprep.subr.bf16.mxu0 %v2740
  %3881 = vmatpush1.bf16.msra.mxu0 %v2739
  %3882 = vmatprep.subr.bf16.mxu0 %v2742
  %3883 = vmatpush1.bf16.msra.mxu0 %v2741
  %3884 = vmatprep.subr.bf16.mxu0 %v2744
  %3885 = vmatpush1.bf16.msra.mxu0 %v2743
  %3886 = vmatprep.subr.bf16.mxu0 %v2746
  %3887 = vmatpush1.bf16.msra.mxu0 %v2745
  %3888 = vmatprep.subr.bf16.mxu0 %v2748
  %3889 = vmatpush1.bf16.msra.mxu0 %v2747
  %3890 = vmatprep.subr.bf16.mxu0 %v2750
  %3891 = vmatpush1.bf16.msra.mxu0 %v2749
  %3892 = vmatprep.subr.bf16.mxu0 %v2752
  %3893 = vmatpush1.bf16.msra.mxu0 %v2751
  %3894 = vmatprep.subr.bf16.mxu0 %v2754
  %3895 = vmatpush1.bf16.msra.mxu0 %v2753
  %3896 = vmatprep.subr.bf16.mxu0 %v2756
  %3897 = vmatpush1.bf16.msra.mxu0 %v2755
  %3898 = vmatprep.subr.bf16.mxu0 %v2758
  %3899 = vmatpush1.bf16.msra.mxu0 %v2757
  %3900 = vmatprep.subr.bf16.mxu0 %v2760
  %3901 = vmatpush1.bf16.msra.mxu0 %v2759
  %3902 = vmatprep.subr.bf16.mxu0 %v2762
  %3903 = vmatpush1.bf16.msra.mxu0 %v2761
  %3904 = vmatprep.subr.bf16.mxu0 %v2764
  %3905 = vmatpush1.bf16.msra.mxu0 %v2763
  %3906 = vmatprep.mubr.bf16.mxu0 %v747
  %3907 = vmatmul.mubr.bf16.gmra.mrb[0].mxu0 %v745
  %v3908 = vpop.f32.mrb[0].mxu0
  %v3909 = vadd.f32 %v3868, %v3908
  %v3910 = vpop.f32.mrb[0].mxu0
  %v3911 = vadd.f32 %v3870, %v3910
  %v3912 = vpop.f32.mrb[0].mxu0
  %v3913 = vpop.f32.mrb[0].mxu0
  %3914 = vdwg.mxu0
  %3915 = vmatprep.subr.bf16.mxu0 %v2766
  %3916 = vmatpush1.bf16.msra.mxu0 %v2765
  %3917 = vmatprep.subr.bf16.mxu0 %v2768
  %3918 = vmatpush1.bf16.msra.mxu0 %v2767
  %3919 = vmatprep.subr.bf16.mxu0 %v2770
  %3920 = vmatpush1.bf16.msra.mxu0 %v2769
  %3921 = vmatprep.subr.bf16.mxu0 %v2772
  %3922 = vmatpush1.bf16.msra.mxu0 %v2771
  %3923 = vmatprep.subr.bf16.mxu0 %v2774
  %3924 = vmatpush1.bf16.msra.mxu0 %v2773
  %3925 = vmatprep.subr.bf16.mxu0 %v2776
  %3926 = vmatpush1.bf16.msra.mxu0 %v2775
  %3927 = vmatprep.subr.bf16.mxu0 %v2778
  %3928 = vmatpush1.bf16.msra.mxu0 %v2777
  %3929 = vmatprep.subr.bf16.mxu0 %v2780
  %3930 = vmatpush1.bf16.msra.mxu0 %v2779
  %3931 = vmatprep.subr.bf16.mxu0 %v2782
  %3932 = vmatpush1.bf16.msra.mxu0 %v2781
  %3933 = vmatprep.subr.bf16.mxu0 %v2784
  %3934 = vmatpush1.bf16.msra.mxu0 %v2783
  %3935 = vmatprep.subr.bf16.mxu0 %v2786
  %3936 = vmatpush1.bf16.msra.mxu0 %v2785
  %3937 = vmatprep.subr.bf16.mxu0 %v2788
  %3938 = vmatpush1.bf16.msra.mxu0 %v2787
  %3939 = vmatprep.subr.bf16.mxu0 %v2790
  %3940 = vmatpush1.bf16.msra.mxu0 %v2789
  %3941 = vmatprep.subr.bf16.mxu0 %v2792
  %3942 = vmatpush1.bf16.msra.mxu0 %v2791
  %3943 = vmatprep.subr.bf16.mxu0 %v2794
  %3944 = vmatpush1.bf16.msra.mxu0 %v2793
  %3945 = vmatprep.subr.bf16.mxu0 %v2796
  %3946 = vmatpush1.bf16.msra.mxu0 %v2795
  %3947 = vmatprep.mubr.bf16.mxu0 %v744
  %3948 = vmatmul.mubr.bf16.gmra.mrb[0].mxu0 %v730
  %v3949 = vpop.f32.mrb[0].mxu0
  %v3950 = vadd.f32 %v3909, %v3949
  %v3951 = vpop.f32.mrb[0].mxu0
  %v3952 = vadd.f32 %v3911, %v3951
  %v3953 = vpop.f32.mrb[0].mxu0
  %v3954 = vpop.f32.mrb[0].mxu0
  %3955 = vdwg.mxu0
  %3956 = vmatprep.subr.bf16.mxu0 %v2798
  %3957 = vmatpush1.bf16.msra.mxu0 %v2797
  %3958 = vmatprep.subr.bf16.mxu0 %v2800
  %3959 = vmatpush1.bf16.msra.mxu0 %v2799
  %3960 = vmatprep.subr.bf16.mxu0 %v2802
  %3961 = vmatpush1.bf16.msra.mxu0 %v2801
  %3962 = vmatprep.subr.bf16.mxu0 %v2804
  %3963 = vmatpush1.bf16.msra.mxu0 %v2803
  %3964 = vmatprep.subr.bf16.mxu0 %v2806
  %3965 = vmatpush1.bf16.msra.mxu0 %v2805
  %3966 = vmatprep.subr.bf16.mxu0 %v2808
  %3967 = vmatpush1.bf16.msra.mxu0 %v2807
  %3968 = vmatprep.subr.bf16.mxu0 %v2810
  %3969 = vmatpush1.bf16.msra.mxu0 %v2809
  %3970 = vmatprep.subr.bf16.mxu0 %v2812
  %3971 = vmatpush1.bf16.msra.mxu0 %v2811
  %3972 = vmatprep.subr.bf16.mxu0 %v2814
  %3973 = vmatpush1.bf16.msra.mxu0 %v2813
  %3974 = vmatprep.subr.bf16.mxu0 %v2816
  %3975 = vmatpush1.bf16.msra.mxu0 %v2815
  %3976 = vmatprep.subr.bf16.mxu0 %v2818
  %3977 = vmatpush1.bf16.msra.mxu0 %v2817
  %3978 = vmatprep.subr.bf16.mxu0 %v2820
  %3979 = vmatpush1.bf16.msra.mxu0 %v2819
  %3980 = vmatprep.subr.bf16.mxu0 %v2822
  %3981 = vmatpush1.bf16.msra.mxu0 %v2821
  %3982 = vmatprep.subr.bf16.mxu0 %v2824
  %3983 = vmatpush1.bf16.msra.mxu0 %v2823
  %3984 = vmatprep.subr.bf16.mxu0 %v2826
  %3985 = vmatpush1.bf16.msra.mxu0 %v2825
  %3986 = vmatprep.subr.bf16.mxu0 %v2828
  %3987 = vmatpush1.bf16.msra.mxu0 %v2827
  %3988 = vmatprep.mubr.bf16.mxu0 %v748
  %3989 = vmatmul.mubr.bf16.gmra.mrb[0].mxu0 %v746
  %v3990 = vpop.f32.mrb[0].mxu0
  %v3991 = vadd.f32 %v3950, %v3990
  %v3992 = vpop.f32.mrb[0].mxu0
  %v3993 = vadd.f32 %v3952, %v3992
  %v3994 = vpop.f32.mrb[0].mxu0
  %v3995 = vpop.f32.mrb[0].mxu0
  %3996 = vdwg.mxu0
  %v3997 = vmax.f32 %v3991, 0.0
  %v3998 = vmax.f32 %v3993, 0.0
  %v3999 = vpack.c.bf16 %v3997, %v3997
  %v4000 = vpack.c.bf16 %v3998, %v3998
  %v4001 = vld [vmem:[%s3] sm:$0xf]
  %v4002 = vld [vmem:[%s3 + $0x4] sm:$0xf]
  %v4003 = vld [vmem:[%s3 + $0x8] sm:$0xf]
  %v4004 = vld [vmem:[%s3 + $0xc] sm:$0xf]
  %v4005 = vld [vmem:[%s3 + $0x10] sm:$0xf]
  %v4006 = vld [vmem:[%s3 + $0x14] sm:$0xf]
  %v4007 = vld [vmem:[%s3 + $0x18] sm:$0xf]
  %v4008 = vld [vmem:[%s3 + $0x1c] sm:$0xf]
  %v4009 = vld [vmem:[%s3 + $0x20] sm:$0xf]
  %v4010 = vld [vmem:[%s3 + $0x24] sm:$0xf]
  %v4011 = vld [vmem:[%s3 + $0x28] sm:$0xf]
  %v4012 = vld [vmem:[%s3 + $0x2c] sm:$0xf]
  %v4013 = vld [vmem:[%s3 + $0x30] sm:$0xf]
  %v4014 = vld [vmem:[%s3 + $0x34] sm:$0xf]
  %v4015 = vld [vmem:[%s3 + $0x38] sm:$0xf]
  %v4016 = vld [vmem:[%s3 + $0x3c] sm:$0xf]
  %v4017 = vld [vmem:[%s3 + $0x40] sm:$0xf]
  %v4018 = vld [vmem:[%s3 + $0x44] sm:$0xf]
  %v4019 = vld [vmem:[%s3 + $0x48] sm:$0xf]
  %v4020 = vld [vmem:[%s3 + $0x4c] sm:$0xf]
  %v4021 = vld [vmem:[%s3 + $0x50] sm:$0xf]
  %v4022 = vld [vmem:[%s3 + $0x54] sm:$0xf]
  %v4023 = vld [vmem:[%s3 + $0x58] sm:$0xf]
  %v4024 = vld [vmem:[%s3 + $0x5c] sm:$0xf]
  %v4025 = vld [vmem:[%s3 + $0x60] sm:$0xf]
  %v4026 = vld [vmem:[%s3 + $0x64] sm:$0xf]
  %v4027 = vld [vmem:[%s3 + $0x68] sm:$0xf]
  %v4028 = vld [vmem:[%s3 + $0x6c] sm:$0xf]
  %v4029 = vld [vmem:[%s3 + $0x70] sm:$0xf]
  %v4030 = vld [vmem:[%s3 + $0x74] sm:$0xf]
  %v4031 = vld [vmem:[%s3 + $0x78] sm:$0xf]
  %v4032 = vld [vmem:[%s3 + $0x7c] sm:$0xf]
  %v4033 = vld [vmem:[%s4] sm:$0x1]
  %v4035 = vlaneseq
  %v4036 = vshrl.u32 %v4035, 7
  %v4037 = vsub.s32 0, %v4036
  %v4038 = vrot.slane %v4033, %v4037
  %v4072 = vunpack.c.l.b16 %v4001
  %v4073 = vunpack.c.l.b16 %v4002
  %v4074 = vunpack.c.l.b16 %v4003
  %v4075 = vunpack.c.l.b16 %v4004
  %v4076 = vunpack.c.l.b16 %v4005
  %v4077 = vunpack.c.l.b16 %v4006
  %v4078 = vunpack.c.l.b16 %v4007
  %v4079 = vunpack.c.l.b16 %v4008
  %v4080 = vunpack.c.l.b16 %v4009
  %v4081 = vunpack.c.l.b16 %v4010
  %v4082 = vunpack.c.l.b16 %v4011
  %v4083 = vunpack.c.l.b16 %v4012
  %v4084 = vunpack.c.l.b16 %v4013
  %v4085 = vunpack.c.l.b16 %v4014
  %v4086 = vunpack.c.l.b16 %v4015
  %v4087 = vunpack.c.l.b16 %v4016
  %v4088 = vunpack.c.l.b16 %v4017
  %v4089 = vunpack.c.l.b16 %v4018
  %v4090 = vunpack.c.l.b16 %v4019
  %v4091 = vunpack.c.l.b16 %v4020
  %v4092 = vunpack.c.l.b16 %v4021
  %v4093 = vunpack.c.l.b16 %v4022
  %v4094 = vunpack.c.l.b16 %v4023
  %v4095 = vunpack.c.l.b16 %v4024
  %v4096 = vunpack.c.l.b16 %v4025
  %v4097 = vunpack.c.l.b16 %v4026
  %v4098 = vunpack.c.l.b16 %v4027
  %v4099 = vunpack.c.l.b16 %v4028
  %v4100 = vunpack.c.l.b16 %v4029
  %v4101 = vunpack.c.l.b16 %v4030
  %v4102 = vunpack.c.l.b16 %v4031
  %v4103 = vunpack.c.l.b16 %v4032
  %v4104 = vpack.c.b16 %v4073, %v4072
  %v4105 = vpack.c.b16 %v4075, %v4074
  %v4106 = vpack.c.b16 %v4077, %v4076
  %v4107 = vpack.c.b16 %v4079, %v4078
  %v4108 = vpack.c.b16 %v4081, %v4080
  %v4109 = vpack.c.b16 %v4083, %v4082
  %v4110 = vpack.c.b16 %v4085, %v4084
  %v4111 = vpack.c.b16 %v4087, %v4086
  %v4112 = vpack.c.b16 %v4089, %v4088
  %v4113 = vpack.c.b16 %v4091, %v4090
  %v4114 = vpack.c.b16 %v4093, %v4092
  %v4115 = vpack.c.b16 %v4095, %v4094
  %v4116 = vpack.c.b16 %v4097, %v4096
  %v4117 = vpack.c.b16 %v4099, %v4098
  %v4118 = vpack.c.b16 %v4101, %v4100
  %v4119 = vpack.c.b16 %v4103, %v4102
  %4136 = vmatprep.subr.bf16.mxu0 0
  %4137 = vmatpush1.bf16.msra.mxu0 %v4104
  %4138 = vmatprep.subr.bf16.mxu0 0
  %4139 = vmatpush1.bf16.msra.mxu0 %v4105
  %4140 = vmatprep.subr.bf16.mxu0 0
  %4141 = vmatpush1.bf16.msra.mxu0 %v4106
  %4142 = vmatprep.subr.bf16.mxu0 0
  %4143 = vmatpush1.bf16.msra.mxu0 %v4107
  %4144 = vmatprep.subr.bf16.mxu0 0
  %4145 = vmatpush1.bf16.msra.mxu0 %v4108
  %4146 = vmatprep.subr.bf16.mxu0 0
  %4147 = vmatpush1.bf16.msra.mxu0 %v4109
  %4148 = vmatprep.subr.bf16.mxu0 0
  %4149 = vmatpush1.bf16.msra.mxu0 %v4110
  %4150 = vmatprep.subr.bf16.mxu0 0
  %4151 = vmatpush1.bf16.msra.mxu0 %v4111
  %4152 = vmatprep.subr.bf16.mxu0 0
  %4153 = vmatpush1.bf16.msra.mxu0 %v4112
  %4154 = vmatprep.subr.bf16.mxu0 0
  %4155 = vmatpush1.bf16.msra.mxu0 %v4113
  %4156 = vmatprep.subr.bf16.mxu0 0
  %4157 = vmatpush1.bf16.msra.mxu0 %v4114
  %4158 = vmatprep.subr.bf16.mxu0 0
  %4159 = vmatpush1.bf16.msra.mxu0 %v4115
  %4160 = vmatprep.subr.bf16.mxu0 0
  %4161 = vmatpush1.bf16.msra.mxu0 %v4116
  %4162 = vmatprep.subr.bf16.mxu0 0
  %4163 = vmatpush1.bf16.msra.mxu0 %v4117
  %4164 = vmatprep.subr.bf16.mxu0 0
  %4165 = vmatpush1.bf16.msra.mxu0 %v4118
  %4166 = vmatprep.subr.bf16.mxu0 0
  %4167 = vmatpush1.bf16.msra.mxu0 %v4119
  %4168 = vmatprep.mubr.bf16.mxu0 %v4000
  %4169 = vmatmul.mubr.bf16.gmra.mrb[0].mxu0 %v3999
  %v4170 = vpop.f32.mrb[0].mxu0
  %v4171 = vadd.f32 %v4038, %v4170
  %v4172 = vpop.f32.mrb[0].mxu0
  %v4173 = vpop.f32.mrb[0].mxu0
  %v4174 = vpop.f32.mrb[0].mxu0
  %4175 = vdwg.mxu0
  %4176 = vst [vmem:[%s5] sm:$0x3] %v4171
  // Predicated region
  $region22: #{traditional_model_forward.4} parent=0 // pred_check
    _
  $region23: #{traditional_model_forward.4} parent=0 // pred_check_branch
    %4178 = sbr.rel (0) target = $region25
  $region24: #{traditional_model_forward.4} parent=0 // pred_region
    _
  $region25: #{traditional_model_forward.4} parent=0 // pred_fallthru
    _
  // Predicated region
  $region26: #{traditional_model_forward.4} parent=0 // pred_check
    _
  $region27: #{traditional_model_forward.4} parent=0 // pred_check_branch
    %4180 = sbr.rel (0) target = $region29
  $region28: #{traditional_model_forward.4} parent=0 // pred_region
    _
  $region29: #{traditional_model_forward.4} parent=0 // pred_fallthru
    _

</llo_original>
